<compile_context>
chip_gen: v7x
topology: tpu7x:2x2x1
jax: 0.10.0
libtpu: 0.0.40
codegen_flags: <defaults>
</compile_context>

<pallas_src>
import jax
import jax.numpy as jnp
from jax.experimental import pallas as pl
from jax.experimental.pallas import tpu as pltpu

NUM_ANCHORS = 9                      # len(ANCHOR_SCALES)=3 * len(ANCHOR_RATIOS)=3
NC_SCORE_OUT = NUM_ANCHORS * 2       # 18
NC_BBOX_OUT = NUM_ANCHORS * 4        # 36
MID_CH = 512                         # hard-coded in the torch module
HEAD_PAD = 64                        # 18 (cls) + 36 (bbox) padded to 64 output lanes


def _cdiv(a, b):
    return -(-a // b)


def _round_up(x, m):
    return _cdiv(x, m) * m


def _make_rpn_kernel(TH, W_pad, Cp):
    A = NUM_ANCHORS
    K3 = 3 * Cp
    ROWS = TH * W_pad

    def kernel(xp_ref, wconv_ref, bconv_ref, whead_ref, bhead_ref, out_ref):
        t = pl.program_id(1)
        row0 = pl.multiple_of(t * TH, TH)
        rows = pl.ds(row0, TH + 2)

        # kw-shifted windows read straight from the input ref (no staging copy of
        # the full halo window), concatenated once along the lane/channel axis:
        # (TH+2, W_pad, 3*Cp).  3 shifted copies total instead of 9.
        wide = jnp.concatenate(
            [xp_ref[rows, 0:W_pad, :],
             xp_ref[rows, 1:W_pad + 1, :],
             xp_ref[rows, 2:W_pad + 2, :]], axis=-1)

        # 3x3 conv == 3 chained MXU matmuls with K = 3*Cp; single value accumulator,
        # no VMEM scratch round-trips (Mosaic fuses the MXU result pop with the add).
        acc = jnp.dot(wide[0:TH].reshape(ROWS, K3), wconv_ref[0],
                      preferred_element_type=jnp.float32)
        acc = acc + jnp.dot(wide[1:TH + 1].reshape(ROWS, K3), wconv_ref[1],
                            preferred_element_type=jnp.float32)
        acc = acc + jnp.dot(wide[2:TH + 2].reshape(ROWS, K3), wconv_ref[2],
                            preferred_element_type=jnp.float32)

        conv1 = jnp.maximum(acc + bconv_ref[...], 0.0)            # ReLU (f32)

        # Fused 1x1 heads: (ROWS, 512) @ (512, 64) -> [cls(18) | bbox(36) | pad(10)]
        heads = jnp.dot(conv1.astype(jnp.bfloat16), whead_ref[...],
                        preferred_element_type=jnp.float32) + bhead_ref[...]

        # pairwise softmax over (bg, fg) = channels (c, c+A)
        # == torch: reshape(x, 2) -> softmax(dim=1) -> reshape(x, 2*A)
        c0 = heads[:, :A]
        c1 = heads[:, A:2 * A]
        m = jnp.maximum(c0, c1)
        e0 = jnp.exp(c0 - m)
        e1 = jnp.exp(c1 - m)
        inv = pl.reciprocal(e0 + e1, approx=True)

        # Single bf16 store of the whole (ROWS, 64) slab; the pad lanes reuse the
        # already-zero tail of `heads` (zero-padded weights/bias), no zeros concat.
        out = jnp.concatenate([e0 * inv, e1 * inv, heads[:, 2 * A:]], axis=-1)
        out_ref[...] = out.astype(out_ref.dtype)

    return kernel


def _vmem_capacity_bytes():
    try:
        return int(pltpu.get_tpu_info().vmem_capacity_bytes)
    except Exception:
        return 64 * 1024 * 1024          # conservative default (v7x per-TC VMEM)


def _pick_row_tile(H, W_pad, row_tile):
    """Pick (TH, n_t) so pad rows are minimized and both TCs stay busy at B=1."""
    if row_tile is not None:
        target_th = max(1, int(row_tile))
    else:
        # ~1024 output rows/step on 128 MiB-VMEM chips (v5e/v6e), ~512 on v7x.
        target_rows = 1024 if _vmem_capacity_bytes() >= (100 << 20) else 512
        target_th = max(1, target_rows // W_pad)
    n_t = max(1, _cdiv(H, target_th))
    if n_t == 1 and H >= 2:
        n_t = 2                          # feed both v7x TensorCores when B == 1
    TH = _cdiv(H, n_t)
    n_t = _cdiv(H, TH)                   # drop tiles that would be pure padding
    if n_t == 1 and H >= 2:
        n_t, TH = 2, _cdiv(H, 2)
    return TH, n_t


def _vmem_limit_bytes(H_pad, W_pad, Cp, TH, single_buffer_invariants):
    """Shape-derived VMEM budget (blocks + temps + compiler headroom)."""
    nbuf = 1 if single_buffer_invariants else 2
    rows = TH * W_pad
    x_block = nbuf * (H_pad + 2) * (W_pad + 2) * Cp * 2        # bf16 feature map
    weights = nbuf * (3 * 3 * Cp * MID_CH * 2                  # conv weights (bf16)
                      + MID_CH * HEAD_PAD * 2                  # head weights (bf16)
                      + (MID_CH + HEAD_PAD) * 4)               # biases (f32)
    out_block = 2 * rows * HEAD_PAD * 2                        # bf16, double-buffered
    wide = (TH + 2) * W_pad * 3 * Cp * 2                       # kw-concat temp (bf16)
    acc = rows * MID_CH * 4                                    # f32 accumulator
    temps = wide + 3 * acc                                     # acc + mxu result + conv1/heads slack
    total = int((x_block + weights + out_block + temps) * 1.2) + (16 << 20)
    return max(32 << 20, min(total, 100 << 20))


def rpn_forward(base_feat_nchw, params, im_info=None, gt_boxes=None,
                num_boxes=None, row_tile=None, return_nhwc=False):
    """Eval-mode forward of _RPN. Returns (rois, loss_cls, loss_box, cls_prob, bbox_pred)."""
    B, Cin, H, W = base_feat_nchw.shape

    W_pad = _round_up(W, 8)              # sublane alignment for the tap reshape
    Cp = _round_up(Cin, 128)             # lane alignment for the channel axis
    TH, n_t = _pick_row_tile(H, W_pad, row_tile)
    H_pad = n_t * TH
    ROWS = TH * W_pad

    # NCHW -> NHWC; zero-pad: +1 halo on H/W (conv padding=1) plus alignment padding.
    x = jnp.transpose(base_feat_nchw, (0, 2, 3, 1))
    xp = jnp.pad(x, ((0, 0), (1, 1 + (H_pad - H)), (1, 1 + (W_pad - W)),
                     (0, Cp - Cin))).astype(jnp.bfloat16)

    # 3x3 conv weights -> (3, 3*Cp, 512): per kh, the 3 kw Cin-blocks stacked along K.
    w_conv3 = jnp.pad(params["w_conv"].reshape(3, 3, Cin, MID_CH),
                      ((0, 0), (0, 0), (0, Cp - Cin), (0, 0)))
    w_conv3 = w_conv3.reshape(3, 3 * Cp, MID_CH).astype(jnp.bfloat16)
    b_conv = params["b_conv"].reshape(1, MID_CH).astype(jnp.float32)

    # Fused 1x1 heads: [w_cls | w_bbox | zero-pad] -> (512, 64)
    tail = HEAD_PAD - NC_SCORE_OUT - NC_BBOX_OUT
    w_heads = jnp.concatenate(
        [params["w_cls"], params["w_bbox"],
         jnp.zeros((MID_CH, tail), jnp.float32)], axis=1).astype(jnp.bfloat16)
    b_heads = jnp.concatenate(
        [params["b_cls"].reshape(1, -1), params["b_bbox"].reshape(1, -1),
         jnp.zeros((1, tail), jnp.float32)], axis=1).astype(jnp.float32)

    kernel = _make_rpn_kernel(TH, W_pad, Cp)

    def build(single_buffer_invariants):
        # Grid-invariant blocks (index map constant in t, only xp changes with b):
        # single-buffer them so the big feature-map / conv-weight blocks are not
        # pointlessly double-buffered (key for v7x's 64 MiB VMEM).
        inv_kw = ({"pipeline_mode": pl.Buffered(1)}
                  if single_buffer_invariants else {})
        return pl.pallas_call(
            kernel,
            out_shape=jax.ShapeDtypeStruct((B, H_pad * W_pad, HEAD_PAD),
                                           jnp.bfloat16),
            grid=(B, n_t),
            in_specs=[
                # full padded feature map per batch (resident across the row-tile axis)
                pl.BlockSpec((None, H_pad + 2, W_pad + 2, Cp),
                             lambda b, t: (b, 0, 0, 0), **inv_kw),
                # grid-invariant weights / biases
                pl.BlockSpec((3, 3 * Cp, MID_CH), lambda b, t: (0, 0, 0), **inv_kw),
                pl.BlockSpec((1, MID_CH), lambda b, t: (0, 0), **inv_kw),
                pl.BlockSpec((MID_CH, HEAD_PAD), lambda b, t: (0, 0), **inv_kw),
                pl.BlockSpec((1, HEAD_PAD), lambda b, t: (0, 0), **inv_kw),
            ],
            out_specs=pl.BlockSpec((None, ROWS, HEAD_PAD), lambda b, t: (b, t, 0)),
            compiler_params=pltpu.CompilerParams(
                dimension_semantics=("parallel", "parallel"),
                vmem_limit_bytes=_vmem_limit_bytes(
                    H_pad, W_pad, Cp, TH, single_buffer_invariants)),
        )

    args = (xp, w_conv3, b_conv, w_heads, b_heads)
    try:
        out_flat = build(True)(*args)
    except Exception:
        # Fallback if this jax build rejects pipeline_mode=pl.Buffered(1):
        # identical kernel with default (double) buffering.
        out_flat = build(False)(*args)

    # Slice off alignment padding, split the fused head lanes.
    out = out_flat.reshape(B, H_pad, W_pad, HEAD_PAD)[:, :H, :W, :]
    cls_nhwc = out[..., :NC_SCORE_OUT]
    bbox_nhwc = out[..., NC_SCORE_OUT:NC_SCORE_OUT + NC_BBOX_OUT]

    # TODO(synk): _ProposalLayer (anchor generation + top-k + NMS) and
    # _AnchorTargetLayer / training losses have no clean Pallas equivalent;
    # rois is not produced here (eval-mode losses are 0, as in the module).
    rois = None
    rpn_loss_cls = 0.0
    rpn_loss_box = 0.0

    if return_nhwc:
        # Skip the two full-map NCHW transposes when the consumer accepts NHWC.
        return (rois, rpn_loss_cls, rpn_loss_box,
                cls_nhwc.astype(jnp.float32), bbox_nhwc.astype(jnp.float32))

    rpn_cls_prob = jnp.transpose(cls_nhwc, (0, 3, 1, 2)).astype(jnp.float32)
    rpn_bbox_pred = jnp.transpose(bbox_nhwc, (0, 3, 1, 2)).astype(jnp.float32)
    return rois, rpn_loss_cls, rpn_loss_box, rpn_cls_prob, rpn_bbox_pred


# -------------------- pure-JAX reference (for correctness check) --------------------
def _reference(base_feat_nchw, params):
    B, Cin, H, W = base_feat_nchw.shape
    hi = jax.lax.Precision.HIGHEST
    # (9, Cin, 512) -> OIHW (512, Cin, 3, 3)
    w_oihw = jnp.transpose(params["w_conv"].reshape(3, 3, Cin, MID_CH), (3, 2, 0, 1))
    conv = jax.lax.conv_general_dilated(
        base_feat_nchw, w_oihw, (1, 1), ((1, 1), (1, 1)),
        dimension_numbers=("NCHW", "OIHW", "NCHW"), precision=hi)
    conv = jax.nn.relu(conv + params["b_conv"].reshape(1, MID_CH, 1, 1))

    w_cls = jnp.transpose(params["w_cls"])[:, :, None, None]     # (18, 512, 1, 1)
    cls = jax.lax.conv_general_dilated(
        conv, w_cls, (1, 1), ((0, 0), (0, 0)),
        dimension_numbers=("NCHW", "OIHW", "NCHW"), precision=hi)
    cls = cls + params["b_cls"].reshape(1, NC_SCORE_OUT, 1, 1)

    # torch: reshape(x, 2) -> softmax(dim=1) -> reshape(x, nc_score_out)
    cls_reshape = cls.reshape(B, 2, NUM_ANCHORS * H, W)
    prob = jax.nn.softmax(cls_reshape, axis=1).reshape(B, NC_SCORE_OUT, H, W)

    w_bbox = jnp.transpose(params["w_bbox"])[:, :, None, None]   # (36, 512, 1, 1)
    bbox = jax.lax.conv_general_dilated(
        conv, w_bbox, (1, 1), ((0, 0), (0, 0)),
        dimension_numbers=("NCHW", "OIHW", "NCHW"), precision=hi)
    bbox = bbox + params["b_bbox"].reshape(1, NC_BBOX_OUT, 1, 1)
    return prob, bbox


def _check(base_feat, params, row_tile=None):
    _, _, loss_cls, = None, None, None  # noqa: F841 (keep signature simple)
    rois, lc, lb, cls_prob, bbox_pred = rpn_forward(base_feat, params,
                                                    row_tile=row_tile)
    cls_prob = jax.block_until_ready(cls_prob)
    bbox_pred = jax.block_until_ready(bbox_pred)

    B, _, H, W = base_feat.shape
    ref_prob, ref_bbox = _reference(base_feat, params)
    assert cls_prob.shape == (B, NC_SCORE_OUT, H, W)
    assert bbox_pred.shape == (B, NC_BBOX_OUT, H, W)
    # Kernel uses bf16 MXU inputs with f32 accumulation and a bf16 output slab;
    # reference is f32 HIGHEST.
    assert jnp.allclose(cls_prob, ref_prob, atol=2e-2, rtol=2e-2), \
        float(jnp.max(jnp.abs(cls_prob - ref_prob)))
    assert jnp.allclose(bbox_pred, ref_bbox, atol=2e-2, rtol=2e-2), \
        float(jnp.max(jnp.abs(bbox_pred - ref_bbox)))


if __name__ == "__main__":
    key = jax.random.PRNGKey(0)
    Cin = 4
    ks = jax.random.split(key, 9)

    # Deterministic synthetic parameters (torch module's __init__ shapes, gaussian init).
    s = 0.05
    params = {
        "w_conv": s * jax.random.normal(ks[1], (9, Cin, MID_CH), jnp.float32),
        "b_conv": s * jax.random.normal(ks[2], (1, MID_CH), jnp.float32),
        "w_cls":  s * jax.random.normal(ks[3], (MID_CH, NC_SCORE_OUT), jnp.float32),
        "b_cls":  s * jax.random.normal(ks[4], (1, NC_SCORE_OUT), jnp.float32),
        "w_bbox": s * jax.random.normal(ks[5], (MID_CH, NC_BBOX_OUT), jnp.float32),
        "b_bbox": s * jax.random.normal(ks[6], (1, NC_BBOX_OUT), jnp.float32),
    }

    # Case 1: B=2, 16x16, explicit row_tile=8 -> grid (2, 2): spatial-tiling path.
    base_feat = jax.random.normal(ks[0], (2, Cin, 16, 16), jnp.float32)
    _check(base_feat, params, row_tile=8)

    # Case 2: B=1, odd 13x10 map, default tile heuristic (n_t >= 2, minimal pad rows,
    # W alignment padding) -> exercises the improved tiling / padding path.
    base_feat_odd = jax.random.normal(ks[7], (1, Cin, 13, 10), jnp.float32)
    _check(base_feat_odd, params)

    print("KERNEL_OK")
</pallas_src>

<mosaic_0001>
module attributes {stable_mosaic.version = 11 : i64} {
  func.func @kernel(%arg0: i32, %arg1: i32, %arg2: memref<1x18x18x128xbf16, #tpu.memory_space<vmem>>, %arg3: memref<3x384x512xbf16, #tpu.memory_space<vmem>>, %arg4: memref<1x512xf32, #tpu.memory_space<vmem>>, %arg5: memref<512x64xbf16, #tpu.memory_space<vmem>>, %arg6: memref<1x64xf32, #tpu.memory_space<vmem>>, %arg7: memref<1x128x64xbf16, #tpu.memory_space<vmem>>) attributes {dimension_semantics = [#tpu.dimension_semantics<parallel>, #tpu.dimension_semantics<parallel>], iteration_bounds = array<i64: 2, 2>, scalar_prefetch = 0 : i64, scratch_operands = 0 : i64, tpu.core_type = #tpu.core_type<tc>, window_params = [{pipeline_mode = #tpu.pipeline_mode<synchronous>, transform_indices = @transform_0, window_bounds = array<i64: 1, 18, 18, 128>}, {pipeline_mode = #tpu.pipeline_mode<synchronous>, transform_indices = @transform_1, window_bounds = array<i64: 3, 384, 512>}, {pipeline_mode = #tpu.pipeline_mode<synchronous>, transform_indices = @transform_2, window_bounds = array<i64: 1, 512>}, {pipeline_mode = #tpu.pipeline_mode<synchronous>, transform_indices = @transform_3, window_bounds = array<i64: 512, 64>}, {pipeline_mode = #tpu.pipeline_mode<synchronous>, transform_indices = @transform_4, window_bounds = array<i64: 1, 64>}, {transform_indices = @transform_5, window_bounds = array<i64: 1, 128, 64>}]} {
    %c8_i32 = arith.constant 8 : i32
    %0 = arith.muli %arg1, %c8_i32 : i32
    %1 = tpu.assume_multiple %0, 8 : i32
    %c0 = arith.constant 0 : index
    %2 = arith.index_cast %1 : i32 to index
    %c0_0 = arith.constant 0 : index
    %c0_1 = arith.constant 0 : index
    %3 = vector.load %arg2[%c0, %2, %c0_0, %c0_1] : memref<1x18x18x128xbf16, #tpu.memory_space<vmem>>, vector<1x10x16x128xbf16>
    %4 = vector.shape_cast %3 : vector<1x10x16x128xbf16> to vector<10x16x128xbf16>
    %c0_2 = arith.constant 0 : index
    %5 = arith.index_cast %1 : i32 to index
    %c1 = arith.constant 1 : index
    %c0_3 = arith.constant 0 : index
    %6 = vector.load %arg2[%c0_2, %5, %c1, %c0_3] : memref<1x18x18x128xbf16, #tpu.memory_space<vmem>>, vector<1x10x16x128xbf16>
    %7 = vector.shape_cast %6 : vector<1x10x16x128xbf16> to vector<10x16x128xbf16>
    %c0_4 = arith.constant 0 : index
    %8 = arith.index_cast %1 : i32 to index
    %c2 = arith.constant 2 : index
    %c0_5 = arith.constant 0 : index
    %9 = vector.load %arg2[%c0_4, %8, %c2, %c0_5] : memref<1x18x18x128xbf16, #tpu.memory_space<vmem>>, vector<1x10x16x128xbf16>
    %10 = vector.shape_cast %9 : vector<1x10x16x128xbf16> to vector<10x16x128xbf16>
    %11 = tpu.concatenate %4, %7, %10 in 2 : vector<10x16x128xbf16>, vector<10x16x128xbf16>, vector<10x16x128xbf16> -> vector<10x16x384xbf16>
    %12 = vector.extract_strided_slice %11 {offsets = [0, 0, 0], sizes = [8, 16, 384], strides = [1, 1, 1]} : vector<10x16x384xbf16> to vector<8x16x384xbf16>
    %13 = vector.shape_cast %12 : vector<8x16x384xbf16> to vector<128x384xbf16>
    %c0_6 = arith.constant 0 : index
    %c0_7 = arith.constant 0 : index
    %c0_8 = arith.constant 0 : index
    %14 = vector.load %arg3[%c0_6, %c0_7, %c0_8] : memref<3x384x512xbf16, #tpu.memory_space<vmem>>, vector<1x384x512xbf16>
    %15 = vector.shape_cast %14 : vector<1x384x512xbf16> to vector<384x512xbf16>
    %cst = arith.constant dense<0.000000e+00> : vector<128x512xf32>
    %16 = tpu.matmul %13, %15, %cst {dimension_numbers = #tpu.dot_dimension_numbers<[1], [0], [0], [1], [0, 0, 1, 1], [], []>} : vector<128x384xbf16>, vector<384x512xbf16>, vector<128x512xf32> -> vector<128x512xf32>
    %17 = vector.extract_strided_slice %11 {offsets = [1, 0, 0], sizes = [8, 16, 384], strides = [1, 1, 1]} : vector<10x16x384xbf16> to vector<8x16x384xbf16>
    %18 = vector.shape_cast %17 : vector<8x16x384xbf16> to vector<128x384xbf16>
    %c1_9 = arith.constant 1 : index
    %c0_10 = arith.constant 0 : index
    %c0_11 = arith.constant 0 : index
    %19 = vector.load %arg3[%c1_9, %c0_10, %c0_11] : memref<3x384x512xbf16, #tpu.memory_space<vmem>>, vector<1x384x512xbf16>
    %20 = vector.shape_cast %19 : vector<1x384x512xbf16> to vector<384x512xbf16>
    %cst_12 = arith.constant dense<0.000000e+00> : vector<128x512xf32>
    %21 = tpu.matmul %18, %20, %cst_12 {dimension_numbers = #tpu.dot_dimension_numbers<[1], [0], [0], [1], [0, 0, 1, 1], [], []>} : vector<128x384xbf16>, vector<384x512xbf16>, vector<128x512xf32> -> vector<128x512xf32>
    %22 = arith.addf %16, %21 : vector<128x512xf32>
    %23 = vector.extract_strided_slice %11 {offsets = [2, 0, 0], sizes = [8, 16, 384], strides = [1, 1, 1]} : vector<10x16x384xbf16> to vector<8x16x384xbf16>
    %24 = vector.shape_cast %23 : vector<8x16x384xbf16> to vector<128x384xbf16>
    %c2_13 = arith.constant 2 : index
    %c0_14 = arith.constant 0 : index
    %c0_15 = arith.constant 0 : index
    %25 = vector.load %arg3[%c2_13, %c0_14, %c0_15] : memref<3x384x512xbf16, #tpu.memory_space<vmem>>, vector<1x384x512xbf16>
    %26 = vector.shape_cast %25 : vector<1x384x512xbf16> to vector<384x512xbf16>
    %cst_16 = arith.constant dense<0.000000e+00> : vector<128x512xf32>
    %27 = tpu.matmul %24, %26, %cst_16 {dimension_numbers = #tpu.dot_dimension_numbers<[1], [0], [0], [1], [0, 0, 1, 1], [], []>} : vector<128x384xbf16>, vector<384x512xbf16>, vector<128x512xf32> -> vector<128x512xf32>
    %28 = arith.addf %22, %27 : vector<128x512xf32>
    %c0_17 = arith.constant 0 : index
    %c0_18 = arith.constant 0 : index
    %29 = vector.load %arg4[%c0_17, %c0_18] : memref<1x512xf32, #tpu.memory_space<vmem>>, vector<1x512xf32>
    %30 = vector.broadcast %29 : vector<1x512xf32> to vector<128x512xf32>
    %31 = arith.addf %28, %30 : vector<128x512xf32>
    %cst_19 = arith.constant 0.000000e+00 : f32
    %32 = vector.broadcast %cst_19 : f32 to vector<128x512xf32>
    %33 = arith.maximumf %31, %32 : vector<128x512xf32>
    %34 = arith.truncf %33 : vector<128x512xf32> to vector<128x512xbf16>
    %c0_20 = arith.constant 0 : index
    %c0_21 = arith.constant 0 : index
    %35 = vector.load %arg5[%c0_20, %c0_21] : memref<512x64xbf16, #tpu.memory_space<vmem>>, vector<512x64xbf16>
    %cst_22 = arith.constant dense<0.000000e+00> : vector<128x64xf32>
    %36 = tpu.matmul %34, %35, %cst_22 {dimension_numbers = #tpu.dot_dimension_numbers<[1], [0], [0], [1], [0, 0, 1, 1], [], []>} : vector<128x512xbf16>, vector<512x64xbf16>, vector<128x64xf32> -> vector<128x64xf32>
    %c0_23 = arith.constant 0 : index
    %c0_24 = arith.constant 0 : index
    %37 = vector.load %arg6[%c0_23, %c0_24] : memref<1x64xf32, #tpu.memory_space<vmem>>, vector<1x64xf32>
    %38 = vector.broadcast %37 : vector<1x64xf32> to vector<128x64xf32>
    %39 = arith.addf %36, %38 : vector<128x64xf32>
    %40 = vector.extract_strided_slice %39 {offsets = [0, 0], sizes = [128, 9], strides = [1, 1]} : vector<128x64xf32> to vector<128x9xf32>
    %41 = vector.extract_strided_slice %39 {offsets = [0, 9], sizes = [128, 9], strides = [1, 1]} : vector<128x64xf32> to vector<128x9xf32>
    %42 = arith.maximumf %40, %41 : vector<128x9xf32>
    %43 = arith.subf %40, %42 : vector<128x9xf32>
    %44 = math.exp %43 : vector<128x9xf32>
    %45 = arith.subf %41, %42 : vector<128x9xf32>
    %46 = math.exp %45 : vector<128x9xf32>
    %47 = arith.addf %44, %46 : vector<128x9xf32>
    %48 = tpu.reciprocal %47 {approx = true} : vector<128x9xf32> -> vector<128x9xf32>
    %49 = arith.mulf %44, %48 : vector<128x9xf32>
    %50 = arith.mulf %46, %48 : vector<128x9xf32>
    %51 = vector.extract_strided_slice %39 {offsets = [0, 18], sizes = [128, 46], strides = [1, 1]} : vector<128x64xf32> to vector<128x46xf32>
    %52 = tpu.concatenate %49, %50, %51 in 1 : vector<128x9xf32>, vector<128x9xf32>, vector<128x46xf32> -> vector<128x64xf32>
    %53 = arith.truncf %52 : vector<128x64xf32> to vector<128x64xbf16>
    %c0_25 = arith.constant 0 : index
    %c0_26 = arith.constant 0 : index
    %c0_27 = arith.constant 0 : index
    %54 = vector.load %arg7[%c0_25, %c0_26, %c0_27] : memref<1x128x64xbf16, #tpu.memory_space<vmem>>, vector<1x128x64xbf16>
    %55 = vector.shape_cast %54 : vector<1x128x64xbf16> to vector<128x64xbf16>
    %56 = vector.shape_cast %53 : vector<128x64xbf16> to vector<1x128x64xbf16>
    tpu.vector_store %arg7[%c0_25, %c0_26, %c0_27], %56 {strides = array<i32>} : memref<1x128x64xbf16, #tpu.memory_space<vmem>>, vector<1x128x64xbf16>,
    return
  }
  func.func @transform_0(%arg0: i32, %arg1: i32) -> (i32, i32, i32, i32) {
    %c0_i32 = arith.constant 0 : i32
    %c0_i32_0 = arith.constant 0 : i32
    %c0_i32_1 = arith.constant 0 : i32
    %c0_i32_2 = arith.constant 0 : i32
    return %arg0, %c0_i32, %c0_i32_0, %c0_i32_1 : i32, i32, i32, i32
  }
  func.func @transform_1(%arg0: i32, %arg1: i32) -> (i32, i32, i32) {
    %c0_i32 = arith.constant 0 : i32
    %c0_i32_0 = arith.constant 0 : i32
    %c0_i32_1 = arith.constant 0 : i32
    %c0_i32_2 = arith.constant 0 : i32
    return %c0_i32, %c0_i32_0, %c0_i32_1 : i32, i32, i32
  }
  func.func @transform_2(%arg0: i32, %arg1: i32) -> (i32, i32) {
    %c0_i32 = arith.constant 0 : i32
    %c0_i32_0 = arith.constant 0 : i32
    %c0_i32_1 = arith.constant 0 : i32
    return %c0_i32, %c0_i32_0 : i32, i32
  }
  func.func @transform_3(%arg0: i32, %arg1: i32) -> (i32, i32) {
    %c0_i32 = arith.constant 0 : i32
    %c0_i32_0 = arith.constant 0 : i32
    %c0_i32_1 = arith.constant 0 : i32
    return %c0_i32, %c0_i32_0 : i32, i32
  }
  func.func @transform_4(%arg0: i32, %arg1: i32) -> (i32, i32) {
    %c0_i32 = arith.constant 0 : i32
    %c0_i32_0 = arith.constant 0 : i32
    %c0_i32_1 = arith.constant 0 : i32
    return %c0_i32, %c0_i32_0 : i32, i32
  }
  func.func @transform_5(%arg0: i32, %arg1: i32) -> (i32, i32, i32) {
    %c0_i32 = arith.constant 0 : i32
    %c0_i32_0 = arith.constant 0 : i32
    return %arg0, %arg1, %c0_i32 : i32, i32, i32
  }
}

module attributes {stable_mosaic.version = 11 : i64} {
  func.func @kernel(%arg0: i32, %arg1: i32, %arg2: memref<1x18x18x128xbf16, #tpu.memory_space<vmem>>, %arg3: memref<3x384x512xbf16, #tpu.memory_space<vmem>>, %arg4: memref<1x512xf32, #tpu.memory_space<vmem>>, %arg5: memref<512x64xbf16, #tpu.memory_space<vmem>>, %arg6: memref<1x64xf32, #tpu.memory_space<vmem>>, %arg7: memref<1x128x64xbf16, #tpu.memory_space<vmem>>) attributes {dimension_semantics = [#tpu.dimension_semantics<parallel>, #tpu.dimension_semantics<parallel>], iteration_bounds = array<i64: 2, 2>, scalar_prefetch = 0 : i64, scratch_operands = 0 : i64, tpu.core_type = #tpu.core_type<tc>, window_params = [{transform_indices = @transform_0, window_bounds = array<i64: 1, 18, 18, 128>}, {pipeline_mode = #tpu.pipeline_mode<synchronous>, transform_indices = @transform_1, window_bounds = array<i64: 3, 384, 512>}, {pipeline_mode = #tpu.pipeline_mode<synchronous>, transform_indices = @transform_2, window_bounds = array<i64: 1, 512>}, {pipeline_mode = #tpu.pipeline_mode<synchronous>, transform_indices = @transform_3, window_bounds = array<i64: 512, 64>}, {pipeline_mode = #tpu.pipeline_mode<synchronous>, transform_indices = @transform_4, window_bounds = array<i64: 1, 64>}, {transform_indices = @transform_5, window_bounds = array<i64: 1, 128, 64>}]} {
    %c8_i32 = arith.constant 8 : i32
    %0 = arith.muli %arg1, %c8_i32 : i32
    %1 = tpu.assume_multiple %0, 8 : i32
    %c0 = arith.constant 0 : index
    %2 = arith.index_cast %1 : i32 to index
    %c0_0 = arith.constant 0 : index
    %c0_1 = arith.constant 0 : index
    %3 = vector.load %arg2[%c0, %2, %c0_0, %c0_1] : memref<1x18x18x128xbf16, #tpu.memory_space<vmem>>, vector<1x10x16x128xbf16>
    %4 = vector.shape_cast %3 : vector<1x10x16x128xbf16> to vector<10x16x128xbf16>
    %c0_2 = arith.constant 0 : index
    %5 = arith.index_cast %1 : i32 to index
    %c1 = arith.constant 1 : index
    %c0_3 = arith.constant 0 : index
    %6 = vector.load %arg2[%c0_2, %5, %c1, %c0_3] : memref<1x18x18x128xbf16, #tpu.memory_space<vmem>>, vector<1x10x16x128xbf16>
    %7 = vector.shape_cast %6 : vector<1x10x16x128xbf16> to vector<10x16x128xbf16>
    %c0_4 = arith.constant 0 : index
    %8 = arith.index_cast %1 : i32 to index
    %c2 = arith.constant 2 : index
    %c0_5 = arith.constant 0 : index
    %9 = vector.load %arg2[%c0_4, %8, %c2, %c0_5] : memref<1x18x18x128xbf16, #tpu.memory_space<vmem>>, vector<1x10x16x128xbf16>
    %10 = vector.shape_cast %9 : vector<1x10x16x128xbf16> to vector<10x16x128xbf16>
    %11 = tpu.concatenate %4, %7, %10 in 2 : vector<10x16x128xbf16>, vector<10x16x128xbf16>, vector<10x16x128xbf16> -> vector<10x16x384xbf16>
    %12 = vector.extract_strided_slice %11 {offsets = [0, 0, 0], sizes = [8, 16, 384], strides = [1, 1, 1]} : vector<10x16x384xbf16> to vector<8x16x384xbf16>
    %13 = vector.shape_cast %12 : vector<8x16x384xbf16> to vector<128x384xbf16>
    %c0_6 = arith.constant 0 : index
    %c0_7 = arith.constant 0 : index
    %c0_8 = arith.constant 0 : index
    %14 = vector.load %arg3[%c0_6, %c0_7, %c0_8] : memref<3x384x512xbf16, #tpu.memory_space<vmem>>, vector<1x384x512xbf16>
    %15 = vector.shape_cast %14 : vector<1x384x512xbf16> to vector<384x512xbf16>
    %cst = arith.constant dense<0.000000e+00> : vector<128x512xf32>
    %16 = tpu.matmul %13, %15, %cst {dimension_numbers = #tpu.dot_dimension_numbers<[1], [0], [0], [1], [0, 0, 1, 1], [], []>} : vector<128x384xbf16>, vector<384x512xbf16>, vector<128x512xf32> -> vector<128x512xf32>
    %17 = vector.extract_strided_slice %11 {offsets = [1, 0, 0], sizes = [8, 16, 384], strides = [1, 1, 1]} : vector<10x16x384xbf16> to vector<8x16x384xbf16>
    %18 = vector.shape_cast %17 : vector<8x16x384xbf16> to vector<128x384xbf16>
    %c1_9 = arith.constant 1 : index
    %c0_10 = arith.constant 0 : index
    %c0_11 = arith.constant 0 : index
    %19 = vector.load %arg3[%c1_9, %c0_10, %c0_11] : memref<3x384x512xbf16, #tpu.memory_space<vmem>>, vector<1x384x512xbf16>
    %20 = vector.shape_cast %19 : vector<1x384x512xbf16> to vector<384x512xbf16>
    %cst_12 = arith.constant dense<0.000000e+00> : vector<128x512xf32>
    %21 = tpu.matmul %18, %20, %cst_12 {dimension_numbers = #tpu.dot_dimension_numbers<[1], [0], [0], [1], [0, 0, 1, 1], [], []>} : vector<128x384xbf16>, vector<384x512xbf16>, vector<128x512xf32> -> vector<128x512xf32>
    %22 = arith.addf %16, %21 : vector<128x512xf32>
    %23 = vector.extract_strided_slice %11 {offsets = [2, 0, 0], sizes = [8, 16, 384], strides = [1, 1, 1]} : vector<10x16x384xbf16> to vector<8x16x384xbf16>
    %24 = vector.shape_cast %23 : vector<8x16x384xbf16> to vector<128x384xbf16>
    %c2_13 = arith.constant 2 : index
    %c0_14 = arith.constant 0 : index
    %c0_15 = arith.constant 0 : index
    %25 = vector.load %arg3[%c2_13, %c0_14, %c0_15] : memref<3x384x512xbf16, #tpu.memory_space<vmem>>, vector<1x384x512xbf16>
    %26 = vector.shape_cast %25 : vector<1x384x512xbf16> to vector<384x512xbf16>
    %cst_16 = arith.constant dense<0.000000e+00> : vector<128x512xf32>
    %27 = tpu.matmul %24, %26, %cst_16 {dimension_numbers = #tpu.dot_dimension_numbers<[1], [0], [0], [1], [0, 0, 1, 1], [], []>} : vector<128x384xbf16>, vector<384x512xbf16>, vector<128x512xf32> -> vector<128x512xf32>
    %28 = arith.addf %22, %27 : vector<128x512xf32>
    %c0_17 = arith.constant 0 : index
    %c0_18 = arith.constant 0 : index
    %29 = vector.load %arg4[%c0_17, %c0_18] : memref<1x512xf32, #tpu.memory_space<vmem>>, vector<1x512xf32>
    %30 = vector.broadcast %29 : vector<1x512xf32> to vector<128x512xf32>
    %31 = arith.addf %28, %30 : vector<128x512xf32>
    %cst_19 = arith.constant 0.000000e+00 : f32
    %32 = vector.broadcast %cst_19 : f32 to vector<128x512xf32>
    %33 = arith.maximumf %31, %32 : vector<128x512xf32>
    %34 = arith.truncf %33 : vector<128x512xf32> to vector<128x512xbf16>
    %c0_20 = arith.constant 0 : index
    %c0_21 = arith.constant 0 : index
    %35 = vector.load %arg5[%c0_20, %c0_21] : memref<512x64xbf16, #tpu.memory_space<vmem>>, vector<512x64xbf16>
    %cst_22 = arith.constant dense<0.000000e+00> : vector<128x64xf32>
    %36 = tpu.matmul %34, %35, %cst_22 {dimension_numbers = #tpu.dot_dimension_numbers<[1], [0], [0], [1], [0, 0, 1, 1], [], []>} : vector<128x512xbf16>, vector<512x64xbf16>, vector<128x64xf32> -> vector<128x64xf32>
    %c0_23 = arith.constant 0 : index
    %c0_24 = arith.constant 0 : index
    %37 = vector.load %arg6[%c0_23, %c0_24] : memref<1x64xf32, #tpu.memory_space<vmem>>, vector<1x64xf32>
    %38 = vector.broadcast %37 : vector<1x64xf32> to vector<128x64xf32>
    %39 = arith.addf %36, %38 : vector<128x64xf32>
    %40 = vector.extract_strided_slice %39 {offsets = [0, 0], sizes = [128, 9], strides = [1, 1]} : vector<128x64xf32> to vector<128x9xf32>
    %41 = vector.extract_strided_slice %39 {offsets = [0, 9], sizes = [128, 9], strides = [1, 1]} : vector<128x64xf32> to vector<128x9xf32>
    %42 = arith.maximumf %40, %41 : vector<128x9xf32>
    %43 = arith.subf %40, %42 : vector<128x9xf32>
    %44 = math.exp %43 : vector<128x9xf32>
    %45 = arith.subf %41, %42 : vector<128x9xf32>
    %46 = math.exp %45 : vector<128x9xf32>
    %47 = arith.addf %44, %46 : vector<128x9xf32>
    %48 = tpu.reciprocal %47 {approx = true} : vector<128x9xf32> -> vector<128x9xf32>
    %49 = arith.mulf %44, %48 : vector<128x9xf32>
    %50 = arith.mulf %46, %48 : vector<128x9xf32>
    %51 = vector.extract_strided_slice %39 {offsets = [0, 18], sizes = [128, 46], strides = [1, 1]} : vector<128x64xf32> to vector<128x46xf32>
    %52 = tpu.concatenate %49, %50, %51 in 1 : vector<128x9xf32>, vector<128x9xf32>, vector<128x46xf32> -> vector<128x64xf32>
    %53 = arith.truncf %52 : vector<128x64xf32> to vector<128x64xbf16>
    %c0_25 = arith.constant 0 : index
    %c0_26 = arith.constant 0 : index
    %c0_27 = arith.constant 0 : index
    %54 = vector.load %arg7[%c0_25, %c0_26, %c0_27] : memref<1x128x64xbf16, #tpu.memory_space<vmem>>, vector<1x128x64xbf16>
    %55 = vector.shape_cast %54 : vector<1x128x64xbf16> to vector<128x64xbf16>
    %56 = vector.shape_cast %53 : vector<128x64xbf16> to vector<1x128x64xbf16>
    tpu.vector_store %arg7[%c0_25, %c0_26, %c0_27], %56 {strides = array<i32>} : memref<1x128x64xbf16, #tpu.memory_space<vmem>>, vector<1x128x64xbf16>,
    return
  }
  func.func @transform_0(%arg0: i32, %arg1: i32) -> (i32, i32, i32, i32) {
    %c0_i32 = arith.constant 0 : i32
    %c0_i32_0 = arith.constant 0 : i32
    %c0_i32_1 = arith.constant 0 : i32
    %c0_i32_2 = arith.constant 0 : i32
    return %arg0, %c0_i32, %c0_i32_0, %c0_i32_1 : i32, i32, i32, i32
  }
  func.func @transform_1(%arg0: i32, %arg1: i32) -> (i32, i32, i32) {
    %c0_i32 = arith.constant 0 : i32
    %c0_i32_0 = arith.constant 0 : i32
    %c0_i32_1 = arith.constant 0 : i32
    %c0_i32_2 = arith.constant 0 : i32
    return %c0_i32, %c0_i32_0, %c0_i32_1 : i32, i32, i32
  }
  func.func @transform_2(%arg0: i32, %arg1: i32) -> (i32, i32) {
    %c0_i32 = arith.constant 0 : i32
    %c0_i32_0 = arith.constant 0 : i32
    %c0_i32_1 = arith.constant 0 : i32
    return %c0_i32, %c0_i32_0 : i32, i32
  }
  func.func @transform_3(%arg0: i32, %arg1: i32) -> (i32, i32) {
    %c0_i32 = arith.constant 0 : i32
    %c0_i32_0 = arith.constant 0 : i32
    %c0_i32_1 = arith.constant 0 : i32
    return %c0_i32, %c0_i32_0 : i32, i32
  }
  func.func @transform_4(%arg0: i32, %arg1: i32) -> (i32, i32) {
    %c0_i32 = arith.constant 0 : i32
    %c0_i32_0 = arith.constant 0 : i32
    %c0_i32_1 = arith.constant 0 : i32
    return %c0_i32, %c0_i32_0 : i32, i32
  }
  func.func @transform_5(%arg0: i32, %arg1: i32) -> (i32, i32, i32) {
    %c0_i32 = arith.constant 0 : i32
    %c0_i32_0 = arith.constant 0 : i32
    return %arg0, %arg1, %c0_i32 : i32, i32, i32
  }
}

</mosaic_0001>

<llo_original>
// kernel: tpu_custom_call.1
$region0: #{tpu_custom_call.1}
  #allocation0 [shape = 'u32[]', space=smem, size = 0x4, offset = 0x4, fixed_abs, tag = 'smem constant byte address 0x4 - core index']
  #allocation1 [shape = 'u32[144,128]{1,0:T(1,128)}', space=vmem, size = 0x12000, scoped, tag = 'internal scratch']
  %s0 = inlined_call_operand.vmem [shape: bf16[2,18,18,128], index: 0, kind: input, shape index: {}]
  %s1 = inlined_call_operand.hbm [shape: bf16[3,384,512], index: 1, kind: input, shape index: {}]
  %s2 = inlined_call_operand.hbm [shape: f32[1,512], index: 2, kind: input, shape index: {}]
  %s3 = inlined_call_operand.vmem [shape: bf16[512,64], index: 3, kind: input, shape index: {}]
  %s4 = inlined_call_operand.hbm [shape: f32[1,64], index: 4, kind: input, shape index: {}]
  %s5 = inlined_call_operand.vmem [shape: bf16[2,256,64], index: 5, kind: output, shape index: {}]
  %s6 = sld [smem:[#allocation0]]
  $region65: #{tpu_custom_call.1} parent=0
    _
  %s8 = ssub.s32 1, %s6
  %s9 = scalar_select 0, %s8, %s6
  $region1: #{tpu_custom_call.1} parent=0
    #allocation2 [shape = 'u8[1179648]{0}', space=vmem, size = 0x120000, scoped, tag = 'input window, operand 1, single buffered']
    #allocation3 [shape = 's32[2]{0}', space=sflag, size = 0x8, scoped, tag = 'scoped memory for tpu_custom_call.1']
    #allocation4 [shape = 'u8[2048]{0}', space=vmem, size = 0x800, scoped, tag = 'input window, operand 2, single buffered']
    #allocation5 [shape = 's32[1]{0}', space=sflag, size = 0x4, scoped, tag = 'scoped memory for tpu_custom_call.1']
    #allocation6 [shape = 'u8[512]{0}', space=vmem, size = 0x400, scoped, tag = 'input window, operand 4, single buffered']
    %10 = vsyncpa [#allocation3], 0
    %11 = vsyncpa [#allocation5], 0
    loop: start=0, step=1, limit=6
    $region2: #{tpu_custom_call.1} parent=1 // loop_pre_header
      _
    $region3: #{tpu_custom_call.1} parent=1 // loop_header
      %s13 = sphi 0, %s17
      %p14 = scmp.ge.s32.totalorder %s13, 6
      %s20 = sphi 0, %s32
      %s21 = sphi 0, %s28
      %s22 = sphi 0, %s20
      %s23 = sphi 0, %s21
      %s24 = sphi 0, %s22
      %s25 = sphi 0, %s23
      %s35 = sphi 0, %s37
      %s38 = sphi 0, %s35
      %s39 = sphi 0, %s38
      %s55 = sphi 0, %s39
      %s59 = sphi 0, %s59
      %s61 = sphi 0, %s59
      %s62 = sphi 0, %s61
      %s76 = sphi 0, %s62
      %s80 = sphi 0, %s80
      %s82 = sphi 0, %s80
      %s83 = sphi 0, %s82
      %s97 = sphi 0, %s83
      %s101 = sphi 0, %s101
      %s103 = sphi 0, %s101
      %s104 = sphi 0, %s103
      %s118 = sphi 0, %s104
      %s122 = sphi 0, %s122
      %s124 = sphi 0, %s122
      %s125 = sphi 0, %s124
      %s139 = sphi 0, %s125
      %s147 = sphi 0, %s149
      %s150 = sphi 0, %s147
      %s151 = sphi 0, %s150
      %s167 = sphi 0, %s151
    $region4: #{tpu_custom_call.1} parent=1 // loop_header_branch
      %16 = sbr.rel (%p14) target = $region8
    $region5: #{tpu_custom_call.1} parent=1 // loop_body
      %s18 = ssub.s32 %s13, 1
      %s19 = ssub.s32 %s13, 2
      %s26 = sadd.s32 1, %s21
      %p27 = scmp.ge.s32.totalorder %s26, 2
      %s28 = scalar_select %p27, 0, %s26
      %s29 = sadd.s32 1, %s20
      %s30 = scalar_select %p27, %s29, %s20
      %p31 = scmp.ge.s32.totalorder %s30, 2
      %s32 = scalar_select %p31, 0, %s30
      %s33 = ssub.s32 %s20, %s32
      %p34 = scmp.eq.s32.totalorder %s33, 0
      %s36 = sadd.s32 %s35, 1
      %s37 = scalar_select %p34, %s35, %s36
      %p40 = pneg %p34
      %p41 = scmp.eq.s32.totalorder %s13, 3
      %p42 = por %p40, %p41
      %p43 = scmp.ne.s32.totalorder %s35, %s38
      %p44 = scmp.eq.s32.totalorder %s13, 0
      %p45 = por %p43, %p44
      %p46 = scmp.ne.s32.totalorder %s35, %s38
      %p47 = scmp.eq.s32.totalorder %s18, 3
      %p48 = por %p46, %p47
      %p49 = scmp.ne.s32.totalorder %s38, %s39
      %p50 = scmp.eq.s32.totalorder %s18, 0
      %p51 = por %p49, %p50
      %p52 = scmp.ne.s32.totalorder %s38, %s39
      %p53 = scmp.eq.s32.totalorder %s19, 3
      %p54 = por %p52, %p53
      %p56 = scmp.ne.s32.totalorder %s39, %s55
      %p57 = scmp.eq.s32.totalorder %s19, 0
      %p58 = por %p56, %p57
      %s60 = sadd.s32 %s59, 1
      %p63 = scmp.eq.s32.totalorder %s13, 3
      %p64 = scmp.ne.s32.totalorder %s59, %s61
      %p65 = scmp.eq.s32.totalorder %s13, 0
      %p66 = por %p64, %p65
      %p67 = scmp.ne.s32.totalorder %s59, %s61
      %p68 = scmp.eq.s32.totalorder %s18, 3
      %p69 = por %p67, %p68
      %p70 = scmp.ne.s32.totalorder %s61, %s62
      %p71 = scmp.eq.s32.totalorder %s18, 0
      %p72 = por %p70, %p71
      %p73 = scmp.ne.s32.totalorder %s61, %s62
      %p74 = scmp.eq.s32.totalorder %s19, 3
      %p75 = por %p73, %p74
      %p77 = scmp.ne.s32.totalorder %s62, %s76
      %p78 = scmp.eq.s32.totalorder %s19, 0
      %p79 = por %p77, %p78
      %s81 = sadd.s32 %s80, 1
      %p84 = scmp.eq.s32.totalorder %s13, 3
      %p85 = scmp.ne.s32.totalorder %s80, %s82
      %p86 = scmp.eq.s32.totalorder %s13, 0
      %p87 = por %p85, %p86
      %p88 = scmp.ne.s32.totalorder %s80, %s82
      %p89 = scmp.eq.s32.totalorder %s18, 3
      %p90 = por %p88, %p89
      %p91 = scmp.ne.s32.totalorder %s82, %s83
      %p92 = scmp.eq.s32.totalorder %s18, 0
      %p93 = por %p91, %p92
      %p94 = scmp.ne.s32.totalorder %s82, %s83
      %p95 = scmp.eq.s32.totalorder %s19, 3
      %p96 = por %p94, %p95
      %p98 = scmp.ne.s32.totalorder %s83, %s97
      %p99 = scmp.eq.s32.totalorder %s19, 0
      %p100 = por %p98, %p99
      %s102 = sadd.s32 %s101, 1
      %p105 = scmp.eq.s32.totalorder %s13, 3
      %p106 = scmp.ne.s32.totalorder %s101, %s103
      %p107 = scmp.eq.s32.totalorder %s13, 0
      %p108 = por %p106, %p107
      %p109 = scmp.ne.s32.totalorder %s101, %s103
      %p110 = scmp.eq.s32.totalorder %s18, 3
      %p111 = por %p109, %p110
      %p112 = scmp.ne.s32.totalorder %s103, %s104
      %p113 = scmp.eq.s32.totalorder %s18, 0
      %p114 = por %p112, %p113
      %p115 = scmp.ne.s32.totalorder %s103, %s104
      %p116 = scmp.eq.s32.totalorder %s19, 3
      %p117 = por %p115, %p116
      %p119 = scmp.ne.s32.totalorder %s104, %s118
      %p120 = scmp.eq.s32.totalorder %s19, 0
      %p121 = por %p119, %p120
      %s123 = sadd.s32 %s122, 1
      %p126 = scmp.eq.s32.totalorder %s13, 3
      %p127 = scmp.ne.s32.totalorder %s122, %s124
      %p128 = scmp.eq.s32.totalorder %s13, 0
      %p129 = por %p127, %p128
      %p130 = scmp.ne.s32.totalorder %s122, %s124
      %p131 = scmp.eq.s32.totalorder %s18, 3
      %p132 = por %p130, %p131
      %p133 = scmp.ne.s32.totalorder %s124, %s125
      %p134 = scmp.eq.s32.totalorder %s18, 0
      %p135 = por %p133, %p134
      %p136 = scmp.ne.s32.totalorder %s124, %s125
      %p137 = scmp.eq.s32.totalorder %s19, 3
      %p138 = por %p136, %p137
      %p140 = scmp.ne.s32.totalorder %s125, %s139
      %p141 = scmp.eq.s32.totalorder %s19, 0
      %p142 = por %p140, %p141
      %s143 = ssub.s32 %s20, %s32
      %s144 = ssub.s32 %s21, %s28
      %s145 = sor.u32 %s143, %s144
      %p146 = scmp.eq.s32.totalorder %s145, 0
      %s148 = sadd.s32 %s147, 1
      %s149 = scalar_select %p146, %s147, %s148
      %p152 = pneg %p146
      %p153 = scmp.eq.s32.totalorder %s13, 3
      %p154 = por %p152, %p153
      %p155 = scmp.ne.s32.totalorder %s147, %s150
      %p156 = scmp.eq.s32.totalorder %s13, 0
      %p157 = por %p155, %p156
      %p158 = scmp.ne.s32.totalorder %s147, %s150
      %p159 = scmp.eq.s32.totalorder %s18, 3
      %p160 = por %p158, %p159
      %p161 = scmp.ne.s32.totalorder %s150, %s151
      %p162 = scmp.eq.s32.totalorder %s18, 0
      %p163 = por %p161, %p162
      %p164 = scmp.ne.s32.totalorder %s150, %s151
      %p165 = scmp.eq.s32.totalorder %s19, 3
      %p166 = por %p164, %p165
      %p168 = scmp.ne.s32.totalorder %s151, %s167
      %p169 = scmp.eq.s32.totalorder %s19, 0
      %p170 = por %p168, %p169
      %p171 = scmp.le.s32.totalorder 1, %s13
      %p172 = scmp.lt.s32.totalorder %s13, 5
      %p173 = pnand %p171, %p172
      %p174 = pneg %p173
      // Predicated region
      $region9: #{tpu_custom_call.1} parent=5 // pred_check
        _
      $region10: #{tpu_custom_call.1} parent=5 // pred_check_branch
        %176 = sbr.rel (%p173) target = $region12
      $region11: #{tpu_custom_call.1} parent=5 // pred_region
        %s177 = ssub.s32 %s13, 1
        // Predicated region
        $region13: #{tpu_custom_call.1} parent=11 // pred_check
          %p178 = pneg %p51
        $region14: #{tpu_custom_call.1} parent=11 // pred_check_branch
          %180 = sbr.rel (%p178) target = $region16
        $region15: #{tpu_custom_call.1} parent=11 // pred_region
          %p181 = scmp.lt.s32.totalorder %s22, 1
          %s182 = scalar_select %p181, %s22, 1
          %s183 = smul.addr %s182, 54
          %s184 = smul.addr %s183, 4
          %s185 = scalar_lea.vmem %s0, %s184
        $region16: #{tpu_custom_call.1} parent=11 // pred_fallthru
          _
        // Predicated region
        $region17: #{tpu_custom_call.1} parent=11 // pred_check
          %p186 = pneg %p72
        $region18: #{tpu_custom_call.1} parent=11 // pred_check_branch
          %188 = sbr.rel (%p186) target = $region20
        $region19: #{tpu_custom_call.1} parent=11 // pred_region
          %s190 = ssub.s32 36864, 36864
          %191 = vsyncadd [#allocation3], %s190
          %s192 = sshll.u32 [#allocation2], 4
          %s193 = int_to_ptr.vmem [resolvable:$true] %s192
          %198 = dma.hbm_to_vmem [thread:$0]  %s1, 36864, %s193, [#allocation3], 256, 256, 16
        $region20: #{tpu_custom_call.1} parent=11 // pred_fallthru
          _
        // Predicated region
        $region21: #{tpu_custom_call.1} parent=11 // pred_check
          %p199 = pneg %p93
        $region22: #{tpu_custom_call.1} parent=11 // pred_check_branch
          %201 = sbr.rel (%p199) target = $region24
        $region23: #{tpu_custom_call.1} parent=11 // pred_region
          %s203 = ssub.s32 64, 64
          %204 = vsyncadd [#allocation5], %s203
          %s206 = sshll.u32 [#allocation4], 4
          %s207 = int_to_ptr.vmem [resolvable:$true] %s206
          %209 = dma.hbm_to_vmem [thread:$0]  %s2, 64, %s207, [#allocation5]
        $region24: #{tpu_custom_call.1} parent=11 // pred_fallthru
          _
        // Predicated region
        $region25: #{tpu_custom_call.1} parent=11 // pred_check
          %p210 = pneg %p114
        $region26: #{tpu_custom_call.1} parent=11 // pred_check_branch
          %212 = sbr.rel (%p210) target = $region28
        $region27: #{tpu_custom_call.1} parent=11 // pred_region
          _
        $region28: #{tpu_custom_call.1} parent=11 // pred_fallthru
          _
        // Predicated region
        $region29: #{tpu_custom_call.1} parent=11 // pred_check
          %p213 = pneg %p135
        $region30: #{tpu_custom_call.1} parent=11 // pred_check_branch
          %215 = sbr.rel (%p213) target = $region32
        $region31: #{tpu_custom_call.1} parent=11 // pred_region
          %s217 = ssub.s32 16, 16
          %218 = vsyncadd [#allocation5], %s217
          %s220 = sshll.u32 [#allocation6], 4
          %s221 = int_to_ptr.vmem [resolvable:$true] %s220
          %223 = dma.hbm_to_vmem [thread:$0]  %s4, 16, %s221, [#allocation5]
        $region32: #{tpu_custom_call.1} parent=11 // pred_fallthru
          _
      $region12: #{tpu_custom_call.1} parent=5 // pred_fallthru
        _
      %p224 = scmp.lt.s32.totalorder %s13, 4
      // Predicated region
      $region33: #{tpu_custom_call.1} parent=5 // pred_check
        %p225 = pneg %p224
      $region34: #{tpu_custom_call.1} parent=5 // pred_check_branch
        %227 = sbr.rel (%p225) target = $region36
      $region35: #{tpu_custom_call.1} parent=5 // pred_region
        _
      $region36: #{tpu_custom_call.1} parent=5 // pred_fallthru
        _
      %p228 = scmp.le.s32.totalorder 1, %s13
      %p229 = scmp.lt.s32.totalorder %s13, 5
      %p230 = pnand %p228, %p229
      %p231 = pneg %p230
      // Predicated region
      $region37: #{tpu_custom_call.1} parent=5 // pred_check
        _
      $region38: #{tpu_custom_call.1} parent=5 // pred_check_branch
        %233 = sbr.rel (%p230) target = $region40
      $region39: #{tpu_custom_call.1} parent=5 // pred_region
        %s234 = ssub.s32 %s13, 1
        // Predicated region
        $region41: #{tpu_custom_call.1} parent=39 // pred_check
          %p235 = pneg %p72
        $region42: #{tpu_custom_call.1} parent=39 // pred_check_branch
          %237 = sbr.rel (%p235) target = $region44
        $region43: #{tpu_custom_call.1} parent=39 // pred_region
          %238 = dma.done [#allocation3], 36864
        $region44: #{tpu_custom_call.1} parent=39 // pred_fallthru
          _
        // Predicated region
        $region45: #{tpu_custom_call.1} parent=39 // pred_check
          %p239 = pneg %p93
        $region46: #{tpu_custom_call.1} parent=39 // pred_check_branch
          %241 = sbr.rel (%p239) target = $region48
        $region47: #{tpu_custom_call.1} parent=39 // pred_region
          %242 = dma.done [#allocation5], 64
        $region48: #{tpu_custom_call.1} parent=39 // pred_fallthru
          _
        // Predicated region
        $region49: #{tpu_custom_call.1} parent=39 // pred_check
          %p243 = pneg %p135
        $region50: #{tpu_custom_call.1} parent=39 // pred_check_branch
          %245 = sbr.rel (%p243) target = $region52
        $region51: #{tpu_custom_call.1} parent=39 // pred_region
          %246 = dma.done [#allocation5], 16
        $region52: #{tpu_custom_call.1} parent=39 // pred_fallthru
          _
        %p247 = scmp.lt.s32.totalorder %s22, 1
        %s248 = scalar_select %p247, %s22, 1
        %s249 = smul.addr %s248, 54
        %s250 = smul.addr %s249, 4
        %s251 = scalar_lea.vmem %s0, %s250
        %p252 = pneg %p51
        %p253 = pneg %p48
        %p254 = pneg %p72
        %p255 = pneg %p69
        %p256 = pneg %p93
        %p257 = pneg %p90
        %p258 = pneg %p114
        %p259 = pneg %p111
        %p260 = pneg %p135
        %p261 = pneg %p132
        %p262 = pneg %p163
        %p263 = pneg %p160
        %s264 = smul.u32 16, %s23
        %p265 = scmp.lt.s32.totalorder %s22, 1
        %s266 = scalar_select %p265, %s22, 1
        %p267 = scmp.lt.s32.totalorder %s264, 31
        %s268 = scalar_select %p267, %s264, 31
        %s269 = smul.addr %s266, 32
        %s270 = sadd.s32 %s268, %s269
        %s271 = smul.addr %s270, 4
        %s272 = scalar_lea.vmem %s5, %s271
        %p273 = scmp.lt.s32.totalorder %s22, 1
        %s274 = scalar_select %p273, %s22, 1
        %s275 = smul.addr %s274, 54
        %s276 = smul.addr %s275, 4
        %s277 = scalar_lea.vmem %s0, %s276
        %s278 = smul.u32 16, %s23
        %p279 = scmp.lt.s32.totalorder %s22, 1
        %s280 = scalar_select %p279, %s22, 1
        %p281 = scmp.lt.s32.totalorder %s278, 31
        %s282 = scalar_select %p281, %s278, 31
        %s283 = smul.addr %s280, 32
        %s284 = sadd.s32 %s282, %s283
        %s285 = smul.addr %s284, 4
        %s286 = scalar_lea.vmem %s5, %s285
        %s287 = smul.u32 16, %s23
        %s289 = smul.u32 %s23, 8
        %s290 = smul.u32 %s289, 3
        %s291 = smul.addr %s290, 4
        %s292 = scalar_lea.vmem %s277, %s291
        %v293 = vld [vmem:[%s292] sm:$0xf]
        %v294 = vld [vmem:[%s292 + $0x4] sm:$0xf]
        %v295 = vld [vmem:[%s292 + $0xc] sm:$0xf]
        %v296 = vld [vmem:[%s292 + $0x10] sm:$0xf]
        %v297 = vld [vmem:[%s292 + $0x18] sm:$0xf]
        %v298 = vld [vmem:[%s292 + $0x1c] sm:$0xf]
        %v299 = vld [vmem:[%s292 + $0x24] sm:$0xf]
        %v300 = vld [vmem:[%s292 + $0x28] sm:$0xf]
        %v301 = vld [vmem:[%s292 + $0x30] sm:$0xf]
        %v302 = vld [vmem:[%s292 + $0x34] sm:$0xf]
        %v303 = vld [vmem:[%s292 + $0x3c] sm:$0xf]
        %v304 = vld [vmem:[%s292 + $0x40] sm:$0xf]
        %v305 = vld [vmem:[%s292 + $0x48] sm:$0xf]
        %v306 = vld [vmem:[%s292 + $0x4c] sm:$0xf]
        %v307 = vld [vmem:[%s292 + $0x54] sm:$0xf]
        %v308 = vld [vmem:[%s292 + $0x58] sm:$0xf]
        %v309 = vld [vmem:[%s292 + $0x60] sm:$0xf]
        %v310 = vld [vmem:[%s292 + $0x64] sm:$0xf]
        %v311 = vld [vmem:[%s292 + $0x6c] sm:$0xf]
        %v312 = vld [vmem:[%s292 + $0x70] sm:$0xf]
        %v313 = vld [vmem:[%s292 + $0x8] sm:$0x1]
        %v314 = vld [vmem:[%s292 + $0x14] sm:$0x1]
        %v315 = vld [vmem:[%s292 + $0x20] sm:$0x1]
        %v316 = vld [vmem:[%s292 + $0x2c] sm:$0x1]
        %v317 = vld [vmem:[%s292 + $0x38] sm:$0x1]
        %v318 = vld [vmem:[%s292 + $0x44] sm:$0x1]
        %v319 = vld [vmem:[%s292 + $0x50] sm:$0x1]
        %v320 = vld [vmem:[%s292 + $0x5c] sm:$0x1]
        %v321 = vld [vmem:[%s292 + $0x68] sm:$0x1]
        %v322 = vld [vmem:[%s292 + $0x74] sm:$0x1]
        %v323 = vld [vmem:[%s292] sm:$0xe]
        %v324 = vld [vmem:[%s292 + $0xc] sm:$0xe]
        %v325 = vld [vmem:[%s292 + $0x18] sm:$0xe]
        %v326 = vld [vmem:[%s292 + $0x24] sm:$0xe]
        %v327 = vld [vmem:[%s292 + $0x30] sm:$0xe]
        %v328 = vld [vmem:[%s292 + $0x3c] sm:$0xe]
        %v329 = vld [vmem:[%s292 + $0x48] sm:$0xe]
        %v330 = vld [vmem:[%s292 + $0x54] sm:$0xe]
        %v331 = vld [vmem:[%s292 + $0x60] sm:$0xe]
        %v332 = vld [vmem:[%s292 + $0x6c] sm:$0xe]
        %v353 = vunpack.c.l.b16 %v293
        %v354 = vunpack.c.l.b16 %v294
        %v355 = vunpack.c.l.b16 %v295
        %v356 = vunpack.c.l.b16 %v296
        %v357 = vunpack.c.l.b16 %v297
        %v358 = vunpack.c.l.b16 %v298
        %v359 = vunpack.c.l.b16 %v299
        %v360 = vunpack.c.l.b16 %v300
        %v361 = vunpack.c.l.b16 %v301
        %v362 = vunpack.c.l.b16 %v302
        %v363 = vunpack.c.l.b16 %v303
        %v364 = vunpack.c.l.b16 %v304
        %v365 = vunpack.c.l.b16 %v305
        %v366 = vunpack.c.l.b16 %v306
        %v367 = vunpack.c.l.b16 %v307
        %v368 = vunpack.c.l.b16 %v308
        %v369 = vunpack.c.l.b16 %v309
        %v370 = vunpack.c.l.b16 %v310
        %v371 = vunpack.c.l.b16 %v311
        %v372 = vunpack.c.l.b16 %v312
        %v373 = vpack.c.b16 %v354, %v353
        %v374 = vpack.c.b16 %v356, %v355
        %v375 = vpack.c.b16 %v358, %v357
        %v376 = vpack.c.b16 %v360, %v359
        %v377 = vpack.c.b16 %v362, %v361
        %v378 = vpack.c.b16 %v364, %v363
        %v379 = vpack.c.b16 %v366, %v365
        %v380 = vpack.c.b16 %v368, %v367
        %v381 = vpack.c.b16 %v370, %v369
        %v382 = vpack.c.b16 %v372, %v371
        %v403 = vunpack.c.l.b16 %v313
        %v404 = vunpack.c.l.b16 %v314
        %v405 = vunpack.c.l.b16 %v315
        %v406 = vunpack.c.l.b16 %v316
        %v407 = vunpack.c.l.b16 %v317
        %v408 = vunpack.c.l.b16 %v318
        %v409 = vunpack.c.l.b16 %v319
        %v410 = vunpack.c.l.b16 %v320
        %v411 = vunpack.c.l.b16 %v321
        %v412 = vunpack.c.l.b16 %v322
        %v413 = vpack.c.b16 %v403, %v403
        %v414 = vpack.c.b16 %v404, %v404
        %v415 = vpack.c.b16 %v405, %v405
        %v416 = vpack.c.b16 %v406, %v406
        %v417 = vpack.c.b16 %v407, %v407
        %v418 = vpack.c.b16 %v408, %v408
        %v419 = vpack.c.b16 %v409, %v409
        %v420 = vpack.c.b16 %v410, %v410
        %v421 = vpack.c.b16 %v411, %v411
        %v422 = vpack.c.b16 %v412, %v412
        %vm423 = vsmask.f32 7424
        %v425 = vshrl.u32 %v373, 16
        %v427 = vshll.u32 %v373, 16
        %v429 = vrot.slane %v427, 1
        %v430 = vor.u32 %v425, %v429
        %v432 = vshll.u32 %v413, 16
        %v434 = vrot.slane %v432, 1
        %v435 = vsel %vm423, %v430, %v434
        %v437 = vshrl.u32 %v374, 16
        %v439 = vshll.u32 %v374, 16
        %v441 = vrot.slane %v439, 1
        %v442 = vor.u32 %v437, %v441
        %v444 = vshll.u32 %v414, 16
        %v446 = vrot.slane %v444, 1
        %v447 = vsel %vm423, %v442, %v446
        %v449 = vshrl.u32 %v375, 16
        %v451 = vshll.u32 %v375, 16
        %v453 = vrot.slane %v451, 1
        %v454 = vor.u32 %v449, %v453
        %v456 = vshll.u32 %v415, 16
        %v458 = vrot.slane %v456, 1
        %v459 = vsel %vm423, %v454, %v458
        %v461 = vshrl.u32 %v376, 16
        %v463 = vshll.u32 %v376, 16
        %v465 = vrot.slane %v463, 1
        %v466 = vor.u32 %v461, %v465
        %v468 = vshll.u32 %v416, 16
        %v470 = vrot.slane %v468, 1
        %v471 = vsel %vm423, %v466, %v470
        %v473 = vshrl.u32 %v377, 16
        %v475 = vshll.u32 %v377, 16
        %v477 = vrot.slane %v475, 1
        %v478 = vor.u32 %v473, %v477
        %v480 = vshll.u32 %v417, 16
        %v482 = vrot.slane %v480, 1
        %v483 = vsel %vm423, %v478, %v482
        %v485 = vshrl.u32 %v378, 16
        %v487 = vshll.u32 %v378, 16
        %v489 = vrot.slane %v487, 1
        %v490 = vor.u32 %v485, %v489
        %v492 = vshll.u32 %v418, 16
        %v494 = vrot.slane %v492, 1
        %v495 = vsel %vm423, %v490, %v494
        %v497 = vshrl.u32 %v379, 16
        %v499 = vshll.u32 %v379, 16
        %v501 = vrot.slane %v499, 1
        %v502 = vor.u32 %v497, %v501
        %v504 = vshll.u32 %v419, 16
        %v506 = vrot.slane %v504, 1
        %v507 = vsel %vm423, %v502, %v506
        %v509 = vshrl.u32 %v380, 16
        %v511 = vshll.u32 %v380, 16
        %v513 = vrot.slane %v511, 1
        %v514 = vor.u32 %v509, %v513
        %v516 = vshll.u32 %v420, 16
        %v518 = vrot.slane %v516, 1
        %v519 = vsel %vm423, %v514, %v518
        %v521 = vshrl.u32 %v381, 16
        %v523 = vshll.u32 %v381, 16
        %v525 = vrot.slane %v523, 1
        %v526 = vor.u32 %v521, %v525
        %v528 = vshll.u32 %v421, 16
        %v530 = vrot.slane %v528, 1
        %v531 = vsel %vm423, %v526, %v530
        %v533 = vshrl.u32 %v382, 16
        %v535 = vshll.u32 %v382, 16
        %v537 = vrot.slane %v535, 1
        %v538 = vor.u32 %v533, %v537
        %v540 = vshll.u32 %v422, 16
        %v542 = vrot.slane %v540, 1
        %v543 = vsel %vm423, %v538, %v542
        %v564 = vunpack.c.l.b16 %v323
        %v565 = vunpack.c.l.b16 %v324
        %v566 = vunpack.c.l.b16 %v325
        %v567 = vunpack.c.l.b16 %v326
        %v568 = vunpack.c.l.b16 %v327
        %v569 = vunpack.c.l.b16 %v328
        %v570 = vunpack.c.l.b16 %v329
        %v571 = vunpack.c.l.b16 %v330
        %v572 = vunpack.c.l.b16 %v331
        %v573 = vunpack.c.l.b16 %v332
        %v574 = vpack.c.b16 %v354, %v564
        %v575 = vpack.c.b16 %v356, %v565
        %v576 = vpack.c.b16 %v358, %v566
        %v577 = vpack.c.b16 %v360, %v567
        %v578 = vpack.c.b16 %v362, %v568
        %v579 = vpack.c.b16 %v364, %v569
        %v580 = vpack.c.b16 %v366, %v570
        %v581 = vpack.c.b16 %v368, %v571
        %v582 = vpack.c.b16 %v370, %v572
        %v583 = vpack.c.b16 %v372, %v573
        %vm584 = vcmask 1046528
        %v585 = vrot.slane %v574, 1
        %v586 = vrot.slane %v413, 1
        %v587 = vsel %vm584, %v585, %v586
        %v588 = vrot.slane %v575, 1
        %v589 = vrot.slane %v414, 1
        %v590 = vsel %vm584, %v588, %v589
        %v591 = vrot.slane %v576, 1
        %v592 = vrot.slane %v415, 1
        %v593 = vsel %vm584, %v591, %v592
        %v594 = vrot.slane %v577, 1
        %v595 = vrot.slane %v416, 1
        %v596 = vsel %vm584, %v594, %v595
        %v597 = vrot.slane %v578, 1
        %v598 = vrot.slane %v417, 1
        %v599 = vsel %vm584, %v597, %v598
        %v600 = vrot.slane %v579, 1
        %v601 = vrot.slane %v418, 1
        %v602 = vsel %vm584, %v600, %v601
        %v603 = vrot.slane %v580, 1
        %v604 = vrot.slane %v419, 1
        %v605 = vsel %vm584, %v603, %v604
        %v606 = vrot.slane %v581, 1
        %v607 = vrot.slane %v420, 1
        %v608 = vsel %vm584, %v606, %v607
        %v609 = vrot.slane %v582, 1
        %v610 = vrot.slane %v421, 1
        %v611 = vsel %vm584, %v609, %v610
        %v612 = vrot.slane %v583, 1
        %v613 = vrot.slane %v422, 1
        %v614 = vsel %vm584, %v612, %v613
        %v625 = vld [vmem:[#allocation2] sm:$0xff]
        %v626 = vld [vmem:[#allocation2 + $0x8] sm:$0xff]
        %v627 = vld [vmem:[#allocation2 + $0x10] sm:$0xff]
        %v628 = vld [vmem:[#allocation2 + $0x18] sm:$0xff]
        %v629 = vld [vmem:[#allocation2 + $0x20] sm:$0xff]
        %v630 = vld [vmem:[#allocation2 + $0x28] sm:$0xff]
        %v631 = vld [vmem:[#allocation2 + $0x30] sm:$0xff]
        %v632 = vld [vmem:[#allocation2 + $0x38] sm:$0xff]
        %v633 = vld [vmem:[#allocation2 + $0x40] sm:$0xff]
        %v634 = vld [vmem:[#allocation2 + $0x48] sm:$0xff]
        %v635 = vld [vmem:[#allocation2 + $0x50] sm:$0xff]
        %v636 = vld [vmem:[#allocation2 + $0x58] sm:$0xff]
        %v637 = vld [vmem:[#allocation2 + $0x60] sm:$0xff]
        %v638 = vld [vmem:[#allocation2 + $0x68] sm:$0xff]
        %v639 = vld [vmem:[#allocation2 + $0x70] sm:$0xff]
        %v640 = vld [vmem:[#allocation2 + $0x78] sm:$0xff]
        %v641 = vld [vmem:[#allocation2 + $0x80] sm:$0xff]
        %v642 = vld [vmem:[#allocation2 + $0x88] sm:$0xff]
        %v643 = vld [vmem:[#allocation2 + $0x90] sm:$0xff]
        %v644 = vld [vmem:[#allocation2 + $0x98] sm:$0xff]
        %v645 = vld [vmem:[#allocation2 + $0xa0] sm:$0xff]
        %v646 = vld [vmem:[#allocation2 + $0xa8] sm:$0xff]
        %v647 = vld [vmem:[#allocation2 + $0xb0] sm:$0xff]
        %v648 = vld [vmem:[#allocation2 + $0xb8] sm:$0xff]
        %v649 = vld [vmem:[#allocation2 + $0xc0] sm:$0xff]
        %v650 = vld [vmem:[#allocation2 + $0xc8] sm:$0xff]
        %v651 = vld [vmem:[#allocation2 + $0xd0] sm:$0xff]
        %v652 = vld [vmem:[#allocation2 + $0xd8] sm:$0xff]
        %v653 = vld [vmem:[#allocation2 + $0xe0] sm:$0xff]
        %v654 = vld [vmem:[#allocation2 + $0xe8] sm:$0xff]
        %v655 = vld [vmem:[#allocation2 + $0xf0] sm:$0xff]
        %v656 = vld [vmem:[#allocation2 + $0xf8] sm:$0xff]
        %v657 = vld [vmem:[#allocation2 + $0x100] sm:$0xff]
        %v658 = vld [vmem:[#allocation2 + $0x108] sm:$0xff]
        %v659 = vld [vmem:[#allocation2 + $0x110] sm:$0xff]
        %v660 = vld [vmem:[#allocation2 + $0x118] sm:$0xff]
        %v661 = vld [vmem:[#allocation2 + $0x120] sm:$0xff]
        %v662 = vld [vmem:[#allocation2 + $0x128] sm:$0xff]
        %v663 = vld [vmem:[#allocation2 + $0x130] sm:$0xff]
        %v664 = vld [vmem:[#allocation2 + $0x138] sm:$0xff]
        %v665 = vld [vmem:[#allocation2 + $0x140] sm:$0xff]
        %v666 = vld [vmem:[#allocation2 + $0x148] sm:$0xff]
        %v667 = vld [vmem:[#allocation2 + $0x150] sm:$0xff]
        %v668 = vld [vmem:[#allocation2 + $0x158] sm:$0xff]
        %v669 = vld [vmem:[#allocation2 + $0x160] sm:$0xff]
        %v670 = vld [vmem:[#allocation2 + $0x168] sm:$0xff]
        %v671 = vld [vmem:[#allocation2 + $0x170] sm:$0xff]
        %v672 = vld [vmem:[#allocation2 + $0x178] sm:$0xff]
        %v673 = vld [vmem:[#allocation2 + $0x180] sm:$0xff]
        %v674 = vld [vmem:[#allocation2 + $0x188] sm:$0xff]
        %v675 = vld [vmem:[#allocation2 + $0x190] sm:$0xff]
        %v676 = vld [vmem:[#allocation2 + $0x198] sm:$0xff]
        %v677 = vld [vmem:[#allocation2 + $0x1a0] sm:$0xff]
        %v678 = vld [vmem:[#allocation2 + $0x1a8] sm:$0xff]
        %v679 = vld [vmem:[#allocation2 + $0x1b0] sm:$0xff]
        %v680 = vld [vmem:[#allocation2 + $0x1b8] sm:$0xff]
        %v681 = vld [vmem:[#allocation2 + $0x1c0] sm:$0xff]
        %v682 = vld [vmem:[#allocation2 + $0x1c8] sm:$0xff]
        %v683 = vld [vmem:[#allocation2 + $0x1d0] sm:$0xff]
        %v684 = vld [vmem:[#allocation2 + $0x1d8] sm:$0xff]
        %v685 = vld [vmem:[#allocation2 + $0x1e0] sm:$0xff]
        %v686 = vld [vmem:[#allocation2 + $0x1e8] sm:$0xff]
        %v687 = vld [vmem:[#allocation2 + $0x1f0] sm:$0xff]
        %v688 = vld [vmem:[#allocation2 + $0x1f8] sm:$0xff]
        %v689 = vld [vmem:[#allocation2 + $0x200] sm:$0xff]
        %v690 = vld [vmem:[#allocation2 + $0x208] sm:$0xff]
        %v691 = vld [vmem:[#allocation2 + $0x210] sm:$0xff]
        %v692 = vld [vmem:[#allocation2 + $0x218] sm:$0xff]
        %v693 = vld [vmem:[#allocation2 + $0x220] sm:$0xff]
        %v694 = vld [vmem:[#allocation2 + $0x228] sm:$0xff]
        %v695 = vld [vmem:[#allocation2 + $0x230] sm:$0xff]
        %v696 = vld [vmem:[#allocation2 + $0x238] sm:$0xff]
        %v697 = vld [vmem:[#allocation2 + $0x240] sm:$0xff]
        %v698 = vld [vmem:[#allocation2 + $0x248] sm:$0xff]
        %v699 = vld [vmem:[#allocation2 + $0x250] sm:$0xff]
        %v700 = vld [vmem:[#allocation2 + $0x258] sm:$0xff]
        %v701 = vld [vmem:[#allocation2 + $0x260] sm:$0xff]
        %v702 = vld [vmem:[#allocation2 + $0x268] sm:$0xff]
        %v703 = vld [vmem:[#allocation2 + $0x270] sm:$0xff]
        %v704 = vld [vmem:[#allocation2 + $0x278] sm:$0xff]
        %v705 = vld [vmem:[#allocation2 + $0x280] sm:$0xff]
        %v706 = vld [vmem:[#allocation2 + $0x288] sm:$0xff]
        %v707 = vld [vmem:[#allocation2 + $0x290] sm:$0xff]
        %v708 = vld [vmem:[#allocation2 + $0x298] sm:$0xff]
        %v709 = vld [vmem:[#allocation2 + $0x2a0] sm:$0xff]
        %v710 = vld [vmem:[#allocation2 + $0x2a8] sm:$0xff]
        %v711 = vld [vmem:[#allocation2 + $0x2b0] sm:$0xff]
        %v712 = vld [vmem:[#allocation2 + $0x2b8] sm:$0xff]
        %v713 = vld [vmem:[#allocation2 + $0x2c0] sm:$0xff]
        %v714 = vld [vmem:[#allocation2 + $0x2c8] sm:$0xff]
        %v715 = vld [vmem:[#allocation2 + $0x2d0] sm:$0xff]
        %v716 = vld [vmem:[#allocation2 + $0x2d8] sm:$0xff]
        %v717 = vld [vmem:[#allocation2 + $0x2e0] sm:$0xff]
        %v718 = vld [vmem:[#allocation2 + $0x2e8] sm:$0xff]
        %v719 = vld [vmem:[#allocation2 + $0x2f0] sm:$0xff]
        %v720 = vld [vmem:[#allocation2 + $0x2f8] sm:$0xff]
        %s721 = scalar_lea.vmem [#allocation2], 768
        %v722 = vld [vmem:[%s721] sm:$0xff]
        %v723 = vld [vmem:[%s721 + $0x8] sm:$0xff]
        %v724 = vld [vmem:[%s721 + $0x10] sm:$0xff]
        %v725 = vld [vmem:[%s721 + $0x18] sm:$0xff]
        %v726 = vld [vmem:[%s721 + $0x20] sm:$0xff]
        %v727 = vld [vmem:[%s721 + $0x28] sm:$0xff]
        %v728 = vld [vmem:[%s721 + $0x30] sm:$0xff]
        %v729 = vld [vmem:[%s721 + $0x38] sm:$0xff]
        %v730 = vld [vmem:[%s721 + $0x40] sm:$0xff]
        %v731 = vld [vmem:[%s721 + $0x48] sm:$0xff]
        %v732 = vld [vmem:[%s721 + $0x50] sm:$0xff]
        %v733 = vld [vmem:[%s721 + $0x58] sm:$0xff]
        %v734 = vld [vmem:[%s721 + $0x60] sm:$0xff]
        %v735 = vld [vmem:[%s721 + $0x68] sm:$0xff]
        %v736 = vld [vmem:[%s721 + $0x70] sm:$0xff]
        %v737 = vld [vmem:[%s721 + $0x78] sm:$0xff]
        %v738 = vld [vmem:[%s721 + $0x80] sm:$0xff]
        %v739 = vld [vmem:[%s721 + $0x88] sm:$0xff]
        %v740 = vld [vmem:[%s721 + $0x90] sm:$0xff]
        %v741 = vld [vmem:[%s721 + $0x98] sm:$0xff]
        %v742 = vld [vmem:[%s721 + $0xa0] sm:$0xff]
        %v743 = vld [vmem:[%s721 + $0xa8] sm:$0xff]
        %v744 = vld [vmem:[%s721 + $0xb0] sm:$0xff]
        %v745 = vld [vmem:[%s721 + $0xb8] sm:$0xff]
        %v746 = vld [vmem:[%s721 + $0xc0] sm:$0xff]
        %v747 = vld [vmem:[%s721 + $0xc8] sm:$0xff]
        %v748 = vld [vmem:[%s721 + $0xd0] sm:$0xff]
        %v749 = vld [vmem:[%s721 + $0xd8] sm:$0xff]
        %v750 = vld [vmem:[%s721 + $0xe0] sm:$0xff]
        %v751 = vld [vmem:[%s721 + $0xe8] sm:$0xff]
        %v752 = vld [vmem:[%s721 + $0xf0] sm:$0xff]
        %v753 = vld [vmem:[%s721 + $0xf8] sm:$0xff]
        %v754 = vld [vmem:[%s721 + $0x100] sm:$0xff]
        %v755 = vld [vmem:[%s721 + $0x108] sm:$0xff]
        %v756 = vld [vmem:[%s721 + $0x110] sm:$0xff]
        %v757 = vld [vmem:[%s721 + $0x118] sm:$0xff]
        %v758 = vld [vmem:[%s721 + $0x120] sm:$0xff]
        %v759 = vld [vmem:[%s721 + $0x128] sm:$0xff]
        %v760 = vld [vmem:[%s721 + $0x130] sm:$0xff]
        %v761 = vld [vmem:[%s721 + $0x138] sm:$0xff]
        %v762 = vld [vmem:[%s721 + $0x140] sm:$0xff]
        %v763 = vld [vmem:[%s721 + $0x148] sm:$0xff]
        %v764 = vld [vmem:[%s721 + $0x150] sm:$0xff]
        %v765 = vld [vmem:[%s721 + $0x158] sm:$0xff]
        %v766 = vld [vmem:[%s721 + $0x160] sm:$0xff]
        %v767 = vld [vmem:[%s721 + $0x168] sm:$0xff]
        %v768 = vld [vmem:[%s721 + $0x170] sm:$0xff]
        %v769 = vld [vmem:[%s721 + $0x178] sm:$0xff]
        %v770 = vld [vmem:[%s721 + $0x180] sm:$0xff]
        %v771 = vld [vmem:[%s721 + $0x188] sm:$0xff]
        %v772 = vld [vmem:[%s721 + $0x190] sm:$0xff]
        %v773 = vld [vmem:[%s721 + $0x198] sm:$0xff]
        %v774 = vld [vmem:[%s721 + $0x1a0] sm:$0xff]
        %v775 = vld [vmem:[%s721 + $0x1a8] sm:$0xff]
        %v776 = vld [vmem:[%s721 + $0x1b0] sm:$0xff]
        %v777 = vld [vmem:[%s721 + $0x1b8] sm:$0xff]
        %v778 = vld [vmem:[%s721 + $0x1c0] sm:$0xff]
        %v779 = vld [vmem:[%s721 + $0x1c8] sm:$0xff]
        %v780 = vld [vmem:[%s721 + $0x1d0] sm:$0xff]
        %v781 = vld [vmem:[%s721 + $0x1d8] sm:$0xff]
        %v782 = vld [vmem:[%s721 + $0x1e0] sm:$0xff]
        %v783 = vld [vmem:[%s721 + $0x1e8] sm:$0xff]
        %v784 = vld [vmem:[%s721 + $0x1f0] sm:$0xff]
        %v785 = vld [vmem:[%s721 + $0x1f8] sm:$0xff]
        %v786 = vld [vmem:[%s721 + $0x200] sm:$0xff]
        %v787 = vld [vmem:[%s721 + $0x208] sm:$0xff]
        %v788 = vld [vmem:[%s721 + $0x210] sm:$0xff]
        %v789 = vld [vmem:[%s721 + $0x218] sm:$0xff]
        %v790 = vld [vmem:[%s721 + $0x220] sm:$0xff]
        %v791 = vld [vmem:[%s721 + $0x228] sm:$0xff]
        %v792 = vld [vmem:[%s721 + $0x230] sm:$0xff]
        %v793 = vld [vmem:[%s721 + $0x238] sm:$0xff]
        %v794 = vld [vmem:[%s721 + $0x240] sm:$0xff]
        %v795 = vld [vmem:[%s721 + $0x248] sm:$0xff]
        %v796 = vld [vmem:[%s721 + $0x250] sm:$0xff]
        %v797 = vld [vmem:[%s721 + $0x258] sm:$0xff]
        %v798 = vld [vmem:[%s721 + $0x260] sm:$0xff]
        %v799 = vld [vmem:[%s721 + $0x268] sm:$0xff]
        %v800 = vld [vmem:[%s721 + $0x270] sm:$0xff]
        %v801 = vld [vmem:[%s721 + $0x278] sm:$0xff]
        %v802 = vld [vmem:[%s721 + $0x280] sm:$0xff]
        %v803 = vld [vmem:[%s721 + $0x288] sm:$0xff]
        %v804 = vld [vmem:[%s721 + $0x290] sm:$0xff]
        %v805 = vld [vmem:[%s721 + $0x298] sm:$0xff]
        %v806 = vld [vmem:[%s721 + $0x2a0] sm:$0xff]
        %v807 = vld [vmem:[%s721 + $0x2a8] sm:$0xff]
        %v808 = vld [vmem:[%s721 + $0x2b0] sm:$0xff]
        %v809 = vld [vmem:[%s721 + $0x2b8] sm:$0xff]
        %v810 = vld [vmem:[%s721 + $0x2c0] sm:$0xff]
        %v811 = vld [vmem:[%s721 + $0x2c8] sm:$0xff]
        %v812 = vld [vmem:[%s721 + $0x2d0] sm:$0xff]
        %v813 = vld [vmem:[%s721 + $0x2d8] sm:$0xff]
        %v814 = vld [vmem:[%s721 + $0x2e0] sm:$0xff]
        %v815 = vld [vmem:[%s721 + $0x2e8] sm:$0xff]
        %v816 = vld [vmem:[%s721 + $0x2f0] sm:$0xff]
        %v817 = vld [vmem:[%s721 + $0x2f8] sm:$0xff]
        %v914 = vunpack.c.l.b16 %v722
        %v915 = vunpack.c.h.b16 %v722
        %v916 = vunpack.c.l.b16 %v723
        %v917 = vunpack.c.h.b16 %v723
        %v918 = vunpack.c.l.b16 %v724
        %v919 = vunpack.c.h.b16 %v724
        %v920 = vunpack.c.l.b16 %v725
        %v921 = vunpack.c.h.b16 %v725
        %v922 = vunpack.c.l.b16 %v726
        %v923 = vunpack.c.h.b16 %v726
        %v924 = vunpack.c.l.b16 %v727
        %v925 = vunpack.c.h.b16 %v727
        %v926 = vunpack.c.l.b16 %v728
        %v927 = vunpack.c.h.b16 %v728
        %v928 = vunpack.c.l.b16 %v729
        %v929 = vunpack.c.h.b16 %v729
        %v930 = vunpack.c.l.b16 %v730
        %v931 = vunpack.c.h.b16 %v730
        %v932 = vunpack.c.l.b16 %v731
        %v933 = vunpack.c.h.b16 %v731
        %v934 = vunpack.c.l.b16 %v732
        %v935 = vunpack.c.h.b16 %v732
        %v936 = vunpack.c.l.b16 %v733
        %v937 = vunpack.c.h.b16 %v733
        %v938 = vunpack.c.l.b16 %v734
        %v939 = vunpack.c.h.b16 %v734
        %v940 = vunpack.c.l.b16 %v735
        %v941 = vunpack.c.h.b16 %v735
        %v942 = vunpack.c.l.b16 %v736
        %v943 = vunpack.c.h.b16 %v736
        %v944 = vunpack.c.l.b16 %v737
        %v945 = vunpack.c.h.b16 %v737
        %v946 = vunpack.c.l.b16 %v738
        %v947 = vunpack.c.h.b16 %v738
        %v948 = vunpack.c.l.b16 %v739
        %v949 = vunpack.c.h.b16 %v739
        %v950 = vunpack.c.l.b16 %v740
        %v951 = vunpack.c.h.b16 %v740
        %v952 = vunpack.c.l.b16 %v741
        %v953 = vunpack.c.h.b16 %v741
        %v954 = vunpack.c.l.b16 %v742
        %v955 = vunpack.c.h.b16 %v742
        %v956 = vunpack.c.l.b16 %v743
        %v957 = vunpack.c.h.b16 %v743
        %v958 = vunpack.c.l.b16 %v744
        %v959 = vunpack.c.h.b16 %v744
        %v960 = vunpack.c.l.b16 %v745
        %v961 = vunpack.c.h.b16 %v745
        %v962 = vunpack.c.l.b16 %v746
        %v963 = vunpack.c.h.b16 %v746
        %v964 = vunpack.c.l.b16 %v747
        %v965 = vunpack.c.h.b16 %v747
        %v966 = vunpack.c.l.b16 %v748
        %v967 = vunpack.c.h.b16 %v748
        %v968 = vunpack.c.l.b16 %v749
        %v969 = vunpack.c.h.b16 %v749
        %v970 = vunpack.c.l.b16 %v750
        %v971 = vunpack.c.h.b16 %v750
        %v972 = vunpack.c.l.b16 %v751
        %v973 = vunpack.c.h.b16 %v751
        %v974 = vunpack.c.l.b16 %v752
        %v975 = vunpack.c.h.b16 %v752
        %v976 = vunpack.c.l.b16 %v753
        %v977 = vunpack.c.h.b16 %v753
        %v978 = vunpack.c.l.b16 %v754
        %v979 = vunpack.c.h.b16 %v754
        %v980 = vunpack.c.l.b16 %v755
        %v981 = vunpack.c.h.b16 %v755
        %v982 = vunpack.c.l.b16 %v756
        %v983 = vunpack.c.h.b16 %v756
        %v984 = vunpack.c.l.b16 %v757
        %v985 = vunpack.c.h.b16 %v757
        %v986 = vunpack.c.l.b16 %v758
        %v987 = vunpack.c.h.b16 %v758
        %v988 = vunpack.c.l.b16 %v759
        %v989 = vunpack.c.h.b16 %v759
        %v990 = vunpack.c.l.b16 %v760
        %v991 = vunpack.c.h.b16 %v760
        %v992 = vunpack.c.l.b16 %v761
        %v993 = vunpack.c.h.b16 %v761
        %v994 = vunpack.c.l.b16 %v762
        %v995 = vunpack.c.h.b16 %v762
        %v996 = vunpack.c.l.b16 %v763
        %v997 = vunpack.c.h.b16 %v763
        %v998 = vunpack.c.l.b16 %v764
        %v999 = vunpack.c.h.b16 %v764
        %v1000 = vunpack.c.l.b16 %v765
        %v1001 = vunpack.c.h.b16 %v765
        %v1002 = vunpack.c.l.b16 %v766
        %v1003 = vunpack.c.h.b16 %v766
        %v1004 = vunpack.c.l.b16 %v767
        %v1005 = vunpack.c.h.b16 %v767
        %v1006 = vunpack.c.l.b16 %v768
        %v1007 = vunpack.c.h.b16 %v768
        %v1008 = vunpack.c.l.b16 %v769
        %v1009 = vunpack.c.h.b16 %v769
        %v1010 = vunpack.c.l.b16 %v770
        %v1011 = vunpack.c.h.b16 %v770
        %v1012 = vunpack.c.l.b16 %v771
        %v1013 = vunpack.c.h.b16 %v771
        %v1014 = vunpack.c.l.b16 %v772
        %v1015 = vunpack.c.h.b16 %v772
        %v1016 = vunpack.c.l.b16 %v773
        %v1017 = vunpack.c.h.b16 %v773
        %v1018 = vunpack.c.l.b16 %v774
        %v1019 = vunpack.c.h.b16 %v774
        %v1020 = vunpack.c.l.b16 %v775
        %v1021 = vunpack.c.h.b16 %v775
        %v1022 = vunpack.c.l.b16 %v776
        %v1023 = vunpack.c.h.b16 %v776
        %v1024 = vunpack.c.l.b16 %v777
        %v1025 = vunpack.c.h.b16 %v777
        %v1026 = vunpack.c.l.b16 %v778
        %v1027 = vunpack.c.h.b16 %v778
        %v1028 = vunpack.c.l.b16 %v779
        %v1029 = vunpack.c.h.b16 %v779
        %v1030 = vunpack.c.l.b16 %v780
        %v1031 = vunpack.c.h.b16 %v780
        %v1032 = vunpack.c.l.b16 %v781
        %v1033 = vunpack.c.h.b16 %v781
        %v1034 = vunpack.c.l.b16 %v782
        %v1035 = vunpack.c.h.b16 %v782
        %v1036 = vunpack.c.l.b16 %v783
        %v1037 = vunpack.c.h.b16 %v783
        %v1038 = vunpack.c.l.b16 %v784
        %v1039 = vunpack.c.h.b16 %v784
        %v1040 = vunpack.c.l.b16 %v785
        %v1041 = vunpack.c.h.b16 %v785
        %v1042 = vunpack.c.l.b16 %v786
        %v1043 = vunpack.c.h.b16 %v786
        %v1044 = vunpack.c.l.b16 %v787
        %v1045 = vunpack.c.h.b16 %v787
        %v1046 = vunpack.c.l.b16 %v788
        %v1047 = vunpack.c.h.b16 %v788
        %v1048 = vunpack.c.l.b16 %v789
        %v1049 = vunpack.c.h.b16 %v789
        %v1050 = vunpack.c.l.b16 %v790
        %v1051 = vunpack.c.h.b16 %v790
        %v1052 = vunpack.c.l.b16 %v791
        %v1053 = vunpack.c.h.b16 %v791
        %v1054 = vunpack.c.l.b16 %v792
        %v1055 = vunpack.c.h.b16 %v792
        %v1056 = vunpack.c.l.b16 %v793
        %v1057 = vunpack.c.h.b16 %v793
        %v1058 = vunpack.c.l.b16 %v794
        %v1059 = vunpack.c.h.b16 %v794
        %v1060 = vunpack.c.l.b16 %v795
        %v1061 = vunpack.c.h.b16 %v795
        %v1062 = vunpack.c.l.b16 %v796
        %v1063 = vunpack.c.h.b16 %v796
        %v1064 = vunpack.c.l.b16 %v797
        %v1065 = vunpack.c.h.b16 %v797
        %v1066 = vunpack.c.l.b16 %v798
        %v1067 = vunpack.c.h.b16 %v798
        %v1068 = vunpack.c.l.b16 %v799
        %v1069 = vunpack.c.h.b16 %v799
        %v1070 = vunpack.c.l.b16 %v800
        %v1071 = vunpack.c.h.b16 %v800
        %v1072 = vunpack.c.l.b16 %v801
        %v1073 = vunpack.c.h.b16 %v801
        %v1074 = vunpack.c.l.b16 %v802
        %v1075 = vunpack.c.h.b16 %v802
        %v1076 = vunpack.c.l.b16 %v803
        %v1077 = vunpack.c.h.b16 %v803
        %v1078 = vunpack.c.l.b16 %v804
        %v1079 = vunpack.c.h.b16 %v804
        %v1080 = vunpack.c.l.b16 %v805
        %v1081 = vunpack.c.h.b16 %v805
        %v1082 = vunpack.c.l.b16 %v806
        %v1083 = vunpack.c.h.b16 %v806
        %v1084 = vunpack.c.l.b16 %v807
        %v1085 = vunpack.c.h.b16 %v807
        %v1086 = vunpack.c.l.b16 %v808
        %v1087 = vunpack.c.h.b16 %v808
        %v1088 = vunpack.c.l.b16 %v809
        %v1089 = vunpack.c.h.b16 %v809
        %v1090 = vunpack.c.l.b16 %v810
        %v1091 = vunpack.c.h.b16 %v810
        %v1092 = vunpack.c.l.b16 %v811
        %v1093 = vunpack.c.h.b16 %v811
        %v1094 = vunpack.c.l.b16 %v812
        %v1095 = vunpack.c.h.b16 %v812
        %v1096 = vunpack.c.l.b16 %v813
        %v1097 = vunpack.c.h.b16 %v813
        %v1098 = vunpack.c.l.b16 %v814
        %v1099 = vunpack.c.h.b16 %v814
        %v1100 = vunpack.c.l.b16 %v815
        %v1101 = vunpack.c.h.b16 %v815
        %v1102 = vunpack.c.l.b16 %v816
        %v1103 = vunpack.c.h.b16 %v816
        %v1104 = vunpack.c.l.b16 %v817
        %v1105 = vunpack.c.h.b16 %v817
        %v1106 = vpack.c.b16 %v918, %v914
        %v1107 = vpack.c.b16 %v919, %v915
        %v1108 = vpack.c.b16 %v920, %v916
        %v1109 = vpack.c.b16 %v921, %v917
        %v1110 = vpack.c.b16 %v926, %v922
        %v1111 = vpack.c.b16 %v927, %v923
        %v1112 = vpack.c.b16 %v928, %v924
        %v1113 = vpack.c.b16 %v929, %v925
        %v1114 = vpack.c.b16 %v934, %v930
        %v1115 = vpack.c.b16 %v935, %v931
        %v1116 = vpack.c.b16 %v936, %v932
        %v1117 = vpack.c.b16 %v937, %v933
        %v1118 = vpack.c.b16 %v942, %v938
        %v1119 = vpack.c.b16 %v943, %v939
        %v1120 = vpack.c.b16 %v944, %v940
        %v1121 = vpack.c.b16 %v945, %v941
        %v1122 = vpack.c.b16 %v950, %v946
        %v1123 = vpack.c.b16 %v951, %v947
        %v1124 = vpack.c.b16 %v952, %v948
        %v1125 = vpack.c.b16 %v953, %v949
        %v1126 = vpack.c.b16 %v958, %v954
        %v1127 = vpack.c.b16 %v959, %v955
        %v1128 = vpack.c.b16 %v960, %v956
        %v1129 = vpack.c.b16 %v961, %v957
        %v1130 = vpack.c.b16 %v966, %v962
        %v1131 = vpack.c.b16 %v967, %v963
        %v1132 = vpack.c.b16 %v968, %v964
        %v1133 = vpack.c.b16 %v969, %v965
        %v1134 = vpack.c.b16 %v974, %v970
        %v1135 = vpack.c.b16 %v975, %v971
        %v1136 = vpack.c.b16 %v976, %v972
        %v1137 = vpack.c.b16 %v977, %v973
        %v1138 = vpack.c.b16 %v982, %v978
        %v1139 = vpack.c.b16 %v983, %v979
        %v1140 = vpack.c.b16 %v984, %v980
        %v1141 = vpack.c.b16 %v985, %v981
        %v1142 = vpack.c.b16 %v990, %v986
        %v1143 = vpack.c.b16 %v991, %v987
        %v1144 = vpack.c.b16 %v992, %v988
        %v1145 = vpack.c.b16 %v993, %v989
        %v1146 = vpack.c.b16 %v998, %v994
        %v1147 = vpack.c.b16 %v999, %v995
        %v1148 = vpack.c.b16 %v1000, %v996
        %v1149 = vpack.c.b16 %v1001, %v997
        %v1150 = vpack.c.b16 %v1006, %v1002
        %v1151 = vpack.c.b16 %v1007, %v1003
        %v1152 = vpack.c.b16 %v1008, %v1004
        %v1153 = vpack.c.b16 %v1009, %v1005
        %v1154 = vpack.c.b16 %v1014, %v1010
        %v1155 = vpack.c.b16 %v1015, %v1011
        %v1156 = vpack.c.b16 %v1016, %v1012
        %v1157 = vpack.c.b16 %v1017, %v1013
        %v1158 = vpack.c.b16 %v1022, %v1018
        %v1159 = vpack.c.b16 %v1023, %v1019
        %v1160 = vpack.c.b16 %v1024, %v1020
        %v1161 = vpack.c.b16 %v1025, %v1021
        %v1162 = vpack.c.b16 %v1030, %v1026
        %v1163 = vpack.c.b16 %v1031, %v1027
        %v1164 = vpack.c.b16 %v1032, %v1028
        %v1165 = vpack.c.b16 %v1033, %v1029
        %v1166 = vpack.c.b16 %v1038, %v1034
        %v1167 = vpack.c.b16 %v1039, %v1035
        %v1168 = vpack.c.b16 %v1040, %v1036
        %v1169 = vpack.c.b16 %v1041, %v1037
        %v1170 = vpack.c.b16 %v1046, %v1042
        %v1171 = vpack.c.b16 %v1047, %v1043
        %v1172 = vpack.c.b16 %v1048, %v1044
        %v1173 = vpack.c.b16 %v1049, %v1045
        %v1174 = vpack.c.b16 %v1054, %v1050
        %v1175 = vpack.c.b16 %v1055, %v1051
        %v1176 = vpack.c.b16 %v1056, %v1052
        %v1177 = vpack.c.b16 %v1057, %v1053
        %v1178 = vpack.c.b16 %v1062, %v1058
        %v1179 = vpack.c.b16 %v1063, %v1059
        %v1180 = vpack.c.b16 %v1064, %v1060
        %v1181 = vpack.c.b16 %v1065, %v1061
        %v1182 = vpack.c.b16 %v1070, %v1066
        %v1183 = vpack.c.b16 %v1071, %v1067
        %v1184 = vpack.c.b16 %v1072, %v1068
        %v1185 = vpack.c.b16 %v1073, %v1069
        %v1186 = vpack.c.b16 %v1078, %v1074
        %v1187 = vpack.c.b16 %v1079, %v1075
        %v1188 = vpack.c.b16 %v1080, %v1076
        %v1189 = vpack.c.b16 %v1081, %v1077
        %v1190 = vpack.c.b16 %v1086, %v1082
        %v1191 = vpack.c.b16 %v1087, %v1083
        %v1192 = vpack.c.b16 %v1088, %v1084
        %v1193 = vpack.c.b16 %v1089, %v1085
        %v1194 = vpack.c.b16 %v1094, %v1090
        %v1195 = vpack.c.b16 %v1095, %v1091
        %v1196 = vpack.c.b16 %v1096, %v1092
        %v1197 = vpack.c.b16 %v1097, %v1093
        %v1198 = vpack.c.b16 %v1102, %v1098
        %v1199 = vpack.c.b16 %v1103, %v1099
        %v1200 = vpack.c.b16 %v1104, %v1100
        %v1201 = vpack.c.b16 %v1105, %v1101
        %1298 = vmatprep.subr.bf16.mxu0 %v1107
        %1299 = vmatpush1.bf16.msra.mxu0 %v1106
        %1300 = vmatprep.subr.bf16.mxu0 %v1111
        %1301 = vmatpush1.bf16.msra.mxu0 %v1110
        %1302 = vmatprep.subr.bf16.mxu0 %v1115
        %1303 = vmatpush1.bf16.msra.mxu0 %v1114
        %1304 = vmatprep.subr.bf16.mxu0 %v1119
        %1305 = vmatpush1.bf16.msra.mxu0 %v1118
        %1306 = vmatprep.subr.bf16.mxu0 %v1123
        %1307 = vmatpush1.bf16.msra.mxu0 %v1122
        %1308 = vmatprep.subr.bf16.mxu0 %v1127
        %1309 = vmatpush1.bf16.msra.mxu0 %v1126
        %1310 = vmatprep.subr.bf16.mxu0 %v1131
        %1311 = vmatpush1.bf16.msra.mxu0 %v1130
        %1312 = vmatprep.subr.bf16.mxu0 %v1135
        %1313 = vmatpush1.bf16.msra.mxu0 %v1134
        %1314 = vmatprep.subr.bf16.mxu0 %v1139
        %1315 = vmatpush1.bf16.msra.mxu0 %v1138
        %1316 = vmatprep.subr.bf16.mxu0 %v1143
        %1317 = vmatpush1.bf16.msra.mxu0 %v1142
        %1318 = vmatprep.subr.bf16.mxu0 %v1147
        %1319 = vmatpush1.bf16.msra.mxu0 %v1146
        %1320 = vmatprep.subr.bf16.mxu0 %v1151
        %1321 = vmatpush1.bf16.msra.mxu0 %v1150
        %1322 = vmatprep.subr.bf16.mxu0 %v1155
        %1323 = vmatpush1.bf16.msra.mxu0 %v1154
        %1324 = vmatprep.subr.bf16.mxu0 %v1159
        %1325 = vmatpush1.bf16.msra.mxu0 %v1158
        %1326 = vmatprep.subr.bf16.mxu0 %v1163
        %1327 = vmatpush1.bf16.msra.mxu0 %v1162
        %1328 = vmatprep.subr.bf16.mxu0 %v1167
        %1329 = vmatpush1.bf16.msra.mxu0 %v1166
        %1330 = vmatprep.mubr.bf16.mxu0 %v447
        %1331 = vmatmul.mubr.bf16.gmra.mrb[0].mxu0 %v374
        %v1332 = vpop.f32.mrb[0].mxu0
        %v1333 = vadd.f32 0.0, %v1332
        %v1334 = vpop.f32.mrb[0].mxu0
        %v1335 = vadd.f32 0.0, %v1334
        %v1336 = vpop.f32.mrb[0].mxu0
        %v1337 = vadd.f32 0.0, %v1336
        %v1338 = vpop.f32.mrb[0].mxu0
        %v1339 = vadd.f32 0.0, %v1338
        %1340 = vmatprep.mubr.bf16.mxu0 %v459
        %1341 = vmatmul.mubr.bf16.gmra.mrb[0].mxu0 %v375
        %v1342 = vpop.f32.mrb[0].mxu0
        %v1343 = vadd.f32 0.0, %v1342
        %v1344 = vpop.f32.mrb[0].mxu0
        %v1345 = vadd.f32 0.0, %v1344
        %v1346 = vpop.f32.mrb[0].mxu0
        %v1347 = vadd.f32 0.0, %v1346
        %v1348 = vpop.f32.mrb[0].mxu0
        %v1349 = vadd.f32 0.0, %v1348
        %1350 = vmatprep.mubr.bf16.mxu0 %v471
        %1351 = vmatmul.mubr.bf16.gmra.mrb[0].mxu0 %v376
        %v1352 = vpop.f32.mrb[0].mxu0
        %v1353 = vadd.f32 0.0, %v1352
        %v1354 = vpop.f32.mrb[0].mxu0
        %v1355 = vadd.f32 0.0, %v1354
        %v1356 = vpop.f32.mrb[0].mxu0
        %v1357 = vadd.f32 0.0, %v1356
        %v1358 = vpop.f32.mrb[0].mxu0
        %v1359 = vadd.f32 0.0, %v1358
        %1360 = vmatprep.mubr.bf16.mxu0 %v483
        %1361 = vmatmul.mubr.bf16.gmra.mrb[0].mxu0 %v377
        %v1362 = vpop.f32.mrb[0].mxu0
        %v1363 = vadd.f32 0.0, %v1362
        %v1364 = vpop.f32.mrb[0].mxu0
        %v1365 = vadd.f32 0.0, %v1364
        %v1366 = vpop.f32.mrb[0].mxu0
        %v1367 = vadd.f32 0.0, %v1366
        %v1368 = vpop.f32.mrb[0].mxu0
        %v1369 = vadd.f32 0.0, %v1368
        %1370 = vmatprep.mubr.bf16.mxu0 %v495
        %1371 = vmatmul.mubr.bf16.gmra.mrb[0].mxu0 %v378
        %v1372 = vpop.f32.mrb[0].mxu0
        %v1373 = vadd.f32 0.0, %v1372
        %v1374 = vpop.f32.mrb[0].mxu0
        %v1375 = vadd.f32 0.0, %v1374
        %v1376 = vpop.f32.mrb[0].mxu0
        %v1377 = vadd.f32 0.0, %v1376
        %v1378 = vpop.f32.mrb[0].mxu0
        %v1379 = vadd.f32 0.0, %v1378
        %1380 = vmatprep.mubr.bf16.mxu0 %v507
        %1381 = vmatmul.mubr.bf16.gmra.mrb[0].mxu0 %v379
        %v1382 = vpop.f32.mrb[0].mxu0
        %v1383 = vadd.f32 0.0, %v1382
        %v1384 = vpop.f32.mrb[0].mxu0
        %v1385 = vadd.f32 0.0, %v1384
        %v1386 = vpop.f32.mrb[0].mxu0
        %v1387 = vadd.f32 0.0, %v1386
        %v1388 = vpop.f32.mrb[0].mxu0
        %v1389 = vadd.f32 0.0, %v1388
        %1390 = vmatprep.mubr.bf16.mxu0 %v519
        %1391 = vmatmul.mubr.bf16.gmra.mrb[0].mxu0 %v380
        %v1392 = vpop.f32.mrb[0].mxu0
        %v1393 = vadd.f32 0.0, %v1392
        %v1394 = vpop.f32.mrb[0].mxu0
        %v1395 = vadd.f32 0.0, %v1394
        %v1396 = vpop.f32.mrb[0].mxu0
        %v1397 = vadd.f32 0.0, %v1396
        %v1398 = vpop.f32.mrb[0].mxu0
        %v1399 = vadd.f32 0.0, %v1398
        %1400 = vmatprep.mubr.bf16.mxu0 %v531
        %1401 = vmatmul.mubr.bf16.gmra.mrb[0].mxu0 %v381
        %v1402 = vpop.f32.mrb[0].mxu0
        %v1403 = vadd.f32 0.0, %v1402
        %v1404 = vpop.f32.mrb[0].mxu0
        %v1405 = vadd.f32 0.0, %v1404
        %v1406 = vpop.f32.mrb[0].mxu0
        %v1407 = vadd.f32 0.0, %v1406
        %v1408 = vpop.f32.mrb[0].mxu0
        %v1409 = vadd.f32 0.0, %v1408
        %1410 = vdwg.mxu0
        %1411 = vmatprep.subr.bf16.mxu0 %v1171
        %1412 = vmatpush1.bf16.msra.mxu0 %v1170
        %1413 = vmatprep.subr.bf16.mxu0 %v1175
        %1414 = vmatpush1.bf16.msra.mxu0 %v1174
        %1415 = vmatprep.subr.bf16.mxu0 %v1179
        %1416 = vmatpush1.bf16.msra.mxu0 %v1178
        %1417 = vmatprep.subr.bf16.mxu0 %v1183
        %1418 = vmatpush1.bf16.msra.mxu0 %v1182
        %1419 = vmatprep.subr.bf16.mxu0 %v1187
        %1420 = vmatpush1.bf16.msra.mxu0 %v1186
        %1421 = vmatprep.subr.bf16.mxu0 %v1191
        %1422 = vmatpush1.bf16.msra.mxu0 %v1190
        %1423 = vmatprep.subr.bf16.mxu0 %v1195
        %1424 = vmatpush1.bf16.msra.mxu0 %v1194
        %1425 = vmatprep.subr.bf16.mxu0 %v1199
        %1426 = vmatpush1.bf16.msra.mxu0 %v1198
        %1427 = vmatprep.subr.bf16.mxu0 0
        %1428 = vmatpush1.bf16.msra.mxu0 0
        %1429 = vmatprep.subr.bf16.mxu0 0
        %1430 = vmatpush1.bf16.msra.mxu0 0
        %1431 = vmatprep.subr.bf16.mxu0 0
        %1432 = vmatpush1.bf16.msra.mxu0 0
        %1433 = vmatprep.subr.bf16.mxu0 0
        %1434 = vmatpush1.bf16.msra.mxu0 0
        %1435 = vmatprep.subr.bf16.mxu0 0
        %1436 = vmatpush1.bf16.msra.mxu0 0
        %1437 = vmatprep.subr.bf16.mxu0 0
        %1438 = vmatpush1.bf16.msra.mxu0 0
        %1439 = vmatprep.subr.bf16.mxu0 0
        %1440 = vmatpush1.bf16.msra.mxu0 0
        %1441 = vmatprep.subr.bf16.mxu0 0
        %1442 = vmatpush1.bf16.msra.mxu0 0
        %1443 = vmatprep.mubr.bf16.mxu0 0
        %1444 = vmatmul.mubr.bf16.gmra.mrb[0].mxu0 %v590
        %v1445 = vpop.f32.mrb[0].mxu0
        %v1446 = vadd.f32 %v1333, %v1445
        %v1447 = vpop.f32.mrb[0].mxu0
        %v1448 = vadd.f32 %v1335, %v1447
        %v1449 = vpop.f32.mrb[0].mxu0
        %v1450 = vadd.f32 %v1337, %v1449
        %v1451 = vpop.f32.mrb[0].mxu0
        %v1452 = vadd.f32 %v1339, %v1451
        %1453 = vmatprep.mubr.bf16.mxu0 0
        %1454 = vmatmul.mubr.bf16.gmra.mrb[0].mxu0 %v593
        %v1455 = vpop.f32.mrb[0].mxu0
        %v1456 = vadd.f32 %v1343, %v1455
        %v1457 = vpop.f32.mrb[0].mxu0
        %v1458 = vadd.f32 %v1345, %v1457
        %v1459 = vpop.f32.mrb[0].mxu0
        %v1460 = vadd.f32 %v1347, %v1459
        %v1461 = vpop.f32.mrb[0].mxu0
        %v1462 = vadd.f32 %v1349, %v1461
        %1463 = vmatprep.mubr.bf16.mxu0 0
        %1464 = vmatmul.mubr.bf16.gmra.mrb[0].mxu0 %v596
        %v1465 = vpop.f32.mrb[0].mxu0
        %v1466 = vadd.f32 %v1353, %v1465
        %v1467 = vpop.f32.mrb[0].mxu0
        %v1468 = vadd.f32 %v1355, %v1467
        %v1469 = vpop.f32.mrb[0].mxu0
        %v1470 = vadd.f32 %v1357, %v1469
        %v1471 = vpop.f32.mrb[0].mxu0
        %v1472 = vadd.f32 %v1359, %v1471
        %1473 = vmatprep.mubr.bf16.mxu0 0
        %1474 = vmatmul.mubr.bf16.gmra.mrb[0].mxu0 %v599
        %v1475 = vpop.f32.mrb[0].mxu0
        %v1476 = vadd.f32 %v1363, %v1475
        %v1477 = vpop.f32.mrb[0].mxu0
        %v1478 = vadd.f32 %v1365, %v1477
        %v1479 = vpop.f32.mrb[0].mxu0
        %v1480 = vadd.f32 %v1367, %v1479
        %v1481 = vpop.f32.mrb[0].mxu0
        %v1482 = vadd.f32 %v1369, %v1481
        %1483 = vmatprep.mubr.bf16.mxu0 0
        %1484 = vmatmul.mubr.bf16.gmra.mrb[0].mxu0 %v602
        %v1485 = vpop.f32.mrb[0].mxu0
        %v1486 = vadd.f32 %v1373, %v1485
        %v1487 = vpop.f32.mrb[0].mxu0
        %v1488 = vadd.f32 %v1375, %v1487
        %v1489 = vpop.f32.mrb[0].mxu0
        %v1490 = vadd.f32 %v1377, %v1489
        %v1491 = vpop.f32.mrb[0].mxu0
        %v1492 = vadd.f32 %v1379, %v1491
        %1493 = vmatprep.mubr.bf16.mxu0 0
        %1494 = vmatmul.mubr.bf16.gmra.mrb[0].mxu0 %v605
        %v1495 = vpop.f32.mrb[0].mxu0
        %v1496 = vadd.f32 %v1383, %v1495
        %v1497 = vpop.f32.mrb[0].mxu0
        %v1498 = vadd.f32 %v1385, %v1497
        %v1499 = vpop.f32.mrb[0].mxu0
        %v1500 = vadd.f32 %v1387, %v1499
        %v1501 = vpop.f32.mrb[0].mxu0
        %v1502 = vadd.f32 %v1389, %v1501
        %1503 = vmatprep.mubr.bf16.mxu0 0
        %1504 = vmatmul.mubr.bf16.gmra.mrb[0].mxu0 %v608
        %v1505 = vpop.f32.mrb[0].mxu0
        %v1506 = vadd.f32 %v1393, %v1505
        %v1507 = vpop.f32.mrb[0].mxu0
        %v1508 = vadd.f32 %v1395, %v1507
        %v1509 = vpop.f32.mrb[0].mxu0
        %v1510 = vadd.f32 %v1397, %v1509
        %v1511 = vpop.f32.mrb[0].mxu0
        %v1512 = vadd.f32 %v1399, %v1511
        %1513 = vmatprep.mubr.bf16.mxu0 0
        %1514 = vmatmul.mubr.bf16.gmra.mrb[0].mxu0 %v611
        %v1515 = vpop.f32.mrb[0].mxu0
        %v1516 = vadd.f32 %v1403, %v1515
        %v1517 = vpop.f32.mrb[0].mxu0
        %v1518 = vadd.f32 %v1405, %v1517
        %v1519 = vpop.f32.mrb[0].mxu0
        %v1520 = vadd.f32 %v1407, %v1519
        %v1521 = vpop.f32.mrb[0].mxu0
        %v1522 = vadd.f32 %v1409, %v1521
        %1523 = vdwg.mxu0
        %1524 = vmatprep.subr.bf16.mxu0 %v1109
        %1525 = vmatpush1.bf16.msra.mxu0 %v1108
        %1526 = vmatprep.subr.bf16.mxu0 %v1113
        %1527 = vmatpush1.bf16.msra.mxu0 %v1112
        %1528 = vmatprep.subr.bf16.mxu0 %v1117
        %1529 = vmatpush1.bf16.msra.mxu0 %v1116
        %1530 = vmatprep.subr.bf16.mxu0 %v1121
        %1531 = vmatpush1.bf16.msra.mxu0 %v1120
        %1532 = vmatprep.subr.bf16.mxu0 %v1125
        %1533 = vmatpush1.bf16.msra.mxu0 %v1124
        %1534 = vmatprep.subr.bf16.mxu0 %v1129
        %1535 = vmatpush1.bf16.msra.mxu0 %v1128
        %1536 = vmatprep.subr.bf16.mxu0 %v1133
        %1537 = vmatpush1.bf16.msra.mxu0 %v1132
        %1538 = vmatprep.subr.bf16.mxu0 %v1137
        %1539 = vmatpush1.bf16.msra.mxu0 %v1136
        %1540 = vmatprep.subr.bf16.mxu0 %v1141
        %1541 = vmatpush1.bf16.msra.mxu0 %v1140
        %1542 = vmatprep.subr.bf16.mxu0 %v1145
        %1543 = vmatpush1.bf16.msra.mxu0 %v1144
        %1544 = vmatprep.subr.bf16.mxu0 %v1149
        %1545 = vmatpush1.bf16.msra.mxu0 %v1148
        %1546 = vmatprep.subr.bf16.mxu0 %v1153
        %1547 = vmatpush1.bf16.msra.mxu0 %v1152
        %1548 = vmatprep.subr.bf16.mxu0 %v1157
        %1549 = vmatpush1.bf16.msra.mxu0 %v1156
        %1550 = vmatprep.subr.bf16.mxu0 %v1161
        %1551 = vmatpush1.bf16.msra.mxu0 %v1160
        %1552 = vmatprep.subr.bf16.mxu0 %v1165
        %1553 = vmatpush1.bf16.msra.mxu0 %v1164
        %1554 = vmatprep.subr.bf16.mxu0 %v1169
        %1555 = vmatpush1.bf16.msra.mxu0 %v1168
        %1556 = vmatprep.mubr.bf16.mxu0 %v447
        %1557 = vmatmul.mubr.bf16.gmra.mrb[0].mxu0 %v374
        %v1558 = vpop.f32.mrb[0].mxu0
        %v1559 = vadd.f32 0.0, %v1558
        %v1560 = vpop.f32.mrb[0].mxu0
        %v1561 = vadd.f32 0.0, %v1560
        %v1562 = vpop.f32.mrb[0].mxu0
        %v1563 = vadd.f32 0.0, %v1562
        %v1564 = vpop.f32.mrb[0].mxu0
        %v1565 = vadd.f32 0.0, %v1564
        %1566 = vmatprep.mubr.bf16.mxu0 %v459
        %1567 = vmatmul.mubr.bf16.gmra.mrb[0].mxu0 %v375
        %v1568 = vpop.f32.mrb[0].mxu0
        %v1569 = vadd.f32 0.0, %v1568
        %v1570 = vpop.f32.mrb[0].mxu0
        %v1571 = vadd.f32 0.0, %v1570
        %v1572 = vpop.f32.mrb[0].mxu0
        %v1573 = vadd.f32 0.0, %v1572
        %v1574 = vpop.f32.mrb[0].mxu0
        %v1575 = vadd.f32 0.0, %v1574
        %1576 = vmatprep.mubr.bf16.mxu0 %v471
        %1577 = vmatmul.mubr.bf16.gmra.mrb[0].mxu0 %v376
        %v1578 = vpop.f32.mrb[0].mxu0
        %v1579 = vadd.f32 0.0, %v1578
        %v1580 = vpop.f32.mrb[0].mxu0
        %v1581 = vadd.f32 0.0, %v1580
        %v1582 = vpop.f32.mrb[0].mxu0
        %v1583 = vadd.f32 0.0, %v1582
        %v1584 = vpop.f32.mrb[0].mxu0
        %v1585 = vadd.f32 0.0, %v1584
        %1586 = vmatprep.mubr.bf16.mxu0 %v483
        %1587 = vmatmul.mubr.bf16.gmra.mrb[0].mxu0 %v377
        %v1588 = vpop.f32.mrb[0].mxu0
        %v1589 = vadd.f32 0.0, %v1588
        %v1590 = vpop.f32.mrb[0].mxu0
        %v1591 = vadd.f32 0.0, %v1590
        %v1592 = vpop.f32.mrb[0].mxu0
        %v1593 = vadd.f32 0.0, %v1592
        %v1594 = vpop.f32.mrb[0].mxu0
        %v1595 = vadd.f32 0.0, %v1594
        %1596 = vmatprep.mubr.bf16.mxu0 %v495
        %1597 = vmatmul.mubr.bf16.gmra.mrb[0].mxu0 %v378
        %v1598 = vpop.f32.mrb[0].mxu0
        %v1599 = vadd.f32 0.0, %v1598
        %v1600 = vpop.f32.mrb[0].mxu0
        %v1601 = vadd.f32 0.0, %v1600
        %v1602 = vpop.f32.mrb[0].mxu0
        %v1603 = vadd.f32 0.0, %v1602
        %v1604 = vpop.f32.mrb[0].mxu0
        %v1605 = vadd.f32 0.0, %v1604
        %1606 = vmatprep.mubr.bf16.mxu0 %v507
        %1607 = vmatmul.mubr.bf16.gmra.mrb[0].mxu0 %v379
        %v1608 = vpop.f32.mrb[0].mxu0
        %v1609 = vadd.f32 0.0, %v1608
        %v1610 = vpop.f32.mrb[0].mxu0
        %v1611 = vadd.f32 0.0, %v1610
        %v1612 = vpop.f32.mrb[0].mxu0
        %v1613 = vadd.f32 0.0, %v1612
        %v1614 = vpop.f32.mrb[0].mxu0
        %v1615 = vadd.f32 0.0, %v1614
        %1616 = vmatprep.mubr.bf16.mxu0 %v519
        %1617 = vmatmul.mubr.bf16.gmra.mrb[0].mxu0 %v380
        %v1618 = vpop.f32.mrb[0].mxu0
        %v1619 = vadd.f32 0.0, %v1618
        %v1620 = vpop.f32.mrb[0].mxu0
        %v1621 = vadd.f32 0.0, %v1620
        %v1622 = vpop.f32.mrb[0].mxu0
        %v1623 = vadd.f32 0.0, %v1622
        %v1624 = vpop.f32.mrb[0].mxu0
        %v1625 = vadd.f32 0.0, %v1624
        %1626 = vmatprep.mubr.bf16.mxu0 %v531
        %1627 = vmatmul.mubr.bf16.gmra.mrb[0].mxu0 %v381
        %v1628 = vpop.f32.mrb[0].mxu0
        %v1629 = vadd.f32 0.0, %v1628
        %v1630 = vpop.f32.mrb[0].mxu0
        %v1631 = vadd.f32 0.0, %v1630
        %v1632 = vpop.f32.mrb[0].mxu0
        %v1633 = vadd.f32 0.0, %v1632
        %v1634 = vpop.f32.mrb[0].mxu0
        %v1635 = vadd.f32 0.0, %v1634
        %1636 = vdwg.mxu0
        %1637 = vmatprep.subr.bf16.mxu0 %v1173
        %1638 = vmatpush1.bf16.msra.mxu0 %v1172
        %1639 = vmatprep.subr.bf16.mxu0 %v1177
        %1640 = vmatpush1.bf16.msra.mxu0 %v1176
        %1641 = vmatprep.subr.bf16.mxu0 %v1181
        %1642 = vmatpush1.bf16.msra.mxu0 %v1180
        %1643 = vmatprep.subr.bf16.mxu0 %v1185
        %1644 = vmatpush1.bf16.msra.mxu0 %v1184
        %1645 = vmatprep.subr.bf16.mxu0 %v1189
        %1646 = vmatpush1.bf16.msra.mxu0 %v1188
        %1647 = vmatprep.subr.bf16.mxu0 %v1193
        %1648 = vmatpush1.bf16.msra.mxu0 %v1192
        %1649 = vmatprep.subr.bf16.mxu0 %v1197
        %1650 = vmatpush1.bf16.msra.mxu0 %v1196
        %1651 = vmatprep.subr.bf16.mxu0 %v1201
        %1652 = vmatpush1.bf16.msra.mxu0 %v1200
        %1653 = vmatprep.subr.bf16.mxu0 0
        %1654 = vmatpush1.bf16.msra.mxu0 0
        %1655 = vmatprep.subr.bf16.mxu0 0
        %1656 = vmatpush1.bf16.msra.mxu0 0
        %1657 = vmatprep.subr.bf16.mxu0 0
        %1658 = vmatpush1.bf16.msra.mxu0 0
        %1659 = vmatprep.subr.bf16.mxu0 0
        %1660 = vmatpush1.bf16.msra.mxu0 0
        %1661 = vmatprep.subr.bf16.mxu0 0
        %1662 = vmatpush1.bf16.msra.mxu0 0
        %1663 = vmatprep.subr.bf16.mxu0 0
        %1664 = vmatpush1.bf16.msra.mxu0 0
        %1665 = vmatprep.subr.bf16.mxu0 0
        %1666 = vmatpush1.bf16.msra.mxu0 0
        %1667 = vmatprep.subr.bf16.mxu0 0
        %1668 = vmatpush1.bf16.msra.mxu0 0
        %1669 = vmatprep.mubr.bf16.mxu0 0
        %1670 = vmatmul.mubr.bf16.gmra.mrb[0].mxu0 %v590
        %v1671 = vpop.f32.mrb[0].mxu0
        %v1672 = vadd.f32 %v1559, %v1671
        %v1673 = vpop.f32.mrb[0].mxu0
        %v1674 = vadd.f32 %v1561, %v1673
        %v1675 = vpop.f32.mrb[0].mxu0
        %v1676 = vadd.f32 %v1563, %v1675
        %v1677 = vpop.f32.mrb[0].mxu0
        %v1678 = vadd.f32 %v1565, %v1677
        %1679 = vmatprep.mubr.bf16.mxu0 0
        %1680 = vmatmul.mubr.bf16.gmra.mrb[0].mxu0 %v593
        %v1681 = vpop.f32.mrb[0].mxu0
        %v1682 = vadd.f32 %v1569, %v1681
        %v1683 = vpop.f32.mrb[0].mxu0
        %v1684 = vadd.f32 %v1571, %v1683
        %v1685 = vpop.f32.mrb[0].mxu0
        %v1686 = vadd.f32 %v1573, %v1685
        %v1687 = vpop.f32.mrb[0].mxu0
        %v1688 = vadd.f32 %v1575, %v1687
        %1689 = vmatprep.mubr.bf16.mxu0 0
        %1690 = vmatmul.mubr.bf16.gmra.mrb[0].mxu0 %v596
        %v1691 = vpop.f32.mrb[0].mxu0
        %v1692 = vadd.f32 %v1579, %v1691
        %v1693 = vpop.f32.mrb[0].mxu0
        %v1694 = vadd.f32 %v1581, %v1693
        %v1695 = vpop.f32.mrb[0].mxu0
        %v1696 = vadd.f32 %v1583, %v1695
        %v1697 = vpop.f32.mrb[0].mxu0
        %v1698 = vadd.f32 %v1585, %v1697
        %1699 = vmatprep.mubr.bf16.mxu0 0
        %1700 = vmatmul.mubr.bf16.gmra.mrb[0].mxu0 %v599
        %v1701 = vpop.f32.mrb[0].mxu0
        %v1702 = vadd.f32 %v1589, %v1701
        %v1703 = vpop.f32.mrb[0].mxu0
        %v1704 = vadd.f32 %v1591, %v1703
        %v1705 = vpop.f32.mrb[0].mxu0
        %v1706 = vadd.f32 %v1593, %v1705
        %v1707 = vpop.f32.mrb[0].mxu0
        %v1708 = vadd.f32 %v1595, %v1707
        %1709 = vmatprep.mubr.bf16.mxu0 0
        %1710 = vmatmul.mubr.bf16.gmra.mrb[0].mxu0 %v602
        %v1711 = vpop.f32.mrb[0].mxu0
        %v1712 = vadd.f32 %v1599, %v1711
        %v1713 = vpop.f32.mrb[0].mxu0
        %v1714 = vadd.f32 %v1601, %v1713
        %v1715 = vpop.f32.mrb[0].mxu0
        %v1716 = vadd.f32 %v1603, %v1715
        %v1717 = vpop.f32.mrb[0].mxu0
        %v1718 = vadd.f32 %v1605, %v1717
        %1719 = vmatprep.mubr.bf16.mxu0 0
        %1720 = vmatmul.mubr.bf16.gmra.mrb[0].mxu0 %v605
        %v1721 = vpop.f32.mrb[0].mxu0
        %v1722 = vadd.f32 %v1609, %v1721
        %v1723 = vpop.f32.mrb[0].mxu0
        %v1724 = vadd.f32 %v1611, %v1723
        %v1725 = vpop.f32.mrb[0].mxu0
        %v1726 = vadd.f32 %v1613, %v1725
        %v1727 = vpop.f32.mrb[0].mxu0
        %v1728 = vadd.f32 %v1615, %v1727
        %1729 = vmatprep.mubr.bf16.mxu0 0
        %1730 = vmatmul.mubr.bf16.gmra.mrb[0].mxu0 %v608
        %v1731 = vpop.f32.mrb[0].mxu0
        %v1732 = vadd.f32 %v1619, %v1731
        %v1733 = vpop.f32.mrb[0].mxu0
        %v1734 = vadd.f32 %v1621, %v1733
        %v1735 = vpop.f32.mrb[0].mxu0
        %v1736 = vadd.f32 %v1623, %v1735
        %v1737 = vpop.f32.mrb[0].mxu0
        %v1738 = vadd.f32 %v1625, %v1737
        %1739 = vmatprep.mubr.bf16.mxu0 0
        %1740 = vmatmul.mubr.bf16.gmra.mrb[0].mxu0 %v611
        %v1741 = vpop.f32.mrb[0].mxu0
        %v1742 = vadd.f32 %v1629, %v1741
        %v1743 = vpop.f32.mrb[0].mxu0
        %v1744 = vadd.f32 %v1631, %v1743
        %v1745 = vpop.f32.mrb[0].mxu0
        %v1746 = vadd.f32 %v1633, %v1745
        %v1747 = vpop.f32.mrb[0].mxu0
        %v1748 = vadd.f32 %v1635, %v1747
        %1749 = vdwg.mxu0
        %v1846 = vunpack.c.l.b16 %v625
        %v1847 = vunpack.c.h.b16 %v625
        %v1848 = vunpack.c.l.b16 %v626
        %v1849 = vunpack.c.h.b16 %v626
        %v1850 = vunpack.c.l.b16 %v627
        %v1851 = vunpack.c.h.b16 %v627
        %v1852 = vunpack.c.l.b16 %v628
        %v1853 = vunpack.c.h.b16 %v628
        %v1854 = vunpack.c.l.b16 %v629
        %v1855 = vunpack.c.h.b16 %v629
        %v1856 = vunpack.c.l.b16 %v630
        %v1857 = vunpack.c.h.b16 %v630
        %v1858 = vunpack.c.l.b16 %v631
        %v1859 = vunpack.c.h.b16 %v631
        %v1860 = vunpack.c.l.b16 %v632
        %v1861 = vunpack.c.h.b16 %v632
        %v1862 = vunpack.c.l.b16 %v633
        %v1863 = vunpack.c.h.b16 %v633
        %v1864 = vunpack.c.l.b16 %v634
        %v1865 = vunpack.c.h.b16 %v634
        %v1866 = vunpack.c.l.b16 %v635
        %v1867 = vunpack.c.h.b16 %v635
        %v1868 = vunpack.c.l.b16 %v636
        %v1869 = vunpack.c.h.b16 %v636
        %v1870 = vunpack.c.l.b16 %v637
        %v1871 = vunpack.c.h.b16 %v637
        %v1872 = vunpack.c.l.b16 %v638
        %v1873 = vunpack.c.h.b16 %v638
        %v1874 = vunpack.c.l.b16 %v639
        %v1875 = vunpack.c.h.b16 %v639
        %v1876 = vunpack.c.l.b16 %v640
        %v1877 = vunpack.c.h.b16 %v640
        %v1878 = vunpack.c.l.b16 %v641
        %v1879 = vunpack.c.h.b16 %v641
        %v1880 = vunpack.c.l.b16 %v642
        %v1881 = vunpack.c.h.b16 %v642
        %v1882 = vunpack.c.l.b16 %v643
        %v1883 = vunpack.c.h.b16 %v643
        %v1884 = vunpack.c.l.b16 %v644
        %v1885 = vunpack.c.h.b16 %v644
        %v1886 = vunpack.c.l.b16 %v645
        %v1887 = vunpack.c.h.b16 %v645
        %v1888 = vunpack.c.l.b16 %v646
        %v1889 = vunpack.c.h.b16 %v646
        %v1890 = vunpack.c.l.b16 %v647
        %v1891 = vunpack.c.h.b16 %v647
        %v1892 = vunpack.c.l.b16 %v648
        %v1893 = vunpack.c.h.b16 %v648
        %v1894 = vunpack.c.l.b16 %v649
        %v1895 = vunpack.c.h.b16 %v649
        %v1896 = vunpack.c.l.b16 %v650
        %v1897 = vunpack.c.h.b16 %v650
        %v1898 = vunpack.c.l.b16 %v651
        %v1899 = vunpack.c.h.b16 %v651
        %v1900 = vunpack.c.l.b16 %v652
        %v1901 = vunpack.c.h.b16 %v652
        %v1902 = vunpack.c.l.b16 %v653
        %v1903 = vunpack.c.h.b16 %v653
        %v1904 = vunpack.c.l.b16 %v654
        %v1905 = vunpack.c.h.b16 %v654
        %v1906 = vunpack.c.l.b16 %v655
        %v1907 = vunpack.c.h.b16 %v655
        %v1908 = vunpack.c.l.b16 %v656
        %v1909 = vunpack.c.h.b16 %v656
        %v1910 = vunpack.c.l.b16 %v657
        %v1911 = vunpack.c.h.b16 %v657
        %v1912 = vunpack.c.l.b16 %v658
        %v1913 = vunpack.c.h.b16 %v658
        %v1914 = vunpack.c.l.b16 %v659
        %v1915 = vunpack.c.h.b16 %v659
        %v1916 = vunpack.c.l.b16 %v660
        %v1917 = vunpack.c.h.b16 %v660
        %v1918 = vunpack.c.l.b16 %v661
        %v1919 = vunpack.c.h.b16 %v661
        %v1920 = vunpack.c.l.b16 %v662
        %v1921 = vunpack.c.h.b16 %v662
        %v1922 = vunpack.c.l.b16 %v663
        %v1923 = vunpack.c.h.b16 %v663
        %v1924 = vunpack.c.l.b16 %v664
        %v1925 = vunpack.c.h.b16 %v664
        %v1926 = vunpack.c.l.b16 %v665
        %v1927 = vunpack.c.h.b16 %v665
        %v1928 = vunpack.c.l.b16 %v666
        %v1929 = vunpack.c.h.b16 %v666
        %v1930 = vunpack.c.l.b16 %v667
        %v1931 = vunpack.c.h.b16 %v667
        %v1932 = vunpack.c.l.b16 %v668
        %v1933 = vunpack.c.h.b16 %v668
        %v1934 = vunpack.c.l.b16 %v669
        %v1935 = vunpack.c.h.b16 %v669
        %v1936 = vunpack.c.l.b16 %v670
        %v1937 = vunpack.c.h.b16 %v670
        %v1938 = vunpack.c.l.b16 %v671
        %v1939 = vunpack.c.h.b16 %v671
        %v1940 = vunpack.c.l.b16 %v672
        %v1941 = vunpack.c.h.b16 %v672
        %v1942 = vunpack.c.l.b16 %v673
        %v1943 = vunpack.c.h.b16 %v673
        %v1944 = vunpack.c.l.b16 %v674
        %v1945 = vunpack.c.h.b16 %v674
        %v1946 = vunpack.c.l.b16 %v675
        %v1947 = vunpack.c.h.b16 %v675
        %v1948 = vunpack.c.l.b16 %v676
        %v1949 = vunpack.c.h.b16 %v676
        %v1950 = vunpack.c.l.b16 %v677
        %v1951 = vunpack.c.h.b16 %v677
        %v1952 = vunpack.c.l.b16 %v678
        %v1953 = vunpack.c.h.b16 %v678
        %v1954 = vunpack.c.l.b16 %v679
        %v1955 = vunpack.c.h.b16 %v679
        %v1956 = vunpack.c.l.b16 %v680
        %v1957 = vunpack.c.h.b16 %v680
        %v1958 = vunpack.c.l.b16 %v681
        %v1959 = vunpack.c.h.b16 %v681
        %v1960 = vunpack.c.l.b16 %v682
        %v1961 = vunpack.c.h.b16 %v682
        %v1962 = vunpack.c.l.b16 %v683
        %v1963 = vunpack.c.h.b16 %v683
        %v1964 = vunpack.c.l.b16 %v684
        %v1965 = vunpack.c.h.b16 %v684
        %v1966 = vunpack.c.l.b16 %v685
        %v1967 = vunpack.c.h.b16 %v685
        %v1968 = vunpack.c.l.b16 %v686
        %v1969 = vunpack.c.h.b16 %v686
        %v1970 = vunpack.c.l.b16 %v687
        %v1971 = vunpack.c.h.b16 %v687
        %v1972 = vunpack.c.l.b16 %v688
        %v1973 = vunpack.c.h.b16 %v688
        %v1974 = vunpack.c.l.b16 %v689
        %v1975 = vunpack.c.h.b16 %v689
        %v1976 = vunpack.c.l.b16 %v690
        %v1977 = vunpack.c.h.b16 %v690
        %v1978 = vunpack.c.l.b16 %v691
        %v1979 = vunpack.c.h.b16 %v691
        %v1980 = vunpack.c.l.b16 %v692
        %v1981 = vunpack.c.h.b16 %v692
        %v1982 = vunpack.c.l.b16 %v693
        %v1983 = vunpack.c.h.b16 %v693
        %v1984 = vunpack.c.l.b16 %v694
        %v1985 = vunpack.c.h.b16 %v694
        %v1986 = vunpack.c.l.b16 %v695
        %v1987 = vunpack.c.h.b16 %v695
        %v1988 = vunpack.c.l.b16 %v696
        %v1989 = vunpack.c.h.b16 %v696
        %v1990 = vunpack.c.l.b16 %v697
        %v1991 = vunpack.c.h.b16 %v697
        %v1992 = vunpack.c.l.b16 %v698
        %v1993 = vunpack.c.h.b16 %v698
        %v1994 = vunpack.c.l.b16 %v699
        %v1995 = vunpack.c.h.b16 %v699
        %v1996 = vunpack.c.l.b16 %v700
        %v1997 = vunpack.c.h.b16 %v700
        %v1998 = vunpack.c.l.b16 %v701
        %v1999 = vunpack.c.h.b16 %v701
        %v2000 = vunpack.c.l.b16 %v702
        %v2001 = vunpack.c.h.b16 %v702
        %v2002 = vunpack.c.l.b16 %v703
        %v2003 = vunpack.c.h.b16 %v703
        %v2004 = vunpack.c.l.b16 %v704
        %v2005 = vunpack.c.h.b16 %v704
        %v2006 = vunpack.c.l.b16 %v705
        %v2007 = vunpack.c.h.b16 %v705
        %v2008 = vunpack.c.l.b16 %v706
        %v2009 = vunpack.c.h.b16 %v706
        %v2010 = vunpack.c.l.b16 %v707
        %v2011 = vunpack.c.h.b16 %v707
        %v2012 = vunpack.c.l.b16 %v708
        %v2013 = vunpack.c.h.b16 %v708
        %v2014 = vunpack.c.l.b16 %v709
        %v2015 = vunpack.c.h.b16 %v709
        %v2016 = vunpack.c.l.b16 %v710
        %v2017 = vunpack.c.h.b16 %v710
        %v2018 = vunpack.c.l.b16 %v711
        %v2019 = vunpack.c.h.b16 %v711
        %v2020 = vunpack.c.l.b16 %v712
        %v2021 = vunpack.c.h.b16 %v712
        %v2022 = vunpack.c.l.b16 %v713
        %v2023 = vunpack.c.h.b16 %v713
        %v2024 = vunpack.c.l.b16 %v714
        %v2025 = vunpack.c.h.b16 %v714
        %v2026 = vunpack.c.l.b16 %v715
        %v2027 = vunpack.c.h.b16 %v715
        %v2028 = vunpack.c.l.b16 %v716
        %v2029 = vunpack.c.h.b16 %v716
        %v2030 = vunpack.c.l.b16 %v717
        %v2031 = vunpack.c.h.b16 %v717
        %v2032 = vunpack.c.l.b16 %v718
        %v2033 = vunpack.c.h.b16 %v718
        %v2034 = vunpack.c.l.b16 %v719
        %v2035 = vunpack.c.h.b16 %v719
        %v2036 = vunpack.c.l.b16 %v720
        %v2037 = vunpack.c.h.b16 %v720
        %v2038 = vpack.c.b16 %v1850, %v1846
        %v2039 = vpack.c.b16 %v1851, %v1847
        %v2040 = vpack.c.b16 %v1852, %v1848
        %v2041 = vpack.c.b16 %v1853, %v1849
        %v2042 = vpack.c.b16 %v1858, %v1854
        %v2043 = vpack.c.b16 %v1859, %v1855
        %v2044 = vpack.c.b16 %v1860, %v1856
        %v2045 = vpack.c.b16 %v1861, %v1857
        %v2046 = vpack.c.b16 %v1866, %v1862
        %v2047 = vpack.c.b16 %v1867, %v1863
        %v2048 = vpack.c.b16 %v1868, %v1864
        %v2049 = vpack.c.b16 %v1869, %v1865
        %v2050 = vpack.c.b16 %v1874, %v1870
        %v2051 = vpack.c.b16 %v1875, %v1871
        %v2052 = vpack.c.b16 %v1876, %v1872
        %v2053 = vpack.c.b16 %v1877, %v1873
        %v2054 = vpack.c.b16 %v1882, %v1878
        %v2055 = vpack.c.b16 %v1883, %v1879
        %v2056 = vpack.c.b16 %v1884, %v1880
        %v2057 = vpack.c.b16 %v1885, %v1881
        %v2058 = vpack.c.b16 %v1890, %v1886
        %v2059 = vpack.c.b16 %v1891, %v1887
        %v2060 = vpack.c.b16 %v1892, %v1888
        %v2061 = vpack.c.b16 %v1893, %v1889
        %v2062 = vpack.c.b16 %v1898, %v1894
        %v2063 = vpack.c.b16 %v1899, %v1895
        %v2064 = vpack.c.b16 %v1900, %v1896
        %v2065 = vpack.c.b16 %v1901, %v1897
        %v2066 = vpack.c.b16 %v1906, %v1902
        %v2067 = vpack.c.b16 %v1907, %v1903
        %v2068 = vpack.c.b16 %v1908, %v1904
        %v2069 = vpack.c.b16 %v1909, %v1905
        %v2070 = vpack.c.b16 %v1914, %v1910
        %v2071 = vpack.c.b16 %v1915, %v1911
        %v2072 = vpack.c.b16 %v1916, %v1912
        %v2073 = vpack.c.b16 %v1917, %v1913
        %v2074 = vpack.c.b16 %v1922, %v1918
        %v2075 = vpack.c.b16 %v1923, %v1919
        %v2076 = vpack.c.b16 %v1924, %v1920
        %v2077 = vpack.c.b16 %v1925, %v1921
        %v2078 = vpack.c.b16 %v1930, %v1926
        %v2079 = vpack.c.b16 %v1931, %v1927
        %v2080 = vpack.c.b16 %v1932, %v1928
        %v2081 = vpack.c.b16 %v1933, %v1929
        %v2082 = vpack.c.b16 %v1938, %v1934
        %v2083 = vpack.c.b16 %v1939, %v1935
        %v2084 = vpack.c.b16 %v1940, %v1936
        %v2085 = vpack.c.b16 %v1941, %v1937
        %v2086 = vpack.c.b16 %v1946, %v1942
        %v2087 = vpack.c.b16 %v1947, %v1943
        %v2088 = vpack.c.b16 %v1948, %v1944
        %v2089 = vpack.c.b16 %v1949, %v1945
        %v2090 = vpack.c.b16 %v1954, %v1950
        %v2091 = vpack.c.b16 %v1955, %v1951
        %v2092 = vpack.c.b16 %v1956, %v1952
        %v2093 = vpack.c.b16 %v1957, %v1953
        %v2094 = vpack.c.b16 %v1962, %v1958
        %v2095 = vpack.c.b16 %v1963, %v1959
        %v2096 = vpack.c.b16 %v1964, %v1960
        %v2097 = vpack.c.b16 %v1965, %v1961
        %v2098 = vpack.c.b16 %v1970, %v1966
        %v2099 = vpack.c.b16 %v1971, %v1967
        %v2100 = vpack.c.b16 %v1972, %v1968
        %v2101 = vpack.c.b16 %v1973, %v1969
        %v2102 = vpack.c.b16 %v1978, %v1974
        %v2103 = vpack.c.b16 %v1979, %v1975
        %v2104 = vpack.c.b16 %v1980, %v1976
        %v2105 = vpack.c.b16 %v1981, %v1977
        %v2106 = vpack.c.b16 %v1986, %v1982
        %v2107 = vpack.c.b16 %v1987, %v1983
        %v2108 = vpack.c.b16 %v1988, %v1984
        %v2109 = vpack.c.b16 %v1989, %v1985
        %v2110 = vpack.c.b16 %v1994, %v1990
        %v2111 = vpack.c.b16 %v1995, %v1991
        %v2112 = vpack.c.b16 %v1996, %v1992
        %v2113 = vpack.c.b16 %v1997, %v1993
        %v2114 = vpack.c.b16 %v2002, %v1998
        %v2115 = vpack.c.b16 %v2003, %v1999
        %v2116 = vpack.c.b16 %v2004, %v2000
        %v2117 = vpack.c.b16 %v2005, %v2001
        %v2118 = vpack.c.b16 %v2010, %v2006
        %v2119 = vpack.c.b16 %v2011, %v2007
        %v2120 = vpack.c.b16 %v2012, %v2008
        %v2121 = vpack.c.b16 %v2013, %v2009
        %v2122 = vpack.c.b16 %v2018, %v2014
        %v2123 = vpack.c.b16 %v2019, %v2015
        %v2124 = vpack.c.b16 %v2020, %v2016
        %v2125 = vpack.c.b16 %v2021, %v2017
        %v2126 = vpack.c.b16 %v2026, %v2022
        %v2127 = vpack.c.b16 %v2027, %v2023
        %v2128 = vpack.c.b16 %v2028, %v2024
        %v2129 = vpack.c.b16 %v2029, %v2025
        %v2130 = vpack.c.b16 %v2034, %v2030
        %v2131 = vpack.c.b16 %v2035, %v2031
        %v2132 = vpack.c.b16 %v2036, %v2032
        %v2133 = vpack.c.b16 %v2037, %v2033
        %2230 = vmatprep.subr.bf16.mxu0 %v2039
        %2231 = vmatpush1.bf16.msra.mxu0 %v2038
        %2232 = vmatprep.subr.bf16.mxu0 %v2043
        %2233 = vmatpush1.bf16.msra.mxu0 %v2042
        %2234 = vmatprep.subr.bf16.mxu0 %v2047
        %2235 = vmatpush1.bf16.msra.mxu0 %v2046
        %2236 = vmatprep.subr.bf16.mxu0 %v2051
        %2237 = vmatpush1.bf16.msra.mxu0 %v2050
        %2238 = vmatprep.subr.bf16.mxu0 %v2055
        %2239 = vmatpush1.bf16.msra.mxu0 %v2054
        %2240 = vmatprep.subr.bf16.mxu0 %v2059
        %2241 = vmatpush1.bf16.msra.mxu0 %v2058
        %2242 = vmatprep.subr.bf16.mxu0 %v2063
        %2243 = vmatpush1.bf16.msra.mxu0 %v2062
        %2244 = vmatprep.subr.bf16.mxu0 %v2067
        %2245 = vmatpush1.bf16.msra.mxu0 %v2066
        %2246 = vmatprep.subr.bf16.mxu0 %v2071
        %2247 = vmatpush1.bf16.msra.mxu0 %v2070
        %2248 = vmatprep.subr.bf16.mxu0 %v2075
        %2249 = vmatpush1.bf16.msra.mxu0 %v2074
        %2250 = vmatprep.subr.bf16.mxu0 %v2079
        %2251 = vmatpush1.bf16.msra.mxu0 %v2078
        %2252 = vmatprep.subr.bf16.mxu0 %v2083
        %2253 = vmatpush1.bf16.msra.mxu0 %v2082
        %2254 = vmatprep.subr.bf16.mxu0 %v2087
        %2255 = vmatpush1.bf16.msra.mxu0 %v2086
        %2256 = vmatprep.subr.bf16.mxu0 %v2091
        %2257 = vmatpush1.bf16.msra.mxu0 %v2090
        %2258 = vmatprep.subr.bf16.mxu0 %v2095
        %2259 = vmatpush1.bf16.msra.mxu0 %v2094
        %2260 = vmatprep.subr.bf16.mxu0 %v2099
        %2261 = vmatpush1.bf16.msra.mxu0 %v2098
        %2262 = vmatprep.mubr.bf16.mxu0 %v435
        %2263 = vmatmul.mubr.bf16.gmra.mrb[0].mxu0 %v373
        %v2264 = vpop.f32.mrb[0].mxu0
        %v2265 = vadd.f32 %v1446, %v2264
        %v2266 = vpop.f32.mrb[0].mxu0
        %v2267 = vadd.f32 %v1448, %v2266
        %v2268 = vpop.f32.mrb[0].mxu0
        %v2269 = vadd.f32 %v1450, %v2268
        %v2270 = vpop.f32.mrb[0].mxu0
        %v2271 = vadd.f32 %v1452, %v2270
        %2272 = vmatprep.mubr.bf16.mxu0 %v447
        %2273 = vmatmul.mubr.bf16.gmra.mrb[0].mxu0 %v374
        %v2274 = vpop.f32.mrb[0].mxu0
        %v2275 = vadd.f32 %v1456, %v2274
        %v2276 = vpop.f32.mrb[0].mxu0
        %v2277 = vadd.f32 %v1458, %v2276
        %v2278 = vpop.f32.mrb[0].mxu0
        %v2279 = vadd.f32 %v1460, %v2278
        %v2280 = vpop.f32.mrb[0].mxu0
        %v2281 = vadd.f32 %v1462, %v2280
        %2282 = vmatprep.mubr.bf16.mxu0 %v459
        %2283 = vmatmul.mubr.bf16.gmra.mrb[0].mxu0 %v375
        %v2284 = vpop.f32.mrb[0].mxu0
        %v2285 = vadd.f32 %v1466, %v2284
        %v2286 = vpop.f32.mrb[0].mxu0
        %v2287 = vadd.f32 %v1468, %v2286
        %v2288 = vpop.f32.mrb[0].mxu0
        %v2289 = vadd.f32 %v1470, %v2288
        %v2290 = vpop.f32.mrb[0].mxu0
        %v2291 = vadd.f32 %v1472, %v2290
        %2292 = vmatprep.mubr.bf16.mxu0 %v471
        %2293 = vmatmul.mubr.bf16.gmra.mrb[0].mxu0 %v376
        %v2294 = vpop.f32.mrb[0].mxu0
        %v2295 = vadd.f32 %v1476, %v2294
        %v2296 = vpop.f32.mrb[0].mxu0
        %v2297 = vadd.f32 %v1478, %v2296
        %v2298 = vpop.f32.mrb[0].mxu0
        %v2299 = vadd.f32 %v1480, %v2298
        %v2300 = vpop.f32.mrb[0].mxu0
        %v2301 = vadd.f32 %v1482, %v2300
        %2302 = vmatprep.mubr.bf16.mxu0 %v483
        %2303 = vmatmul.mubr.bf16.gmra.mrb[0].mxu0 %v377
        %v2304 = vpop.f32.mrb[0].mxu0
        %v2305 = vadd.f32 %v1486, %v2304
        %v2306 = vpop.f32.mrb[0].mxu0
        %v2307 = vadd.f32 %v1488, %v2306
        %v2308 = vpop.f32.mrb[0].mxu0
        %v2309 = vadd.f32 %v1490, %v2308
        %v2310 = vpop.f32.mrb[0].mxu0
        %v2311 = vadd.f32 %v1492, %v2310
        %2312 = vmatprep.mubr.bf16.mxu0 %v495
        %2313 = vmatmul.mubr.bf16.gmra.mrb[0].mxu0 %v378
        %v2314 = vpop.f32.mrb[0].mxu0
        %v2315 = vadd.f32 %v1496, %v2314
        %v2316 = vpop.f32.mrb[0].mxu0
        %v2317 = vadd.f32 %v1498, %v2316
        %v2318 = vpop.f32.mrb[0].mxu0
        %v2319 = vadd.f32 %v1500, %v2318
        %v2320 = vpop.f32.mrb[0].mxu0
        %v2321 = vadd.f32 %v1502, %v2320
        %2322 = vmatprep.mubr.bf16.mxu0 %v507
        %2323 = vmatmul.mubr.bf16.gmra.mrb[0].mxu0 %v379
        %v2324 = vpop.f32.mrb[0].mxu0
        %v2325 = vadd.f32 %v1506, %v2324
        %v2326 = vpop.f32.mrb[0].mxu0
        %v2327 = vadd.f32 %v1508, %v2326
        %v2328 = vpop.f32.mrb[0].mxu0
        %v2329 = vadd.f32 %v1510, %v2328
        %v2330 = vpop.f32.mrb[0].mxu0
        %v2331 = vadd.f32 %v1512, %v2330
        %2332 = vmatprep.mubr.bf16.mxu0 %v519
        %2333 = vmatmul.mubr.bf16.gmra.mrb[0].mxu0 %v380
        %v2334 = vpop.f32.mrb[0].mxu0
        %v2335 = vadd.f32 %v1516, %v2334
        %v2336 = vpop.f32.mrb[0].mxu0
        %v2337 = vadd.f32 %v1518, %v2336
        %v2338 = vpop.f32.mrb[0].mxu0
        %v2339 = vadd.f32 %v1520, %v2338
        %v2340 = vpop.f32.mrb[0].mxu0
        %v2341 = vadd.f32 %v1522, %v2340
        %2342 = vdwg.mxu0
        %2343 = vmatprep.subr.bf16.mxu0 %v2103
        %2344 = vmatpush1.bf16.msra.mxu0 %v2102
        %2345 = vmatprep.subr.bf16.mxu0 %v2107
        %2346 = vmatpush1.bf16.msra.mxu0 %v2106
        %2347 = vmatprep.subr.bf16.mxu0 %v2111
        %2348 = vmatpush1.bf16.msra.mxu0 %v2110
        %2349 = vmatprep.subr.bf16.mxu0 %v2115
        %2350 = vmatpush1.bf16.msra.mxu0 %v2114
        %2351 = vmatprep.subr.bf16.mxu0 %v2119
        %2352 = vmatpush1.bf16.msra.mxu0 %v2118
        %2353 = vmatprep.subr.bf16.mxu0 %v2123
        %2354 = vmatpush1.bf16.msra.mxu0 %v2122
        %2355 = vmatprep.subr.bf16.mxu0 %v2127
        %2356 = vmatpush1.bf16.msra.mxu0 %v2126
        %2357 = vmatprep.subr.bf16.mxu0 %v2131
        %2358 = vmatpush1.bf16.msra.mxu0 %v2130
        %2359 = vmatprep.subr.bf16.mxu0 0
        %2360 = vmatpush1.bf16.msra.mxu0 0
        %2361 = vmatprep.subr.bf16.mxu0 0
        %2362 = vmatpush1.bf16.msra.mxu0 0
        %2363 = vmatprep.subr.bf16.mxu0 0
        %2364 = vmatpush1.bf16.msra.mxu0 0
        %2365 = vmatprep.subr.bf16.mxu0 0
        %2366 = vmatpush1.bf16.msra.mxu0 0
        %2367 = vmatprep.subr.bf16.mxu0 0
        %2368 = vmatpush1.bf16.msra.mxu0 0
        %2369 = vmatprep.subr.bf16.mxu0 0
        %2370 = vmatpush1.bf16.msra.mxu0 0
        %2371 = vmatprep.subr.bf16.mxu0 0
        %2372 = vmatpush1.bf16.msra.mxu0 0
        %2373 = vmatprep.subr.bf16.mxu0 0
        %2374 = vmatpush1.bf16.msra.mxu0 0
        %2375 = vmatprep.mubr.bf16.mxu0 0
        %2376 = vmatmul.mubr.bf16.gmra.mrb[0].mxu0 %v587
        %v2377 = vpop.f32.mrb[0].mxu0
        %v2378 = vadd.f32 %v2265, %v2377
        %v2379 = vpop.f32.mrb[0].mxu0
        %v2380 = vadd.f32 %v2267, %v2379
        %v2381 = vpop.f32.mrb[0].mxu0
        %v2382 = vadd.f32 %v2269, %v2381
        %v2383 = vpop.f32.mrb[0].mxu0
        %v2384 = vadd.f32 %v2271, %v2383
        %2385 = vmatprep.mubr.bf16.mxu0 0
        %2386 = vmatmul.mubr.bf16.gmra.mrb[0].mxu0 %v590
        %v2387 = vpop.f32.mrb[0].mxu0
        %v2388 = vadd.f32 %v2275, %v2387
        %v2389 = vpop.f32.mrb[0].mxu0
        %v2390 = vadd.f32 %v2277, %v2389
        %v2391 = vpop.f32.mrb[0].mxu0
        %v2392 = vadd.f32 %v2279, %v2391
        %v2393 = vpop.f32.mrb[0].mxu0
        %v2394 = vadd.f32 %v2281, %v2393
        %2395 = vmatprep.mubr.bf16.mxu0 0
        %2396 = vmatmul.mubr.bf16.gmra.mrb[0].mxu0 %v593
        %v2397 = vpop.f32.mrb[0].mxu0
        %v2398 = vadd.f32 %v2285, %v2397
        %v2399 = vpop.f32.mrb[0].mxu0
        %v2400 = vadd.f32 %v2287, %v2399
        %v2401 = vpop.f32.mrb[0].mxu0
        %v2402 = vadd.f32 %v2289, %v2401
        %v2403 = vpop.f32.mrb[0].mxu0
        %v2404 = vadd.f32 %v2291, %v2403
        %2405 = vmatprep.mubr.bf16.mxu0 0
        %2406 = vmatmul.mubr.bf16.gmra.mrb[0].mxu0 %v596
        %v2407 = vpop.f32.mrb[0].mxu0
        %v2408 = vadd.f32 %v2295, %v2407
        %v2409 = vpop.f32.mrb[0].mxu0
        %v2410 = vadd.f32 %v2297, %v2409
        %v2411 = vpop.f32.mrb[0].mxu0
        %v2412 = vadd.f32 %v2299, %v2411
        %v2413 = vpop.f32.mrb[0].mxu0
        %v2414 = vadd.f32 %v2301, %v2413
        %2415 = vmatprep.mubr.bf16.mxu0 0
        %2416 = vmatmul.mubr.bf16.gmra.mrb[0].mxu0 %v599
        %v2417 = vpop.f32.mrb[0].mxu0
        %v2418 = vadd.f32 %v2305, %v2417
        %v2419 = vpop.f32.mrb[0].mxu0
        %v2420 = vadd.f32 %v2307, %v2419
        %v2421 = vpop.f32.mrb[0].mxu0
        %v2422 = vadd.f32 %v2309, %v2421
        %v2423 = vpop.f32.mrb[0].mxu0
        %v2424 = vadd.f32 %v2311, %v2423
        %2425 = vmatprep.mubr.bf16.mxu0 0
        %2426 = vmatmul.mubr.bf16.gmra.mrb[0].mxu0 %v602
        %v2427 = vpop.f32.mrb[0].mxu0
        %v2428 = vadd.f32 %v2315, %v2427
        %v2429 = vpop.f32.mrb[0].mxu0
        %v2430 = vadd.f32 %v2317, %v2429
        %v2431 = vpop.f32.mrb[0].mxu0
        %v2432 = vadd.f32 %v2319, %v2431
        %v2433 = vpop.f32.mrb[0].mxu0
        %v2434 = vadd.f32 %v2321, %v2433
        %2435 = vmatprep.mubr.bf16.mxu0 0
        %2436 = vmatmul.mubr.bf16.gmra.mrb[0].mxu0 %v605
        %v2437 = vpop.f32.mrb[0].mxu0
        %v2438 = vadd.f32 %v2325, %v2437
        %v2439 = vpop.f32.mrb[0].mxu0
        %v2440 = vadd.f32 %v2327, %v2439
        %v2441 = vpop.f32.mrb[0].mxu0
        %v2442 = vadd.f32 %v2329, %v2441
        %v2443 = vpop.f32.mrb[0].mxu0
        %v2444 = vadd.f32 %v2331, %v2443
        %2445 = vmatprep.mubr.bf16.mxu0 0
        %2446 = vmatmul.mubr.bf16.gmra.mrb[0].mxu0 %v608
        %v2447 = vpop.f32.mrb[0].mxu0
        %v2448 = vadd.f32 %v2335, %v2447
        %v2449 = vpop.f32.mrb[0].mxu0
        %v2450 = vadd.f32 %v2337, %v2449
        %v2451 = vpop.f32.mrb[0].mxu0
        %v2452 = vadd.f32 %v2339, %v2451
        %v2453 = vpop.f32.mrb[0].mxu0
        %v2454 = vadd.f32 %v2341, %v2453
        %2455 = vdwg.mxu0
        %2456 = vmatprep.subr.bf16.mxu0 %v2041
        %2457 = vmatpush1.bf16.msra.mxu0 %v2040
        %2458 = vmatprep.subr.bf16.mxu0 %v2045
        %2459 = vmatpush1.bf16.msra.mxu0 %v2044
        %2460 = vmatprep.subr.bf16.mxu0 %v2049
        %2461 = vmatpush1.bf16.msra.mxu0 %v2048
        %2462 = vmatprep.subr.bf16.mxu0 %v2053
        %2463 = vmatpush1.bf16.msra.mxu0 %v2052
        %2464 = vmatprep.subr.bf16.mxu0 %v2057
        %2465 = vmatpush1.bf16.msra.mxu0 %v2056
        %2466 = vmatprep.subr.bf16.mxu0 %v2061
        %2467 = vmatpush1.bf16.msra.mxu0 %v2060
        %2468 = vmatprep.subr.bf16.mxu0 %v2065
        %2469 = vmatpush1.bf16.msra.mxu0 %v2064
        %2470 = vmatprep.subr.bf16.mxu0 %v2069
        %2471 = vmatpush1.bf16.msra.mxu0 %v2068
        %2472 = vmatprep.subr.bf16.mxu0 %v2073
        %2473 = vmatpush1.bf16.msra.mxu0 %v2072
        %2474 = vmatprep.subr.bf16.mxu0 %v2077
        %2475 = vmatpush1.bf16.msra.mxu0 %v2076
        %2476 = vmatprep.subr.bf16.mxu0 %v2081
        %2477 = vmatpush1.bf16.msra.mxu0 %v2080
        %2478 = vmatprep.subr.bf16.mxu0 %v2085
        %2479 = vmatpush1.bf16.msra.mxu0 %v2084
        %2480 = vmatprep.subr.bf16.mxu0 %v2089
        %2481 = vmatpush1.bf16.msra.mxu0 %v2088
        %2482 = vmatprep.subr.bf16.mxu0 %v2093
        %2483 = vmatpush1.bf16.msra.mxu0 %v2092
        %2484 = vmatprep.subr.bf16.mxu0 %v2097
        %2485 = vmatpush1.bf16.msra.mxu0 %v2096
        %2486 = vmatprep.subr.bf16.mxu0 %v2101
        %2487 = vmatpush1.bf16.msra.mxu0 %v2100
        %2488 = vmatprep.mubr.bf16.mxu0 %v435
        %2489 = vmatmul.mubr.bf16.gmra.mrb[0].mxu0 %v373
        %v2490 = vpop.f32.mrb[0].mxu0
        %v2491 = vadd.f32 %v1672, %v2490
        %v2492 = vpop.f32.mrb[0].mxu0
        %v2493 = vadd.f32 %v1674, %v2492
        %v2494 = vpop.f32.mrb[0].mxu0
        %v2495 = vadd.f32 %v1676, %v2494
        %v2496 = vpop.f32.mrb[0].mxu0
        %v2497 = vadd.f32 %v1678, %v2496
        %2498 = vmatprep.mubr.bf16.mxu0 %v447
        %2499 = vmatmul.mubr.bf16.gmra.mrb[0].mxu0 %v374
        %v2500 = vpop.f32.mrb[0].mxu0
        %v2501 = vadd.f32 %v1682, %v2500
        %v2502 = vpop.f32.mrb[0].mxu0
        %v2503 = vadd.f32 %v1684, %v2502
        %v2504 = vpop.f32.mrb[0].mxu0
        %v2505 = vadd.f32 %v1686, %v2504
        %v2506 = vpop.f32.mrb[0].mxu0
        %v2507 = vadd.f32 %v1688, %v2506
        %2508 = vmatprep.mubr.bf16.mxu0 %v459
        %2509 = vmatmul.mubr.bf16.gmra.mrb[0].mxu0 %v375
        %v2510 = vpop.f32.mrb[0].mxu0
        %v2511 = vadd.f32 %v1692, %v2510
        %v2512 = vpop.f32.mrb[0].mxu0
        %v2513 = vadd.f32 %v1694, %v2512
        %v2514 = vpop.f32.mrb[0].mxu0
        %v2515 = vadd.f32 %v1696, %v2514
        %v2516 = vpop.f32.mrb[0].mxu0
        %v2517 = vadd.f32 %v1698, %v2516
        %2518 = vmatprep.mubr.bf16.mxu0 %v471
        %2519 = vmatmul.mubr.bf16.gmra.mrb[0].mxu0 %v376
        %v2520 = vpop.f32.mrb[0].mxu0
        %v2521 = vadd.f32 %v1702, %v2520
        %v2522 = vpop.f32.mrb[0].mxu0
        %v2523 = vadd.f32 %v1704, %v2522
        %v2524 = vpop.f32.mrb[0].mxu0
        %v2525 = vadd.f32 %v1706, %v2524
        %v2526 = vpop.f32.mrb[0].mxu0
        %v2527 = vadd.f32 %v1708, %v2526
        %2528 = vmatprep.mubr.bf16.mxu0 %v483
        %2529 = vmatmul.mubr.bf16.gmra.mrb[0].mxu0 %v377
        %v2530 = vpop.f32.mrb[0].mxu0
        %v2531 = vadd.f32 %v1712, %v2530
        %v2532 = vpop.f32.mrb[0].mxu0
        %v2533 = vadd.f32 %v1714, %v2532
        %v2534 = vpop.f32.mrb[0].mxu0
        %v2535 = vadd.f32 %v1716, %v2534
        %v2536 = vpop.f32.mrb[0].mxu0
        %v2537 = vadd.f32 %v1718, %v2536
        %2538 = vmatprep.mubr.bf16.mxu0 %v495
        %2539 = vmatmul.mubr.bf16.gmra.mrb[0].mxu0 %v378
        %v2540 = vpop.f32.mrb[0].mxu0
        %v2541 = vadd.f32 %v1722, %v2540
        %v2542 = vpop.f32.mrb[0].mxu0
        %v2543 = vadd.f32 %v1724, %v2542
        %v2544 = vpop.f32.mrb[0].mxu0
        %v2545 = vadd.f32 %v1726, %v2544
        %v2546 = vpop.f32.mrb[0].mxu0
        %v2547 = vadd.f32 %v1728, %v2546
        %2548 = vmatprep.mubr.bf16.mxu0 %v507
        %2549 = vmatmul.mubr.bf16.gmra.mrb[0].mxu0 %v379
        %v2550 = vpop.f32.mrb[0].mxu0
        %v2551 = vadd.f32 %v1732, %v2550
        %v2552 = vpop.f32.mrb[0].mxu0
        %v2553 = vadd.f32 %v1734, %v2552
        %v2554 = vpop.f32.mrb[0].mxu0
        %v2555 = vadd.f32 %v1736, %v2554
        %v2556 = vpop.f32.mrb[0].mxu0
        %v2557 = vadd.f32 %v1738, %v2556
        %2558 = vmatprep.mubr.bf16.mxu0 %v519
        %2559 = vmatmul.mubr.bf16.gmra.mrb[0].mxu0 %v380
        %v2560 = vpop.f32.mrb[0].mxu0
        %v2561 = vadd.f32 %v1742, %v2560
        %v2562 = vpop.f32.mrb[0].mxu0
        %v2563 = vadd.f32 %v1744, %v2562
        %v2564 = vpop.f32.mrb[0].mxu0
        %v2565 = vadd.f32 %v1746, %v2564
        %v2566 = vpop.f32.mrb[0].mxu0
        %v2567 = vadd.f32 %v1748, %v2566
        %2568 = vdwg.mxu0
        %2569 = vmatprep.subr.bf16.mxu0 %v2105
        %2570 = vmatpush1.bf16.msra.mxu0 %v2104
        %2571 = vmatprep.subr.bf16.mxu0 %v2109
        %2572 = vmatpush1.bf16.msra.mxu0 %v2108
        %2573 = vmatprep.subr.bf16.mxu0 %v2113
        %2574 = vmatpush1.bf16.msra.mxu0 %v2112
        %2575 = vmatprep.subr.bf16.mxu0 %v2117
        %2576 = vmatpush1.bf16.msra.mxu0 %v2116
        %2577 = vmatprep.subr.bf16.mxu0 %v2121
        %2578 = vmatpush1.bf16.msra.mxu0 %v2120
        %2579 = vmatprep.subr.bf16.mxu0 %v2125
        %2580 = vmatpush1.bf16.msra.mxu0 %v2124
        %2581 = vmatprep.subr.bf16.mxu0 %v2129
        %2582 = vmatpush1.bf16.msra.mxu0 %v2128
        %2583 = vmatprep.subr.bf16.mxu0 %v2133
        %2584 = vmatpush1.bf16.msra.mxu0 %v2132
        %2585 = vmatprep.subr.bf16.mxu0 0
        %2586 = vmatpush1.bf16.msra.mxu0 0
        %2587 = vmatprep.subr.bf16.mxu0 0
        %2588 = vmatpush1.bf16.msra.mxu0 0
        %2589 = vmatprep.subr.bf16.mxu0 0
        %2590 = vmatpush1.bf16.msra.mxu0 0
        %2591 = vmatprep.subr.bf16.mxu0 0
        %2592 = vmatpush1.bf16.msra.mxu0 0
        %2593 = vmatprep.subr.bf16.mxu0 0
        %2594 = vmatpush1.bf16.msra.mxu0 0
        %2595 = vmatprep.subr.bf16.mxu0 0
        %2596 = vmatpush1.bf16.msra.mxu0 0
        %2597 = vmatprep.subr.bf16.mxu0 0
        %2598 = vmatpush1.bf16.msra.mxu0 0
        %2599 = vmatprep.subr.bf16.mxu0 0
        %2600 = vmatpush1.bf16.msra.mxu0 0
        %2601 = vmatprep.mubr.bf16.mxu0 0
        %2602 = vmatmul.mubr.bf16.gmra.mrb[0].mxu0 %v587
        %v2603 = vpop.f32.mrb[0].mxu0
        %v2604 = vadd.f32 %v2491, %v2603
        %v2605 = vpop.f32.mrb[0].mxu0
        %v2606 = vadd.f32 %v2493, %v2605
        %v2607 = vpop.f32.mrb[0].mxu0
        %v2608 = vadd.f32 %v2495, %v2607
        %v2609 = vpop.f32.mrb[0].mxu0
        %v2610 = vadd.f32 %v2497, %v2609
        %2611 = vmatprep.mubr.bf16.mxu0 0
        %2612 = vmatmul.mubr.bf16.gmra.mrb[0].mxu0 %v590
        %v2613 = vpop.f32.mrb[0].mxu0
        %v2614 = vadd.f32 %v2501, %v2613
        %v2615 = vpop.f32.mrb[0].mxu0
        %v2616 = vadd.f32 %v2503, %v2615
        %v2617 = vpop.f32.mrb[0].mxu0
        %v2618 = vadd.f32 %v2505, %v2617
        %v2619 = vpop.f32.mrb[0].mxu0
        %v2620 = vadd.f32 %v2507, %v2619
        %2621 = vmatprep.mubr.bf16.mxu0 0
        %2622 = vmatmul.mubr.bf16.gmra.mrb[0].mxu0 %v593
        %v2623 = vpop.f32.mrb[0].mxu0
        %v2624 = vadd.f32 %v2511, %v2623
        %v2625 = vpop.f32.mrb[0].mxu0
        %v2626 = vadd.f32 %v2513, %v2625
        %v2627 = vpop.f32.mrb[0].mxu0
        %v2628 = vadd.f32 %v2515, %v2627
        %v2629 = vpop.f32.mrb[0].mxu0
        %v2630 = vadd.f32 %v2517, %v2629
        %2631 = vmatprep.mubr.bf16.mxu0 0
        %2632 = vmatmul.mubr.bf16.gmra.mrb[0].mxu0 %v596
        %v2633 = vpop.f32.mrb[0].mxu0
        %v2634 = vadd.f32 %v2521, %v2633
        %v2635 = vpop.f32.mrb[0].mxu0
        %v2636 = vadd.f32 %v2523, %v2635
        %v2637 = vpop.f32.mrb[0].mxu0
        %v2638 = vadd.f32 %v2525, %v2637
        %v2639 = vpop.f32.mrb[0].mxu0
        %v2640 = vadd.f32 %v2527, %v2639
        %2641 = vmatprep.mubr.bf16.mxu0 0
        %2642 = vmatmul.mubr.bf16.gmra.mrb[0].mxu0 %v599
        %v2643 = vpop.f32.mrb[0].mxu0
        %v2644 = vadd.f32 %v2531, %v2643
        %v2645 = vpop.f32.mrb[0].mxu0
        %v2646 = vadd.f32 %v2533, %v2645
        %v2647 = vpop.f32.mrb[0].mxu0
        %v2648 = vadd.f32 %v2535, %v2647
        %v2649 = vpop.f32.mrb[0].mxu0
        %v2650 = vadd.f32 %v2537, %v2649
        %2651 = vmatprep.mubr.bf16.mxu0 0
        %2652 = vmatmul.mubr.bf16.gmra.mrb[0].mxu0 %v602
        %v2653 = vpop.f32.mrb[0].mxu0
        %v2654 = vadd.f32 %v2541, %v2653
        %v2655 = vpop.f32.mrb[0].mxu0
        %v2656 = vadd.f32 %v2543, %v2655
        %v2657 = vpop.f32.mrb[0].mxu0
        %v2658 = vadd.f32 %v2545, %v2657
        %v2659 = vpop.f32.mrb[0].mxu0
        %v2660 = vadd.f32 %v2547, %v2659
        %2661 = vmatprep.mubr.bf16.mxu0 0
        %2662 = vmatmul.mubr.bf16.gmra.mrb[0].mxu0 %v605
        %v2663 = vpop.f32.mrb[0].mxu0
        %v2664 = vadd.f32 %v2551, %v2663
        %v2665 = vpop.f32.mrb[0].mxu0
        %v2666 = vadd.f32 %v2553, %v2665
        %v2667 = vpop.f32.mrb[0].mxu0
        %v2668 = vadd.f32 %v2555, %v2667
        %v2669 = vpop.f32.mrb[0].mxu0
        %v2670 = vadd.f32 %v2557, %v2669
        %2671 = vmatprep.mubr.bf16.mxu0 0
        %2672 = vmatmul.mubr.bf16.gmra.mrb[0].mxu0 %v608
        %v2673 = vpop.f32.mrb[0].mxu0
        %v2674 = vadd.f32 %v2561, %v2673
        %v2675 = vpop.f32.mrb[0].mxu0
        %v2676 = vadd.f32 %v2563, %v2675
        %v2677 = vpop.f32.mrb[0].mxu0
        %v2678 = vadd.f32 %v2565, %v2677
        %v2679 = vpop.f32.mrb[0].mxu0
        %v2680 = vadd.f32 %v2567, %v2679
        %2681 = vdwg.mxu0
        %s2682 = scalar_lea.vmem [#allocation2], 1536
        %v2683 = vld [vmem:[%s2682] sm:$0xff]
        %v2684 = vld [vmem:[%s2682 + $0x8] sm:$0xff]
        %v2685 = vld [vmem:[%s2682 + $0x10] sm:$0xff]
        %v2686 = vld [vmem:[%s2682 + $0x18] sm:$0xff]
        %v2687 = vld [vmem:[%s2682 + $0x20] sm:$0xff]
        %v2688 = vld [vmem:[%s2682 + $0x28] sm:$0xff]
        %v2689 = vld [vmem:[%s2682 + $0x30] sm:$0xff]
        %v2690 = vld [vmem:[%s2682 + $0x38] sm:$0xff]
        %v2691 = vld [vmem:[%s2682 + $0x40] sm:$0xff]
        %v2692 = vld [vmem:[%s2682 + $0x48] sm:$0xff]
        %v2693 = vld [vmem:[%s2682 + $0x50] sm:$0xff]
        %v2694 = vld [vmem:[%s2682 + $0x58] sm:$0xff]
        %v2695 = vld [vmem:[%s2682 + $0x60] sm:$0xff]
        %v2696 = vld [vmem:[%s2682 + $0x68] sm:$0xff]
        %v2697 = vld [vmem:[%s2682 + $0x70] sm:$0xff]
        %v2698 = vld [vmem:[%s2682 + $0x78] sm:$0xff]
        %v2699 = vld [vmem:[%s2682 + $0x80] sm:$0xff]
        %v2700 = vld [vmem:[%s2682 + $0x88] sm:$0xff]
        %v2701 = vld [vmem:[%s2682 + $0x90] sm:$0xff]
        %v2702 = vld [vmem:[%s2682 + $0x98] sm:$0xff]
        %v2703 = vld [vmem:[%s2682 + $0xa0] sm:$0xff]
        %v2704 = vld [vmem:[%s2682 + $0xa8] sm:$0xff]
        %v2705 = vld [vmem:[%s2682 + $0xb0] sm:$0xff]
        %v2706 = vld [vmem:[%s2682 + $0xb8] sm:$0xff]
        %v2707 = vld [vmem:[%s2682 + $0xc0] sm:$0xff]
        %v2708 = vld [vmem:[%s2682 + $0xc8] sm:$0xff]
        %v2709 = vld [vmem:[%s2682 + $0xd0] sm:$0xff]
        %v2710 = vld [vmem:[%s2682 + $0xd8] sm:$0xff]
        %v2711 = vld [vmem:[%s2682 + $0xe0] sm:$0xff]
        %v2712 = vld [vmem:[%s2682 + $0xe8] sm:$0xff]
        %v2713 = vld [vmem:[%s2682 + $0xf0] sm:$0xff]
        %v2714 = vld [vmem:[%s2682 + $0xf8] sm:$0xff]
        %v2715 = vld [vmem:[%s2682 + $0x100] sm:$0xff]
        %v2716 = vld [vmem:[%s2682 + $0x108] sm:$0xff]
        %v2717 = vld [vmem:[%s2682 + $0x110] sm:$0xff]
        %v2718 = vld [vmem:[%s2682 + $0x118] sm:$0xff]
        %v2719 = vld [vmem:[%s2682 + $0x120] sm:$0xff]
        %v2720 = vld [vmem:[%s2682 + $0x128] sm:$0xff]
        %v2721 = vld [vmem:[%s2682 + $0x130] sm:$0xff]
        %v2722 = vld [vmem:[%s2682 + $0x138] sm:$0xff]
        %v2723 = vld [vmem:[%s2682 + $0x140] sm:$0xff]
        %v2724 = vld [vmem:[%s2682 + $0x148] sm:$0xff]
        %v2725 = vld [vmem:[%s2682 + $0x150] sm:$0xff]
        %v2726 = vld [vmem:[%s2682 + $0x158] sm:$0xff]
        %v2727 = vld [vmem:[%s2682 + $0x160] sm:$0xff]
        %v2728 = vld [vmem:[%s2682 + $0x168] sm:$0xff]
        %v2729 = vld [vmem:[%s2682 + $0x170] sm:$0xff]
        %v2730 = vld [vmem:[%s2682 + $0x178] sm:$0xff]
        %v2731 = vld [vmem:[%s2682 + $0x180] sm:$0xff]
        %v2732 = vld [vmem:[%s2682 + $0x188] sm:$0xff]
        %v2733 = vld [vmem:[%s2682 + $0x190] sm:$0xff]
        %v2734 = vld [vmem:[%s2682 + $0x198] sm:$0xff]
        %v2735 = vld [vmem:[%s2682 + $0x1a0] sm:$0xff]
        %v2736 = vld [vmem:[%s2682 + $0x1a8] sm:$0xff]
        %v2737 = vld [vmem:[%s2682 + $0x1b0] sm:$0xff]
        %v2738 = vld [vmem:[%s2682 + $0x1b8] sm:$0xff]
        %v2739 = vld [vmem:[%s2682 + $0x1c0] sm:$0xff]
        %v2740 = vld [vmem:[%s2682 + $0x1c8] sm:$0xff]
        %v2741 = vld [vmem:[%s2682 + $0x1d0] sm:$0xff]
        %v2742 = vld [vmem:[%s2682 + $0x1d8] sm:$0xff]
        %v2743 = vld [vmem:[%s2682 + $0x1e0] sm:$0xff]
        %v2744 = vld [vmem:[%s2682 + $0x1e8] sm:$0xff]
        %v2745 = vld [vmem:[%s2682 + $0x1f0] sm:$0xff]
        %v2746 = vld [vmem:[%s2682 + $0x1f8] sm:$0xff]
        %v2747 = vld [vmem:[%s2682 + $0x200] sm:$0xff]
        %v2748 = vld [vmem:[%s2682 + $0x208] sm:$0xff]
        %v2749 = vld [vmem:[%s2682 + $0x210] sm:$0xff]
        %v2750 = vld [vmem:[%s2682 + $0x218] sm:$0xff]
        %v2751 = vld [vmem:[%s2682 + $0x220] sm:$0xff]
        %v2752 = vld [vmem:[%s2682 + $0x228] sm:$0xff]
        %v2753 = vld [vmem:[%s2682 + $0x230] sm:$0xff]
        %v2754 = vld [vmem:[%s2682 + $0x238] sm:$0xff]
        %v2755 = vld [vmem:[%s2682 + $0x240] sm:$0xff]
        %v2756 = vld [vmem:[%s2682 + $0x248] sm:$0xff]
        %v2757 = vld [vmem:[%s2682 + $0x250] sm:$0xff]
        %v2758 = vld [vmem:[%s2682 + $0x258] sm:$0xff]
        %v2759 = vld [vmem:[%s2682 + $0x260] sm:$0xff]
        %v2760 = vld [vmem:[%s2682 + $0x268] sm:$0xff]
        %v2761 = vld [vmem:[%s2682 + $0x270] sm:$0xff]
        %v2762 = vld [vmem:[%s2682 + $0x278] sm:$0xff]
        %v2763 = vld [vmem:[%s2682 + $0x280] sm:$0xff]
        %v2764 = vld [vmem:[%s2682 + $0x288] sm:$0xff]
        %v2765 = vld [vmem:[%s2682 + $0x290] sm:$0xff]
        %v2766 = vld [vmem:[%s2682 + $0x298] sm:$0xff]
        %v2767 = vld [vmem:[%s2682 + $0x2a0] sm:$0xff]
        %v2768 = vld [vmem:[%s2682 + $0x2a8] sm:$0xff]
        %v2769 = vld [vmem:[%s2682 + $0x2b0] sm:$0xff]
        %v2770 = vld [vmem:[%s2682 + $0x2b8] sm:$0xff]
        %v2771 = vld [vmem:[%s2682 + $0x2c0] sm:$0xff]
        %v2772 = vld [vmem:[%s2682 + $0x2c8] sm:$0xff]
        %v2773 = vld [vmem:[%s2682 + $0x2d0] sm:$0xff]
        %v2774 = vld [vmem:[%s2682 + $0x2d8] sm:$0xff]
        %v2775 = vld [vmem:[%s2682 + $0x2e0] sm:$0xff]
        %v2776 = vld [vmem:[%s2682 + $0x2e8] sm:$0xff]
        %v2777 = vld [vmem:[%s2682 + $0x2f0] sm:$0xff]
        %v2778 = vld [vmem:[%s2682 + $0x2f8] sm:$0xff]
        %v2875 = vunpack.c.l.b16 %v2683
        %v2876 = vunpack.c.h.b16 %v2683
        %v2877 = vunpack.c.l.b16 %v2684
        %v2878 = vunpack.c.h.b16 %v2684
        %v2879 = vunpack.c.l.b16 %v2685
        %v2880 = vunpack.c.h.b16 %v2685
        %v2881 = vunpack.c.l.b16 %v2686
        %v2882 = vunpack.c.h.b16 %v2686
        %v2883 = vunpack.c.l.b16 %v2687
        %v2884 = vunpack.c.h.b16 %v2687
        %v2885 = vunpack.c.l.b16 %v2688
        %v2886 = vunpack.c.h.b16 %v2688
        %v2887 = vunpack.c.l.b16 %v2689
        %v2888 = vunpack.c.h.b16 %v2689
        %v2889 = vunpack.c.l.b16 %v2690
        %v2890 = vunpack.c.h.b16 %v2690
        %v2891 = vunpack.c.l.b16 %v2691
        %v2892 = vunpack.c.h.b16 %v2691
        %v2893 = vunpack.c.l.b16 %v2692
        %v2894 = vunpack.c.h.b16 %v2692
        %v2895 = vunpack.c.l.b16 %v2693
        %v2896 = vunpack.c.h.b16 %v2693
        %v2897 = vunpack.c.l.b16 %v2694
        %v2898 = vunpack.c.h.b16 %v2694
        %v2899 = vunpack.c.l.b16 %v2695
        %v2900 = vunpack.c.h.b16 %v2695
        %v2901 = vunpack.c.l.b16 %v2696
        %v2902 = vunpack.c.h.b16 %v2696
        %v2903 = vunpack.c.l.b16 %v2697
        %v2904 = vunpack.c.h.b16 %v2697
        %v2905 = vunpack.c.l.b16 %v2698
        %v2906 = vunpack.c.h.b16 %v2698
        %v2907 = vunpack.c.l.b16 %v2699
        %v2908 = vunpack.c.h.b16 %v2699
        %v2909 = vunpack.c.l.b16 %v2700
        %v2910 = vunpack.c.h.b16 %v2700
        %v2911 = vunpack.c.l.b16 %v2701
        %v2912 = vunpack.c.h.b16 %v2701
        %v2913 = vunpack.c.l.b16 %v2702
        %v2914 = vunpack.c.h.b16 %v2702
        %v2915 = vunpack.c.l.b16 %v2703
        %v2916 = vunpack.c.h.b16 %v2703
        %v2917 = vunpack.c.l.b16 %v2704
        %v2918 = vunpack.c.h.b16 %v2704
        %v2919 = vunpack.c.l.b16 %v2705
        %v2920 = vunpack.c.h.b16 %v2705
        %v2921 = vunpack.c.l.b16 %v2706
        %v2922 = vunpack.c.h.b16 %v2706
        %v2923 = vunpack.c.l.b16 %v2707
        %v2924 = vunpack.c.h.b16 %v2707
        %v2925 = vunpack.c.l.b16 %v2708
        %v2926 = vunpack.c.h.b16 %v2708
        %v2927 = vunpack.c.l.b16 %v2709
        %v2928 = vunpack.c.h.b16 %v2709
        %v2929 = vunpack.c.l.b16 %v2710
        %v2930 = vunpack.c.h.b16 %v2710
        %v2931 = vunpack.c.l.b16 %v2711
        %v2932 = vunpack.c.h.b16 %v2711
        %v2933 = vunpack.c.l.b16 %v2712
        %v2934 = vunpack.c.h.b16 %v2712
        %v2935 = vunpack.c.l.b16 %v2713
        %v2936 = vunpack.c.h.b16 %v2713
        %v2937 = vunpack.c.l.b16 %v2714
        %v2938 = vunpack.c.h.b16 %v2714
        %v2939 = vunpack.c.l.b16 %v2715
        %v2940 = vunpack.c.h.b16 %v2715
        %v2941 = vunpack.c.l.b16 %v2716
        %v2942 = vunpack.c.h.b16 %v2716
        %v2943 = vunpack.c.l.b16 %v2717
        %v2944 = vunpack.c.h.b16 %v2717
        %v2945 = vunpack.c.l.b16 %v2718
        %v2946 = vunpack.c.h.b16 %v2718
        %v2947 = vunpack.c.l.b16 %v2719
        %v2948 = vunpack.c.h.b16 %v2719
        %v2949 = vunpack.c.l.b16 %v2720
        %v2950 = vunpack.c.h.b16 %v2720
        %v2951 = vunpack.c.l.b16 %v2721
        %v2952 = vunpack.c.h.b16 %v2721
        %v2953 = vunpack.c.l.b16 %v2722
        %v2954 = vunpack.c.h.b16 %v2722
        %v2955 = vunpack.c.l.b16 %v2723
        %v2956 = vunpack.c.h.b16 %v2723
        %v2957 = vunpack.c.l.b16 %v2724
        %v2958 = vunpack.c.h.b16 %v2724
        %v2959 = vunpack.c.l.b16 %v2725
        %v2960 = vunpack.c.h.b16 %v2725
        %v2961 = vunpack.c.l.b16 %v2726
        %v2962 = vunpack.c.h.b16 %v2726
        %v2963 = vunpack.c.l.b16 %v2727
        %v2964 = vunpack.c.h.b16 %v2727
        %v2965 = vunpack.c.l.b16 %v2728
        %v2966 = vunpack.c.h.b16 %v2728
        %v2967 = vunpack.c.l.b16 %v2729
        %v2968 = vunpack.c.h.b16 %v2729
        %v2969 = vunpack.c.l.b16 %v2730
        %v2970 = vunpack.c.h.b16 %v2730
        %v2971 = vunpack.c.l.b16 %v2731
        %v2972 = vunpack.c.h.b16 %v2731
        %v2973 = vunpack.c.l.b16 %v2732
        %v2974 = vunpack.c.h.b16 %v2732
        %v2975 = vunpack.c.l.b16 %v2733
        %v2976 = vunpack.c.h.b16 %v2733
        %v2977 = vunpack.c.l.b16 %v2734
        %v2978 = vunpack.c.h.b16 %v2734
        %v2979 = vunpack.c.l.b16 %v2735
        %v2980 = vunpack.c.h.b16 %v2735
        %v2981 = vunpack.c.l.b16 %v2736
        %v2982 = vunpack.c.h.b16 %v2736
        %v2983 = vunpack.c.l.b16 %v2737
        %v2984 = vunpack.c.h.b16 %v2737
        %v2985 = vunpack.c.l.b16 %v2738
        %v2986 = vunpack.c.h.b16 %v2738
        %v2987 = vunpack.c.l.b16 %v2739
        %v2988 = vunpack.c.h.b16 %v2739
        %v2989 = vunpack.c.l.b16 %v2740
        %v2990 = vunpack.c.h.b16 %v2740
        %v2991 = vunpack.c.l.b16 %v2741
        %v2992 = vunpack.c.h.b16 %v2741
        %v2993 = vunpack.c.l.b16 %v2742
        %v2994 = vunpack.c.h.b16 %v2742
        %v2995 = vunpack.c.l.b16 %v2743
        %v2996 = vunpack.c.h.b16 %v2743
        %v2997 = vunpack.c.l.b16 %v2744
        %v2998 = vunpack.c.h.b16 %v2744
        %v2999 = vunpack.c.l.b16 %v2745
        %v3000 = vunpack.c.h.b16 %v2745
        %v3001 = vunpack.c.l.b16 %v2746
        %v3002 = vunpack.c.h.b16 %v2746
        %v3003 = vunpack.c.l.b16 %v2747
        %v3004 = vunpack.c.h.b16 %v2747
        %v3005 = vunpack.c.l.b16 %v2748
        %v3006 = vunpack.c.h.b16 %v2748
        %v3007 = vunpack.c.l.b16 %v2749
        %v3008 = vunpack.c.h.b16 %v2749
        %v3009 = vunpack.c.l.b16 %v2750
        %v3010 = vunpack.c.h.b16 %v2750
        %v3011 = vunpack.c.l.b16 %v2751
        %v3012 = vunpack.c.h.b16 %v2751
        %v3013 = vunpack.c.l.b16 %v2752
        %v3014 = vunpack.c.h.b16 %v2752
        %v3015 = vunpack.c.l.b16 %v2753
        %v3016 = vunpack.c.h.b16 %v2753
        %v3017 = vunpack.c.l.b16 %v2754
        %v3018 = vunpack.c.h.b16 %v2754
        %v3019 = vunpack.c.l.b16 %v2755
        %v3020 = vunpack.c.h.b16 %v2755
        %v3021 = vunpack.c.l.b16 %v2756
        %v3022 = vunpack.c.h.b16 %v2756
        %v3023 = vunpack.c.l.b16 %v2757
        %v3024 = vunpack.c.h.b16 %v2757
        %v3025 = vunpack.c.l.b16 %v2758
        %v3026 = vunpack.c.h.b16 %v2758
        %v3027 = vunpack.c.l.b16 %v2759
        %v3028 = vunpack.c.h.b16 %v2759
        %v3029 = vunpack.c.l.b16 %v2760
        %v3030 = vunpack.c.h.b16 %v2760
        %v3031 = vunpack.c.l.b16 %v2761
        %v3032 = vunpack.c.h.b16 %v2761
        %v3033 = vunpack.c.l.b16 %v2762
        %v3034 = vunpack.c.h.b16 %v2762
        %v3035 = vunpack.c.l.b16 %v2763
        %v3036 = vunpack.c.h.b16 %v2763
        %v3037 = vunpack.c.l.b16 %v2764
        %v3038 = vunpack.c.h.b16 %v2764
        %v3039 = vunpack.c.l.b16 %v2765
        %v3040 = vunpack.c.h.b16 %v2765
        %v3041 = vunpack.c.l.b16 %v2766
        %v3042 = vunpack.c.h.b16 %v2766
        %v3043 = vunpack.c.l.b16 %v2767
        %v3044 = vunpack.c.h.b16 %v2767
        %v3045 = vunpack.c.l.b16 %v2768
        %v3046 = vunpack.c.h.b16 %v2768
        %v3047 = vunpack.c.l.b16 %v2769
        %v3048 = vunpack.c.h.b16 %v2769
        %v3049 = vunpack.c.l.b16 %v2770
        %v3050 = vunpack.c.h.b16 %v2770
        %v3051 = vunpack.c.l.b16 %v2771
        %v3052 = vunpack.c.h.b16 %v2771
        %v3053 = vunpack.c.l.b16 %v2772
        %v3054 = vunpack.c.h.b16 %v2772
        %v3055 = vunpack.c.l.b16 %v2773
        %v3056 = vunpack.c.h.b16 %v2773
        %v3057 = vunpack.c.l.b16 %v2774
        %v3058 = vunpack.c.h.b16 %v2774
        %v3059 = vunpack.c.l.b16 %v2775
        %v3060 = vunpack.c.h.b16 %v2775
        %v3061 = vunpack.c.l.b16 %v2776
        %v3062 = vunpack.c.h.b16 %v2776
        %v3063 = vunpack.c.l.b16 %v2777
        %v3064 = vunpack.c.h.b16 %v2777
        %v3065 = vunpack.c.l.b16 %v2778
        %v3066 = vunpack.c.h.b16 %v2778
        %v3067 = vpack.c.b16 %v2879, %v2875
        %v3068 = vpack.c.b16 %v2880, %v2876
        %v3069 = vpack.c.b16 %v2881, %v2877
        %v3070 = vpack.c.b16 %v2882, %v2878
        %v3071 = vpack.c.b16 %v2887, %v2883
        %v3072 = vpack.c.b16 %v2888, %v2884
        %v3073 = vpack.c.b16 %v2889, %v2885
        %v3074 = vpack.c.b16 %v2890, %v2886
        %v3075 = vpack.c.b16 %v2895, %v2891
        %v3076 = vpack.c.b16 %v2896, %v2892
        %v3077 = vpack.c.b16 %v2897, %v2893
        %v3078 = vpack.c.b16 %v2898, %v2894
        %v3079 = vpack.c.b16 %v2903, %v2899
        %v3080 = vpack.c.b16 %v2904, %v2900
        %v3081 = vpack.c.b16 %v2905, %v2901
        %v3082 = vpack.c.b16 %v2906, %v2902
        %v3083 = vpack.c.b16 %v2911, %v2907
        %v3084 = vpack.c.b16 %v2912, %v2908
        %v3085 = vpack.c.b16 %v2913, %v2909
        %v3086 = vpack.c.b16 %v2914, %v2910
        %v3087 = vpack.c.b16 %v2919, %v2915
        %v3088 = vpack.c.b16 %v2920, %v2916
        %v3089 = vpack.c.b16 %v2921, %v2917
        %v3090 = vpack.c.b16 %v2922, %v2918
        %v3091 = vpack.c.b16 %v2927, %v2923
        %v3092 = vpack.c.b16 %v2928, %v2924
        %v3093 = vpack.c.b16 %v2929, %v2925
        %v3094 = vpack.c.b16 %v2930, %v2926
        %v3095 = vpack.c.b16 %v2935, %v2931
        %v3096 = vpack.c.b16 %v2936, %v2932
        %v3097 = vpack.c.b16 %v2937, %v2933
        %v3098 = vpack.c.b16 %v2938, %v2934
        %v3099 = vpack.c.b16 %v2943, %v2939
        %v3100 = vpack.c.b16 %v2944, %v2940
        %v3101 = vpack.c.b16 %v2945, %v2941
        %v3102 = vpack.c.b16 %v2946, %v2942
        %v3103 = vpack.c.b16 %v2951, %v2947
        %v3104 = vpack.c.b16 %v2952, %v2948
        %v3105 = vpack.c.b16 %v2953, %v2949
        %v3106 = vpack.c.b16 %v2954, %v2950
        %v3107 = vpack.c.b16 %v2959, %v2955
        %v3108 = vpack.c.b16 %v2960, %v2956
        %v3109 = vpack.c.b16 %v2961, %v2957
        %v3110 = vpack.c.b16 %v2962, %v2958
        %v3111 = vpack.c.b16 %v2967, %v2963
        %v3112 = vpack.c.b16 %v2968, %v2964
        %v3113 = vpack.c.b16 %v2969, %v2965
        %v3114 = vpack.c.b16 %v2970, %v2966
        %v3115 = vpack.c.b16 %v2975, %v2971
        %v3116 = vpack.c.b16 %v2976, %v2972
        %v3117 = vpack.c.b16 %v2977, %v2973
        %v3118 = vpack.c.b16 %v2978, %v2974
        %v3119 = vpack.c.b16 %v2983, %v2979
        %v3120 = vpack.c.b16 %v2984, %v2980
        %v3121 = vpack.c.b16 %v2985, %v2981
        %v3122 = vpack.c.b16 %v2986, %v2982
        %v3123 = vpack.c.b16 %v2991, %v2987
        %v3124 = vpack.c.b16 %v2992, %v2988
        %v3125 = vpack.c.b16 %v2993, %v2989
        %v3126 = vpack.c.b16 %v2994, %v2990
        %v3127 = vpack.c.b16 %v2999, %v2995
        %v3128 = vpack.c.b16 %v3000, %v2996
        %v3129 = vpack.c.b16 %v3001, %v2997
        %v3130 = vpack.c.b16 %v3002, %v2998
        %v3131 = vpack.c.b16 %v3007, %v3003
        %v3132 = vpack.c.b16 %v3008, %v3004
        %v3133 = vpack.c.b16 %v3009, %v3005
        %v3134 = vpack.c.b16 %v3010, %v3006
        %v3135 = vpack.c.b16 %v3015, %v3011
        %v3136 = vpack.c.b16 %v3016, %v3012
        %v3137 = vpack.c.b16 %v3017, %v3013
        %v3138 = vpack.c.b16 %v3018, %v3014
        %v3139 = vpack.c.b16 %v3023, %v3019
        %v3140 = vpack.c.b16 %v3024, %v3020
        %v3141 = vpack.c.b16 %v3025, %v3021
        %v3142 = vpack.c.b16 %v3026, %v3022
        %v3143 = vpack.c.b16 %v3031, %v3027
        %v3144 = vpack.c.b16 %v3032, %v3028
        %v3145 = vpack.c.b16 %v3033, %v3029
        %v3146 = vpack.c.b16 %v3034, %v3030
        %v3147 = vpack.c.b16 %v3039, %v3035
        %v3148 = vpack.c.b16 %v3040, %v3036
        %v3149 = vpack.c.b16 %v3041, %v3037
        %v3150 = vpack.c.b16 %v3042, %v3038
        %v3151 = vpack.c.b16 %v3047, %v3043
        %v3152 = vpack.c.b16 %v3048, %v3044
        %v3153 = vpack.c.b16 %v3049, %v3045
        %v3154 = vpack.c.b16 %v3050, %v3046
        %v3155 = vpack.c.b16 %v3055, %v3051
        %v3156 = vpack.c.b16 %v3056, %v3052
        %v3157 = vpack.c.b16 %v3057, %v3053
        %v3158 = vpack.c.b16 %v3058, %v3054
        %v3159 = vpack.c.b16 %v3063, %v3059
        %v3160 = vpack.c.b16 %v3064, %v3060
        %v3161 = vpack.c.b16 %v3065, %v3061
        %v3162 = vpack.c.b16 %v3066, %v3062
        %3259 = vmatprep.subr.bf16.mxu0 %v3068
        %3260 = vmatpush1.bf16.msra.mxu0 %v3067
        %3261 = vmatprep.subr.bf16.mxu0 %v3072
        %3262 = vmatpush1.bf16.msra.mxu0 %v3071
        %3263 = vmatprep.subr.bf16.mxu0 %v3076
        %3264 = vmatpush1.bf16.msra.mxu0 %v3075
        %3265 = vmatprep.subr.bf16.mxu0 %v3080
        %3266 = vmatpush1.bf16.msra.mxu0 %v3079
        %3267 = vmatprep.subr.bf16.mxu0 %v3084
        %3268 = vmatpush1.bf16.msra.mxu0 %v3083
        %3269 = vmatprep.subr.bf16.mxu0 %v3088
        %3270 = vmatpush1.bf16.msra.mxu0 %v3087
        %3271 = vmatprep.subr.bf16.mxu0 %v3092
        %3272 = vmatpush1.bf16.msra.mxu0 %v3091
        %3273 = vmatprep.subr.bf16.mxu0 %v3096
        %3274 = vmatpush1.bf16.msra.mxu0 %v3095
        %3275 = vmatprep.subr.bf16.mxu0 %v3100
        %3276 = vmatpush1.bf16.msra.mxu0 %v3099
        %3277 = vmatprep.subr.bf16.mxu0 %v3104
        %3278 = vmatpush1.bf16.msra.mxu0 %v3103
        %3279 = vmatprep.subr.bf16.mxu0 %v3108
        %3280 = vmatpush1.bf16.msra.mxu0 %v3107
        %3281 = vmatprep.subr.bf16.mxu0 %v3112
        %3282 = vmatpush1.bf16.msra.mxu0 %v3111
        %3283 = vmatprep.subr.bf16.mxu0 %v3116
        %3284 = vmatpush1.bf16.msra.mxu0 %v3115
        %3285 = vmatprep.subr.bf16.mxu0 %v3120
        %3286 = vmatpush1.bf16.msra.mxu0 %v3119
        %3287 = vmatprep.subr.bf16.mxu0 %v3124
        %3288 = vmatpush1.bf16.msra.mxu0 %v3123
        %3289 = vmatprep.subr.bf16.mxu0 %v3128
        %3290 = vmatpush1.bf16.msra.mxu0 %v3127
        %3291 = vmatprep.mubr.bf16.mxu0 %v459
        %3292 = vmatmul.mubr.bf16.gmra.mrb[0].mxu0 %v375
        %v3293 = vpop.f32.mrb[0].mxu0
        %v3294 = vadd.f32 0.0, %v3293
        %v3295 = vpop.f32.mrb[0].mxu0
        %v3296 = vadd.f32 0.0, %v3295
        %v3297 = vpop.f32.mrb[0].mxu0
        %v3298 = vadd.f32 0.0, %v3297
        %v3299 = vpop.f32.mrb[0].mxu0
        %v3300 = vadd.f32 0.0, %v3299
        %3301 = vmatprep.mubr.bf16.mxu0 %v471
        %3302 = vmatmul.mubr.bf16.gmra.mrb[0].mxu0 %v376
        %v3303 = vpop.f32.mrb[0].mxu0
        %v3304 = vadd.f32 0.0, %v3303
        %v3305 = vpop.f32.mrb[0].mxu0
        %v3306 = vadd.f32 0.0, %v3305
        %v3307 = vpop.f32.mrb[0].mxu0
        %v3308 = vadd.f32 0.0, %v3307
        %v3309 = vpop.f32.mrb[0].mxu0
        %v3310 = vadd.f32 0.0, %v3309
        %3311 = vmatprep.mubr.bf16.mxu0 %v483
        %3312 = vmatmul.mubr.bf16.gmra.mrb[0].mxu0 %v377
        %v3313 = vpop.f32.mrb[0].mxu0
        %v3314 = vadd.f32 0.0, %v3313
        %v3315 = vpop.f32.mrb[0].mxu0
        %v3316 = vadd.f32 0.0, %v3315
        %v3317 = vpop.f32.mrb[0].mxu0
        %v3318 = vadd.f32 0.0, %v3317
        %v3319 = vpop.f32.mrb[0].mxu0
        %v3320 = vadd.f32 0.0, %v3319
        %3321 = vmatprep.mubr.bf16.mxu0 %v495
        %3322 = vmatmul.mubr.bf16.gmra.mrb[0].mxu0 %v378
        %v3323 = vpop.f32.mrb[0].mxu0
        %v3324 = vadd.f32 0.0, %v3323
        %v3325 = vpop.f32.mrb[0].mxu0
        %v3326 = vadd.f32 0.0, %v3325
        %v3327 = vpop.f32.mrb[0].mxu0
        %v3328 = vadd.f32 0.0, %v3327
        %v3329 = vpop.f32.mrb[0].mxu0
        %v3330 = vadd.f32 0.0, %v3329
        %3331 = vmatprep.mubr.bf16.mxu0 %v507
        %3332 = vmatmul.mubr.bf16.gmra.mrb[0].mxu0 %v379
        %v3333 = vpop.f32.mrb[0].mxu0
        %v3334 = vadd.f32 0.0, %v3333
        %v3335 = vpop.f32.mrb[0].mxu0
        %v3336 = vadd.f32 0.0, %v3335
        %v3337 = vpop.f32.mrb[0].mxu0
        %v3338 = vadd.f32 0.0, %v3337
        %v3339 = vpop.f32.mrb[0].mxu0
        %v3340 = vadd.f32 0.0, %v3339
        %3341 = vmatprep.mubr.bf16.mxu0 %v519
        %3342 = vmatmul.mubr.bf16.gmra.mrb[0].mxu0 %v380
        %v3343 = vpop.f32.mrb[0].mxu0
        %v3344 = vadd.f32 0.0, %v3343
        %v3345 = vpop.f32.mrb[0].mxu0
        %v3346 = vadd.f32 0.0, %v3345
        %v3347 = vpop.f32.mrb[0].mxu0
        %v3348 = vadd.f32 0.0, %v3347
        %v3349 = vpop.f32.mrb[0].mxu0
        %v3350 = vadd.f32 0.0, %v3349
        %3351 = vmatprep.mubr.bf16.mxu0 %v531
        %3352 = vmatmul.mubr.bf16.gmra.mrb[0].mxu0 %v381
        %v3353 = vpop.f32.mrb[0].mxu0
        %v3354 = vadd.f32 0.0, %v3353
        %v3355 = vpop.f32.mrb[0].mxu0
        %v3356 = vadd.f32 0.0, %v3355
        %v3357 = vpop.f32.mrb[0].mxu0
        %v3358 = vadd.f32 0.0, %v3357
        %v3359 = vpop.f32.mrb[0].mxu0
        %v3360 = vadd.f32 0.0, %v3359
        %3361 = vmatprep.mubr.bf16.mxu0 %v543
        %3362 = vmatmul.mubr.bf16.gmra.mrb[0].mxu0 %v382
        %v3363 = vpop.f32.mrb[0].mxu0
        %v3364 = vadd.f32 0.0, %v3363
        %v3365 = vpop.f32.mrb[0].mxu0
        %v3366 = vadd.f32 0.0, %v3365
        %v3367 = vpop.f32.mrb[0].mxu0
        %v3368 = vadd.f32 0.0, %v3367
        %v3369 = vpop.f32.mrb[0].mxu0
        %v3370 = vadd.f32 0.0, %v3369
        %3371 = vdwg.mxu0
        %3372 = vmatprep.subr.bf16.mxu0 %v3132
        %3373 = vmatpush1.bf16.msra.mxu0 %v3131
        %3374 = vmatprep.subr.bf16.mxu0 %v3136
        %3375 = vmatpush1.bf16.msra.mxu0 %v3135
        %3376 = vmatprep.subr.bf16.mxu0 %v3140
        %3377 = vmatpush1.bf16.msra.mxu0 %v3139
        %3378 = vmatprep.subr.bf16.mxu0 %v3144
        %3379 = vmatpush1.bf16.msra.mxu0 %v3143
        %3380 = vmatprep.subr.bf16.mxu0 %v3148
        %3381 = vmatpush1.bf16.msra.mxu0 %v3147
        %3382 = vmatprep.subr.bf16.mxu0 %v3152
        %3383 = vmatpush1.bf16.msra.mxu0 %v3151
        %3384 = vmatprep.subr.bf16.mxu0 %v3156
        %3385 = vmatpush1.bf16.msra.mxu0 %v3155
        %3386 = vmatprep.subr.bf16.mxu0 %v3160
        %3387 = vmatpush1.bf16.msra.mxu0 %v3159
        %3388 = vmatprep.subr.bf16.mxu0 0
        %3389 = vmatpush1.bf16.msra.mxu0 0
        %3390 = vmatprep.subr.bf16.mxu0 0
        %3391 = vmatpush1.bf16.msra.mxu0 0
        %3392 = vmatprep.subr.bf16.mxu0 0
        %3393 = vmatpush1.bf16.msra.mxu0 0
        %3394 = vmatprep.subr.bf16.mxu0 0
        %3395 = vmatpush1.bf16.msra.mxu0 0
        %3396 = vmatprep.subr.bf16.mxu0 0
        %3397 = vmatpush1.bf16.msra.mxu0 0
        %3398 = vmatprep.subr.bf16.mxu0 0
        %3399 = vmatpush1.bf16.msra.mxu0 0
        %3400 = vmatprep.subr.bf16.mxu0 0
        %3401 = vmatpush1.bf16.msra.mxu0 0
        %3402 = vmatprep.subr.bf16.mxu0 0
        %3403 = vmatpush1.bf16.msra.mxu0 0
        %3404 = vmatprep.mubr.bf16.mxu0 0
        %3405 = vmatmul.mubr.bf16.gmra.mrb[0].mxu0 %v593
        %v3406 = vpop.f32.mrb[0].mxu0
        %v3407 = vadd.f32 %v3294, %v3406
        %v3408 = vpop.f32.mrb[0].mxu0
        %v3409 = vadd.f32 %v3296, %v3408
        %v3410 = vpop.f32.mrb[0].mxu0
        %v3411 = vadd.f32 %v3298, %v3410
        %v3412 = vpop.f32.mrb[0].mxu0
        %v3413 = vadd.f32 %v3300, %v3412
        %3414 = vmatprep.mubr.bf16.mxu0 0
        %3415 = vmatmul.mubr.bf16.gmra.mrb[0].mxu0 %v596
        %v3416 = vpop.f32.mrb[0].mxu0
        %v3417 = vadd.f32 %v3304, %v3416
        %v3418 = vpop.f32.mrb[0].mxu0
        %v3419 = vadd.f32 %v3306, %v3418
        %v3420 = vpop.f32.mrb[0].mxu0
        %v3421 = vadd.f32 %v3308, %v3420
        %v3422 = vpop.f32.mrb[0].mxu0
        %v3423 = vadd.f32 %v3310, %v3422
        %3424 = vmatprep.mubr.bf16.mxu0 0
        %3425 = vmatmul.mubr.bf16.gmra.mrb[0].mxu0 %v599
        %v3426 = vpop.f32.mrb[0].mxu0
        %v3427 = vadd.f32 %v3314, %v3426
        %v3428 = vpop.f32.mrb[0].mxu0
        %v3429 = vadd.f32 %v3316, %v3428
        %v3430 = vpop.f32.mrb[0].mxu0
        %v3431 = vadd.f32 %v3318, %v3430
        %v3432 = vpop.f32.mrb[0].mxu0
        %v3433 = vadd.f32 %v3320, %v3432
        %3434 = vmatprep.mubr.bf16.mxu0 0
        %3435 = vmatmul.mubr.bf16.gmra.mrb[0].mxu0 %v602
        %v3436 = vpop.f32.mrb[0].mxu0
        %v3437 = vadd.f32 %v3324, %v3436
        %v3438 = vpop.f32.mrb[0].mxu0
        %v3439 = vadd.f32 %v3326, %v3438
        %v3440 = vpop.f32.mrb[0].mxu0
        %v3441 = vadd.f32 %v3328, %v3440
        %v3442 = vpop.f32.mrb[0].mxu0
        %v3443 = vadd.f32 %v3330, %v3442
        %3444 = vmatprep.mubr.bf16.mxu0 0
        %3445 = vmatmul.mubr.bf16.gmra.mrb[0].mxu0 %v605
        %v3446 = vpop.f32.mrb[0].mxu0
        %v3447 = vadd.f32 %v3334, %v3446
        %v3448 = vpop.f32.mrb[0].mxu0
        %v3449 = vadd.f32 %v3336, %v3448
        %v3450 = vpop.f32.mrb[0].mxu0
        %v3451 = vadd.f32 %v3338, %v3450
        %v3452 = vpop.f32.mrb[0].mxu0
        %v3453 = vadd.f32 %v3340, %v3452
        %3454 = vmatprep.mubr.bf16.mxu0 0
        %3455 = vmatmul.mubr.bf16.gmra.mrb[0].mxu0 %v608
        %v3456 = vpop.f32.mrb[0].mxu0
        %v3457 = vadd.f32 %v3344, %v3456
        %v3458 = vpop.f32.mrb[0].mxu0
        %v3459 = vadd.f32 %v3346, %v3458
        %v3460 = vpop.f32.mrb[0].mxu0
        %v3461 = vadd.f32 %v3348, %v3460
        %v3462 = vpop.f32.mrb[0].mxu0
        %v3463 = vadd.f32 %v3350, %v3462
        %3464 = vmatprep.mubr.bf16.mxu0 0
        %3465 = vmatmul.mubr.bf16.gmra.mrb[0].mxu0 %v611
        %v3466 = vpop.f32.mrb[0].mxu0
        %v3467 = vadd.f32 %v3354, %v3466
        %v3468 = vpop.f32.mrb[0].mxu0
        %v3469 = vadd.f32 %v3356, %v3468
        %v3470 = vpop.f32.mrb[0].mxu0
        %v3471 = vadd.f32 %v3358, %v3470
        %v3472 = vpop.f32.mrb[0].mxu0
        %v3473 = vadd.f32 %v3360, %v3472
        %3474 = vmatprep.mubr.bf16.mxu0 0
        %3475 = vmatmul.mubr.bf16.gmra.mrb[0].mxu0 %v614
        %v3476 = vpop.f32.mrb[0].mxu0
        %v3477 = vadd.f32 %v3364, %v3476
        %v3478 = vpop.f32.mrb[0].mxu0
        %v3479 = vadd.f32 %v3366, %v3478
        %v3480 = vpop.f32.mrb[0].mxu0
        %v3481 = vadd.f32 %v3368, %v3480
        %v3482 = vpop.f32.mrb[0].mxu0
        %v3483 = vadd.f32 %v3370, %v3482
        %3484 = vdwg.mxu0
        %3485 = vmatprep.subr.bf16.mxu0 %v3070
        %3486 = vmatpush1.bf16.msra.mxu0 %v3069
        %3487 = vmatprep.subr.bf16.mxu0 %v3074
        %3488 = vmatpush1.bf16.msra.mxu0 %v3073
        %3489 = vmatprep.subr.bf16.mxu0 %v3078
        %3490 = vmatpush1.bf16.msra.mxu0 %v3077
        %3491 = vmatprep.subr.bf16.mxu0 %v3082
        %3492 = vmatpush1.bf16.msra.mxu0 %v3081
        %3493 = vmatprep.subr.bf16.mxu0 %v3086
        %3494 = vmatpush1.bf16.msra.mxu0 %v3085
        %3495 = vmatprep.subr.bf16.mxu0 %v3090
        %3496 = vmatpush1.bf16.msra.mxu0 %v3089
        %3497 = vmatprep.subr.bf16.mxu0 %v3094
        %3498 = vmatpush1.bf16.msra.mxu0 %v3093
        %3499 = vmatprep.subr.bf16.mxu0 %v3098
        %3500 = vmatpush1.bf16.msra.mxu0 %v3097
        %3501 = vmatprep.subr.bf16.mxu0 %v3102
        %3502 = vmatpush1.bf16.msra.mxu0 %v3101
        %3503 = vmatprep.subr.bf16.mxu0 %v3106
        %3504 = vmatpush1.bf16.msra.mxu0 %v3105
        %3505 = vmatprep.subr.bf16.mxu0 %v3110
        %3506 = vmatpush1.bf16.msra.mxu0 %v3109
        %3507 = vmatprep.subr.bf16.mxu0 %v3114
        %3508 = vmatpush1.bf16.msra.mxu0 %v3113
        %3509 = vmatprep.subr.bf16.mxu0 %v3118
        %3510 = vmatpush1.bf16.msra.mxu0 %v3117
        %3511 = vmatprep.subr.bf16.mxu0 %v3122
        %3512 = vmatpush1.bf16.msra.mxu0 %v3121
        %3513 = vmatprep.subr.bf16.mxu0 %v3126
        %3514 = vmatpush1.bf16.msra.mxu0 %v3125
        %3515 = vmatprep.subr.bf16.mxu0 %v3130
        %3516 = vmatpush1.bf16.msra.mxu0 %v3129
        %3517 = vmatprep.mubr.bf16.mxu0 %v459
        %3518 = vmatmul.mubr.bf16.gmra.mrb[0].mxu0 %v375
        %v3519 = vpop.f32.mrb[0].mxu0
        %v3520 = vadd.f32 0.0, %v3519
        %v3521 = vpop.f32.mrb[0].mxu0
        %v3522 = vadd.f32 0.0, %v3521
        %v3523 = vpop.f32.mrb[0].mxu0
        %v3524 = vadd.f32 0.0, %v3523
        %v3525 = vpop.f32.mrb[0].mxu0
        %v3526 = vadd.f32 0.0, %v3525
        %3527 = vmatprep.mubr.bf16.mxu0 %v471
        %3528 = vmatmul.mubr.bf16.gmra.mrb[0].mxu0 %v376
        %v3529 = vpop.f32.mrb[0].mxu0
        %v3530 = vadd.f32 0.0, %v3529
        %v3531 = vpop.f32.mrb[0].mxu0
        %v3532 = vadd.f32 0.0, %v3531
        %v3533 = vpop.f32.mrb[0].mxu0
        %v3534 = vadd.f32 0.0, %v3533
        %v3535 = vpop.f32.mrb[0].mxu0
        %v3536 = vadd.f32 0.0, %v3535
        %3537 = vmatprep.mubr.bf16.mxu0 %v483
        %3538 = vmatmul.mubr.bf16.gmra.mrb[0].mxu0 %v377
        %v3539 = vpop.f32.mrb[0].mxu0
        %v3540 = vadd.f32 0.0, %v3539
        %v3541 = vpop.f32.mrb[0].mxu0
        %v3542 = vadd.f32 0.0, %v3541
        %v3543 = vpop.f32.mrb[0].mxu0
        %v3544 = vadd.f32 0.0, %v3543
        %v3545 = vpop.f32.mrb[0].mxu0
        %v3546 = vadd.f32 0.0, %v3545
        %3547 = vmatprep.mubr.bf16.mxu0 %v495
        %3548 = vmatmul.mubr.bf16.gmra.mrb[0].mxu0 %v378
        %v3549 = vpop.f32.mrb[0].mxu0
        %v3550 = vadd.f32 0.0, %v3549
        %v3551 = vpop.f32.mrb[0].mxu0
        %v3552 = vadd.f32 0.0, %v3551
        %v3553 = vpop.f32.mrb[0].mxu0
        %v3554 = vadd.f32 0.0, %v3553
        %v3555 = vpop.f32.mrb[0].mxu0
        %v3556 = vadd.f32 0.0, %v3555
        %3557 = vmatprep.mubr.bf16.mxu0 %v507
        %3558 = vmatmul.mubr.bf16.gmra.mrb[0].mxu0 %v379
        %v3559 = vpop.f32.mrb[0].mxu0
        %v3560 = vadd.f32 0.0, %v3559
        %v3561 = vpop.f32.mrb[0].mxu0
        %v3562 = vadd.f32 0.0, %v3561
        %v3563 = vpop.f32.mrb[0].mxu0
        %v3564 = vadd.f32 0.0, %v3563
        %v3565 = vpop.f32.mrb[0].mxu0
        %v3566 = vadd.f32 0.0, %v3565
        %3567 = vmatprep.mubr.bf16.mxu0 %v519
        %3568 = vmatmul.mubr.bf16.gmra.mrb[0].mxu0 %v380
        %v3569 = vpop.f32.mrb[0].mxu0
        %v3570 = vadd.f32 0.0, %v3569
        %v3571 = vpop.f32.mrb[0].mxu0
        %v3572 = vadd.f32 0.0, %v3571
        %v3573 = vpop.f32.mrb[0].mxu0
        %v3574 = vadd.f32 0.0, %v3573
        %v3575 = vpop.f32.mrb[0].mxu0
        %v3576 = vadd.f32 0.0, %v3575
        %3577 = vmatprep.mubr.bf16.mxu0 %v531
        %3578 = vmatmul.mubr.bf16.gmra.mrb[0].mxu0 %v381
        %v3579 = vpop.f32.mrb[0].mxu0
        %v3580 = vadd.f32 0.0, %v3579
        %v3581 = vpop.f32.mrb[0].mxu0
        %v3582 = vadd.f32 0.0, %v3581
        %v3583 = vpop.f32.mrb[0].mxu0
        %v3584 = vadd.f32 0.0, %v3583
        %v3585 = vpop.f32.mrb[0].mxu0
        %v3586 = vadd.f32 0.0, %v3585
        %3587 = vmatprep.mubr.bf16.mxu0 %v543
        %3588 = vmatmul.mubr.bf16.gmra.mrb[0].mxu0 %v382
        %v3589 = vpop.f32.mrb[0].mxu0
        %v3590 = vadd.f32 0.0, %v3589
        %v3591 = vpop.f32.mrb[0].mxu0
        %v3592 = vadd.f32 0.0, %v3591
        %v3593 = vpop.f32.mrb[0].mxu0
        %v3594 = vadd.f32 0.0, %v3593
        %v3595 = vpop.f32.mrb[0].mxu0
        %v3596 = vadd.f32 0.0, %v3595
        %3597 = vdwg.mxu0
        %3598 = vmatprep.subr.bf16.mxu0 %v3134
        %3599 = vmatpush1.bf16.msra.mxu0 %v3133
        %3600 = vmatprep.subr.bf16.mxu0 %v3138
        %3601 = vmatpush1.bf16.msra.mxu0 %v3137
        %3602 = vmatprep.subr.bf16.mxu0 %v3142
        %3603 = vmatpush1.bf16.msra.mxu0 %v3141
        %3604 = vmatprep.subr.bf16.mxu0 %v3146
        %3605 = vmatpush1.bf16.msra.mxu0 %v3145
        %3606 = vmatprep.subr.bf16.mxu0 %v3150
        %3607 = vmatpush1.bf16.msra.mxu0 %v3149
        %3608 = vmatprep.subr.bf16.mxu0 %v3154
        %3609 = vmatpush1.bf16.msra.mxu0 %v3153
        %3610 = vmatprep.subr.bf16.mxu0 %v3158
        %3611 = vmatpush1.bf16.msra.mxu0 %v3157
        %3612 = vmatprep.subr.bf16.mxu0 %v3162
        %3613 = vmatpush1.bf16.msra.mxu0 %v3161
        %3614 = vmatprep.subr.bf16.mxu0 0
        %3615 = vmatpush1.bf16.msra.mxu0 0
        %3616 = vmatprep.subr.bf16.mxu0 0
        %3617 = vmatpush1.bf16.msra.mxu0 0
        %3618 = vmatprep.subr.bf16.mxu0 0
        %3619 = vmatpush1.bf16.msra.mxu0 0
        %3620 = vmatprep.subr.bf16.mxu0 0
        %3621 = vmatpush1.bf16.msra.mxu0 0
        %3622 = vmatprep.subr.bf16.mxu0 0
        %3623 = vmatpush1.bf16.msra.mxu0 0
        %3624 = vmatprep.subr.bf16.mxu0 0
        %3625 = vmatpush1.bf16.msra.mxu0 0
        %3626 = vmatprep.subr.bf16.mxu0 0
        %3627 = vmatpush1.bf16.msra.mxu0 0
        %3628 = vmatprep.subr.bf16.mxu0 0
        %3629 = vmatpush1.bf16.msra.mxu0 0
        %3630 = vmatprep.mubr.bf16.mxu0 0
        %3631 = vmatmul.mubr.bf16.gmra.mrb[0].mxu0 %v593
        %v3632 = vpop.f32.mrb[0].mxu0
        %v3633 = vadd.f32 %v3520, %v3632
        %v3634 = vpop.f32.mrb[0].mxu0
        %v3635 = vadd.f32 %v3522, %v3634
        %v3636 = vpop.f32.mrb[0].mxu0
        %v3637 = vadd.f32 %v3524, %v3636
        %v3638 = vpop.f32.mrb[0].mxu0
        %v3639 = vadd.f32 %v3526, %v3638
        %3640 = vmatprep.mubr.bf16.mxu0 0
        %3641 = vmatmul.mubr.bf16.gmra.mrb[0].mxu0 %v596
        %v3642 = vpop.f32.mrb[0].mxu0
        %v3643 = vadd.f32 %v3530, %v3642
        %v3644 = vpop.f32.mrb[0].mxu0
        %v3645 = vadd.f32 %v3532, %v3644
        %v3646 = vpop.f32.mrb[0].mxu0
        %v3647 = vadd.f32 %v3534, %v3646
        %v3648 = vpop.f32.mrb[0].mxu0
        %v3649 = vadd.f32 %v3536, %v3648
        %3650 = vmatprep.mubr.bf16.mxu0 0
        %3651 = vmatmul.mubr.bf16.gmra.mrb[0].mxu0 %v599
        %v3652 = vpop.f32.mrb[0].mxu0
        %v3653 = vadd.f32 %v3540, %v3652
        %v3654 = vpop.f32.mrb[0].mxu0
        %v3655 = vadd.f32 %v3542, %v3654
        %v3656 = vpop.f32.mrb[0].mxu0
        %v3657 = vadd.f32 %v3544, %v3656
        %v3658 = vpop.f32.mrb[0].mxu0
        %v3659 = vadd.f32 %v3546, %v3658
        %3660 = vmatprep.mubr.bf16.mxu0 0
        %3661 = vmatmul.mubr.bf16.gmra.mrb[0].mxu0 %v602
        %v3662 = vpop.f32.mrb[0].mxu0
        %v3663 = vadd.f32 %v3550, %v3662
        %v3664 = vpop.f32.mrb[0].mxu0
        %v3665 = vadd.f32 %v3552, %v3664
        %v3666 = vpop.f32.mrb[0].mxu0
        %v3667 = vadd.f32 %v3554, %v3666
        %v3668 = vpop.f32.mrb[0].mxu0
        %v3669 = vadd.f32 %v3556, %v3668
        %3670 = vmatprep.mubr.bf16.mxu0 0
        %3671 = vmatmul.mubr.bf16.gmra.mrb[0].mxu0 %v605
        %v3672 = vpop.f32.mrb[0].mxu0
        %v3673 = vadd.f32 %v3560, %v3672
        %v3674 = vpop.f32.mrb[0].mxu0
        %v3675 = vadd.f32 %v3562, %v3674
        %v3676 = vpop.f32.mrb[0].mxu0
        %v3677 = vadd.f32 %v3564, %v3676
        %v3678 = vpop.f32.mrb[0].mxu0
        %v3679 = vadd.f32 %v3566, %v3678
        %3680 = vmatprep.mubr.bf16.mxu0 0
        %3681 = vmatmul.mubr.bf16.gmra.mrb[0].mxu0 %v608
        %v3682 = vpop.f32.mrb[0].mxu0
        %v3683 = vadd.f32 %v3570, %v3682
        %v3684 = vpop.f32.mrb[0].mxu0
        %v3685 = vadd.f32 %v3572, %v3684
        %v3686 = vpop.f32.mrb[0].mxu0
        %v3687 = vadd.f32 %v3574, %v3686
        %v3688 = vpop.f32.mrb[0].mxu0
        %v3689 = vadd.f32 %v3576, %v3688
        %3690 = vmatprep.mubr.bf16.mxu0 0
        %3691 = vmatmul.mubr.bf16.gmra.mrb[0].mxu0 %v611
        %v3692 = vpop.f32.mrb[0].mxu0
        %v3693 = vadd.f32 %v3580, %v3692
        %v3694 = vpop.f32.mrb[0].mxu0
        %v3695 = vadd.f32 %v3582, %v3694
        %v3696 = vpop.f32.mrb[0].mxu0
        %v3697 = vadd.f32 %v3584, %v3696
        %v3698 = vpop.f32.mrb[0].mxu0
        %v3699 = vadd.f32 %v3586, %v3698
        %3700 = vmatprep.mubr.bf16.mxu0 0
        %3701 = vmatmul.mubr.bf16.gmra.mrb[0].mxu0 %v614
        %v3702 = vpop.f32.mrb[0].mxu0
        %v3703 = vadd.f32 %v3590, %v3702
        %v3704 = vpop.f32.mrb[0].mxu0
        %v3705 = vadd.f32 %v3592, %v3704
        %v3706 = vpop.f32.mrb[0].mxu0
        %v3707 = vadd.f32 %v3594, %v3706
        %v3708 = vpop.f32.mrb[0].mxu0
        %v3709 = vadd.f32 %v3596, %v3708
        %3710 = vdwg.mxu0
        %v3711 = vadd.f32 %v2378, %v3407
        %v3712 = vadd.f32 %v2380, %v3409
        %v3713 = vadd.f32 %v2604, %v3633
        %v3714 = vadd.f32 %v2606, %v3635
        %v3715 = vadd.f32 %v2382, %v3411
        %v3716 = vadd.f32 %v2384, %v3413
        %v3717 = vadd.f32 %v2608, %v3637
        %v3718 = vadd.f32 %v2610, %v3639
        %v3719 = vadd.f32 %v2388, %v3417
        %v3720 = vadd.f32 %v2390, %v3419
        %v3721 = vadd.f32 %v2614, %v3643
        %v3722 = vadd.f32 %v2616, %v3645
        %v3723 = vadd.f32 %v2392, %v3421
        %v3724 = vadd.f32 %v2394, %v3423
        %v3725 = vadd.f32 %v2618, %v3647
        %v3726 = vadd.f32 %v2620, %v3649
        %v3727 = vadd.f32 %v2398, %v3427
        %v3728 = vadd.f32 %v2400, %v3429
        %v3729 = vadd.f32 %v2624, %v3653
        %v3730 = vadd.f32 %v2626, %v3655
        %v3731 = vadd.f32 %v2402, %v3431
        %v3732 = vadd.f32 %v2404, %v3433
        %v3733 = vadd.f32 %v2628, %v3657
        %v3734 = vadd.f32 %v2630, %v3659
        %v3735 = vadd.f32 %v2408, %v3437
        %v3736 = vadd.f32 %v2410, %v3439
        %v3737 = vadd.f32 %v2634, %v3663
        %v3738 = vadd.f32 %v2636, %v3665
        %v3739 = vadd.f32 %v2412, %v3441
        %v3740 = vadd.f32 %v2414, %v3443
        %v3741 = vadd.f32 %v2638, %v3667
        %v3742 = vadd.f32 %v2640, %v3669
        %v3743 = vadd.f32 %v2418, %v3447
        %v3744 = vadd.f32 %v2420, %v3449
        %v3745 = vadd.f32 %v2644, %v3673
        %v3746 = vadd.f32 %v2646, %v3675
        %v3747 = vadd.f32 %v2422, %v3451
        %v3748 = vadd.f32 %v2424, %v3453
        %v3749 = vadd.f32 %v2648, %v3677
        %v3750 = vadd.f32 %v2650, %v3679
        %v3751 = vadd.f32 %v2428, %v3457
        %v3752 = vadd.f32 %v2430, %v3459
        %v3753 = vadd.f32 %v2654, %v3683
        %v3754 = vadd.f32 %v2656, %v3685
        %v3755 = vadd.f32 %v2432, %v3461
        %v3756 = vadd.f32 %v2434, %v3463
        %v3757 = vadd.f32 %v2658, %v3687
        %v3758 = vadd.f32 %v2660, %v3689
        %v3759 = vadd.f32 %v2438, %v3467
        %v3760 = vadd.f32 %v2440, %v3469
        %v3761 = vadd.f32 %v2664, %v3693
        %v3762 = vadd.f32 %v2666, %v3695
        %v3763 = vadd.f32 %v2442, %v3471
        %v3764 = vadd.f32 %v2444, %v3473
        %v3765 = vadd.f32 %v2668, %v3697
        %v3766 = vadd.f32 %v2670, %v3699
        %v3767 = vadd.f32 %v2448, %v3477
        %v3768 = vadd.f32 %v2450, %v3479
        %v3769 = vadd.f32 %v2674, %v3703
        %v3770 = vadd.f32 %v2676, %v3705
        %v3771 = vadd.f32 %v2452, %v3481
        %v3772 = vadd.f32 %v2454, %v3483
        %v3773 = vadd.f32 %v2678, %v3707
        %v3774 = vadd.f32 %v2680, %v3709
        %v3775 = vld [vmem:[#allocation4] sm:$0xf]
        %v3777 = vlaneseq
        %v3778 = vshrl.u32 %v3777, 7
        %v3779 = vsub.s32 0, %v3778
        %v3780 = vrot.slane %v3775, %v3779
        %v3781 = vlaneseq
        %v3782 = vshrl.u32 %v3781, 7
        %v3783 = vsub.s32 1, %v3782
        %v3784 = vrot.slane %v3775, %v3783
        %v3785 = vlaneseq
        %v3786 = vshrl.u32 %v3785, 7
        %v3787 = vsub.s32 2, %v3786
        %v3788 = vrot.slane %v3775, %v3787
        %v3789 = vlaneseq
        %v3790 = vshrl.u32 %v3789, 7
        %v3791 = vsub.s32 3, %v3790
        %v3792 = vrot.slane %v3775, %v3791
        %v3797 = vadd.f32 %v3711, %v3780
        %v3798 = vadd.f32 %v3712, %v3784
        %v3799 = vadd.f32 %v3713, %v3788
        %v3800 = vadd.f32 %v3714, %v3792
        %v3801 = vadd.f32 %v3715, %v3780
        %v3802 = vadd.f32 %v3716, %v3784
        %v3803 = vadd.f32 %v3717, %v3788
        %v3804 = vadd.f32 %v3718, %v3792
        %v3805 = vadd.f32 %v3719, %v3780
        %v3806 = vadd.f32 %v3720, %v3784
        %v3807 = vadd.f32 %v3721, %v3788
        %v3808 = vadd.f32 %v3722, %v3792
        %v3809 = vadd.f32 %v3723, %v3780
        %v3810 = vadd.f32 %v3724, %v3784
        %v3811 = vadd.f32 %v3725, %v3788
        %v3812 = vadd.f32 %v3726, %v3792
        %v3813 = vadd.f32 %v3727, %v3780
        %v3814 = vadd.f32 %v3728, %v3784
        %v3815 = vadd.f32 %v3729, %v3788
        %v3816 = vadd.f32 %v3730, %v3792
        %v3817 = vadd.f32 %v3731, %v3780
        %v3818 = vadd.f32 %v3732, %v3784
        %v3819 = vadd.f32 %v3733, %v3788
        %v3820 = vadd.f32 %v3734, %v3792
        %v3821 = vadd.f32 %v3735, %v3780
        %v3822 = vadd.f32 %v3736, %v3784
        %v3823 = vadd.f32 %v3737, %v3788
        %v3824 = vadd.f32 %v3738, %v3792
        %v3825 = vadd.f32 %v3739, %v3780
        %v3826 = vadd.f32 %v3740, %v3784
        %v3827 = vadd.f32 %v3741, %v3788
        %v3828 = vadd.f32 %v3742, %v3792
        %v3829 = vadd.f32 %v3743, %v3780
        %v3830 = vadd.f32 %v3744, %v3784
        %v3831 = vadd.f32 %v3745, %v3788
        %v3832 = vadd.f32 %v3746, %v3792
        %v3833 = vadd.f32 %v3747, %v3780
        %v3834 = vadd.f32 %v3748, %v3784
        %v3835 = vadd.f32 %v3749, %v3788
        %v3836 = vadd.f32 %v3750, %v3792
        %v3837 = vadd.f32 %v3751, %v3780
        %v3838 = vadd.f32 %v3752, %v3784
        %v3839 = vadd.f32 %v3753, %v3788
        %v3840 = vadd.f32 %v3754, %v3792
        %v3841 = vadd.f32 %v3755, %v3780
        %v3842 = vadd.f32 %v3756, %v3784
        %v3843 = vadd.f32 %v3757, %v3788
        %v3844 = vadd.f32 %v3758, %v3792
        %v3845 = vadd.f32 %v3759, %v3780
        %v3846 = vadd.f32 %v3760, %v3784
        %v3847 = vadd.f32 %v3761, %v3788
        %v3848 = vadd.f32 %v3762, %v3792
        %v3849 = vadd.f32 %v3763, %v3780
        %v3850 = vadd.f32 %v3764, %v3784
        %v3851 = vadd.f32 %v3765, %v3788
        %v3852 = vadd.f32 %v3766, %v3792
        %v3853 = vadd.f32 %v3767, %v3780
        %v3854 = vadd.f32 %v3768, %v3784
        %v3855 = vadd.f32 %v3769, %v3788
        %v3856 = vadd.f32 %v3770, %v3792
        %v3857 = vadd.f32 %v3771, %v3780
        %v3858 = vadd.f32 %v3772, %v3784
        %v3859 = vadd.f32 %v3773, %v3788
        %v3860 = vadd.f32 %v3774, %v3792
        %v3861 = vmax.f32 %v3797, 0.0
        %v3862 = vmax.f32 %v3798, 0.0
        %v3863 = vmax.f32 %v3799, 0.0
        %v3864 = vmax.f32 %v3800, 0.0
        %v3865 = vmax.f32 %v3801, 0.0
        %v3866 = vmax.f32 %v3802, 0.0
        %v3867 = vmax.f32 %v3803, 0.0
        %v3868 = vmax.f32 %v3804, 0.0
        %v3869 = vmax.f32 %v3805, 0.0
        %v3870 = vmax.f32 %v3806, 0.0
        %v3871 = vmax.f32 %v3807, 0.0
        %v3872 = vmax.f32 %v3808, 0.0
        %v3873 = vmax.f32 %v3809, 0.0
        %v3874 = vmax.f32 %v3810, 0.0
        %v3875 = vmax.f32 %v3811, 0.0
        %v3876 = vmax.f32 %v3812, 0.0
        %v3877 = vmax.f32 %v3813, 0.0
        %v3878 = vmax.f32 %v3814, 0.0
        %v3879 = vmax.f32 %v3815, 0.0
        %v3880 = vmax.f32 %v3816, 0.0
        %v3881 = vmax.f32 %v3817, 0.0
        %v3882 = vmax.f32 %v3818, 0.0
        %v3883 = vmax.f32 %v3819, 0.0
        %v3884 = vmax.f32 %v3820, 0.0
        %v3885 = vmax.f32 %v3821, 0.0
        %v3886 = vmax.f32 %v3822, 0.0
        %v3887 = vmax.f32 %v3823, 0.0
        %v3888 = vmax.f32 %v3824, 0.0
        %v3889 = vmax.f32 %v3825, 0.0
        %v3890 = vmax.f32 %v3826, 0.0
        %v3891 = vmax.f32 %v3827, 0.0
        %v3892 = vmax.f32 %v3828, 0.0
        %v3893 = vmax.f32 %v3829, 0.0
        %v3894 = vmax.f32 %v3830, 0.0
        %v3895 = vmax.f32 %v3831, 0.0
        %v3896 = vmax.f32 %v3832, 0.0
        %v3897 = vmax.f32 %v3833, 0.0
        %v3898 = vmax.f32 %v3834, 0.0
        %v3899 = vmax.f32 %v3835, 0.0
        %v3900 = vmax.f32 %v3836, 0.0
        %v3901 = vmax.f32 %v3837, 0.0
        %v3902 = vmax.f32 %v3838, 0.0
        %v3903 = vmax.f32 %v3839, 0.0
        %v3904 = vmax.f32 %v3840, 0.0
        %v3905 = vmax.f32 %v3841, 0.0
        %v3906 = vmax.f32 %v3842, 0.0
        %v3907 = vmax.f32 %v3843, 0.0
        %v3908 = vmax.f32 %v3844, 0.0
        %v3909 = vmax.f32 %v3845, 0.0
        %v3910 = vmax.f32 %v3846, 0.0
        %v3911 = vmax.f32 %v3847, 0.0
        %v3912 = vmax.f32 %v3848, 0.0
        %v3913 = vmax.f32 %v3849, 0.0
        %v3914 = vmax.f32 %v3850, 0.0
        %v3915 = vmax.f32 %v3851, 0.0
        %v3916 = vmax.f32 %v3852, 0.0
        %v3917 = vmax.f32 %v3853, 0.0
        %v3918 = vmax.f32 %v3854, 0.0
        %v3919 = vmax.f32 %v3855, 0.0
        %v3920 = vmax.f32 %v3856, 0.0
        %v3921 = vmax.f32 %v3857, 0.0
        %v3922 = vmax.f32 %v3858, 0.0
        %v3923 = vmax.f32 %v3859, 0.0
        %v3924 = vmax.f32 %v3860, 0.0
        %v3925 = vpack.c.bf16 %v3865, %v3861
        %v3926 = vpack.c.bf16 %v3866, %v3862
        %v3927 = vpack.c.bf16 %v3867, %v3863
        %v3928 = vpack.c.bf16 %v3868, %v3864
        %v3929 = vpack.c.bf16 %v3873, %v3869
        %v3930 = vpack.c.bf16 %v3874, %v3870
        %v3931 = vpack.c.bf16 %v3875, %v3871
        %v3932 = vpack.c.bf16 %v3876, %v3872
        %v3933 = vpack.c.bf16 %v3881, %v3877
        %v3934 = vpack.c.bf16 %v3882, %v3878
        %v3935 = vpack.c.bf16 %v3883, %v3879
        %v3936 = vpack.c.bf16 %v3884, %v3880
        %v3937 = vpack.c.bf16 %v3889, %v3885
        %v3938 = vpack.c.bf16 %v3890, %v3886
        %v3939 = vpack.c.bf16 %v3891, %v3887
        %v3940 = vpack.c.bf16 %v3892, %v3888
        %v3941 = vpack.c.bf16 %v3897, %v3893
        %v3942 = vpack.c.bf16 %v3898, %v3894
        %v3943 = vpack.c.bf16 %v3899, %v3895
        %v3944 = vpack.c.bf16 %v3900, %v3896
        %v3945 = vpack.c.bf16 %v3905, %v3901
        %v3946 = vpack.c.bf16 %v3906, %v3902
        %v3947 = vpack.c.bf16 %v3907, %v3903
        %v3948 = vpack.c.bf16 %v3908, %v3904
        %v3949 = vpack.c.bf16 %v3913, %v3909
        %v3950 = vpack.c.bf16 %v3914, %v3910
        %v3951 = vpack.c.bf16 %v3915, %v3911
        %v3952 = vpack.c.bf16 %v3916, %v3912
        %v3953 = vpack.c.bf16 %v3921, %v3917
        %v3954 = vpack.c.bf16 %v3922, %v3918
        %v3955 = vpack.c.bf16 %v3923, %v3919
        %v3956 = vpack.c.bf16 %v3924, %v3920
        %v3957 = vld [vmem:[%s3] sm:$0xf]
        %v3958 = vld [vmem:[%s3 + $0x4] sm:$0xf]
        %v3959 = vld [vmem:[%s3 + $0x8] sm:$0xf]
        %v3960 = vld [vmem:[%s3 + $0xc] sm:$0xf]
        %v3961 = vld [vmem:[%s3 + $0x10] sm:$0xf]
        %v3962 = vld [vmem:[%s3 + $0x14] sm:$0xf]
        %v3963 = vld [vmem:[%s3 + $0x18] sm:$0xf]
        %v3964 = vld [vmem:[%s3 + $0x1c] sm:$0xf]
        %v3965 = vld [vmem:[%s3 + $0x20] sm:$0xf]
        %v3966 = vld [vmem:[%s3 + $0x24] sm:$0xf]
        %v3967 = vld [vmem:[%s3 + $0x28] sm:$0xf]
        %v3968 = vld [vmem:[%s3 + $0x2c] sm:$0xf]
        %v3969 = vld [vmem:[%s3 + $0x30] sm:$0xf]
        %v3970 = vld [vmem:[%s3 + $0x34] sm:$0xf]
        %v3971 = vld [vmem:[%s3 + $0x38] sm:$0xf]
        %v3972 = vld [vmem:[%s3 + $0x3c] sm:$0xf]
        %v3973 = vld [vmem:[%s3 + $0x40] sm:$0xf]
        %v3974 = vld [vmem:[%s3 + $0x44] sm:$0xf]
        %v3975 = vld [vmem:[%s3 + $0x48] sm:$0xf]
        %v3976 = vld [vmem:[%s3 + $0x4c] sm:$0xf]
        %v3977 = vld [vmem:[%s3 + $0x50] sm:$0xf]
        %v3978 = vld [vmem:[%s3 + $0x54] sm:$0xf]
        %v3979 = vld [vmem:[%s3 + $0x58] sm:$0xf]
        %v3980 = vld [vmem:[%s3 + $0x5c] sm:$0xf]
        %v3981 = vld [vmem:[%s3 + $0x60] sm:$0xf]
        %v3982 = vld [vmem:[%s3 + $0x64] sm:$0xf]
        %v3983 = vld [vmem:[%s3 + $0x68] sm:$0xf]
        %v3984 = vld [vmem:[%s3 + $0x6c] sm:$0xf]
        %v3985 = vld [vmem:[%s3 + $0x70] sm:$0xf]
        %v3986 = vld [vmem:[%s3 + $0x74] sm:$0xf]
        %v3987 = vld [vmem:[%s3 + $0x78] sm:$0xf]
        %v3988 = vld [vmem:[%s3 + $0x7c] sm:$0xf]
        %v3989 = vld [vmem:[%s3 + $0x80] sm:$0xf]
        %v3990 = vld [vmem:[%s3 + $0x84] sm:$0xf]
        %v3991 = vld [vmem:[%s3 + $0x88] sm:$0xf]
        %v3992 = vld [vmem:[%s3 + $0x8c] sm:$0xf]
        %v3993 = vld [vmem:[%s3 + $0x90] sm:$0xf]
        %v3994 = vld [vmem:[%s3 + $0x94] sm:$0xf]
        %v3995 = vld [vmem:[%s3 + $0x98] sm:$0xf]
        %v3996 = vld [vmem:[%s3 + $0x9c] sm:$0xf]
        %v3997 = vld [vmem:[%s3 + $0xa0] sm:$0xf]
        %v3998 = vld [vmem:[%s3 + $0xa4] sm:$0xf]
        %v3999 = vld [vmem:[%s3 + $0xa8] sm:$0xf]
        %v4000 = vld [vmem:[%s3 + $0xac] sm:$0xf]
        %v4001 = vld [vmem:[%s3 + $0xb0] sm:$0xf]
        %v4002 = vld [vmem:[%s3 + $0xb4] sm:$0xf]
        %v4003 = vld [vmem:[%s3 + $0xb8] sm:$0xf]
        %v4004 = vld [vmem:[%s3 + $0xbc] sm:$0xf]
        %v4005 = vld [vmem:[%s3 + $0xc0] sm:$0xf]
        %v4006 = vld [vmem:[%s3 + $0xc4] sm:$0xf]
        %v4007 = vld [vmem:[%s3 + $0xc8] sm:$0xf]
        %v4008 = vld [vmem:[%s3 + $0xcc] sm:$0xf]
        %v4009 = vld [vmem:[%s3 + $0xd0] sm:$0xf]
        %v4010 = vld [vmem:[%s3 + $0xd4] sm:$0xf]
        %v4011 = vld [vmem:[%s3 + $0xd8] sm:$0xf]
        %v4012 = vld [vmem:[%s3 + $0xdc] sm:$0xf]
        %v4013 = vld [vmem:[%s3 + $0xe0] sm:$0xf]
        %v4014 = vld [vmem:[%s3 + $0xe4] sm:$0xf]
        %v4015 = vld [vmem:[%s3 + $0xe8] sm:$0xf]
        %v4016 = vld [vmem:[%s3 + $0xec] sm:$0xf]
        %v4017 = vld [vmem:[%s3 + $0xf0] sm:$0xf]
        %v4018 = vld [vmem:[%s3 + $0xf4] sm:$0xf]
        %v4019 = vld [vmem:[%s3 + $0xf8] sm:$0xf]
        %v4020 = vld [vmem:[%s3 + $0xfc] sm:$0xf]
        %v4021 = vld [vmem:[#allocation6] sm:$0x1]
        %v4023 = vlaneseq
        %v4024 = vshrl.u32 %v4023, 7
        %v4025 = vsub.s32 0, %v4024
        %v4026 = vrot.slane %v4021, %v4025
        %v4092 = vunpack.c.l.b16 %v3957
        %v4093 = vunpack.c.l.b16 %v3958
        %v4094 = vunpack.c.l.b16 %v3959
        %v4095 = vunpack.c.l.b16 %v3960
        %v4096 = vunpack.c.l.b16 %v3961
        %v4097 = vunpack.c.l.b16 %v3962
        %v4098 = vunpack.c.l.b16 %v3963
        %v4099 = vunpack.c.l.b16 %v3964
        %v4100 = vunpack.c.l.b16 %v3965
        %v4101 = vunpack.c.l.b16 %v3966
        %v4102 = vunpack.c.l.b16 %v3967
        %v4103 = vunpack.c.l.b16 %v3968
        %v4104 = vunpack.c.l.b16 %v3969
        %v4105 = vunpack.c.l.b16 %v3970
        %v4106 = vunpack.c.l.b16 %v3971
        %v4107 = vunpack.c.l.b16 %v3972
        %v4108 = vunpack.c.l.b16 %v3973
        %v4109 = vunpack.c.l.b16 %v3974
        %v4110 = vunpack.c.l.b16 %v3975
        %v4111 = vunpack.c.l.b16 %v3976
        %v4112 = vunpack.c.l.b16 %v3977
        %v4113 = vunpack.c.l.b16 %v3978
        %v4114 = vunpack.c.l.b16 %v3979
        %v4115 = vunpack.c.l.b16 %v3980
        %v4116 = vunpack.c.l.b16 %v3981
        %v4117 = vunpack.c.l.b16 %v3982
        %v4118 = vunpack.c.l.b16 %v3983
        %v4119 = vunpack.c.l.b16 %v3984
        %v4120 = vunpack.c.l.b16 %v3985
        %v4121 = vunpack.c.l.b16 %v3986
        %v4122 = vunpack.c.l.b16 %v3987
        %v4123 = vunpack.c.l.b16 %v3988
        %v4124 = vunpack.c.l.b16 %v3989
        %v4125 = vunpack.c.l.b16 %v3990
        %v4126 = vunpack.c.l.b16 %v3991
        %v4127 = vunpack.c.l.b16 %v3992
        %v4128 = vunpack.c.l.b16 %v3993
        %v4129 = vunpack.c.l.b16 %v3994
        %v4130 = vunpack.c.l.b16 %v3995
        %v4131 = vunpack.c.l.b16 %v3996
        %v4132 = vunpack.c.l.b16 %v3997
        %v4133 = vunpack.c.l.b16 %v3998
        %v4134 = vunpack.c.l.b16 %v3999
        %v4135 = vunpack.c.l.b16 %v4000
        %v4136 = vunpack.c.l.b16 %v4001
        %v4137 = vunpack.c.l.b16 %v4002
        %v4138 = vunpack.c.l.b16 %v4003
        %v4139 = vunpack.c.l.b16 %v4004
        %v4140 = vunpack.c.l.b16 %v4005
        %v4141 = vunpack.c.l.b16 %v4006
        %v4142 = vunpack.c.l.b16 %v4007
        %v4143 = vunpack.c.l.b16 %v4008
        %v4144 = vunpack.c.l.b16 %v4009
        %v4145 = vunpack.c.l.b16 %v4010
        %v4146 = vunpack.c.l.b16 %v4011
        %v4147 = vunpack.c.l.b16 %v4012
        %v4148 = vunpack.c.l.b16 %v4013
        %v4149 = vunpack.c.l.b16 %v4014
        %v4150 = vunpack.c.l.b16 %v4015
        %v4151 = vunpack.c.l.b16 %v4016
        %v4152 = vunpack.c.l.b16 %v4017
        %v4153 = vunpack.c.l.b16 %v4018
        %v4154 = vunpack.c.l.b16 %v4019
        %v4155 = vunpack.c.l.b16 %v4020
        %v4156 = vpack.c.b16 %v4093, %v4092
        %v4157 = vpack.c.b16 %v4095, %v4094
        %v4158 = vpack.c.b16 %v4097, %v4096
        %v4159 = vpack.c.b16 %v4099, %v4098
        %v4160 = vpack.c.b16 %v4101, %v4100
        %v4161 = vpack.c.b16 %v4103, %v4102
        %v4162 = vpack.c.b16 %v4105, %v4104
        %v4163 = vpack.c.b16 %v4107, %v4106
        %v4164 = vpack.c.b16 %v4109, %v4108
        %v4165 = vpack.c.b16 %v4111, %v4110
        %v4166 = vpack.c.b16 %v4113, %v4112
        %v4167 = vpack.c.b16 %v4115, %v4114
        %v4168 = vpack.c.b16 %v4117, %v4116
        %v4169 = vpack.c.b16 %v4119, %v4118
        %v4170 = vpack.c.b16 %v4121, %v4120
        %v4171 = vpack.c.b16 %v4123, %v4122
        %v4172 = vpack.c.b16 %v4125, %v4124
        %v4173 = vpack.c.b16 %v4127, %v4126
        %v4174 = vpack.c.b16 %v4129, %v4128
        %v4175 = vpack.c.b16 %v4131, %v4130
        %v4176 = vpack.c.b16 %v4133, %v4132
        %v4177 = vpack.c.b16 %v4135, %v4134
        %v4178 = vpack.c.b16 %v4137, %v4136
        %v4179 = vpack.c.b16 %v4139, %v4138
        %v4180 = vpack.c.b16 %v4141, %v4140
        %v4181 = vpack.c.b16 %v4143, %v4142
        %v4182 = vpack.c.b16 %v4145, %v4144
        %v4183 = vpack.c.b16 %v4147, %v4146
        %v4184 = vpack.c.b16 %v4149, %v4148
        %v4185 = vpack.c.b16 %v4151, %v4150
        %v4186 = vpack.c.b16 %v4153, %v4152
        %v4187 = vpack.c.b16 %v4155, %v4154
        %4220 = vmatprep.subr.bf16.mxu0 0
        %4221 = vmatpush1.bf16.msra.mxu0 %v4156
        %4222 = vmatprep.subr.bf16.mxu0 0
        %4223 = vmatpush1.bf16.msra.mxu0 %v4157
        %4224 = vmatprep.subr.bf16.mxu0 0
        %4225 = vmatpush1.bf16.msra.mxu0 %v4158
        %4226 = vmatprep.subr.bf16.mxu0 0
        %4227 = vmatpush1.bf16.msra.mxu0 %v4159
        %4228 = vmatprep.subr.bf16.mxu0 0
        %4229 = vmatpush1.bf16.msra.mxu0 %v4160
        %4230 = vmatprep.subr.bf16.mxu0 0
        %4231 = vmatpush1.bf16.msra.mxu0 %v4161
        %4232 = vmatprep.subr.bf16.mxu0 0
        %4233 = vmatpush1.bf16.msra.mxu0 %v4162
        %4234 = vmatprep.subr.bf16.mxu0 0
        %4235 = vmatpush1.bf16.msra.mxu0 %v4163
        %4236 = vmatprep.subr.bf16.mxu0 0
        %4237 = vmatpush1.bf16.msra.mxu0 %v4164
        %4238 = vmatprep.subr.bf16.mxu0 0
        %4239 = vmatpush1.bf16.msra.mxu0 %v4165
        %4240 = vmatprep.subr.bf16.mxu0 0
        %4241 = vmatpush1.bf16.msra.mxu0 %v4166
        %4242 = vmatprep.subr.bf16.mxu0 0
        %4243 = vmatpush1.bf16.msra.mxu0 %v4167
        %4244 = vmatprep.subr.bf16.mxu0 0
        %4245 = vmatpush1.bf16.msra.mxu0 %v4168
        %4246 = vmatprep.subr.bf16.mxu0 0
        %4247 = vmatpush1.bf16.msra.mxu0 %v4169
        %4248 = vmatprep.subr.bf16.mxu0 0
        %4249 = vmatpush1.bf16.msra.mxu0 %v4170
        %4250 = vmatprep.subr.bf16.mxu0 0
        %4251 = vmatpush1.bf16.msra.mxu0 %v4171
        %4252 = vmatprep.mubr.bf16.mxu0 %v3926
        %4253 = vmatmul.mubr.bf16.gmra.mrb[0].mxu0 %v3925
        %v4254 = vpop.f32.mrb[0].mxu0
        %v4255 = vadd.f32 %v4026, %v4254
        %v4256 = vpop.f32.mrb[0].mxu0
        %v4257 = vpop.f32.mrb[0].mxu0
        %v4258 = vadd.f32 %v4026, %v4257
        %v4259 = vpop.f32.mrb[0].mxu0
        %4260 = vmatprep.mubr.bf16.mxu0 %v3930
        %4261 = vmatmul.mubr.bf16.gmra.mrb[0].mxu0 %v3929
        %v4262 = vpop.f32.mrb[0].mxu0
        %v4263 = vadd.f32 %v4026, %v4262
        %v4264 = vpop.f32.mrb[0].mxu0
        %v4265 = vpop.f32.mrb[0].mxu0
        %v4266 = vadd.f32 %v4026, %v4265
        %v4267 = vpop.f32.mrb[0].mxu0
        %4268 = vmatprep.mubr.bf16.mxu0 %v3934
        %4269 = vmatmul.mubr.bf16.gmra.mrb[0].mxu0 %v3933
        %v4270 = vpop.f32.mrb[0].mxu0
        %v4271 = vadd.f32 %v4026, %v4270
        %v4272 = vpop.f32.mrb[0].mxu0
        %v4273 = vpop.f32.mrb[0].mxu0
        %v4274 = vadd.f32 %v4026, %v4273
        %v4275 = vpop.f32.mrb[0].mxu0
        %4276 = vmatprep.mubr.bf16.mxu0 %v3938
        %4277 = vmatmul.mubr.bf16.gmra.mrb[0].mxu0 %v3937
        %v4278 = vpop.f32.mrb[0].mxu0
        %v4279 = vadd.f32 %v4026, %v4278
        %v4280 = vpop.f32.mrb[0].mxu0
        %v4281 = vpop.f32.mrb[0].mxu0
        %v4282 = vadd.f32 %v4026, %v4281
        %v4283 = vpop.f32.mrb[0].mxu0
        %4284 = vmatprep.mubr.bf16.mxu0 %v3942
        %4285 = vmatmul.mubr.bf16.gmra.mrb[0].mxu0 %v3941
        %v4286 = vpop.f32.mrb[0].mxu0
        %v4287 = vadd.f32 %v4026, %v4286
        %v4288 = vpop.f32.mrb[0].mxu0
        %v4289 = vpop.f32.mrb[0].mxu0
        %v4290 = vadd.f32 %v4026, %v4289
        %v4291 = vpop.f32.mrb[0].mxu0
        %4292 = vmatprep.mubr.bf16.mxu0 %v3946
        %4293 = vmatmul.mubr.bf16.gmra.mrb[0].mxu0 %v3945
        %v4294 = vpop.f32.mrb[0].mxu0
        %v4295 = vadd.f32 %v4026, %v4294
        %v4296 = vpop.f32.mrb[0].mxu0
        %v4297 = vpop.f32.mrb[0].mxu0
        %v4298 = vadd.f32 %v4026, %v4297
        %v4299 = vpop.f32.mrb[0].mxu0
        %4300 = vmatprep.mubr.bf16.mxu0 %v3950
        %4301 = vmatmul.mubr.bf16.gmra.mrb[0].mxu0 %v3949
        %v4302 = vpop.f32.mrb[0].mxu0
        %v4303 = vadd.f32 %v4026, %v4302
        %v4304 = vpop.f32.mrb[0].mxu0
        %v4305 = vpop.f32.mrb[0].mxu0
        %v4306 = vadd.f32 %v4026, %v4305
        %v4307 = vpop.f32.mrb[0].mxu0
        %4308 = vmatprep.mubr.bf16.mxu0 %v3954
        %4309 = vmatmul.mubr.bf16.gmra.mrb[0].mxu0 %v3953
        %v4310 = vpop.f32.mrb[0].mxu0
        %v4311 = vadd.f32 %v4026, %v4310
        %v4312 = vpop.f32.mrb[0].mxu0
        %v4313 = vpop.f32.mrb[0].mxu0
        %v4314 = vadd.f32 %v4026, %v4313
        %v4315 = vpop.f32.mrb[0].mxu0
        %4316 = vdwg.mxu0
        %4317 = vmatprep.subr.bf16.mxu0 0
        %4318 = vmatpush1.bf16.msra.mxu0 %v4172
        %4319 = vmatprep.subr.bf16.mxu0 0
        %4320 = vmatpush1.bf16.msra.mxu0 %v4173
        %4321 = vmatprep.subr.bf16.mxu0 0
        %4322 = vmatpush1.bf16.msra.mxu0 %v4174
        %4323 = vmatprep.subr.bf16.mxu0 0
        %4324 = vmatpush1.bf16.msra.mxu0 %v4175
        %4325 = vmatprep.subr.bf16.mxu0 0
        %4326 = vmatpush1.bf16.msra.mxu0 %v4176
        %4327 = vmatprep.subr.bf16.mxu0 0
        %4328 = vmatpush1.bf16.msra.mxu0 %v4177
        %4329 = vmatprep.subr.bf16.mxu0 0
        %4330 = vmatpush1.bf16.msra.mxu0 %v4178
        %4331 = vmatprep.subr.bf16.mxu0 0
        %4332 = vmatpush1.bf16.msra.mxu0 %v4179
        %4333 = vmatprep.subr.bf16.mxu0 0
        %4334 = vmatpush1.bf16.msra.mxu0 %v4180
        %4335 = vmatprep.subr.bf16.mxu0 0
        %4336 = vmatpush1.bf16.msra.mxu0 %v4181
        %4337 = vmatprep.subr.bf16.mxu0 0
        %4338 = vmatpush1.bf16.msra.mxu0 %v4182
        %4339 = vmatprep.subr.bf16.mxu0 0
        %4340 = vmatpush1.bf16.msra.mxu0 %v4183
        %4341 = vmatprep.subr.bf16.mxu0 0
        %4342 = vmatpush1.bf16.msra.mxu0 %v4184
        %4343 = vmatprep.subr.bf16.mxu0 0
        %4344 = vmatpush1.bf16.msra.mxu0 %v4185
        %4345 = vmatprep.subr.bf16.mxu0 0
        %4346 = vmatpush1.bf16.msra.mxu0 %v4186
        %4347 = vmatprep.subr.bf16.mxu0 0
        %4348 = vmatpush1.bf16.msra.mxu0 %v4187
        %4349 = vmatprep.mubr.bf16.mxu0 %v3928
        %4350 = vmatmul.mubr.bf16.gmra.mrb[0].mxu0 %v3927
        %v4351 = vpop.f32.mrb[0].mxu0
        %v4352 = vadd.f32 %v4255, %v4351
        %v4353 = vpop.f32.mrb[0].mxu0
        %v4354 = vpop.f32.mrb[0].mxu0
        %v4355 = vadd.f32 %v4258, %v4354
        %v4356 = vpop.f32.mrb[0].mxu0
        %4357 = vmatprep.mubr.bf16.mxu0 %v3932
        %4358 = vmatmul.mubr.bf16.gmra.mrb[0].mxu0 %v3931
        %v4359 = vpop.f32.mrb[0].mxu0
        %v4360 = vadd.f32 %v4263, %v4359
        %v4361 = vpop.f32.mrb[0].mxu0
        %v4362 = vpop.f32.mrb[0].mxu0
        %v4363 = vadd.f32 %v4266, %v4362
        %v4364 = vpop.f32.mrb[0].mxu0
        %4365 = vmatprep.mubr.bf16.mxu0 %v3936
        %4366 = vmatmul.mubr.bf16.gmra.mrb[0].mxu0 %v3935
        %v4367 = vpop.f32.mrb[0].mxu0
        %v4368 = vadd.f32 %v4271, %v4367
        %v4369 = vpop.f32.mrb[0].mxu0
        %v4370 = vpop.f32.mrb[0].mxu0
        %v4371 = vadd.f32 %v4274, %v4370
        %v4372 = vpop.f32.mrb[0].mxu0
        %4373 = vmatprep.mubr.bf16.mxu0 %v3940
        %4374 = vmatmul.mubr.bf16.gmra.mrb[0].mxu0 %v3939
        %v4375 = vpop.f32.mrb[0].mxu0
        %v4376 = vadd.f32 %v4279, %v4375
        %v4377 = vpop.f32.mrb[0].mxu0
        %v4378 = vpop.f32.mrb[0].mxu0
        %v4379 = vadd.f32 %v4282, %v4378
        %v4380 = vpop.f32.mrb[0].mxu0
        %4381 = vmatprep.mubr.bf16.mxu0 %v3944
        %4382 = vmatmul.mubr.bf16.gmra.mrb[0].mxu0 %v3943
        %v4383 = vpop.f32.mrb[0].mxu0
        %v4384 = vadd.f32 %v4287, %v4383
        %v4385 = vpop.f32.mrb[0].mxu0
        %v4386 = vpop.f32.mrb[0].mxu0
        %v4387 = vadd.f32 %v4290, %v4386
        %v4388 = vpop.f32.mrb[0].mxu0
        %4389 = vmatprep.mubr.bf16.mxu0 %v3948
        %4390 = vmatmul.mubr.bf16.gmra.mrb[0].mxu0 %v3947
        %v4391 = vpop.f32.mrb[0].mxu0
        %v4392 = vadd.f32 %v4295, %v4391
        %v4393 = vpop.f32.mrb[0].mxu0
        %v4394 = vpop.f32.mrb[0].mxu0
        %v4395 = vadd.f32 %v4298, %v4394
        %v4396 = vpop.f32.mrb[0].mxu0
        %4397 = vmatprep.mubr.bf16.mxu0 %v3952
        %4398 = vmatmul.mubr.bf16.gmra.mrb[0].mxu0 %v3951
        %v4399 = vpop.f32.mrb[0].mxu0
        %v4400 = vadd.f32 %v4303, %v4399
        %v4401 = vpop.f32.mrb[0].mxu0
        %v4402 = vpop.f32.mrb[0].mxu0
        %v4403 = vadd.f32 %v4306, %v4402
        %v4404 = vpop.f32.mrb[0].mxu0
        %4405 = vmatprep.mubr.bf16.mxu0 %v3956
        %4406 = vmatmul.mubr.bf16.gmra.mrb[0].mxu0 %v3955
        %v4407 = vpop.f32.mrb[0].mxu0
        %v4408 = vadd.f32 %v4311, %v4407
        %v4409 = vpop.f32.mrb[0].mxu0
        %v4410 = vpop.f32.mrb[0].mxu0
        %v4411 = vadd.f32 %v4314, %v4410
        %v4412 = vpop.f32.mrb[0].mxu0
        %4413 = vdwg.mxu0
        %4430 = vrot.lane.b32.xlu0 %v4352, 119
        %v4431 = vpop.permute.xlu0 %4430
        %4432 = vrot.lane.b32.xlu0 %v4355, 119
        %v4433 = vpop.permute.xlu0 %4432
        %4434 = vrot.lane.b32.xlu0 %v4360, 119
        %v4435 = vpop.permute.xlu0 %4434
        %4436 = vrot.lane.b32.xlu0 %v4363, 119
        %v4437 = vpop.permute.xlu0 %4436
        %4438 = vrot.lane.b32.xlu0 %v4368, 119
        %v4439 = vpop.permute.xlu0 %4438
        %4440 = vrot.lane.b32.xlu0 %v4371, 119
        %v4441 = vpop.permute.xlu0 %4440
        %4442 = vrot.lane.b32.xlu0 %v4376, 119
        %v4443 = vpop.permute.xlu0 %4442
        %4444 = vrot.lane.b32.xlu0 %v4379, 119
        %v4445 = vpop.permute.xlu0 %4444
        %4446 = vrot.lane.b32.xlu0 %v4384, 119
        %v4447 = vpop.permute.xlu0 %4446
        %4448 = vrot.lane.b32.xlu0 %v4387, 119
        %v4449 = vpop.permute.xlu0 %4448
        %4450 = vrot.lane.b32.xlu0 %v4392, 119
        %v4451 = vpop.permute.xlu0 %4450
        %4452 = vrot.lane.b32.xlu0 %v4395, 119
        %v4453 = vpop.permute.xlu0 %4452
        %4454 = vrot.lane.b32.xlu0 %v4400, 119
        %v4455 = vpop.permute.xlu0 %4454
        %4456 = vrot.lane.b32.xlu0 %v4403, 119
        %v4457 = vpop.permute.xlu0 %4456
        %4458 = vrot.lane.b32.xlu0 %v4408, 119
        %v4459 = vpop.permute.xlu0 %4458
        %4460 = vrot.lane.b32.xlu0 %v4411, 119
        %v4461 = vpop.permute.xlu0 %4460
        %v4478 = vmax.f32 %v4352, %v4431
        %v4479 = vmax.f32 %v4355, %v4433
        %v4480 = vmax.f32 %v4360, %v4435
        %v4481 = vmax.f32 %v4363, %v4437
        %v4482 = vmax.f32 %v4368, %v4439
        %v4483 = vmax.f32 %v4371, %v4441
        %v4484 = vmax.f32 %v4376, %v4443
        %v4485 = vmax.f32 %v4379, %v4445
        %v4486 = vmax.f32 %v4384, %v4447
        %v4487 = vmax.f32 %v4387, %v4449
        %v4488 = vmax.f32 %v4392, %v4451
        %v4489 = vmax.f32 %v4395, %v4453
        %v4490 = vmax.f32 %v4400, %v4455
        %v4491 = vmax.f32 %v4403, %v4457
        %v4492 = vmax.f32 %v4408, %v4459
        %v4493 = vmax.f32 %v4411, %v4461
        %v4494 = vsub.f32 %v4352, %v4478
        %v4495 = vsub.f32 %v4355, %v4479
        %v4496 = vsub.f32 %v4360, %v4480
        %v4497 = vsub.f32 %v4363, %v4481
        %v4498 = vsub.f32 %v4368, %v4482
        %v4499 = vsub.f32 %v4371, %v4483
        %v4500 = vsub.f32 %v4376, %v4484
        %v4501 = vsub.f32 %v4379, %v4485
        %v4502 = vsub.f32 %v4384, %v4486
        %v4503 = vsub.f32 %v4387, %v4487
        %v4504 = vsub.f32 %v4392, %v4488
        %v4505 = vsub.f32 %v4395, %v4489
        %v4506 = vsub.f32 %v4400, %v4490
        %v4507 = vsub.f32 %v4403, %v4491
        %v4508 = vsub.f32 %v4408, %v4492
        %v4509 = vsub.f32 %v4411, %v4493
        %v4510 = vmul.f32 %v4494, 1.442695
        %v4511 = vpow.pop %v4510
        %v4512 = vmul.f32 %v4495, 1.442695
        %v4513 = vpow.pop %v4512
        %v4514 = vmul.f32 %v4496, 1.442695
        %v4515 = vpow.pop %v4514
        %v4516 = vmul.f32 %v4497, 1.442695
        %v4517 = vpow.pop %v4516
        %v4518 = vmul.f32 %v4498, 1.442695
        %v4519 = vpow.pop %v4518
        %v4520 = vmul.f32 %v4499, 1.442695
        %v4521 = vpow.pop %v4520
        %v4522 = vmul.f32 %v4500, 1.442695
        %v4523 = vpow.pop %v4522
        %v4524 = vmul.f32 %v4501, 1.442695
        %v4525 = vpow.pop %v4524
        %v4526 = vmul.f32 %v4502, 1.442695
        %v4527 = vpow.pop %v4526
        %v4528 = vmul.f32 %v4503, 1.442695
        %v4529 = vpow.pop %v4528
        %v4530 = vmul.f32 %v4504, 1.442695
        %v4531 = vpow.pop %v4530
        %v4532 = vmul.f32 %v4505, 1.442695
        %v4533 = vpow.pop %v4532
        %v4534 = vmul.f32 %v4506, 1.442695
        %v4535 = vpow.pop %v4534
        %v4536 = vmul.f32 %v4507, 1.442695
        %v4537 = vpow.pop %v4536
        %v4538 = vmul.f32 %v4508, 1.442695
        %v4539 = vpow.pop %v4538
        %v4540 = vmul.f32 %v4509, 1.442695
        %v4541 = vpow.pop %v4540
        %4558 = vrot.lane.b32.xlu0 %v4478, 9
        %v4559 = vpop.permute.xlu0 %4558
        %4560 = vrot.lane.b32.xlu0 %v4479, 9
        %v4561 = vpop.permute.xlu0 %4560
        %4562 = vrot.lane.b32.xlu0 %v4480, 9
        %v4563 = vpop.permute.xlu0 %4562
        %4564 = vrot.lane.b32.xlu0 %v4481, 9
        %v4565 = vpop.permute.xlu0 %4564
        %4566 = vrot.lane.b32.xlu0 %v4482, 9
        %v4567 = vpop.permute.xlu0 %4566
        %4568 = vrot.lane.b32.xlu0 %v4483, 9
        %v4569 = vpop.permute.xlu0 %4568
        %4570 = vrot.lane.b32.xlu0 %v4484, 9
        %v4571 = vpop.permute.xlu0 %4570
        %4572 = vrot.lane.b32.xlu0 %v4485, 9
        %v4573 = vpop.permute.xlu0 %4572
        %4574 = vrot.lane.b32.xlu0 %v4486, 9
        %v4575 = vpop.permute.xlu0 %4574
        %4576 = vrot.lane.b32.xlu0 %v4487, 9
        %v4577 = vpop.permute.xlu0 %4576
        %4578 = vrot.lane.b32.xlu0 %v4488, 9
        %v4579 = vpop.permute.xlu0 %4578
        %4580 = vrot.lane.b32.xlu0 %v4489, 9
        %v4581 = vpop.permute.xlu0 %4580
        %4582 = vrot.lane.b32.xlu0 %v4490, 9
        %v4583 = vpop.permute.xlu0 %4582
        %4584 = vrot.lane.b32.xlu0 %v4491, 9
        %v4585 = vpop.permute.xlu0 %4584
        %4586 = vrot.lane.b32.xlu0 %v4492, 9
        %v4587 = vpop.permute.xlu0 %4586
        %4588 = vrot.lane.b32.xlu0 %v4493, 9
        %v4589 = vpop.permute.xlu0 %4588
        %v4606 = vsub.f32 %v4352, %v4559
        %v4607 = vsub.f32 %v4355, %v4561
        %v4608 = vsub.f32 %v4360, %v4563
        %v4609 = vsub.f32 %v4363, %v4565
        %v4610 = vsub.f32 %v4368, %v4567
        %v4611 = vsub.f32 %v4371, %v4569
        %v4612 = vsub.f32 %v4376, %v4571
        %v4613 = vsub.f32 %v4379, %v4573
        %v4614 = vsub.f32 %v4384, %v4575
        %v4615 = vsub.f32 %v4387, %v4577
        %v4616 = vsub.f32 %v4392, %v4579
        %v4617 = vsub.f32 %v4395, %v4581
        %v4618 = vsub.f32 %v4400, %v4583
        %v4619 = vsub.f32 %v4403, %v4585
        %v4620 = vsub.f32 %v4408, %v4587
        %v4621 = vsub.f32 %v4411, %v4589
        %v4622 = vmul.f32 %v4606, 1.442695
        %v4623 = vpow.pop %v4622
        %v4624 = vmul.f32 %v4607, 1.442695
        %v4625 = vpow.pop %v4624
        %v4626 = vmul.f32 %v4608, 1.442695
        %v4627 = vpow.pop %v4626
        %v4628 = vmul.f32 %v4609, 1.442695
        %v4629 = vpow.pop %v4628
        %v4630 = vmul.f32 %v4610, 1.442695
        %v4631 = vpow.pop %v4630
        %v4632 = vmul.f32 %v4611, 1.442695
        %v4633 = vpow.pop %v4632
        %v4634 = vmul.f32 %v4612, 1.442695
        %v4635 = vpow.pop %v4634
        %v4636 = vmul.f32 %v4613, 1.442695
        %v4637 = vpow.pop %v4636
        %v4638 = vmul.f32 %v4614, 1.442695
        %v4639 = vpow.pop %v4638
        %v4640 = vmul.f32 %v4615, 1.442695
        %v4641 = vpow.pop %v4640
        %v4642 = vmul.f32 %v4616, 1.442695
        %v4643 = vpow.pop %v4642
        %v4644 = vmul.f32 %v4617, 1.442695
        %v4645 = vpow.pop %v4644
        %v4646 = vmul.f32 %v4618, 1.442695
        %v4647 = vpow.pop %v4646
        %v4648 = vmul.f32 %v4619, 1.442695
        %v4649 = vpow.pop %v4648
        %v4650 = vmul.f32 %v4620, 1.442695
        %v4651 = vpow.pop %v4650
        %v4652 = vmul.f32 %v4621, 1.442695
        %v4653 = vpow.pop %v4652
        %4670 = vrot.lane.b32.xlu0 %v4623, 119
        %v4671 = vpop.permute.xlu0 %4670
        %4672 = vrot.lane.b32.xlu0 %v4625, 119
        %v4673 = vpop.permute.xlu0 %4672
        %4674 = vrot.lane.b32.xlu0 %v4627, 119
        %v4675 = vpop.permute.xlu0 %4674
        %4676 = vrot.lane.b32.xlu0 %v4629, 119
        %v4677 = vpop.permute.xlu0 %4676
        %4678 = vrot.lane.b32.xlu0 %v4631, 119
        %v4679 = vpop.permute.xlu0 %4678
        %4680 = vrot.lane.b32.xlu0 %v4633, 119
        %v4681 = vpop.permute.xlu0 %4680
        %4682 = vrot.lane.b32.xlu0 %v4635, 119
        %v4683 = vpop.permute.xlu0 %4682
        %4684 = vrot.lane.b32.xlu0 %v4637, 119
        %v4685 = vpop.permute.xlu0 %4684
        %4686 = vrot.lane.b32.xlu0 %v4639, 119
        %v4687 = vpop.permute.xlu0 %4686
        %4688 = vrot.lane.b32.xlu0 %v4641, 119
        %v4689 = vpop.permute.xlu0 %4688
        %4690 = vrot.lane.b32.xlu0 %v4643, 119
        %v4691 = vpop.permute.xlu0 %4690
        %4692 = vrot.lane.b32.xlu0 %v4645, 119
        %v4693 = vpop.permute.xlu0 %4692
        %4694 = vrot.lane.b32.xlu0 %v4647, 119
        %v4695 = vpop.permute.xlu0 %4694
        %4696 = vrot.lane.b32.xlu0 %v4649, 119
        %v4697 = vpop.permute.xlu0 %4696
        %4698 = vrot.lane.b32.xlu0 %v4651, 119
        %v4699 = vpop.permute.xlu0 %4698
        %4700 = vrot.lane.b32.xlu0 %v4653, 119
        %v4701 = vpop.permute.xlu0 %4700
        %v4718 = vadd.f32 %v4511, %v4671
        %v4719 = vadd.f32 %v4513, %v4673
        %v4720 = vadd.f32 %v4515, %v4675
        %v4721 = vadd.f32 %v4517, %v4677
        %v4722 = vadd.f32 %v4519, %v4679
        %v4723 = vadd.f32 %v4521, %v4681
        %v4724 = vadd.f32 %v4523, %v4683
        %v4725 = vadd.f32 %v4525, %v4685
        %v4726 = vadd.f32 %v4527, %v4687
        %v4727 = vadd.f32 %v4529, %v4689
        %v4728 = vadd.f32 %v4531, %v4691
        %v4729 = vadd.f32 %v4533, %v4693
        %v4730 = vadd.f32 %v4535, %v4695
        %v4731 = vadd.f32 %v4537, %v4697
        %v4732 = vadd.f32 %v4539, %v4699
        %v4733 = vadd.f32 %v4541, %v4701
        %v4734 = vrcp.pop %v4718
        %v4735 = vrcp.pop %v4719
        %v4736 = vrcp.pop %v4720
        %v4737 = vrcp.pop %v4721
        %v4738 = vrcp.pop %v4722
        %v4739 = vrcp.pop %v4723
        %v4740 = vrcp.pop %v4724
        %v4741 = vrcp.pop %v4725
        %v4742 = vrcp.pop %v4726
        %v4743 = vrcp.pop %v4727
        %v4744 = vrcp.pop %v4728
        %v4745 = vrcp.pop %v4729
        %v4746 = vrcp.pop %v4730
        %v4747 = vrcp.pop %v4731
        %v4748 = vrcp.pop %v4732
        %v4749 = vrcp.pop %v4733
        %v4750 = vmul.f32 %v4511, %v4734
        %v4751 = vmul.f32 %v4513, %v4735
        %v4752 = vmul.f32 %v4515, %v4736
        %v4753 = vmul.f32 %v4517, %v4737
        %v4754 = vmul.f32 %v4519, %v4738
        %v4755 = vmul.f32 %v4521, %v4739
        %v4756 = vmul.f32 %v4523, %v4740
        %v4757 = vmul.f32 %v4525, %v4741
        %v4758 = vmul.f32 %v4527, %v4742
        %v4759 = vmul.f32 %v4529, %v4743
        %v4760 = vmul.f32 %v4531, %v4744
        %v4761 = vmul.f32 %v4533, %v4745
        %v4762 = vmul.f32 %v4535, %v4746
        %v4763 = vmul.f32 %v4537, %v4747
        %v4764 = vmul.f32 %v4539, %v4748
        %v4765 = vmul.f32 %v4541, %v4749
        %4782 = vrot.lane.b32.xlu0 %v4734, 9
        %v4783 = vpop.permute.xlu0 %4782
        %4784 = vrot.lane.b32.xlu0 %v4735, 9
        %v4785 = vpop.permute.xlu0 %4784
        %4786 = vrot.lane.b32.xlu0 %v4736, 9
        %v4787 = vpop.permute.xlu0 %4786
        %4788 = vrot.lane.b32.xlu0 %v4737, 9
        %v4789 = vpop.permute.xlu0 %4788
        %4790 = vrot.lane.b32.xlu0 %v4738, 9
        %v4791 = vpop.permute.xlu0 %4790
        %4792 = vrot.lane.b32.xlu0 %v4739, 9
        %v4793 = vpop.permute.xlu0 %4792
        %4794 = vrot.lane.b32.xlu0 %v4740, 9
        %v4795 = vpop.permute.xlu0 %4794
        %4796 = vrot.lane.b32.xlu0 %v4741, 9
        %v4797 = vpop.permute.xlu0 %4796
        %4798 = vrot.lane.b32.xlu0 %v4742, 9
        %v4799 = vpop.permute.xlu0 %4798
        %4800 = vrot.lane.b32.xlu0 %v4743, 9
        %v4801 = vpop.permute.xlu0 %4800
        %4802 = vrot.lane.b32.xlu0 %v4744, 9
        %v4803 = vpop.permute.xlu0 %4802
        %4804 = vrot.lane.b32.xlu0 %v4745, 9
        %v4805 = vpop.permute.xlu0 %4804
        %4806 = vrot.lane.b32.xlu0 %v4746, 9
        %v4807 = vpop.permute.xlu0 %4806
        %4808 = vrot.lane.b32.xlu0 %v4747, 9
        %v4809 = vpop.permute.xlu0 %4808
        %4810 = vrot.lane.b32.xlu0 %v4748, 9
        %v4811 = vpop.permute.xlu0 %4810
        %4812 = vrot.lane.b32.xlu0 %v4749, 9
        %v4813 = vpop.permute.xlu0 %4812
        %v4830 = vmul.f32 %v4623, %v4783
        %v4831 = vmul.f32 %v4625, %v4785
        %v4832 = vmul.f32 %v4627, %v4787
        %v4833 = vmul.f32 %v4629, %v4789
        %v4834 = vmul.f32 %v4631, %v4791
        %v4835 = vmul.f32 %v4633, %v4793
        %v4836 = vmul.f32 %v4635, %v4795
        %v4837 = vmul.f32 %v4637, %v4797
        %v4838 = vmul.f32 %v4639, %v4799
        %v4839 = vmul.f32 %v4641, %v4801
        %v4840 = vmul.f32 %v4643, %v4803
        %v4841 = vmul.f32 %v4645, %v4805
        %v4842 = vmul.f32 %v4647, %v4807
        %v4843 = vmul.f32 %v4649, %v4809
        %v4844 = vmul.f32 %v4651, %v4811
        %v4845 = vmul.f32 %v4653, %v4813
        %vm4846 = vcmask 72704
        %v4847 = vsel %vm4846, %v4750, %v4830
        %v4848 = vsel %vm4846, %v4751, %v4831
        %v4849 = vsel %vm4846, %v4752, %v4832
        %v4850 = vsel %vm4846, %v4753, %v4833
        %v4851 = vsel %vm4846, %v4754, %v4834
        %v4852 = vsel %vm4846, %v4755, %v4835
        %v4853 = vsel %vm4846, %v4756, %v4836
        %v4854 = vsel %vm4846, %v4757, %v4837
        %v4855 = vsel %vm4846, %v4758, %v4838
        %v4856 = vsel %vm4846, %v4759, %v4839
        %v4857 = vsel %vm4846, %v4760, %v4840
        %v4858 = vsel %vm4846, %v4761, %v4841
        %v4859 = vsel %vm4846, %v4762, %v4842
        %v4860 = vsel %vm4846, %v4763, %v4843
        %v4861 = vsel %vm4846, %v4764, %v4844
        %v4862 = vsel %vm4846, %v4765, %v4845
        %vm4863 = vcmask 146432
        %v4864 = vsel %vm4863, %v4847, %v4352
        %v4865 = vsel %vm4863, %v4848, %v4355
        %v4866 = vsel %vm4863, %v4849, %v4360
        %v4867 = vsel %vm4863, %v4850, %v4363
        %v4868 = vsel %vm4863, %v4851, %v4368
        %v4869 = vsel %vm4863, %v4852, %v4371
        %v4870 = vsel %vm4863, %v4853, %v4376
        %v4871 = vsel %vm4863, %v4854, %v4379
        %v4872 = vsel %vm4863, %v4855, %v4384
        %v4873 = vsel %vm4863, %v4856, %v4387
        %v4874 = vsel %vm4863, %v4857, %v4392
        %v4875 = vsel %vm4863, %v4858, %v4395
        %v4876 = vsel %vm4863, %v4859, %v4400
        %v4877 = vsel %vm4863, %v4860, %v4403
        %v4878 = vsel %vm4863, %v4861, %v4408
        %v4879 = vsel %vm4863, %v4862, %v4411
        %v4880 = vpack.c.bf16 %v4865, %v4864
        %v4881 = vpack.c.bf16 %v4867, %v4866
        %v4882 = vpack.c.bf16 %v4869, %v4868
        %v4883 = vpack.c.bf16 %v4871, %v4870
        %v4884 = vpack.c.bf16 %v4873, %v4872
        %v4885 = vpack.c.bf16 %v4875, %v4874
        %v4886 = vpack.c.bf16 %v4877, %v4876
        %v4887 = vpack.c.bf16 %v4879, %v4878
        %v4896 = vunpack.c.l.b16 %v4880
        %v4897 = vunpack.c.h.b16 %v4880
        %v4898 = vunpack.c.l.b16 %v4881
        %v4899 = vunpack.c.h.b16 %v4881
        %v4900 = vunpack.c.l.b16 %v4882
        %v4901 = vunpack.c.h.b16 %v4882
        %v4902 = vunpack.c.l.b16 %v4883
        %v4903 = vunpack.c.h.b16 %v4883
        %v4904 = vunpack.c.l.b16 %v4884
        %v4905 = vunpack.c.h.b16 %v4884
        %v4906 = vunpack.c.l.b16 %v4885
        %v4907 = vunpack.c.h.b16 %v4885
        %v4908 = vunpack.c.l.b16 %v4886
        %v4909 = vunpack.c.h.b16 %v4886
        %v4910 = vunpack.c.l.b16 %v4887
        %v4911 = vunpack.c.h.b16 %v4887
        %v4912 = vpack.c.b16 %v4896, %v4896
        %v4913 = vpack.c.b16 %v4897, %v4897
        %v4914 = vpack.c.b16 %v4898, %v4898
        %v4915 = vpack.c.b16 %v4899, %v4899
        %v4916 = vpack.c.b16 %v4900, %v4900
        %v4917 = vpack.c.b16 %v4901, %v4901
        %v4918 = vpack.c.b16 %v4902, %v4902
        %v4919 = vpack.c.b16 %v4903, %v4903
        %v4920 = vpack.c.b16 %v4904, %v4904
        %v4921 = vpack.c.b16 %v4905, %v4905
        %v4922 = vpack.c.b16 %v4906, %v4906
        %v4923 = vpack.c.b16 %v4907, %v4907
        %v4924 = vpack.c.b16 %v4908, %v4908
        %v4925 = vpack.c.b16 %v4909, %v4909
        %v4926 = vpack.c.b16 %v4910, %v4910
        %v4927 = vpack.c.b16 %v4911, %v4911
        %vm4944 = vcmask 519168
        %4945 = vst.msk [vmem:[%s286] sm:$0xf] %vm4944, %v4912
        %4946 = vst.msk [vmem:[%s286 + $0x4] sm:$0xf] %vm4944, %v4913
        %4947 = vst.msk [vmem:[%s286 + $0x8] sm:$0xf] %vm4944, %v4914
        %4948 = vst.msk [vmem:[%s286 + $0xc] sm:$0xf] %vm4944, %v4915
        %4949 = vst.msk [vmem:[%s286 + $0x10] sm:$0xf] %vm4944, %v4916
        %4950 = vst.msk [vmem:[%s286 + $0x14] sm:$0xf] %vm4944, %v4917
        %4951 = vst.msk [vmem:[%s286 + $0x18] sm:$0xf] %vm4944, %v4918
        %4952 = vst.msk [vmem:[%s286 + $0x1c] sm:$0xf] %vm4944, %v4919
        %4953 = vst.msk [vmem:[%s286 + $0x20] sm:$0xf] %vm4944, %v4920
        %4954 = vst.msk [vmem:[%s286 + $0x24] sm:$0xf] %vm4944, %v4921
        %4955 = vst.msk [vmem:[%s286 + $0x28] sm:$0xf] %vm4944, %v4922
        %4956 = vst.msk [vmem:[%s286 + $0x2c] sm:$0xf] %vm4944, %v4923
        %4957 = vst.msk [vmem:[%s286 + $0x30] sm:$0xf] %vm4944, %v4924
        %4958 = vst.msk [vmem:[%s286 + $0x34] sm:$0xf] %vm4944, %v4925
        %4959 = vst.msk [vmem:[%s286 + $0x38] sm:$0xf] %vm4944, %v4926
        %4960 = vst.msk [vmem:[%s286 + $0x3c] sm:$0xf] %vm4944, %v4927
        %s4961 = smul.u32 16, %s23
        %p4962 = scmp.lt.s32.totalorder %s22, 1
        %s4963 = scalar_select %p4962, %s22, 1
        %p4964 = scmp.lt.s32.totalorder %s4961, 31
        %s4965 = scalar_select %p4964, %s4961, 31
        %s4966 = smul.addr %s4963, 32
        %s4967 = sadd.s32 %s4965, %s4966
        %s4968 = smul.addr %s4967, 4
        %s4969 = scalar_lea.vmem %s5, %s4968
        // Predicated region
        $region53: #{tpu_custom_call.1} parent=39 // pred_check
          %p4970 = pneg %p160
        $region54: #{tpu_custom_call.1} parent=39 // pred_check_branch
          %4972 = sbr.rel (%p4970) target = $region56
        $region55: #{tpu_custom_call.1} parent=39 // pred_region
          %s4973 = smul.u32 16, %s23
        $region56: #{tpu_custom_call.1} parent=39 // pred_fallthru
          _
      $region40: #{tpu_custom_call.1} parent=5 // pred_fallthru
        _
      %p4974 = scmp.le.s32.totalorder 2, %s13
      // Predicated region
      $region57: #{tpu_custom_call.1} parent=5 // pred_check
        %p4975 = pneg %p4974
      $region58: #{tpu_custom_call.1} parent=5 // pred_check_branch
        %4977 = sbr.rel (%p4975) target = $region60
      $region59: #{tpu_custom_call.1} parent=5 // pred_region
        %s4978 = ssub.s32 %s13, 2
        // Predicated region
        $region61: #{tpu_custom_call.1} parent=59 // pred_check
          %p4979 = pneg %p166
        $region62: #{tpu_custom_call.1} parent=59 // pred_check_branch
          %4981 = sbr.rel (%p4979) target = $region64
        $region63: #{tpu_custom_call.1} parent=59 // pred_region
          %s4982 = smul.u32 16, %s25
          %p4983 = scmp.lt.s32.totalorder %s24, 1
          %s4984 = scalar_select %p4983, %s24, 1
          %p4985 = scmp.lt.s32.totalorder %s4982, 31
          %s4986 = scalar_select %p4985, %s4982, 31
          %s4987 = smul.addr %s4984, 32
          %s4988 = sadd.s32 %s4986, %s4987
          %s4989 = smul.addr %s4988, 4
          %s4990 = scalar_lea.vmem %s5, %s4989
        $region64: #{tpu_custom_call.1} parent=59 // pred_fallthru
          _
      $region60: #{tpu_custom_call.1} parent=5 // pred_fallthru
        _
    $region6: #{tpu_custom_call.1} parent=1 // loop_footer
      %s17 = sadd.s32 1, %s13
    $region7: #{tpu_custom_call.1} parent=1 // loop_footer_branch
      %12 = sbr.rel target = $region3
    $region8: #{tpu_custom_call.1} parent=1 // loop_exit
      _
    %4991 = vsyncpa [#allocation3], 1
    %s4992 = scalar_lea.sflag [#allocation3], 1
    %4993 = vsyncpa %s4992, 1
    %4994 = vsyncpa [#allocation5], 1

// kernel: tpu_custom_call.1
$region0: #{tpu_custom_call.1}
  #allocation0 [shape = 'u32[]', space=smem, size = 0x4, offset = 0x4, fixed_abs, tag = 'smem constant byte address 0x4 - core index']
  #allocation1 [shape = 'u32[144,128]{1,0:T(1,128)}', space=vmem, size = 0x12000, scoped, tag = 'internal scratch']
  %s0 = inlined_call_operand.vmem [shape: bf16[2,18,18,128], index: 0, kind: input, shape index: {}]
  %s1 = inlined_call_operand.hbm [shape: bf16[3,384,512], index: 1, kind: input, shape index: {}]
  %s2 = inlined_call_operand.hbm [shape: f32[1,512], index: 2, kind: input, shape index: {}]
  %s3 = inlined_call_operand.vmem [shape: bf16[512,64], index: 3, kind: input, shape index: {}]
  %s4 = inlined_call_operand.hbm [shape: f32[1,64], index: 4, kind: input, shape index: {}]
  %s5 = inlined_call_operand.vmem [shape: bf16[2,256,64], index: 5, kind: output, shape index: {}]
  %s6 = sld [smem:[#allocation0]]
  $region65: #{tpu_custom_call.1} parent=0
    _
  %s8 = ssub.s32 1, %s6
  %s9 = scalar_select 0, %s8, %s6
  $region1: #{tpu_custom_call.1} parent=0
    #allocation2 [shape = 'u8[1179648]{0}', space=vmem, size = 0x120000, scoped, tag = 'input window, operand 1, single buffered']
    #allocation3 [shape = 's32[2]{0}', space=sflag, size = 0x8, scoped, tag = 'scoped memory for tpu_custom_call.1']
    #allocation4 [shape = 'u8[2048]{0}', space=vmem, size = 0x800, scoped, tag = 'input window, operand 2, single buffered']
    #allocation5 [shape = 's32[1]{0}', space=sflag, size = 0x4, scoped, tag = 'scoped memory for tpu_custom_call.1']
    #allocation6 [shape = 'u8[512]{0}', space=vmem, size = 0x400, scoped, tag = 'input window, operand 4, single buffered']
    %10 = vsyncpa [#allocation3], 0
    %11 = vsyncpa [#allocation5], 0
    loop: start=0, step=1, limit=6
    $region2: #{tpu_custom_call.1} parent=1 // loop_pre_header
      _
    $region3: #{tpu_custom_call.1} parent=1 // loop_header
      %s13 = sphi 0, %s17
      %p14 = scmp.ge.s32.totalorder %s13, 6
      %s20 = sphi 0, %s32
      %s21 = sphi 0, %s28
      %s22 = sphi 0, %s20
      %s23 = sphi 0, %s21
      %s24 = sphi 0, %s22
      %s25 = sphi 0, %s23
      %s35 = sphi 0, %s37
      %s38 = sphi 0, %s35
      %s39 = sphi 0, %s38
      %s55 = sphi 0, %s39
      %s59 = sphi 0, %s59
      %s61 = sphi 0, %s59
      %s62 = sphi 0, %s61
      %s76 = sphi 0, %s62
      %s80 = sphi 0, %s80
      %s82 = sphi 0, %s80
      %s83 = sphi 0, %s82
      %s97 = sphi 0, %s83
      %s101 = sphi 0, %s101
      %s103 = sphi 0, %s101
      %s104 = sphi 0, %s103
      %s118 = sphi 0, %s104
      %s122 = sphi 0, %s122
      %s124 = sphi 0, %s122
      %s125 = sphi 0, %s124
      %s139 = sphi 0, %s125
      %s147 = sphi 0, %s149
      %s150 = sphi 0, %s147
      %s151 = sphi 0, %s150
      %s167 = sphi 0, %s151
    $region4: #{tpu_custom_call.1} parent=1 // loop_header_branch
      %16 = sbr.rel (%p14) target = $region8
    $region5: #{tpu_custom_call.1} parent=1 // loop_body
      %s18 = ssub.s32 %s13, 1
      %s19 = ssub.s32 %s13, 2
      %s26 = sadd.s32 1, %s21
      %p27 = scmp.ge.s32.totalorder %s26, 2
      %s28 = scalar_select %p27, 0, %s26
      %s29 = sadd.s32 1, %s20
      %s30 = scalar_select %p27, %s29, %s20
      %p31 = scmp.ge.s32.totalorder %s30, 2
      %s32 = scalar_select %p31, 0, %s30
      %s33 = ssub.s32 %s20, %s32
      %p34 = scmp.eq.s32.totalorder %s33, 0
      %s36 = sadd.s32 %s35, 1
      %s37 = scalar_select %p34, %s35, %s36
      %p40 = pneg %p34
      %p41 = scmp.eq.s32.totalorder %s13, 3
      %p42 = por %p40, %p41
      %p43 = scmp.ne.s32.totalorder %s35, %s38
      %p44 = scmp.eq.s32.totalorder %s13, 0
      %p45 = por %p43, %p44
      %p46 = scmp.ne.s32.totalorder %s35, %s38
      %p47 = scmp.eq.s32.totalorder %s18, 3
      %p48 = por %p46, %p47
      %p49 = scmp.ne.s32.totalorder %s38, %s39
      %p50 = scmp.eq.s32.totalorder %s18, 0
      %p51 = por %p49, %p50
      %p52 = scmp.ne.s32.totalorder %s38, %s39
      %p53 = scmp.eq.s32.totalorder %s19, 3
      %p54 = por %p52, %p53
      %p56 = scmp.ne.s32.totalorder %s39, %s55
      %p57 = scmp.eq.s32.totalorder %s19, 0
      %p58 = por %p56, %p57
      %s60 = sadd.s32 %s59, 1
      %p63 = scmp.eq.s32.totalorder %s13, 3
      %p64 = scmp.ne.s32.totalorder %s59, %s61
      %p65 = scmp.eq.s32.totalorder %s13, 0
      %p66 = por %p64, %p65
      %p67 = scmp.ne.s32.totalorder %s59, %s61
      %p68 = scmp.eq.s32.totalorder %s18, 3
      %p69 = por %p67, %p68
      %p70 = scmp.ne.s32.totalorder %s61, %s62
      %p71 = scmp.eq.s32.totalorder %s18, 0
      %p72 = por %p70, %p71
      %p73 = scmp.ne.s32.totalorder %s61, %s62
      %p74 = scmp.eq.s32.totalorder %s19, 3
      %p75 = por %p73, %p74
      %p77 = scmp.ne.s32.totalorder %s62, %s76
      %p78 = scmp.eq.s32.totalorder %s19, 0
      %p79 = por %p77, %p78
      %s81 = sadd.s32 %s80, 1
      %p84 = scmp.eq.s32.totalorder %s13, 3
      %p85 = scmp.ne.s32.totalorder %s80, %s82
      %p86 = scmp.eq.s32.totalorder %s13, 0
      %p87 = por %p85, %p86
      %p88 = scmp.ne.s32.totalorder %s80, %s82
      %p89 = scmp.eq.s32.totalorder %s18, 3
      %p90 = por %p88, %p89
      %p91 = scmp.ne.s32.totalorder %s82, %s83
      %p92 = scmp.eq.s32.totalorder %s18, 0
      %p93 = por %p91, %p92
      %p94 = scmp.ne.s32.totalorder %s82, %s83
      %p95 = scmp.eq.s32.totalorder %s19, 3
      %p96 = por %p94, %p95
      %p98 = scmp.ne.s32.totalorder %s83, %s97
      %p99 = scmp.eq.s32.totalorder %s19, 0
      %p100 = por %p98, %p99
      %s102 = sadd.s32 %s101, 1
      %p105 = scmp.eq.s32.totalorder %s13, 3
      %p106 = scmp.ne.s32.totalorder %s101, %s103
      %p107 = scmp.eq.s32.totalorder %s13, 0
      %p108 = por %p106, %p107
      %p109 = scmp.ne.s32.totalorder %s101, %s103
      %p110 = scmp.eq.s32.totalorder %s18, 3
      %p111 = por %p109, %p110
      %p112 = scmp.ne.s32.totalorder %s103, %s104
      %p113 = scmp.eq.s32.totalorder %s18, 0
      %p114 = por %p112, %p113
      %p115 = scmp.ne.s32.totalorder %s103, %s104
      %p116 = scmp.eq.s32.totalorder %s19, 3
      %p117 = por %p115, %p116
      %p119 = scmp.ne.s32.totalorder %s104, %s118
      %p120 = scmp.eq.s32.totalorder %s19, 0
      %p121 = por %p119, %p120
      %s123 = sadd.s32 %s122, 1
      %p126 = scmp.eq.s32.totalorder %s13, 3
      %p127 = scmp.ne.s32.totalorder %s122, %s124
      %p128 = scmp.eq.s32.totalorder %s13, 0
      %p129 = por %p127, %p128
      %p130 = scmp.ne.s32.totalorder %s122, %s124
      %p131 = scmp.eq.s32.totalorder %s18, 3
      %p132 = por %p130, %p131
      %p133 = scmp.ne.s32.totalorder %s124, %s125
      %p134 = scmp.eq.s32.totalorder %s18, 0
      %p135 = por %p133, %p134
      %p136 = scmp.ne.s32.totalorder %s124, %s125
      %p137 = scmp.eq.s32.totalorder %s19, 3
      %p138 = por %p136, %p137
      %p140 = scmp.ne.s32.totalorder %s125, %s139
      %p141 = scmp.eq.s32.totalorder %s19, 0
      %p142 = por %p140, %p141
      %s143 = ssub.s32 %s20, %s32
      %s144 = ssub.s32 %s21, %s28
      %s145 = sor.u32 %s143, %s144
      %p146 = scmp.eq.s32.totalorder %s145, 0
      %s148 = sadd.s32 %s147, 1
      %s149 = scalar_select %p146, %s147, %s148
      %p152 = pneg %p146
      %p153 = scmp.eq.s32.totalorder %s13, 3
      %p154 = por %p152, %p153
      %p155 = scmp.ne.s32.totalorder %s147, %s150
      %p156 = scmp.eq.s32.totalorder %s13, 0
      %p157 = por %p155, %p156
      %p158 = scmp.ne.s32.totalorder %s147, %s150
      %p159 = scmp.eq.s32.totalorder %s18, 3
      %p160 = por %p158, %p159
      %p161 = scmp.ne.s32.totalorder %s150, %s151
      %p162 = scmp.eq.s32.totalorder %s18, 0
      %p163 = por %p161, %p162
      %p164 = scmp.ne.s32.totalorder %s150, %s151
      %p165 = scmp.eq.s32.totalorder %s19, 3
      %p166 = por %p164, %p165
      %p168 = scmp.ne.s32.totalorder %s151, %s167
      %p169 = scmp.eq.s32.totalorder %s19, 0
      %p170 = por %p168, %p169
      %p171 = scmp.le.s32.totalorder 1, %s13
      %p172 = scmp.lt.s32.totalorder %s13, 5
      %p173 = pnand %p171, %p172
      %p174 = pneg %p173
      // Predicated region
      $region9: #{tpu_custom_call.1} parent=5 // pred_check
        _
      $region10: #{tpu_custom_call.1} parent=5 // pred_check_branch
        %176 = sbr.rel (%p173) target = $region12
      $region11: #{tpu_custom_call.1} parent=5 // pred_region
        %s177 = ssub.s32 %s13, 1
        // Predicated region
        $region13: #{tpu_custom_call.1} parent=11 // pred_check
          %p178 = pneg %p72
        $region14: #{tpu_custom_call.1} parent=11 // pred_check_branch
          %180 = sbr.rel (%p178) target = $region16
        $region15: #{tpu_custom_call.1} parent=11 // pred_region
          %s182 = ssub.s32 36864, 36864
          %183 = vsyncadd [#allocation3], %s182
          %s184 = sshll.u32 [#allocation2], 4
          %s185 = int_to_ptr.vmem [resolvable:$true] %s184
          %190 = dma.hbm_to_vmem [thread:$0]  %s1, 36864, %s185, [#allocation3], 256, 256, 16
        $region16: #{tpu_custom_call.1} parent=11 // pred_fallthru
          _
        // Predicated region
        $region17: #{tpu_custom_call.1} parent=11 // pred_check
          %p191 = pneg %p93
        $region18: #{tpu_custom_call.1} parent=11 // pred_check_branch
          %193 = sbr.rel (%p191) target = $region20
        $region19: #{tpu_custom_call.1} parent=11 // pred_region
          %s195 = ssub.s32 64, 64
          %196 = vsyncadd [#allocation5], %s195
          %s198 = sshll.u32 [#allocation4], 4
          %s199 = int_to_ptr.vmem [resolvable:$true] %s198
          %201 = dma.hbm_to_vmem [thread:$0]  %s2, 64, %s199, [#allocation5]
        $region20: #{tpu_custom_call.1} parent=11 // pred_fallthru
          _
        // Predicated region
        $region21: #{tpu_custom_call.1} parent=11 // pred_check
          %p202 = pneg %p114
        $region22: #{tpu_custom_call.1} parent=11 // pred_check_branch
          %204 = sbr.rel (%p202) target = $region24
        $region23: #{tpu_custom_call.1} parent=11 // pred_region
          _
        $region24: #{tpu_custom_call.1} parent=11 // pred_fallthru
          _
        // Predicated region
        $region25: #{tpu_custom_call.1} parent=11 // pred_check
          %p205 = pneg %p135
        $region26: #{tpu_custom_call.1} parent=11 // pred_check_branch
          %207 = sbr.rel (%p205) target = $region28
        $region27: #{tpu_custom_call.1} parent=11 // pred_region
          %s209 = ssub.s32 16, 16
          %210 = vsyncadd [#allocation5], %s209
          %s212 = sshll.u32 [#allocation6], 4
          %s213 = int_to_ptr.vmem [resolvable:$true] %s212
          %215 = dma.hbm_to_vmem [thread:$0]  %s4, 16, %s213, [#allocation5]
        $region28: #{tpu_custom_call.1} parent=11 // pred_fallthru
          _
      $region12: #{tpu_custom_call.1} parent=5 // pred_fallthru
        _
      %p216 = scmp.lt.s32.totalorder %s13, 4
      // Predicated region
      $region29: #{tpu_custom_call.1} parent=5 // pred_check
        %p217 = pneg %p216
      $region30: #{tpu_custom_call.1} parent=5 // pred_check_branch
        %219 = sbr.rel (%p217) target = $region32
      $region31: #{tpu_custom_call.1} parent=5 // pred_region
        // Predicated region
        $region33: #{tpu_custom_call.1} parent=31 // pred_check
          %p220 = pneg %p45
        $region34: #{tpu_custom_call.1} parent=31 // pred_check_branch
          %222 = sbr.rel (%p220) target = $region36
        $region35: #{tpu_custom_call.1} parent=31 // pred_region
          %p223 = scmp.lt.s32.totalorder %s20, 1
          %s224 = scalar_select %p223, %s20, 1
          %s225 = smul.addr %s224, 54
          %s226 = smul.addr %s225, 4
          %s227 = scalar_lea.vmem %s0, %s226
        $region36: #{tpu_custom_call.1} parent=31 // pred_fallthru
          _
      $region32: #{tpu_custom_call.1} parent=5 // pred_fallthru
        _
      %p228 = scmp.le.s32.totalorder 1, %s13
      %p229 = scmp.lt.s32.totalorder %s13, 5
      %p230 = pnand %p228, %p229
      %p231 = pneg %p230
      // Predicated region
      $region37: #{tpu_custom_call.1} parent=5 // pred_check
        _
      $region38: #{tpu_custom_call.1} parent=5 // pred_check_branch
        %233 = sbr.rel (%p230) target = $region40
      $region39: #{tpu_custom_call.1} parent=5 // pred_region
        %s234 = ssub.s32 %s13, 1
        // Predicated region
        $region41: #{tpu_custom_call.1} parent=39 // pred_check
          %p235 = pneg %p72
        $region42: #{tpu_custom_call.1} parent=39 // pred_check_branch
          %237 = sbr.rel (%p235) target = $region44
        $region43: #{tpu_custom_call.1} parent=39 // pred_region
          %238 = dma.done [#allocation3], 36864
        $region44: #{tpu_custom_call.1} parent=39 // pred_fallthru
          _
        // Predicated region
        $region45: #{tpu_custom_call.1} parent=39 // pred_check
          %p239 = pneg %p93
        $region46: #{tpu_custom_call.1} parent=39 // pred_check_branch
          %241 = sbr.rel (%p239) target = $region48
        $region47: #{tpu_custom_call.1} parent=39 // pred_region
          %242 = dma.done [#allocation5], 64
        $region48: #{tpu_custom_call.1} parent=39 // pred_fallthru
          _
        // Predicated region
        $region49: #{tpu_custom_call.1} parent=39 // pred_check
          %p243 = pneg %p135
        $region50: #{tpu_custom_call.1} parent=39 // pred_check_branch
          %245 = sbr.rel (%p243) target = $region52
        $region51: #{tpu_custom_call.1} parent=39 // pred_region
          %246 = dma.done [#allocation5], 16
        $region52: #{tpu_custom_call.1} parent=39 // pred_fallthru
          _
        %p247 = scmp.lt.s32.totalorder %s22, 1
        %s248 = scalar_select %p247, %s22, 1
        %s249 = smul.addr %s248, 54
        %s250 = smul.addr %s249, 4
        %s251 = scalar_lea.vmem %s0, %s250
        %p252 = pneg %p51
        %p253 = pneg %p48
        %p254 = pneg %p72
        %p255 = pneg %p69
        %p256 = pneg %p93
        %p257 = pneg %p90
        %p258 = pneg %p114
        %p259 = pneg %p111
        %p260 = pneg %p135
        %p261 = pneg %p132
        %p262 = pneg %p163
        %p263 = pneg %p160
        %s264 = smul.u32 16, %s23
        %p265 = scmp.lt.s32.totalorder %s22, 1
        %s266 = scalar_select %p265, %s22, 1
        %p267 = scmp.lt.s32.totalorder %s264, 31
        %s268 = scalar_select %p267, %s264, 31
        %s269 = smul.addr %s266, 32
        %s270 = sadd.s32 %s268, %s269
        %s271 = smul.addr %s270, 4
        %s272 = scalar_lea.vmem %s5, %s271
        %p273 = scmp.lt.s32.totalorder %s22, 1
        %s274 = scalar_select %p273, %s22, 1
        %s275 = smul.addr %s274, 54
        %s276 = smul.addr %s275, 4
        %s277 = scalar_lea.vmem %s0, %s276
        %s278 = smul.u32 16, %s23
        %p279 = scmp.lt.s32.totalorder %s22, 1
        %s280 = scalar_select %p279, %s22, 1
        %p281 = scmp.lt.s32.totalorder %s278, 31
        %s282 = scalar_select %p281, %s278, 31
        %s283 = smul.addr %s280, 32
        %s284 = sadd.s32 %s282, %s283
        %s285 = smul.addr %s284, 4
        %s286 = scalar_lea.vmem %s5, %s285
        %s287 = smul.u32 16, %s23
        %s289 = smul.u32 %s23, 8
        %s290 = smul.u32 %s289, 3
        %s291 = smul.addr %s290, 4
        %s292 = scalar_lea.vmem %s277, %s291
        %v293 = vld [vmem:[%s292] sm:$0xf]
        %v294 = vld [vmem:[%s292 + $0x4] sm:$0xf]
        %v295 = vld [vmem:[%s292 + $0xc] sm:$0xf]
        %v296 = vld [vmem:[%s292 + $0x10] sm:$0xf]
        %v297 = vld [vmem:[%s292 + $0x18] sm:$0xf]
        %v298 = vld [vmem:[%s292 + $0x1c] sm:$0xf]
        %v299 = vld [vmem:[%s292 + $0x24] sm:$0xf]
        %v300 = vld [vmem:[%s292 + $0x28] sm:$0xf]
        %v301 = vld [vmem:[%s292 + $0x30] sm:$0xf]
        %v302 = vld [vmem:[%s292 + $0x34] sm:$0xf]
        %v303 = vld [vmem:[%s292 + $0x3c] sm:$0xf]
        %v304 = vld [vmem:[%s292 + $0x40] sm:$0xf]
        %v305 = vld [vmem:[%s292 + $0x48] sm:$0xf]
        %v306 = vld [vmem:[%s292 + $0x4c] sm:$0xf]
        %v307 = vld [vmem:[%s292 + $0x54] sm:$0xf]
        %v308 = vld [vmem:[%s292 + $0x58] sm:$0xf]
        %v309 = vld [vmem:[%s292 + $0x60] sm:$0xf]
        %v310 = vld [vmem:[%s292 + $0x64] sm:$0xf]
        %v311 = vld [vmem:[%s292 + $0x6c] sm:$0xf]
        %v312 = vld [vmem:[%s292 + $0x70] sm:$0xf]
        %v313 = vld [vmem:[%s292 + $0x8] sm:$0x1]
        %v314 = vld [vmem:[%s292 + $0x14] sm:$0x1]
        %v315 = vld [vmem:[%s292 + $0x20] sm:$0x1]
        %v316 = vld [vmem:[%s292 + $0x2c] sm:$0x1]
        %v317 = vld [vmem:[%s292 + $0x38] sm:$0x1]
        %v318 = vld [vmem:[%s292 + $0x44] sm:$0x1]
        %v319 = vld [vmem:[%s292 + $0x50] sm:$0x1]
        %v320 = vld [vmem:[%s292 + $0x5c] sm:$0x1]
        %v321 = vld [vmem:[%s292 + $0x68] sm:$0x1]
        %v322 = vld [vmem:[%s292 + $0x74] sm:$0x1]
        %v323 = vld [vmem:[%s292] sm:$0xe]
        %v324 = vld [vmem:[%s292 + $0xc] sm:$0xe]
        %v325 = vld [vmem:[%s292 + $0x18] sm:$0xe]
        %v326 = vld [vmem:[%s292 + $0x24] sm:$0xe]
        %v327 = vld [vmem:[%s292 + $0x30] sm:$0xe]
        %v328 = vld [vmem:[%s292 + $0x3c] sm:$0xe]
        %v329 = vld [vmem:[%s292 + $0x48] sm:$0xe]
        %v330 = vld [vmem:[%s292 + $0x54] sm:$0xe]
        %v331 = vld [vmem:[%s292 + $0x60] sm:$0xe]
        %v332 = vld [vmem:[%s292 + $0x6c] sm:$0xe]
        %v353 = vunpack.c.l.b16 %v293
        %v354 = vunpack.c.l.b16 %v294
        %v355 = vunpack.c.l.b16 %v295
        %v356 = vunpack.c.l.b16 %v296
        %v357 = vunpack.c.l.b16 %v297
        %v358 = vunpack.c.l.b16 %v298
        %v359 = vunpack.c.l.b16 %v299
        %v360 = vunpack.c.l.b16 %v300
        %v361 = vunpack.c.l.b16 %v301
        %v362 = vunpack.c.l.b16 %v302
        %v363 = vunpack.c.l.b16 %v303
        %v364 = vunpack.c.l.b16 %v304
        %v365 = vunpack.c.l.b16 %v305
        %v366 = vunpack.c.l.b16 %v306
        %v367 = vunpack.c.l.b16 %v307
        %v368 = vunpack.c.l.b16 %v308
        %v369 = vunpack.c.l.b16 %v309
        %v370 = vunpack.c.l.b16 %v310
        %v371 = vunpack.c.l.b16 %v311
        %v372 = vunpack.c.l.b16 %v312
        %v373 = vpack.c.b16 %v354, %v353
        %v374 = vpack.c.b16 %v356, %v355
        %v375 = vpack.c.b16 %v358, %v357
        %v376 = vpack.c.b16 %v360, %v359
        %v377 = vpack.c.b16 %v362, %v361
        %v378 = vpack.c.b16 %v364, %v363
        %v379 = vpack.c.b16 %v366, %v365
        %v380 = vpack.c.b16 %v368, %v367
        %v381 = vpack.c.b16 %v370, %v369
        %v382 = vpack.c.b16 %v372, %v371
        %v403 = vunpack.c.l.b16 %v313
        %v404 = vunpack.c.l.b16 %v314
        %v405 = vunpack.c.l.b16 %v315
        %v406 = vunpack.c.l.b16 %v316
        %v407 = vunpack.c.l.b16 %v317
        %v408 = vunpack.c.l.b16 %v318
        %v409 = vunpack.c.l.b16 %v319
        %v410 = vunpack.c.l.b16 %v320
        %v411 = vunpack.c.l.b16 %v321
        %v412 = vunpack.c.l.b16 %v322
        %v413 = vpack.c.b16 %v403, %v403
        %v414 = vpack.c.b16 %v404, %v404
        %v415 = vpack.c.b16 %v405, %v405
        %v416 = vpack.c.b16 %v406, %v406
        %v417 = vpack.c.b16 %v407, %v407
        %v418 = vpack.c.b16 %v408, %v408
        %v419 = vpack.c.b16 %v409, %v409
        %v420 = vpack.c.b16 %v410, %v410
        %v421 = vpack.c.b16 %v411, %v411
        %v422 = vpack.c.b16 %v412, %v412
        %vm423 = vsmask.f32 7424
        %v425 = vshrl.u32 %v373, 16
        %v427 = vshll.u32 %v373, 16
        %v429 = vrot.slane %v427, 1
        %v430 = vor.u32 %v425, %v429
        %v432 = vshll.u32 %v413, 16
        %v434 = vrot.slane %v432, 1
        %v435 = vsel %vm423, %v430, %v434
        %v437 = vshrl.u32 %v374, 16
        %v439 = vshll.u32 %v374, 16
        %v441 = vrot.slane %v439, 1
        %v442 = vor.u32 %v437, %v441
        %v444 = vshll.u32 %v414, 16
        %v446 = vrot.slane %v444, 1
        %v447 = vsel %vm423, %v442, %v446
        %v449 = vshrl.u32 %v375, 16
        %v451 = vshll.u32 %v375, 16
        %v453 = vrot.slane %v451, 1
        %v454 = vor.u32 %v449, %v453
        %v456 = vshll.u32 %v415, 16
        %v458 = vrot.slane %v456, 1
        %v459 = vsel %vm423, %v454, %v458
        %v461 = vshrl.u32 %v376, 16
        %v463 = vshll.u32 %v376, 16
        %v465 = vrot.slane %v463, 1
        %v466 = vor.u32 %v461, %v465
        %v468 = vshll.u32 %v416, 16
        %v470 = vrot.slane %v468, 1
        %v471 = vsel %vm423, %v466, %v470
        %v473 = vshrl.u32 %v377, 16
        %v475 = vshll.u32 %v377, 16
        %v477 = vrot.slane %v475, 1
        %v478 = vor.u32 %v473, %v477
        %v480 = vshll.u32 %v417, 16
        %v482 = vrot.slane %v480, 1
        %v483 = vsel %vm423, %v478, %v482
        %v485 = vshrl.u32 %v378, 16
        %v487 = vshll.u32 %v378, 16
        %v489 = vrot.slane %v487, 1
        %v490 = vor.u32 %v485, %v489
        %v492 = vshll.u32 %v418, 16
        %v494 = vrot.slane %v492, 1
        %v495 = vsel %vm423, %v490, %v494
        %v497 = vshrl.u32 %v379, 16
        %v499 = vshll.u32 %v379, 16
        %v501 = vrot.slane %v499, 1
        %v502 = vor.u32 %v497, %v501
        %v504 = vshll.u32 %v419, 16
        %v506 = vrot.slane %v504, 1
        %v507 = vsel %vm423, %v502, %v506
        %v509 = vshrl.u32 %v380, 16
        %v511 = vshll.u32 %v380, 16
        %v513 = vrot.slane %v511, 1
        %v514 = vor.u32 %v509, %v513
        %v516 = vshll.u32 %v420, 16
        %v518 = vrot.slane %v516, 1
        %v519 = vsel %vm423, %v514, %v518
        %v521 = vshrl.u32 %v381, 16
        %v523 = vshll.u32 %v381, 16
        %v525 = vrot.slane %v523, 1
        %v526 = vor.u32 %v521, %v525
        %v528 = vshll.u32 %v421, 16
        %v530 = vrot.slane %v528, 1
        %v531 = vsel %vm423, %v526, %v530
        %v533 = vshrl.u32 %v382, 16
        %v535 = vshll.u32 %v382, 16
        %v537 = vrot.slane %v535, 1
        %v538 = vor.u32 %v533, %v537
        %v540 = vshll.u32 %v422, 16
        %v542 = vrot.slane %v540, 1
        %v543 = vsel %vm423, %v538, %v542
        %v564 = vunpack.c.l.b16 %v323
        %v565 = vunpack.c.l.b16 %v324
        %v566 = vunpack.c.l.b16 %v325
        %v567 = vunpack.c.l.b16 %v326
        %v568 = vunpack.c.l.b16 %v327
        %v569 = vunpack.c.l.b16 %v328
        %v570 = vunpack.c.l.b16 %v329
        %v571 = vunpack.c.l.b16 %v330
        %v572 = vunpack.c.l.b16 %v331
        %v573 = vunpack.c.l.b16 %v332
        %v574 = vpack.c.b16 %v354, %v564
        %v575 = vpack.c.b16 %v356, %v565
        %v576 = vpack.c.b16 %v358, %v566
        %v577 = vpack.c.b16 %v360, %v567
        %v578 = vpack.c.b16 %v362, %v568
        %v579 = vpack.c.b16 %v364, %v569
        %v580 = vpack.c.b16 %v366, %v570
        %v581 = vpack.c.b16 %v368, %v571
        %v582 = vpack.c.b16 %v370, %v572
        %v583 = vpack.c.b16 %v372, %v573
        %vm584 = vcmask 1046528
        %v585 = vrot.slane %v574, 1
        %v586 = vrot.slane %v413, 1
        %v587 = vsel %vm584, %v585, %v586
        %v588 = vrot.slane %v575, 1
        %v589 = vrot.slane %v414, 1
        %v590 = vsel %vm584, %v588, %v589
        %v591 = vrot.slane %v576, 1
        %v592 = vrot.slane %v415, 1
        %v593 = vsel %vm584, %v591, %v592
        %v594 = vrot.slane %v577, 1
        %v595 = vrot.slane %v416, 1
        %v596 = vsel %vm584, %v594, %v595
        %v597 = vrot.slane %v578, 1
        %v598 = vrot.slane %v417, 1
        %v599 = vsel %vm584, %v597, %v598
        %v600 = vrot.slane %v579, 1
        %v601 = vrot.slane %v418, 1
        %v602 = vsel %vm584, %v600, %v601
        %v603 = vrot.slane %v580, 1
        %v604 = vrot.slane %v419, 1
        %v605 = vsel %vm584, %v603, %v604
        %v606 = vrot.slane %v581, 1
        %v607 = vrot.slane %v420, 1
        %v608 = vsel %vm584, %v606, %v607
        %v609 = vrot.slane %v582, 1
        %v610 = vrot.slane %v421, 1
        %v611 = vsel %vm584, %v609, %v610
        %v612 = vrot.slane %v583, 1
        %v613 = vrot.slane %v422, 1
        %v614 = vsel %vm584, %v612, %v613
        %v625 = vld [vmem:[#allocation2] sm:$0xff]
        %v626 = vld [vmem:[#allocation2 + $0x8] sm:$0xff]
        %v627 = vld [vmem:[#allocation2 + $0x10] sm:$0xff]
        %v628 = vld [vmem:[#allocation2 + $0x18] sm:$0xff]
        %v629 = vld [vmem:[#allocation2 + $0x20] sm:$0xff]
        %v630 = vld [vmem:[#allocation2 + $0x28] sm:$0xff]
        %v631 = vld [vmem:[#allocation2 + $0x30] sm:$0xff]
        %v632 = vld [vmem:[#allocation2 + $0x38] sm:$0xff]
        %v633 = vld [vmem:[#allocation2 + $0x40] sm:$0xff]
        %v634 = vld [vmem:[#allocation2 + $0x48] sm:$0xff]
        %v635 = vld [vmem:[#allocation2 + $0x50] sm:$0xff]
        %v636 = vld [vmem:[#allocation2 + $0x58] sm:$0xff]
        %v637 = vld [vmem:[#allocation2 + $0x60] sm:$0xff]
        %v638 = vld [vmem:[#allocation2 + $0x68] sm:$0xff]
        %v639 = vld [vmem:[#allocation2 + $0x70] sm:$0xff]
        %v640 = vld [vmem:[#allocation2 + $0x78] sm:$0xff]
        %v641 = vld [vmem:[#allocation2 + $0x80] sm:$0xff]
        %v642 = vld [vmem:[#allocation2 + $0x88] sm:$0xff]
        %v643 = vld [vmem:[#allocation2 + $0x90] sm:$0xff]
        %v644 = vld [vmem:[#allocation2 + $0x98] sm:$0xff]
        %v645 = vld [vmem:[#allocation2 + $0xa0] sm:$0xff]
        %v646 = vld [vmem:[#allocation2 + $0xa8] sm:$0xff]
        %v647 = vld [vmem:[#allocation2 + $0xb0] sm:$0xff]
        %v648 = vld [vmem:[#allocation2 + $0xb8] sm:$0xff]
        %v649 = vld [vmem:[#allocation2 + $0xc0] sm:$0xff]
        %v650 = vld [vmem:[#allocation2 + $0xc8] sm:$0xff]
        %v651 = vld [vmem:[#allocation2 + $0xd0] sm:$0xff]
        %v652 = vld [vmem:[#allocation2 + $0xd8] sm:$0xff]
        %v653 = vld [vmem:[#allocation2 + $0xe0] sm:$0xff]
        %v654 = vld [vmem:[#allocation2 + $0xe8] sm:$0xff]
        %v655 = vld [vmem:[#allocation2 + $0xf0] sm:$0xff]
        %v656 = vld [vmem:[#allocation2 + $0xf8] sm:$0xff]
        %v657 = vld [vmem:[#allocation2 + $0x100] sm:$0xff]
        %v658 = vld [vmem:[#allocation2 + $0x108] sm:$0xff]
        %v659 = vld [vmem:[#allocation2 + $0x110] sm:$0xff]
        %v660 = vld [vmem:[#allocation2 + $0x118] sm:$0xff]
        %v661 = vld [vmem:[#allocation2 + $0x120] sm:$0xff]
        %v662 = vld [vmem:[#allocation2 + $0x128] sm:$0xff]
        %v663 = vld [vmem:[#allocation2 + $0x130] sm:$0xff]
        %v664 = vld [vmem:[#allocation2 + $0x138] sm:$0xff]
        %v665 = vld [vmem:[#allocation2 + $0x140] sm:$0xff]
        %v666 = vld [vmem:[#allocation2 + $0x148] sm:$0xff]
        %v667 = vld [vmem:[#allocation2 + $0x150] sm:$0xff]
        %v668 = vld [vmem:[#allocation2 + $0x158] sm:$0xff]
        %v669 = vld [vmem:[#allocation2 + $0x160] sm:$0xff]
        %v670 = vld [vmem:[#allocation2 + $0x168] sm:$0xff]
        %v671 = vld [vmem:[#allocation2 + $0x170] sm:$0xff]
        %v672 = vld [vmem:[#allocation2 + $0x178] sm:$0xff]
        %v673 = vld [vmem:[#allocation2 + $0x180] sm:$0xff]
        %v674 = vld [vmem:[#allocation2 + $0x188] sm:$0xff]
        %v675 = vld [vmem:[#allocation2 + $0x190] sm:$0xff]
        %v676 = vld [vmem:[#allocation2 + $0x198] sm:$0xff]
        %v677 = vld [vmem:[#allocation2 + $0x1a0] sm:$0xff]
        %v678 = vld [vmem:[#allocation2 + $0x1a8] sm:$0xff]
        %v679 = vld [vmem:[#allocation2 + $0x1b0] sm:$0xff]
        %v680 = vld [vmem:[#allocation2 + $0x1b8] sm:$0xff]
        %v681 = vld [vmem:[#allocation2 + $0x1c0] sm:$0xff]
        %v682 = vld [vmem:[#allocation2 + $0x1c8] sm:$0xff]
        %v683 = vld [vmem:[#allocation2 + $0x1d0] sm:$0xff]
        %v684 = vld [vmem:[#allocation2 + $0x1d8] sm:$0xff]
        %v685 = vld [vmem:[#allocation2 + $0x1e0] sm:$0xff]
        %v686 = vld [vmem:[#allocation2 + $0x1e8] sm:$0xff]
        %v687 = vld [vmem:[#allocation2 + $0x1f0] sm:$0xff]
        %v688 = vld [vmem:[#allocation2 + $0x1f8] sm:$0xff]
        %v689 = vld [vmem:[#allocation2 + $0x200] sm:$0xff]
        %v690 = vld [vmem:[#allocation2 + $0x208] sm:$0xff]
        %v691 = vld [vmem:[#allocation2 + $0x210] sm:$0xff]
        %v692 = vld [vmem:[#allocation2 + $0x218] sm:$0xff]
        %v693 = vld [vmem:[#allocation2 + $0x220] sm:$0xff]
        %v694 = vld [vmem:[#allocation2 + $0x228] sm:$0xff]
        %v695 = vld [vmem:[#allocation2 + $0x230] sm:$0xff]
        %v696 = vld [vmem:[#allocation2 + $0x238] sm:$0xff]
        %v697 = vld [vmem:[#allocation2 + $0x240] sm:$0xff]
        %v698 = vld [vmem:[#allocation2 + $0x248] sm:$0xff]
        %v699 = vld [vmem:[#allocation2 + $0x250] sm:$0xff]
        %v700 = vld [vmem:[#allocation2 + $0x258] sm:$0xff]
        %v701 = vld [vmem:[#allocation2 + $0x260] sm:$0xff]
        %v702 = vld [vmem:[#allocation2 + $0x268] sm:$0xff]
        %v703 = vld [vmem:[#allocation2 + $0x270] sm:$0xff]
        %v704 = vld [vmem:[#allocation2 + $0x278] sm:$0xff]
        %v705 = vld [vmem:[#allocation2 + $0x280] sm:$0xff]
        %v706 = vld [vmem:[#allocation2 + $0x288] sm:$0xff]
        %v707 = vld [vmem:[#allocation2 + $0x290] sm:$0xff]
        %v708 = vld [vmem:[#allocation2 + $0x298] sm:$0xff]
        %v709 = vld [vmem:[#allocation2 + $0x2a0] sm:$0xff]
        %v710 = vld [vmem:[#allocation2 + $0x2a8] sm:$0xff]
        %v711 = vld [vmem:[#allocation2 + $0x2b0] sm:$0xff]
        %v712 = vld [vmem:[#allocation2 + $0x2b8] sm:$0xff]
        %v713 = vld [vmem:[#allocation2 + $0x2c0] sm:$0xff]
        %v714 = vld [vmem:[#allocation2 + $0x2c8] sm:$0xff]
        %v715 = vld [vmem:[#allocation2 + $0x2d0] sm:$0xff]
        %v716 = vld [vmem:[#allocation2 + $0x2d8] sm:$0xff]
        %v717 = vld [vmem:[#allocation2 + $0x2e0] sm:$0xff]
        %v718 = vld [vmem:[#allocation2 + $0x2e8] sm:$0xff]
        %v719 = vld [vmem:[#allocation2 + $0x2f0] sm:$0xff]
        %v720 = vld [vmem:[#allocation2 + $0x2f8] sm:$0xff]
        %s721 = scalar_lea.vmem [#allocation2], 768
        %v722 = vld [vmem:[%s721] sm:$0xff]
        %v723 = vld [vmem:[%s721 + $0x8] sm:$0xff]
        %v724 = vld [vmem:[%s721 + $0x10] sm:$0xff]
        %v725 = vld [vmem:[%s721 + $0x18] sm:$0xff]
        %v726 = vld [vmem:[%s721 + $0x20] sm:$0xff]
        %v727 = vld [vmem:[%s721 + $0x28] sm:$0xff]
        %v728 = vld [vmem:[%s721 + $0x30] sm:$0xff]
        %v729 = vld [vmem:[%s721 + $0x38] sm:$0xff]
        %v730 = vld [vmem:[%s721 + $0x40] sm:$0xff]
        %v731 = vld [vmem:[%s721 + $0x48] sm:$0xff]
        %v732 = vld [vmem:[%s721 + $0x50] sm:$0xff]
        %v733 = vld [vmem:[%s721 + $0x58] sm:$0xff]
        %v734 = vld [vmem:[%s721 + $0x60] sm:$0xff]
        %v735 = vld [vmem:[%s721 + $0x68] sm:$0xff]
        %v736 = vld [vmem:[%s721 + $0x70] sm:$0xff]
        %v737 = vld [vmem:[%s721 + $0x78] sm:$0xff]
        %v738 = vld [vmem:[%s721 + $0x80] sm:$0xff]
        %v739 = vld [vmem:[%s721 + $0x88] sm:$0xff]
        %v740 = vld [vmem:[%s721 + $0x90] sm:$0xff]
        %v741 = vld [vmem:[%s721 + $0x98] sm:$0xff]
        %v742 = vld [vmem:[%s721 + $0xa0] sm:$0xff]
        %v743 = vld [vmem:[%s721 + $0xa8] sm:$0xff]
        %v744 = vld [vmem:[%s721 + $0xb0] sm:$0xff]
        %v745 = vld [vmem:[%s721 + $0xb8] sm:$0xff]
        %v746 = vld [vmem:[%s721 + $0xc0] sm:$0xff]
        %v747 = vld [vmem:[%s721 + $0xc8] sm:$0xff]
        %v748 = vld [vmem:[%s721 + $0xd0] sm:$0xff]
        %v749 = vld [vmem:[%s721 + $0xd8] sm:$0xff]
        %v750 = vld [vmem:[%s721 + $0xe0] sm:$0xff]
        %v751 = vld [vmem:[%s721 + $0xe8] sm:$0xff]
        %v752 = vld [vmem:[%s721 + $0xf0] sm:$0xff]
        %v753 = vld [vmem:[%s721 + $0xf8] sm:$0xff]
        %v754 = vld [vmem:[%s721 + $0x100] sm:$0xff]
        %v755 = vld [vmem:[%s721 + $0x108] sm:$0xff]
        %v756 = vld [vmem:[%s721 + $0x110] sm:$0xff]
        %v757 = vld [vmem:[%s721 + $0x118] sm:$0xff]
        %v758 = vld [vmem:[%s721 + $0x120] sm:$0xff]
        %v759 = vld [vmem:[%s721 + $0x128] sm:$0xff]
        %v760 = vld [vmem:[%s721 + $0x130] sm:$0xff]
        %v761 = vld [vmem:[%s721 + $0x138] sm:$0xff]
        %v762 = vld [vmem:[%s721 + $0x140] sm:$0xff]
        %v763 = vld [vmem:[%s721 + $0x148] sm:$0xff]
        %v764 = vld [vmem:[%s721 + $0x150] sm:$0xff]
        %v765 = vld [vmem:[%s721 + $0x158] sm:$0xff]
        %v766 = vld [vmem:[%s721 + $0x160] sm:$0xff]
        %v767 = vld [vmem:[%s721 + $0x168] sm:$0xff]
        %v768 = vld [vmem:[%s721 + $0x170] sm:$0xff]
        %v769 = vld [vmem:[%s721 + $0x178] sm:$0xff]
        %v770 = vld [vmem:[%s721 + $0x180] sm:$0xff]
        %v771 = vld [vmem:[%s721 + $0x188] sm:$0xff]
        %v772 = vld [vmem:[%s721 + $0x190] sm:$0xff]
        %v773 = vld [vmem:[%s721 + $0x198] sm:$0xff]
        %v774 = vld [vmem:[%s721 + $0x1a0] sm:$0xff]
        %v775 = vld [vmem:[%s721 + $0x1a8] sm:$0xff]
        %v776 = vld [vmem:[%s721 + $0x1b0] sm:$0xff]
        %v777 = vld [vmem:[%s721 + $0x1b8] sm:$0xff]
        %v778 = vld [vmem:[%s721 + $0x1c0] sm:$0xff]
        %v779 = vld [vmem:[%s721 + $0x1c8] sm:$0xff]
        %v780 = vld [vmem:[%s721 + $0x1d0] sm:$0xff]
        %v781 = vld [vmem:[%s721 + $0x1d8] sm:$0xff]
        %v782 = vld [vmem:[%s721 + $0x1e0] sm:$0xff]
        %v783 = vld [vmem:[%s721 + $0x1e8] sm:$0xff]
        %v784 = vld [vmem:[%s721 + $0x1f0] sm:$0xff]
        %v785 = vld [vmem:[%s721 + $0x1f8] sm:$0xff]
        %v786 = vld [vmem:[%s721 + $0x200] sm:$0xff]
        %v787 = vld [vmem:[%s721 + $0x208] sm:$0xff]
        %v788 = vld [vmem:[%s721 + $0x210] sm:$0xff]
        %v789 = vld [vmem:[%s721 + $0x218] sm:$0xff]
        %v790 = vld [vmem:[%s721 + $0x220] sm:$0xff]
        %v791 = vld [vmem:[%s721 + $0x228] sm:$0xff]
        %v792 = vld [vmem:[%s721 + $0x230] sm:$0xff]
        %v793 = vld [vmem:[%s721 + $0x238] sm:$0xff]
        %v794 = vld [vmem:[%s721 + $0x240] sm:$0xff]
        %v795 = vld [vmem:[%s721 + $0x248] sm:$0xff]
        %v796 = vld [vmem:[%s721 + $0x250] sm:$0xff]
        %v797 = vld [vmem:[%s721 + $0x258] sm:$0xff]
        %v798 = vld [vmem:[%s721 + $0x260] sm:$0xff]
        %v799 = vld [vmem:[%s721 + $0x268] sm:$0xff]
        %v800 = vld [vmem:[%s721 + $0x270] sm:$0xff]
        %v801 = vld [vmem:[%s721 + $0x278] sm:$0xff]
        %v802 = vld [vmem:[%s721 + $0x280] sm:$0xff]
        %v803 = vld [vmem:[%s721 + $0x288] sm:$0xff]
        %v804 = vld [vmem:[%s721 + $0x290] sm:$0xff]
        %v805 = vld [vmem:[%s721 + $0x298] sm:$0xff]
        %v806 = vld [vmem:[%s721 + $0x2a0] sm:$0xff]
        %v807 = vld [vmem:[%s721 + $0x2a8] sm:$0xff]
        %v808 = vld [vmem:[%s721 + $0x2b0] sm:$0xff]
        %v809 = vld [vmem:[%s721 + $0x2b8] sm:$0xff]
        %v810 = vld [vmem:[%s721 + $0x2c0] sm:$0xff]
        %v811 = vld [vmem:[%s721 + $0x2c8] sm:$0xff]
        %v812 = vld [vmem:[%s721 + $0x2d0] sm:$0xff]
        %v813 = vld [vmem:[%s721 + $0x2d8] sm:$0xff]
        %v814 = vld [vmem:[%s721 + $0x2e0] sm:$0xff]
        %v815 = vld [vmem:[%s721 + $0x2e8] sm:$0xff]
        %v816 = vld [vmem:[%s721 + $0x2f0] sm:$0xff]
        %v817 = vld [vmem:[%s721 + $0x2f8] sm:$0xff]
        %v914 = vunpack.c.l.b16 %v722
        %v915 = vunpack.c.h.b16 %v722
        %v916 = vunpack.c.l.b16 %v723
        %v917 = vunpack.c.h.b16 %v723
        %v918 = vunpack.c.l.b16 %v724
        %v919 = vunpack.c.h.b16 %v724
        %v920 = vunpack.c.l.b16 %v725
        %v921 = vunpack.c.h.b16 %v725
        %v922 = vunpack.c.l.b16 %v726
        %v923 = vunpack.c.h.b16 %v726
        %v924 = vunpack.c.l.b16 %v727
        %v925 = vunpack.c.h.b16 %v727
        %v926 = vunpack.c.l.b16 %v728
        %v927 = vunpack.c.h.b16 %v728
        %v928 = vunpack.c.l.b16 %v729
        %v929 = vunpack.c.h.b16 %v729
        %v930 = vunpack.c.l.b16 %v730
        %v931 = vunpack.c.h.b16 %v730
        %v932 = vunpack.c.l.b16 %v731
        %v933 = vunpack.c.h.b16 %v731
        %v934 = vunpack.c.l.b16 %v732
        %v935 = vunpack.c.h.b16 %v732
        %v936 = vunpack.c.l.b16 %v733
        %v937 = vunpack.c.h.b16 %v733
        %v938 = vunpack.c.l.b16 %v734
        %v939 = vunpack.c.h.b16 %v734
        %v940 = vunpack.c.l.b16 %v735
        %v941 = vunpack.c.h.b16 %v735
        %v942 = vunpack.c.l.b16 %v736
        %v943 = vunpack.c.h.b16 %v736
        %v944 = vunpack.c.l.b16 %v737
        %v945 = vunpack.c.h.b16 %v737
        %v946 = vunpack.c.l.b16 %v738
        %v947 = vunpack.c.h.b16 %v738
        %v948 = vunpack.c.l.b16 %v739
        %v949 = vunpack.c.h.b16 %v739
        %v950 = vunpack.c.l.b16 %v740
        %v951 = vunpack.c.h.b16 %v740
        %v952 = vunpack.c.l.b16 %v741
        %v953 = vunpack.c.h.b16 %v741
        %v954 = vunpack.c.l.b16 %v742
        %v955 = vunpack.c.h.b16 %v742
        %v956 = vunpack.c.l.b16 %v743
        %v957 = vunpack.c.h.b16 %v743
        %v958 = vunpack.c.l.b16 %v744
        %v959 = vunpack.c.h.b16 %v744
        %v960 = vunpack.c.l.b16 %v745
        %v961 = vunpack.c.h.b16 %v745
        %v962 = vunpack.c.l.b16 %v746
        %v963 = vunpack.c.h.b16 %v746
        %v964 = vunpack.c.l.b16 %v747
        %v965 = vunpack.c.h.b16 %v747
        %v966 = vunpack.c.l.b16 %v748
        %v967 = vunpack.c.h.b16 %v748
        %v968 = vunpack.c.l.b16 %v749
        %v969 = vunpack.c.h.b16 %v749
        %v970 = vunpack.c.l.b16 %v750
        %v971 = vunpack.c.h.b16 %v750
        %v972 = vunpack.c.l.b16 %v751
        %v973 = vunpack.c.h.b16 %v751
        %v974 = vunpack.c.l.b16 %v752
        %v975 = vunpack.c.h.b16 %v752
        %v976 = vunpack.c.l.b16 %v753
        %v977 = vunpack.c.h.b16 %v753
        %v978 = vunpack.c.l.b16 %v754
        %v979 = vunpack.c.h.b16 %v754
        %v980 = vunpack.c.l.b16 %v755
        %v981 = vunpack.c.h.b16 %v755
        %v982 = vunpack.c.l.b16 %v756
        %v983 = vunpack.c.h.b16 %v756
        %v984 = vunpack.c.l.b16 %v757
        %v985 = vunpack.c.h.b16 %v757
        %v986 = vunpack.c.l.b16 %v758
        %v987 = vunpack.c.h.b16 %v758
        %v988 = vunpack.c.l.b16 %v759
        %v989 = vunpack.c.h.b16 %v759
        %v990 = vunpack.c.l.b16 %v760
        %v991 = vunpack.c.h.b16 %v760
        %v992 = vunpack.c.l.b16 %v761
        %v993 = vunpack.c.h.b16 %v761
        %v994 = vunpack.c.l.b16 %v762
        %v995 = vunpack.c.h.b16 %v762
        %v996 = vunpack.c.l.b16 %v763
        %v997 = vunpack.c.h.b16 %v763
        %v998 = vunpack.c.l.b16 %v764
        %v999 = vunpack.c.h.b16 %v764
        %v1000 = vunpack.c.l.b16 %v765
        %v1001 = vunpack.c.h.b16 %v765
        %v1002 = vunpack.c.l.b16 %v766
        %v1003 = vunpack.c.h.b16 %v766
        %v1004 = vunpack.c.l.b16 %v767
        %v1005 = vunpack.c.h.b16 %v767
        %v1006 = vunpack.c.l.b16 %v768
        %v1007 = vunpack.c.h.b16 %v768
        %v1008 = vunpack.c.l.b16 %v769
        %v1009 = vunpack.c.h.b16 %v769
        %v1010 = vunpack.c.l.b16 %v770
        %v1011 = vunpack.c.h.b16 %v770
        %v1012 = vunpack.c.l.b16 %v771
        %v1013 = vunpack.c.h.b16 %v771
        %v1014 = vunpack.c.l.b16 %v772
        %v1015 = vunpack.c.h.b16 %v772
        %v1016 = vunpack.c.l.b16 %v773
        %v1017 = vunpack.c.h.b16 %v773
        %v1018 = vunpack.c.l.b16 %v774
        %v1019 = vunpack.c.h.b16 %v774
        %v1020 = vunpack.c.l.b16 %v775
        %v1021 = vunpack.c.h.b16 %v775
        %v1022 = vunpack.c.l.b16 %v776
        %v1023 = vunpack.c.h.b16 %v776
        %v1024 = vunpack.c.l.b16 %v777
        %v1025 = vunpack.c.h.b16 %v777
        %v1026 = vunpack.c.l.b16 %v778
        %v1027 = vunpack.c.h.b16 %v778
        %v1028 = vunpack.c.l.b16 %v779
        %v1029 = vunpack.c.h.b16 %v779
        %v1030 = vunpack.c.l.b16 %v780
        %v1031 = vunpack.c.h.b16 %v780
        %v1032 = vunpack.c.l.b16 %v781
        %v1033 = vunpack.c.h.b16 %v781
        %v1034 = vunpack.c.l.b16 %v782
        %v1035 = vunpack.c.h.b16 %v782
        %v1036 = vunpack.c.l.b16 %v783
        %v1037 = vunpack.c.h.b16 %v783
        %v1038 = vunpack.c.l.b16 %v784
        %v1039 = vunpack.c.h.b16 %v784
        %v1040 = vunpack.c.l.b16 %v785
        %v1041 = vunpack.c.h.b16 %v785
        %v1042 = vunpack.c.l.b16 %v786
        %v1043 = vunpack.c.h.b16 %v786
        %v1044 = vunpack.c.l.b16 %v787
        %v1045 = vunpack.c.h.b16 %v787
        %v1046 = vunpack.c.l.b16 %v788
        %v1047 = vunpack.c.h.b16 %v788
        %v1048 = vunpack.c.l.b16 %v789
        %v1049 = vunpack.c.h.b16 %v789
        %v1050 = vunpack.c.l.b16 %v790
        %v1051 = vunpack.c.h.b16 %v790
        %v1052 = vunpack.c.l.b16 %v791
        %v1053 = vunpack.c.h.b16 %v791
        %v1054 = vunpack.c.l.b16 %v792
        %v1055 = vunpack.c.h.b16 %v792
        %v1056 = vunpack.c.l.b16 %v793
        %v1057 = vunpack.c.h.b16 %v793
        %v1058 = vunpack.c.l.b16 %v794
        %v1059 = vunpack.c.h.b16 %v794
        %v1060 = vunpack.c.l.b16 %v795
        %v1061 = vunpack.c.h.b16 %v795
        %v1062 = vunpack.c.l.b16 %v796
        %v1063 = vunpack.c.h.b16 %v796
        %v1064 = vunpack.c.l.b16 %v797
        %v1065 = vunpack.c.h.b16 %v797
        %v1066 = vunpack.c.l.b16 %v798
        %v1067 = vunpack.c.h.b16 %v798
        %v1068 = vunpack.c.l.b16 %v799
        %v1069 = vunpack.c.h.b16 %v799
        %v1070 = vunpack.c.l.b16 %v800
        %v1071 = vunpack.c.h.b16 %v800
        %v1072 = vunpack.c.l.b16 %v801
        %v1073 = vunpack.c.h.b16 %v801
        %v1074 = vunpack.c.l.b16 %v802
        %v1075 = vunpack.c.h.b16 %v802
        %v1076 = vunpack.c.l.b16 %v803
        %v1077 = vunpack.c.h.b16 %v803
        %v1078 = vunpack.c.l.b16 %v804
        %v1079 = vunpack.c.h.b16 %v804
        %v1080 = vunpack.c.l.b16 %v805
        %v1081 = vunpack.c.h.b16 %v805
        %v1082 = vunpack.c.l.b16 %v806
        %v1083 = vunpack.c.h.b16 %v806
        %v1084 = vunpack.c.l.b16 %v807
        %v1085 = vunpack.c.h.b16 %v807
        %v1086 = vunpack.c.l.b16 %v808
        %v1087 = vunpack.c.h.b16 %v808
        %v1088 = vunpack.c.l.b16 %v809
        %v1089 = vunpack.c.h.b16 %v809
        %v1090 = vunpack.c.l.b16 %v810
        %v1091 = vunpack.c.h.b16 %v810
        %v1092 = vunpack.c.l.b16 %v811
        %v1093 = vunpack.c.h.b16 %v811
        %v1094 = vunpack.c.l.b16 %v812
        %v1095 = vunpack.c.h.b16 %v812
        %v1096 = vunpack.c.l.b16 %v813
        %v1097 = vunpack.c.h.b16 %v813
        %v1098 = vunpack.c.l.b16 %v814
        %v1099 = vunpack.c.h.b16 %v814
        %v1100 = vunpack.c.l.b16 %v815
        %v1101 = vunpack.c.h.b16 %v815
        %v1102 = vunpack.c.l.b16 %v816
        %v1103 = vunpack.c.h.b16 %v816
        %v1104 = vunpack.c.l.b16 %v817
        %v1105 = vunpack.c.h.b16 %v817
        %v1106 = vpack.c.b16 %v918, %v914
        %v1107 = vpack.c.b16 %v919, %v915
        %v1108 = vpack.c.b16 %v920, %v916
        %v1109 = vpack.c.b16 %v921, %v917
        %v1110 = vpack.c.b16 %v926, %v922
        %v1111 = vpack.c.b16 %v927, %v923
        %v1112 = vpack.c.b16 %v928, %v924
        %v1113 = vpack.c.b16 %v929, %v925
        %v1114 = vpack.c.b16 %v934, %v930
        %v1115 = vpack.c.b16 %v935, %v931
        %v1116 = vpack.c.b16 %v936, %v932
        %v1117 = vpack.c.b16 %v937, %v933
        %v1118 = vpack.c.b16 %v942, %v938
        %v1119 = vpack.c.b16 %v943, %v939
        %v1120 = vpack.c.b16 %v944, %v940
        %v1121 = vpack.c.b16 %v945, %v941
        %v1122 = vpack.c.b16 %v950, %v946
        %v1123 = vpack.c.b16 %v951, %v947
        %v1124 = vpack.c.b16 %v952, %v948
        %v1125 = vpack.c.b16 %v953, %v949
        %v1126 = vpack.c.b16 %v958, %v954
        %v1127 = vpack.c.b16 %v959, %v955
        %v1128 = vpack.c.b16 %v960, %v956
        %v1129 = vpack.c.b16 %v961, %v957
        %v1130 = vpack.c.b16 %v966, %v962
        %v1131 = vpack.c.b16 %v967, %v963
        %v1132 = vpack.c.b16 %v968, %v964
        %v1133 = vpack.c.b16 %v969, %v965
        %v1134 = vpack.c.b16 %v974, %v970
        %v1135 = vpack.c.b16 %v975, %v971
        %v1136 = vpack.c.b16 %v976, %v972
        %v1137 = vpack.c.b16 %v977, %v973
        %v1138 = vpack.c.b16 %v982, %v978
        %v1139 = vpack.c.b16 %v983, %v979
        %v1140 = vpack.c.b16 %v984, %v980
        %v1141 = vpack.c.b16 %v985, %v981
        %v1142 = vpack.c.b16 %v990, %v986
        %v1143 = vpack.c.b16 %v991, %v987
        %v1144 = vpack.c.b16 %v992, %v988
        %v1145 = vpack.c.b16 %v993, %v989
        %v1146 = vpack.c.b16 %v998, %v994
        %v1147 = vpack.c.b16 %v999, %v995
        %v1148 = vpack.c.b16 %v1000, %v996
        %v1149 = vpack.c.b16 %v1001, %v997
        %v1150 = vpack.c.b16 %v1006, %v1002
        %v1151 = vpack.c.b16 %v1007, %v1003
        %v1152 = vpack.c.b16 %v1008, %v1004
        %v1153 = vpack.c.b16 %v1009, %v1005
        %v1154 = vpack.c.b16 %v1014, %v1010
        %v1155 = vpack.c.b16 %v1015, %v1011
        %v1156 = vpack.c.b16 %v1016, %v1012
        %v1157 = vpack.c.b16 %v1017, %v1013
        %v1158 = vpack.c.b16 %v1022, %v1018
        %v1159 = vpack.c.b16 %v1023, %v1019
        %v1160 = vpack.c.b16 %v1024, %v1020
        %v1161 = vpack.c.b16 %v1025, %v1021
        %v1162 = vpack.c.b16 %v1030, %v1026
        %v1163 = vpack.c.b16 %v1031, %v1027
        %v1164 = vpack.c.b16 %v1032, %v1028
        %v1165 = vpack.c.b16 %v1033, %v1029
        %v1166 = vpack.c.b16 %v1038, %v1034
        %v1167 = vpack.c.b16 %v1039, %v1035
        %v1168 = vpack.c.b16 %v1040, %v1036
        %v1169 = vpack.c.b16 %v1041, %v1037
        %v1170 = vpack.c.b16 %v1046, %v1042
        %v1171 = vpack.c.b16 %v1047, %v1043
        %v1172 = vpack.c.b16 %v1048, %v1044
        %v1173 = vpack.c.b16 %v1049, %v1045
        %v1174 = vpack.c.b16 %v1054, %v1050
        %v1175 = vpack.c.b16 %v1055, %v1051
        %v1176 = vpack.c.b16 %v1056, %v1052
        %v1177 = vpack.c.b16 %v1057, %v1053
        %v1178 = vpack.c.b16 %v1062, %v1058
        %v1179 = vpack.c.b16 %v1063, %v1059
        %v1180 = vpack.c.b16 %v1064, %v1060
        %v1181 = vpack.c.b16 %v1065, %v1061
        %v1182 = vpack.c.b16 %v1070, %v1066
        %v1183 = vpack.c.b16 %v1071, %v1067
        %v1184 = vpack.c.b16 %v1072, %v1068
        %v1185 = vpack.c.b16 %v1073, %v1069
        %v1186 = vpack.c.b16 %v1078, %v1074
        %v1187 = vpack.c.b16 %v1079, %v1075
        %v1188 = vpack.c.b16 %v1080, %v1076
        %v1189 = vpack.c.b16 %v1081, %v1077
        %v1190 = vpack.c.b16 %v1086, %v1082
        %v1191 = vpack.c.b16 %v1087, %v1083
        %v1192 = vpack.c.b16 %v1088, %v1084
        %v1193 = vpack.c.b16 %v1089, %v1085
        %v1194 = vpack.c.b16 %v1094, %v1090
        %v1195 = vpack.c.b16 %v1095, %v1091
        %v1196 = vpack.c.b16 %v1096, %v1092
        %v1197 = vpack.c.b16 %v1097, %v1093
        %v1198 = vpack.c.b16 %v1102, %v1098
        %v1199 = vpack.c.b16 %v1103, %v1099
        %v1200 = vpack.c.b16 %v1104, %v1100
        %v1201 = vpack.c.b16 %v1105, %v1101
        %1298 = vmatprep.subr.bf16.mxu0 %v1107
        %1299 = vmatpush1.bf16.msra.mxu0 %v1106
        %1300 = vmatprep.subr.bf16.mxu0 %v1111
        %1301 = vmatpush1.bf16.msra.mxu0 %v1110
        %1302 = vmatprep.subr.bf16.mxu0 %v1115
        %1303 = vmatpush1.bf16.msra.mxu0 %v1114
        %1304 = vmatprep.subr.bf16.mxu0 %v1119
        %1305 = vmatpush1.bf16.msra.mxu0 %v1118
        %1306 = vmatprep.subr.bf16.mxu0 %v1123
        %1307 = vmatpush1.bf16.msra.mxu0 %v1122
        %1308 = vmatprep.subr.bf16.mxu0 %v1127
        %1309 = vmatpush1.bf16.msra.mxu0 %v1126
        %1310 = vmatprep.subr.bf16.mxu0 %v1131
        %1311 = vmatpush1.bf16.msra.mxu0 %v1130
        %1312 = vmatprep.subr.bf16.mxu0 %v1135
        %1313 = vmatpush1.bf16.msra.mxu0 %v1134
        %1314 = vmatprep.subr.bf16.mxu0 %v1139
        %1315 = vmatpush1.bf16.msra.mxu0 %v1138
        %1316 = vmatprep.subr.bf16.mxu0 %v1143
        %1317 = vmatpush1.bf16.msra.mxu0 %v1142
        %1318 = vmatprep.subr.bf16.mxu0 %v1147
        %1319 = vmatpush1.bf16.msra.mxu0 %v1146
        %1320 = vmatprep.subr.bf16.mxu0 %v1151
        %1321 = vmatpush1.bf16.msra.mxu0 %v1150
        %1322 = vmatprep.subr.bf16.mxu0 %v1155
        %1323 = vmatpush1.bf16.msra.mxu0 %v1154
        %1324 = vmatprep.subr.bf16.mxu0 %v1159
        %1325 = vmatpush1.bf16.msra.mxu0 %v1158
        %1326 = vmatprep.subr.bf16.mxu0 %v1163
        %1327 = vmatpush1.bf16.msra.mxu0 %v1162
        %1328 = vmatprep.subr.bf16.mxu0 %v1167
        %1329 = vmatpush1.bf16.msra.mxu0 %v1166
        %1330 = vmatprep.mubr.bf16.mxu0 %v447
        %1331 = vmatmul.mubr.bf16.gmra.mrb[0].mxu0 %v374
        %v1332 = vpop.f32.mrb[0].mxu0
        %v1333 = vadd.f32 0.0, %v1332
        %v1334 = vpop.f32.mrb[0].mxu0
        %v1335 = vadd.f32 0.0, %v1334
        %v1336 = vpop.f32.mrb[0].mxu0
        %v1337 = vadd.f32 0.0, %v1336
        %v1338 = vpop.f32.mrb[0].mxu0
        %v1339 = vadd.f32 0.0, %v1338
        %1340 = vmatprep.mubr.bf16.mxu0 %v459
        %1341 = vmatmul.mubr.bf16.gmra.mrb[0].mxu0 %v375
        %v1342 = vpop.f32.mrb[0].mxu0
        %v1343 = vadd.f32 0.0, %v1342
        %v1344 = vpop.f32.mrb[0].mxu0
        %v1345 = vadd.f32 0.0, %v1344
        %v1346 = vpop.f32.mrb[0].mxu0
        %v1347 = vadd.f32 0.0, %v1346
        %v1348 = vpop.f32.mrb[0].mxu0
        %v1349 = vadd.f32 0.0, %v1348
        %1350 = vmatprep.mubr.bf16.mxu0 %v471
        %1351 = vmatmul.mubr.bf16.gmra.mrb[0].mxu0 %v376
        %v1352 = vpop.f32.mrb[0].mxu0
        %v1353 = vadd.f32 0.0, %v1352
        %v1354 = vpop.f32.mrb[0].mxu0
        %v1355 = vadd.f32 0.0, %v1354
        %v1356 = vpop.f32.mrb[0].mxu0
        %v1357 = vadd.f32 0.0, %v1356
        %v1358 = vpop.f32.mrb[0].mxu0
        %v1359 = vadd.f32 0.0, %v1358
        %1360 = vmatprep.mubr.bf16.mxu0 %v483
        %1361 = vmatmul.mubr.bf16.gmra.mrb[0].mxu0 %v377
        %v1362 = vpop.f32.mrb[0].mxu0
        %v1363 = vadd.f32 0.0, %v1362
        %v1364 = vpop.f32.mrb[0].mxu0
        %v1365 = vadd.f32 0.0, %v1364
        %v1366 = vpop.f32.mrb[0].mxu0
        %v1367 = vadd.f32 0.0, %v1366
        %v1368 = vpop.f32.mrb[0].mxu0
        %v1369 = vadd.f32 0.0, %v1368
        %1370 = vmatprep.mubr.bf16.mxu0 %v495
        %1371 = vmatmul.mubr.bf16.gmra.mrb[0].mxu0 %v378
        %v1372 = vpop.f32.mrb[0].mxu0
        %v1373 = vadd.f32 0.0, %v1372
        %v1374 = vpop.f32.mrb[0].mxu0
        %v1375 = vadd.f32 0.0, %v1374
        %v1376 = vpop.f32.mrb[0].mxu0
        %v1377 = vadd.f32 0.0, %v1376
        %v1378 = vpop.f32.mrb[0].mxu0
        %v1379 = vadd.f32 0.0, %v1378
        %1380 = vmatprep.mubr.bf16.mxu0 %v507
        %1381 = vmatmul.mubr.bf16.gmra.mrb[0].mxu0 %v379
        %v1382 = vpop.f32.mrb[0].mxu0
        %v1383 = vadd.f32 0.0, %v1382
        %v1384 = vpop.f32.mrb[0].mxu0
        %v1385 = vadd.f32 0.0, %v1384
        %v1386 = vpop.f32.mrb[0].mxu0
        %v1387 = vadd.f32 0.0, %v1386
        %v1388 = vpop.f32.mrb[0].mxu0
        %v1389 = vadd.f32 0.0, %v1388
        %1390 = vmatprep.mubr.bf16.mxu0 %v519
        %1391 = vmatmul.mubr.bf16.gmra.mrb[0].mxu0 %v380
        %v1392 = vpop.f32.mrb[0].mxu0
        %v1393 = vadd.f32 0.0, %v1392
        %v1394 = vpop.f32.mrb[0].mxu0
        %v1395 = vadd.f32 0.0, %v1394
        %v1396 = vpop.f32.mrb[0].mxu0
        %v1397 = vadd.f32 0.0, %v1396
        %v1398 = vpop.f32.mrb[0].mxu0
        %v1399 = vadd.f32 0.0, %v1398
        %1400 = vmatprep.mubr.bf16.mxu0 %v531
        %1401 = vmatmul.mubr.bf16.gmra.mrb[0].mxu0 %v381
        %v1402 = vpop.f32.mrb[0].mxu0
        %v1403 = vadd.f32 0.0, %v1402
        %v1404 = vpop.f32.mrb[0].mxu0
        %v1405 = vadd.f32 0.0, %v1404
        %v1406 = vpop.f32.mrb[0].mxu0
        %v1407 = vadd.f32 0.0, %v1406
        %v1408 = vpop.f32.mrb[0].mxu0
        %v1409 = vadd.f32 0.0, %v1408
        %1410 = vdwg.mxu0
        %1411 = vmatprep.subr.bf16.mxu0 %v1171
        %1412 = vmatpush1.bf16.msra.mxu0 %v1170
        %1413 = vmatprep.subr.bf16.mxu0 %v1175
        %1414 = vmatpush1.bf16.msra.mxu0 %v1174
        %1415 = vmatprep.subr.bf16.mxu0 %v1179
        %1416 = vmatpush1.bf16.msra.mxu0 %v1178
        %1417 = vmatprep.subr.bf16.mxu0 %v1183
        %1418 = vmatpush1.bf16.msra.mxu0 %v1182
        %1419 = vmatprep.subr.bf16.mxu0 %v1187
        %1420 = vmatpush1.bf16.msra.mxu0 %v1186
        %1421 = vmatprep.subr.bf16.mxu0 %v1191
        %1422 = vmatpush1.bf16.msra.mxu0 %v1190
        %1423 = vmatprep.subr.bf16.mxu0 %v1195
        %1424 = vmatpush1.bf16.msra.mxu0 %v1194
        %1425 = vmatprep.subr.bf16.mxu0 %v1199
        %1426 = vmatpush1.bf16.msra.mxu0 %v1198
        %1427 = vmatprep.subr.bf16.mxu0 0
        %1428 = vmatpush1.bf16.msra.mxu0 0
        %1429 = vmatprep.subr.bf16.mxu0 0
        %1430 = vmatpush1.bf16.msra.mxu0 0
        %1431 = vmatprep.subr.bf16.mxu0 0
        %1432 = vmatpush1.bf16.msra.mxu0 0
        %1433 = vmatprep.subr.bf16.mxu0 0
        %1434 = vmatpush1.bf16.msra.mxu0 0
        %1435 = vmatprep.subr.bf16.mxu0 0
        %1436 = vmatpush1.bf16.msra.mxu0 0
        %1437 = vmatprep.subr.bf16.mxu0 0
        %1438 = vmatpush1.bf16.msra.mxu0 0
        %1439 = vmatprep.subr.bf16.mxu0 0
        %1440 = vmatpush1.bf16.msra.mxu0 0
        %1441 = vmatprep.subr.bf16.mxu0 0
        %1442 = vmatpush1.bf16.msra.mxu0 0
        %1443 = vmatprep.mubr.bf16.mxu0 0
        %1444 = vmatmul.mubr.bf16.gmra.mrb[0].mxu0 %v590
        %v1445 = vpop.f32.mrb[0].mxu0
        %v1446 = vadd.f32 %v1333, %v1445
        %v1447 = vpop.f32.mrb[0].mxu0
        %v1448 = vadd.f32 %v1335, %v1447
        %v1449 = vpop.f32.mrb[0].mxu0
        %v1450 = vadd.f32 %v1337, %v1449
        %v1451 = vpop.f32.mrb[0].mxu0
        %v1452 = vadd.f32 %v1339, %v1451
        %1453 = vmatprep.mubr.bf16.mxu0 0
        %1454 = vmatmul.mubr.bf16.gmra.mrb[0].mxu0 %v593
        %v1455 = vpop.f32.mrb[0].mxu0
        %v1456 = vadd.f32 %v1343, %v1455
        %v1457 = vpop.f32.mrb[0].mxu0
        %v1458 = vadd.f32 %v1345, %v1457
        %v1459 = vpop.f32.mrb[0].mxu0
        %v1460 = vadd.f32 %v1347, %v1459
        %v1461 = vpop.f32.mrb[0].mxu0
        %v1462 = vadd.f32 %v1349, %v1461
        %1463 = vmatprep.mubr.bf16.mxu0 0
        %1464 = vmatmul.mubr.bf16.gmra.mrb[0].mxu0 %v596
        %v1465 = vpop.f32.mrb[0].mxu0
        %v1466 = vadd.f32 %v1353, %v1465
        %v1467 = vpop.f32.mrb[0].mxu0
        %v1468 = vadd.f32 %v1355, %v1467
        %v1469 = vpop.f32.mrb[0].mxu0
        %v1470 = vadd.f32 %v1357, %v1469
        %v1471 = vpop.f32.mrb[0].mxu0
        %v1472 = vadd.f32 %v1359, %v1471
        %1473 = vmatprep.mubr.bf16.mxu0 0
        %1474 = vmatmul.mubr.bf16.gmra.mrb[0].mxu0 %v599
        %v1475 = vpop.f32.mrb[0].mxu0
        %v1476 = vadd.f32 %v1363, %v1475
        %v1477 = vpop.f32.mrb[0].mxu0
        %v1478 = vadd.f32 %v1365, %v1477
        %v1479 = vpop.f32.mrb[0].mxu0
        %v1480 = vadd.f32 %v1367, %v1479
        %v1481 = vpop.f32.mrb[0].mxu0
        %v1482 = vadd.f32 %v1369, %v1481
        %1483 = vmatprep.mubr.bf16.mxu0 0
        %1484 = vmatmul.mubr.bf16.gmra.mrb[0].mxu0 %v602
        %v1485 = vpop.f32.mrb[0].mxu0
        %v1486 = vadd.f32 %v1373, %v1485
        %v1487 = vpop.f32.mrb[0].mxu0
        %v1488 = vadd.f32 %v1375, %v1487
        %v1489 = vpop.f32.mrb[0].mxu0
        %v1490 = vadd.f32 %v1377, %v1489
        %v1491 = vpop.f32.mrb[0].mxu0
        %v1492 = vadd.f32 %v1379, %v1491
        %1493 = vmatprep.mubr.bf16.mxu0 0
        %1494 = vmatmul.mubr.bf16.gmra.mrb[0].mxu0 %v605
        %v1495 = vpop.f32.mrb[0].mxu0
        %v1496 = vadd.f32 %v1383, %v1495
        %v1497 = vpop.f32.mrb[0].mxu0
        %v1498 = vadd.f32 %v1385, %v1497
        %v1499 = vpop.f32.mrb[0].mxu0
        %v1500 = vadd.f32 %v1387, %v1499
        %v1501 = vpop.f32.mrb[0].mxu0
        %v1502 = vadd.f32 %v1389, %v1501
        %1503 = vmatprep.mubr.bf16.mxu0 0
        %1504 = vmatmul.mubr.bf16.gmra.mrb[0].mxu0 %v608
        %v1505 = vpop.f32.mrb[0].mxu0
        %v1506 = vadd.f32 %v1393, %v1505
        %v1507 = vpop.f32.mrb[0].mxu0
        %v1508 = vadd.f32 %v1395, %v1507
        %v1509 = vpop.f32.mrb[0].mxu0
        %v1510 = vadd.f32 %v1397, %v1509
        %v1511 = vpop.f32.mrb[0].mxu0
        %v1512 = vadd.f32 %v1399, %v1511
        %1513 = vmatprep.mubr.bf16.mxu0 0
        %1514 = vmatmul.mubr.bf16.gmra.mrb[0].mxu0 %v611
        %v1515 = vpop.f32.mrb[0].mxu0
        %v1516 = vadd.f32 %v1403, %v1515
        %v1517 = vpop.f32.mrb[0].mxu0
        %v1518 = vadd.f32 %v1405, %v1517
        %v1519 = vpop.f32.mrb[0].mxu0
        %v1520 = vadd.f32 %v1407, %v1519
        %v1521 = vpop.f32.mrb[0].mxu0
        %v1522 = vadd.f32 %v1409, %v1521
        %1523 = vdwg.mxu0
        %1524 = vmatprep.subr.bf16.mxu0 %v1109
        %1525 = vmatpush1.bf16.msra.mxu0 %v1108
        %1526 = vmatprep.subr.bf16.mxu0 %v1113
        %1527 = vmatpush1.bf16.msra.mxu0 %v1112
        %1528 = vmatprep.subr.bf16.mxu0 %v1117
        %1529 = vmatpush1.bf16.msra.mxu0 %v1116
        %1530 = vmatprep.subr.bf16.mxu0 %v1121
        %1531 = vmatpush1.bf16.msra.mxu0 %v1120
        %1532 = vmatprep.subr.bf16.mxu0 %v1125
        %1533 = vmatpush1.bf16.msra.mxu0 %v1124
        %1534 = vmatprep.subr.bf16.mxu0 %v1129
        %1535 = vmatpush1.bf16.msra.mxu0 %v1128
        %1536 = vmatprep.subr.bf16.mxu0 %v1133
        %1537 = vmatpush1.bf16.msra.mxu0 %v1132
        %1538 = vmatprep.subr.bf16.mxu0 %v1137
        %1539 = vmatpush1.bf16.msra.mxu0 %v1136
        %1540 = vmatprep.subr.bf16.mxu0 %v1141
        %1541 = vmatpush1.bf16.msra.mxu0 %v1140
        %1542 = vmatprep.subr.bf16.mxu0 %v1145
        %1543 = vmatpush1.bf16.msra.mxu0 %v1144
        %1544 = vmatprep.subr.bf16.mxu0 %v1149
        %1545 = vmatpush1.bf16.msra.mxu0 %v1148
        %1546 = vmatprep.subr.bf16.mxu0 %v1153
        %1547 = vmatpush1.bf16.msra.mxu0 %v1152
        %1548 = vmatprep.subr.bf16.mxu0 %v1157
        %1549 = vmatpush1.bf16.msra.mxu0 %v1156
        %1550 = vmatprep.subr.bf16.mxu0 %v1161
        %1551 = vmatpush1.bf16.msra.mxu0 %v1160
        %1552 = vmatprep.subr.bf16.mxu0 %v1165
        %1553 = vmatpush1.bf16.msra.mxu0 %v1164
        %1554 = vmatprep.subr.bf16.mxu0 %v1169
        %1555 = vmatpush1.bf16.msra.mxu0 %v1168
        %1556 = vmatprep.mubr.bf16.mxu0 %v447
        %1557 = vmatmul.mubr.bf16.gmra.mrb[0].mxu0 %v374
        %v1558 = vpop.f32.mrb[0].mxu0
        %v1559 = vadd.f32 0.0, %v1558
        %v1560 = vpop.f32.mrb[0].mxu0
        %v1561 = vadd.f32 0.0, %v1560
        %v1562 = vpop.f32.mrb[0].mxu0
        %v1563 = vadd.f32 0.0, %v1562
        %v1564 = vpop.f32.mrb[0].mxu0
        %v1565 = vadd.f32 0.0, %v1564
        %1566 = vmatprep.mubr.bf16.mxu0 %v459
        %1567 = vmatmul.mubr.bf16.gmra.mrb[0].mxu0 %v375
        %v1568 = vpop.f32.mrb[0].mxu0
        %v1569 = vadd.f32 0.0, %v1568
        %v1570 = vpop.f32.mrb[0].mxu0
        %v1571 = vadd.f32 0.0, %v1570
        %v1572 = vpop.f32.mrb[0].mxu0
        %v1573 = vadd.f32 0.0, %v1572
        %v1574 = vpop.f32.mrb[0].mxu0
        %v1575 = vadd.f32 0.0, %v1574
        %1576 = vmatprep.mubr.bf16.mxu0 %v471
        %1577 = vmatmul.mubr.bf16.gmra.mrb[0].mxu0 %v376
        %v1578 = vpop.f32.mrb[0].mxu0
        %v1579 = vadd.f32 0.0, %v1578
        %v1580 = vpop.f32.mrb[0].mxu0
        %v1581 = vadd.f32 0.0, %v1580
        %v1582 = vpop.f32.mrb[0].mxu0
        %v1583 = vadd.f32 0.0, %v1582
        %v1584 = vpop.f32.mrb[0].mxu0
        %v1585 = vadd.f32 0.0, %v1584
        %1586 = vmatprep.mubr.bf16.mxu0 %v483
        %1587 = vmatmul.mubr.bf16.gmra.mrb[0].mxu0 %v377
        %v1588 = vpop.f32.mrb[0].mxu0
        %v1589 = vadd.f32 0.0, %v1588
        %v1590 = vpop.f32.mrb[0].mxu0
        %v1591 = vadd.f32 0.0, %v1590
        %v1592 = vpop.f32.mrb[0].mxu0
        %v1593 = vadd.f32 0.0, %v1592
        %v1594 = vpop.f32.mrb[0].mxu0
        %v1595 = vadd.f32 0.0, %v1594
        %1596 = vmatprep.mubr.bf16.mxu0 %v495
        %1597 = vmatmul.mubr.bf16.gmra.mrb[0].mxu0 %v378
        %v1598 = vpop.f32.mrb[0].mxu0
        %v1599 = vadd.f32 0.0, %v1598
        %v1600 = vpop.f32.mrb[0].mxu0
        %v1601 = vadd.f32 0.0, %v1600
        %v1602 = vpop.f32.mrb[0].mxu0
        %v1603 = vadd.f32 0.0, %v1602
        %v1604 = vpop.f32.mrb[0].mxu0
        %v1605 = vadd.f32 0.0, %v1604
        %1606 = vmatprep.mubr.bf16.mxu0 %v507
        %1607 = vmatmul.mubr.bf16.gmra.mrb[0].mxu0 %v379
        %v1608 = vpop.f32.mrb[0].mxu0
        %v1609 = vadd.f32 0.0, %v1608
        %v1610 = vpop.f32.mrb[0].mxu0
        %v1611 = vadd.f32 0.0, %v1610
        %v1612 = vpop.f32.mrb[0].mxu0
        %v1613 = vadd.f32 0.0, %v1612
        %v1614 = vpop.f32.mrb[0].mxu0
        %v1615 = vadd.f32 0.0, %v1614
        %1616 = vmatprep.mubr.bf16.mxu0 %v519
        %1617 = vmatmul.mubr.bf16.gmra.mrb[0].mxu0 %v380
        %v1618 = vpop.f32.mrb[0].mxu0
        %v1619 = vadd.f32 0.0, %v1618
        %v1620 = vpop.f32.mrb[0].mxu0
        %v1621 = vadd.f32 0.0, %v1620
        %v1622 = vpop.f32.mrb[0].mxu0
        %v1623 = vadd.f32 0.0, %v1622
        %v1624 = vpop.f32.mrb[0].mxu0
        %v1625 = vadd.f32 0.0, %v1624
        %1626 = vmatprep.mubr.bf16.mxu0 %v531
        %1627 = vmatmul.mubr.bf16.gmra.mrb[0].mxu0 %v381
        %v1628 = vpop.f32.mrb[0].mxu0
        %v1629 = vadd.f32 0.0, %v1628
        %v1630 = vpop.f32.mrb[0].mxu0
        %v1631 = vadd.f32 0.0, %v1630
        %v1632 = vpop.f32.mrb[0].mxu0
        %v1633 = vadd.f32 0.0, %v1632
        %v1634 = vpop.f32.mrb[0].mxu0
        %v1635 = vadd.f32 0.0, %v1634
        %1636 = vdwg.mxu0
        %1637 = vmatprep.subr.bf16.mxu0 %v1173
        %1638 = vmatpush1.bf16.msra.mxu0 %v1172
        %1639 = vmatprep.subr.bf16.mxu0 %v1177
        %1640 = vmatpush1.bf16.msra.mxu0 %v1176
        %1641 = vmatprep.subr.bf16.mxu0 %v1181
        %1642 = vmatpush1.bf16.msra.mxu0 %v1180
        %1643 = vmatprep.subr.bf16.mxu0 %v1185
        %1644 = vmatpush1.bf16.msra.mxu0 %v1184
        %1645 = vmatprep.subr.bf16.mxu0 %v1189
        %1646 = vmatpush1.bf16.msra.mxu0 %v1188
        %1647 = vmatprep.subr.bf16.mxu0 %v1193
        %1648 = vmatpush1.bf16.msra.mxu0 %v1192
        %1649 = vmatprep.subr.bf16.mxu0 %v1197
        %1650 = vmatpush1.bf16.msra.mxu0 %v1196
        %1651 = vmatprep.subr.bf16.mxu0 %v1201
        %1652 = vmatpush1.bf16.msra.mxu0 %v1200
        %1653 = vmatprep.subr.bf16.mxu0 0
        %1654 = vmatpush1.bf16.msra.mxu0 0
        %1655 = vmatprep.subr.bf16.mxu0 0
        %1656 = vmatpush1.bf16.msra.mxu0 0
        %1657 = vmatprep.subr.bf16.mxu0 0
        %1658 = vmatpush1.bf16.msra.mxu0 0
        %1659 = vmatprep.subr.bf16.mxu0 0
        %1660 = vmatpush1.bf16.msra.mxu0 0
        %1661 = vmatprep.subr.bf16.mxu0 0
        %1662 = vmatpush1.bf16.msra.mxu0 0
        %1663 = vmatprep.subr.bf16.mxu0 0
        %1664 = vmatpush1.bf16.msra.mxu0 0
        %1665 = vmatprep.subr.bf16.mxu0 0
        %1666 = vmatpush1.bf16.msra.mxu0 0
        %1667 = vmatprep.subr.bf16.mxu0 0
        %1668 = vmatpush1.bf16.msra.mxu0 0
        %1669 = vmatprep.mubr.bf16.mxu0 0
        %1670 = vmatmul.mubr.bf16.gmra.mrb[0].mxu0 %v590
        %v1671 = vpop.f32.mrb[0].mxu0
        %v1672 = vadd.f32 %v1559, %v1671
        %v1673 = vpop.f32.mrb[0].mxu0
        %v1674 = vadd.f32 %v1561, %v1673
        %v1675 = vpop.f32.mrb[0].mxu0
        %v1676 = vadd.f32 %v1563, %v1675
        %v1677 = vpop.f32.mrb[0].mxu0
        %v1678 = vadd.f32 %v1565, %v1677
        %1679 = vmatprep.mubr.bf16.mxu0 0
        %1680 = vmatmul.mubr.bf16.gmra.mrb[0].mxu0 %v593
        %v1681 = vpop.f32.mrb[0].mxu0
        %v1682 = vadd.f32 %v1569, %v1681
        %v1683 = vpop.f32.mrb[0].mxu0
        %v1684 = vadd.f32 %v1571, %v1683
        %v1685 = vpop.f32.mrb[0].mxu0
        %v1686 = vadd.f32 %v1573, %v1685
        %v1687 = vpop.f32.mrb[0].mxu0
        %v1688 = vadd.f32 %v1575, %v1687
        %1689 = vmatprep.mubr.bf16.mxu0 0
        %1690 = vmatmul.mubr.bf16.gmra.mrb[0].mxu0 %v596
        %v1691 = vpop.f32.mrb[0].mxu0
        %v1692 = vadd.f32 %v1579, %v1691
        %v1693 = vpop.f32.mrb[0].mxu0
        %v1694 = vadd.f32 %v1581, %v1693
        %v1695 = vpop.f32.mrb[0].mxu0
        %v1696 = vadd.f32 %v1583, %v1695
        %v1697 = vpop.f32.mrb[0].mxu0
        %v1698 = vadd.f32 %v1585, %v1697
        %1699 = vmatprep.mubr.bf16.mxu0 0
        %1700 = vmatmul.mubr.bf16.gmra.mrb[0].mxu0 %v599
        %v1701 = vpop.f32.mrb[0].mxu0
        %v1702 = vadd.f32 %v1589, %v1701
        %v1703 = vpop.f32.mrb[0].mxu0
        %v1704 = vadd.f32 %v1591, %v1703
        %v1705 = vpop.f32.mrb[0].mxu0
        %v1706 = vadd.f32 %v1593, %v1705
        %v1707 = vpop.f32.mrb[0].mxu0
        %v1708 = vadd.f32 %v1595, %v1707
        %1709 = vmatprep.mubr.bf16.mxu0 0
        %1710 = vmatmul.mubr.bf16.gmra.mrb[0].mxu0 %v602
        %v1711 = vpop.f32.mrb[0].mxu0
        %v1712 = vadd.f32 %v1599, %v1711
        %v1713 = vpop.f32.mrb[0].mxu0
        %v1714 = vadd.f32 %v1601, %v1713
        %v1715 = vpop.f32.mrb[0].mxu0
        %v1716 = vadd.f32 %v1603, %v1715
        %v1717 = vpop.f32.mrb[0].mxu0
        %v1718 = vadd.f32 %v1605, %v1717
        %1719 = vmatprep.mubr.bf16.mxu0 0
        %1720 = vmatmul.mubr.bf16.gmra.mrb[0].mxu0 %v605
        %v1721 = vpop.f32.mrb[0].mxu0
        %v1722 = vadd.f32 %v1609, %v1721
        %v1723 = vpop.f32.mrb[0].mxu0
        %v1724 = vadd.f32 %v1611, %v1723
        %v1725 = vpop.f32.mrb[0].mxu0
        %v1726 = vadd.f32 %v1613, %v1725
        %v1727 = vpop.f32.mrb[0].mxu0
        %v1728 = vadd.f32 %v1615, %v1727
        %1729 = vmatprep.mubr.bf16.mxu0 0
        %1730 = vmatmul.mubr.bf16.gmra.mrb[0].mxu0 %v608
        %v1731 = vpop.f32.mrb[0].mxu0
        %v1732 = vadd.f32 %v1619, %v1731
        %v1733 = vpop.f32.mrb[0].mxu0
        %v1734 = vadd.f32 %v1621, %v1733
        %v1735 = vpop.f32.mrb[0].mxu0
        %v1736 = vadd.f32 %v1623, %v1735
        %v1737 = vpop.f32.mrb[0].mxu0
        %v1738 = vadd.f32 %v1625, %v1737
        %1739 = vmatprep.mubr.bf16.mxu0 0
        %1740 = vmatmul.mubr.bf16.gmra.mrb[0].mxu0 %v611
        %v1741 = vpop.f32.mrb[0].mxu0
        %v1742 = vadd.f32 %v1629, %v1741
        %v1743 = vpop.f32.mrb[0].mxu0
        %v1744 = vadd.f32 %v1631, %v1743
        %v1745 = vpop.f32.mrb[0].mxu0
        %v1746 = vadd.f32 %v1633, %v1745
        %v1747 = vpop.f32.mrb[0].mxu0
        %v1748 = vadd.f32 %v1635, %v1747
        %1749 = vdwg.mxu0
        %v1846 = vunpack.c.l.b16 %v625
        %v1847 = vunpack.c.h.b16 %v625
        %v1848 = vunpack.c.l.b16 %v626
        %v1849 = vunpack.c.h.b16 %v626
        %v1850 = vunpack.c.l.b16 %v627
        %v1851 = vunpack.c.h.b16 %v627
        %v1852 = vunpack.c.l.b16 %v628
        %v1853 = vunpack.c.h.b16 %v628
        %v1854 = vunpack.c.l.b16 %v629
        %v1855 = vunpack.c.h.b16 %v629
        %v1856 = vunpack.c.l.b16 %v630
        %v1857 = vunpack.c.h.b16 %v630
        %v1858 = vunpack.c.l.b16 %v631
        %v1859 = vunpack.c.h.b16 %v631
        %v1860 = vunpack.c.l.b16 %v632
        %v1861 = vunpack.c.h.b16 %v632
        %v1862 = vunpack.c.l.b16 %v633
        %v1863 = vunpack.c.h.b16 %v633
        %v1864 = vunpack.c.l.b16 %v634
        %v1865 = vunpack.c.h.b16 %v634
        %v1866 = vunpack.c.l.b16 %v635
        %v1867 = vunpack.c.h.b16 %v635
        %v1868 = vunpack.c.l.b16 %v636
        %v1869 = vunpack.c.h.b16 %v636
        %v1870 = vunpack.c.l.b16 %v637
        %v1871 = vunpack.c.h.b16 %v637
        %v1872 = vunpack.c.l.b16 %v638
        %v1873 = vunpack.c.h.b16 %v638
        %v1874 = vunpack.c.l.b16 %v639
        %v1875 = vunpack.c.h.b16 %v639
        %v1876 = vunpack.c.l.b16 %v640
        %v1877 = vunpack.c.h.b16 %v640
        %v1878 = vunpack.c.l.b16 %v641
        %v1879 = vunpack.c.h.b16 %v641
        %v1880 = vunpack.c.l.b16 %v642
        %v1881 = vunpack.c.h.b16 %v642
        %v1882 = vunpack.c.l.b16 %v643
        %v1883 = vunpack.c.h.b16 %v643
        %v1884 = vunpack.c.l.b16 %v644
        %v1885 = vunpack.c.h.b16 %v644
        %v1886 = vunpack.c.l.b16 %v645
        %v1887 = vunpack.c.h.b16 %v645
        %v1888 = vunpack.c.l.b16 %v646
        %v1889 = vunpack.c.h.b16 %v646
        %v1890 = vunpack.c.l.b16 %v647
        %v1891 = vunpack.c.h.b16 %v647
        %v1892 = vunpack.c.l.b16 %v648
        %v1893 = vunpack.c.h.b16 %v648
        %v1894 = vunpack.c.l.b16 %v649
        %v1895 = vunpack.c.h.b16 %v649
        %v1896 = vunpack.c.l.b16 %v650
        %v1897 = vunpack.c.h.b16 %v650
        %v1898 = vunpack.c.l.b16 %v651
        %v1899 = vunpack.c.h.b16 %v651
        %v1900 = vunpack.c.l.b16 %v652
        %v1901 = vunpack.c.h.b16 %v652
        %v1902 = vunpack.c.l.b16 %v653
        %v1903 = vunpack.c.h.b16 %v653
        %v1904 = vunpack.c.l.b16 %v654
        %v1905 = vunpack.c.h.b16 %v654
        %v1906 = vunpack.c.l.b16 %v655
        %v1907 = vunpack.c.h.b16 %v655
        %v1908 = vunpack.c.l.b16 %v656
        %v1909 = vunpack.c.h.b16 %v656
        %v1910 = vunpack.c.l.b16 %v657
        %v1911 = vunpack.c.h.b16 %v657
        %v1912 = vunpack.c.l.b16 %v658
        %v1913 = vunpack.c.h.b16 %v658
        %v1914 = vunpack.c.l.b16 %v659
        %v1915 = vunpack.c.h.b16 %v659
        %v1916 = vunpack.c.l.b16 %v660
        %v1917 = vunpack.c.h.b16 %v660
        %v1918 = vunpack.c.l.b16 %v661
        %v1919 = vunpack.c.h.b16 %v661
        %v1920 = vunpack.c.l.b16 %v662
        %v1921 = vunpack.c.h.b16 %v662
        %v1922 = vunpack.c.l.b16 %v663
        %v1923 = vunpack.c.h.b16 %v663
        %v1924 = vunpack.c.l.b16 %v664
        %v1925 = vunpack.c.h.b16 %v664
        %v1926 = vunpack.c.l.b16 %v665
        %v1927 = vunpack.c.h.b16 %v665
        %v1928 = vunpack.c.l.b16 %v666
        %v1929 = vunpack.c.h.b16 %v666
        %v1930 = vunpack.c.l.b16 %v667
        %v1931 = vunpack.c.h.b16 %v667
        %v1932 = vunpack.c.l.b16 %v668
        %v1933 = vunpack.c.h.b16 %v668
        %v1934 = vunpack.c.l.b16 %v669
        %v1935 = vunpack.c.h.b16 %v669
        %v1936 = vunpack.c.l.b16 %v670
        %v1937 = vunpack.c.h.b16 %v670
        %v1938 = vunpack.c.l.b16 %v671
        %v1939 = vunpack.c.h.b16 %v671
        %v1940 = vunpack.c.l.b16 %v672
        %v1941 = vunpack.c.h.b16 %v672
        %v1942 = vunpack.c.l.b16 %v673
        %v1943 = vunpack.c.h.b16 %v673
        %v1944 = vunpack.c.l.b16 %v674
        %v1945 = vunpack.c.h.b16 %v674
        %v1946 = vunpack.c.l.b16 %v675
        %v1947 = vunpack.c.h.b16 %v675
        %v1948 = vunpack.c.l.b16 %v676
        %v1949 = vunpack.c.h.b16 %v676
        %v1950 = vunpack.c.l.b16 %v677
        %v1951 = vunpack.c.h.b16 %v677
        %v1952 = vunpack.c.l.b16 %v678
        %v1953 = vunpack.c.h.b16 %v678
        %v1954 = vunpack.c.l.b16 %v679
        %v1955 = vunpack.c.h.b16 %v679
        %v1956 = vunpack.c.l.b16 %v680
        %v1957 = vunpack.c.h.b16 %v680
        %v1958 = vunpack.c.l.b16 %v681
        %v1959 = vunpack.c.h.b16 %v681
        %v1960 = vunpack.c.l.b16 %v682
        %v1961 = vunpack.c.h.b16 %v682
        %v1962 = vunpack.c.l.b16 %v683
        %v1963 = vunpack.c.h.b16 %v683
        %v1964 = vunpack.c.l.b16 %v684
        %v1965 = vunpack.c.h.b16 %v684
        %v1966 = vunpack.c.l.b16 %v685
        %v1967 = vunpack.c.h.b16 %v685
        %v1968 = vunpack.c.l.b16 %v686
        %v1969 = vunpack.c.h.b16 %v686
        %v1970 = vunpack.c.l.b16 %v687
        %v1971 = vunpack.c.h.b16 %v687
        %v1972 = vunpack.c.l.b16 %v688
        %v1973 = vunpack.c.h.b16 %v688
        %v1974 = vunpack.c.l.b16 %v689
        %v1975 = vunpack.c.h.b16 %v689
        %v1976 = vunpack.c.l.b16 %v690
        %v1977 = vunpack.c.h.b16 %v690
        %v1978 = vunpack.c.l.b16 %v691
        %v1979 = vunpack.c.h.b16 %v691
        %v1980 = vunpack.c.l.b16 %v692
        %v1981 = vunpack.c.h.b16 %v692
        %v1982 = vunpack.c.l.b16 %v693
        %v1983 = vunpack.c.h.b16 %v693
        %v1984 = vunpack.c.l.b16 %v694
        %v1985 = vunpack.c.h.b16 %v694
        %v1986 = vunpack.c.l.b16 %v695
        %v1987 = vunpack.c.h.b16 %v695
        %v1988 = vunpack.c.l.b16 %v696
        %v1989 = vunpack.c.h.b16 %v696
        %v1990 = vunpack.c.l.b16 %v697
        %v1991 = vunpack.c.h.b16 %v697
        %v1992 = vunpack.c.l.b16 %v698
        %v1993 = vunpack.c.h.b16 %v698
        %v1994 = vunpack.c.l.b16 %v699
        %v1995 = vunpack.c.h.b16 %v699
        %v1996 = vunpack.c.l.b16 %v700
        %v1997 = vunpack.c.h.b16 %v700
        %v1998 = vunpack.c.l.b16 %v701
        %v1999 = vunpack.c.h.b16 %v701
        %v2000 = vunpack.c.l.b16 %v702
        %v2001 = vunpack.c.h.b16 %v702
        %v2002 = vunpack.c.l.b16 %v703
        %v2003 = vunpack.c.h.b16 %v703
        %v2004 = vunpack.c.l.b16 %v704
        %v2005 = vunpack.c.h.b16 %v704
        %v2006 = vunpack.c.l.b16 %v705
        %v2007 = vunpack.c.h.b16 %v705
        %v2008 = vunpack.c.l.b16 %v706
        %v2009 = vunpack.c.h.b16 %v706
        %v2010 = vunpack.c.l.b16 %v707
        %v2011 = vunpack.c.h.b16 %v707
        %v2012 = vunpack.c.l.b16 %v708
        %v2013 = vunpack.c.h.b16 %v708
        %v2014 = vunpack.c.l.b16 %v709
        %v2015 = vunpack.c.h.b16 %v709
        %v2016 = vunpack.c.l.b16 %v710
        %v2017 = vunpack.c.h.b16 %v710
        %v2018 = vunpack.c.l.b16 %v711
        %v2019 = vunpack.c.h.b16 %v711
        %v2020 = vunpack.c.l.b16 %v712
        %v2021 = vunpack.c.h.b16 %v712
        %v2022 = vunpack.c.l.b16 %v713
        %v2023 = vunpack.c.h.b16 %v713
        %v2024 = vunpack.c.l.b16 %v714
        %v2025 = vunpack.c.h.b16 %v714
        %v2026 = vunpack.c.l.b16 %v715
        %v2027 = vunpack.c.h.b16 %v715
        %v2028 = vunpack.c.l.b16 %v716
        %v2029 = vunpack.c.h.b16 %v716
        %v2030 = vunpack.c.l.b16 %v717
        %v2031 = vunpack.c.h.b16 %v717
        %v2032 = vunpack.c.l.b16 %v718
        %v2033 = vunpack.c.h.b16 %v718
        %v2034 = vunpack.c.l.b16 %v719
        %v2035 = vunpack.c.h.b16 %v719
        %v2036 = vunpack.c.l.b16 %v720
        %v2037 = vunpack.c.h.b16 %v720
        %v2038 = vpack.c.b16 %v1850, %v1846
        %v2039 = vpack.c.b16 %v1851, %v1847
        %v2040 = vpack.c.b16 %v1852, %v1848
        %v2041 = vpack.c.b16 %v1853, %v1849
        %v2042 = vpack.c.b16 %v1858, %v1854
        %v2043 = vpack.c.b16 %v1859, %v1855
        %v2044 = vpack.c.b16 %v1860, %v1856
        %v2045 = vpack.c.b16 %v1861, %v1857
        %v2046 = vpack.c.b16 %v1866, %v1862
        %v2047 = vpack.c.b16 %v1867, %v1863
        %v2048 = vpack.c.b16 %v1868, %v1864
        %v2049 = vpack.c.b16 %v1869, %v1865
        %v2050 = vpack.c.b16 %v1874, %v1870
        %v2051 = vpack.c.b16 %v1875, %v1871
        %v2052 = vpack.c.b16 %v1876, %v1872
        %v2053 = vpack.c.b16 %v1877, %v1873
        %v2054 = vpack.c.b16 %v1882, %v1878
        %v2055 = vpack.c.b16 %v1883, %v1879
        %v2056 = vpack.c.b16 %v1884, %v1880
        %v2057 = vpack.c.b16 %v1885, %v1881
        %v2058 = vpack.c.b16 %v1890, %v1886
        %v2059 = vpack.c.b16 %v1891, %v1887
        %v2060 = vpack.c.b16 %v1892, %v1888
        %v2061 = vpack.c.b16 %v1893, %v1889
        %v2062 = vpack.c.b16 %v1898, %v1894
        %v2063 = vpack.c.b16 %v1899, %v1895
        %v2064 = vpack.c.b16 %v1900, %v1896
        %v2065 = vpack.c.b16 %v1901, %v1897
        %v2066 = vpack.c.b16 %v1906, %v1902
        %v2067 = vpack.c.b16 %v1907, %v1903
        %v2068 = vpack.c.b16 %v1908, %v1904
        %v2069 = vpack.c.b16 %v1909, %v1905
        %v2070 = vpack.c.b16 %v1914, %v1910
        %v2071 = vpack.c.b16 %v1915, %v1911
        %v2072 = vpack.c.b16 %v1916, %v1912
        %v2073 = vpack.c.b16 %v1917, %v1913
        %v2074 = vpack.c.b16 %v1922, %v1918
        %v2075 = vpack.c.b16 %v1923, %v1919
        %v2076 = vpack.c.b16 %v1924, %v1920
        %v2077 = vpack.c.b16 %v1925, %v1921
        %v2078 = vpack.c.b16 %v1930, %v1926
        %v2079 = vpack.c.b16 %v1931, %v1927
        %v2080 = vpack.c.b16 %v1932, %v1928
        %v2081 = vpack.c.b16 %v1933, %v1929
        %v2082 = vpack.c.b16 %v1938, %v1934
        %v2083 = vpack.c.b16 %v1939, %v1935
        %v2084 = vpack.c.b16 %v1940, %v1936
        %v2085 = vpack.c.b16 %v1941, %v1937
        %v2086 = vpack.c.b16 %v1946, %v1942
        %v2087 = vpack.c.b16 %v1947, %v1943
        %v2088 = vpack.c.b16 %v1948, %v1944
        %v2089 = vpack.c.b16 %v1949, %v1945
        %v2090 = vpack.c.b16 %v1954, %v1950
        %v2091 = vpack.c.b16 %v1955, %v1951
        %v2092 = vpack.c.b16 %v1956, %v1952
        %v2093 = vpack.c.b16 %v1957, %v1953
        %v2094 = vpack.c.b16 %v1962, %v1958
        %v2095 = vpack.c.b16 %v1963, %v1959
        %v2096 = vpack.c.b16 %v1964, %v1960
        %v2097 = vpack.c.b16 %v1965, %v1961
        %v2098 = vpack.c.b16 %v1970, %v1966
        %v2099 = vpack.c.b16 %v1971, %v1967
        %v2100 = vpack.c.b16 %v1972, %v1968
        %v2101 = vpack.c.b16 %v1973, %v1969
        %v2102 = vpack.c.b16 %v1978, %v1974
        %v2103 = vpack.c.b16 %v1979, %v1975
        %v2104 = vpack.c.b16 %v1980, %v1976
        %v2105 = vpack.c.b16 %v1981, %v1977
        %v2106 = vpack.c.b16 %v1986, %v1982
        %v2107 = vpack.c.b16 %v1987, %v1983
        %v2108 = vpack.c.b16 %v1988, %v1984
        %v2109 = vpack.c.b16 %v1989, %v1985
        %v2110 = vpack.c.b16 %v1994, %v1990
        %v2111 = vpack.c.b16 %v1995, %v1991
        %v2112 = vpack.c.b16 %v1996, %v1992
        %v2113 = vpack.c.b16 %v1997, %v1993
        %v2114 = vpack.c.b16 %v2002, %v1998
        %v2115 = vpack.c.b16 %v2003, %v1999
        %v2116 = vpack.c.b16 %v2004, %v2000
        %v2117 = vpack.c.b16 %v2005, %v2001
        %v2118 = vpack.c.b16 %v2010, %v2006
        %v2119 = vpack.c.b16 %v2011, %v2007
        %v2120 = vpack.c.b16 %v2012, %v2008
        %v2121 = vpack.c.b16 %v2013, %v2009
        %v2122 = vpack.c.b16 %v2018, %v2014
        %v2123 = vpack.c.b16 %v2019, %v2015
        %v2124 = vpack.c.b16 %v2020, %v2016
        %v2125 = vpack.c.b16 %v2021, %v2017
        %v2126 = vpack.c.b16 %v2026, %v2022
        %v2127 = vpack.c.b16 %v2027, %v2023
        %v2128 = vpack.c.b16 %v2028, %v2024
        %v2129 = vpack.c.b16 %v2029, %v2025
        %v2130 = vpack.c.b16 %v2034, %v2030
        %v2131 = vpack.c.b16 %v2035, %v2031
        %v2132 = vpack.c.b16 %v2036, %v2032
        %v2133 = vpack.c.b16 %v2037, %v2033
        %2230 = vmatprep.subr.bf16.mxu0 %v2039
        %2231 = vmatpush1.bf16.msra.mxu0 %v2038
        %2232 = vmatprep.subr.bf16.mxu0 %v2043
        %2233 = vmatpush1.bf16.msra.mxu0 %v2042
        %2234 = vmatprep.subr.bf16.mxu0 %v2047
        %2235 = vmatpush1.bf16.msra.mxu0 %v2046
        %2236 = vmatprep.subr.bf16.mxu0 %v2051
        %2237 = vmatpush1.bf16.msra.mxu0 %v2050
        %2238 = vmatprep.subr.bf16.mxu0 %v2055
        %2239 = vmatpush1.bf16.msra.mxu0 %v2054
        %2240 = vmatprep.subr.bf16.mxu0 %v2059
        %2241 = vmatpush1.bf16.msra.mxu0 %v2058
        %2242 = vmatprep.subr.bf16.mxu0 %v2063
        %2243 = vmatpush1.bf16.msra.mxu0 %v2062
        %2244 = vmatprep.subr.bf16.mxu0 %v2067
        %2245 = vmatpush1.bf16.msra.mxu0 %v2066
        %2246 = vmatprep.subr.bf16.mxu0 %v2071
        %2247 = vmatpush1.bf16.msra.mxu0 %v2070
        %2248 = vmatprep.subr.bf16.mxu0 %v2075
        %2249 = vmatpush1.bf16.msra.mxu0 %v2074
        %2250 = vmatprep.subr.bf16.mxu0 %v2079
        %2251 = vmatpush1.bf16.msra.mxu0 %v2078
        %2252 = vmatprep.subr.bf16.mxu0 %v2083
        %2253 = vmatpush1.bf16.msra.mxu0 %v2082
        %2254 = vmatprep.subr.bf16.mxu0 %v2087
        %2255 = vmatpush1.bf16.msra.mxu0 %v2086
        %2256 = vmatprep.subr.bf16.mxu0 %v2091
        %2257 = vmatpush1.bf16.msra.mxu0 %v2090
        %2258 = vmatprep.subr.bf16.mxu0 %v2095
        %2259 = vmatpush1.bf16.msra.mxu0 %v2094
        %2260 = vmatprep.subr.bf16.mxu0 %v2099
        %2261 = vmatpush1.bf16.msra.mxu0 %v2098
        %2262 = vmatprep.mubr.bf16.mxu0 %v435
        %2263 = vmatmul.mubr.bf16.gmra.mrb[0].mxu0 %v373
        %v2264 = vpop.f32.mrb[0].mxu0
        %v2265 = vadd.f32 %v1446, %v2264
        %v2266 = vpop.f32.mrb[0].mxu0
        %v2267 = vadd.f32 %v1448, %v2266
        %v2268 = vpop.f32.mrb[0].mxu0
        %v2269 = vadd.f32 %v1450, %v2268
        %v2270 = vpop.f32.mrb[0].mxu0
        %v2271 = vadd.f32 %v1452, %v2270
        %2272 = vmatprep.mubr.bf16.mxu0 %v447
        %2273 = vmatmul.mubr.bf16.gmra.mrb[0].mxu0 %v374
        %v2274 = vpop.f32.mrb[0].mxu0
        %v2275 = vadd.f32 %v1456, %v2274
        %v2276 = vpop.f32.mrb[0].mxu0
        %v2277 = vadd.f32 %v1458, %v2276
        %v2278 = vpop.f32.mrb[0].mxu0
        %v2279 = vadd.f32 %v1460, %v2278
        %v2280 = vpop.f32.mrb[0].mxu0
        %v2281 = vadd.f32 %v1462, %v2280
        %2282 = vmatprep.mubr.bf16.mxu0 %v459
        %2283 = vmatmul.mubr.bf16.gmra.mrb[0].mxu0 %v375
        %v2284 = vpop.f32.mrb[0].mxu0
        %v2285 = vadd.f32 %v1466, %v2284
        %v2286 = vpop.f32.mrb[0].mxu0
        %v2287 = vadd.f32 %v1468, %v2286
        %v2288 = vpop.f32.mrb[0].mxu0
        %v2289 = vadd.f32 %v1470, %v2288
        %v2290 = vpop.f32.mrb[0].mxu0
        %v2291 = vadd.f32 %v1472, %v2290
        %2292 = vmatprep.mubr.bf16.mxu0 %v471
        %2293 = vmatmul.mubr.bf16.gmra.mrb[0].mxu0 %v376
        %v2294 = vpop.f32.mrb[0].mxu0
        %v2295 = vadd.f32 %v1476, %v2294
        %v2296 = vpop.f32.mrb[0].mxu0
        %v2297 = vadd.f32 %v1478, %v2296
        %v2298 = vpop.f32.mrb[0].mxu0
        %v2299 = vadd.f32 %v1480, %v2298
        %v2300 = vpop.f32.mrb[0].mxu0
        %v2301 = vadd.f32 %v1482, %v2300
        %2302 = vmatprep.mubr.bf16.mxu0 %v483
        %2303 = vmatmul.mubr.bf16.gmra.mrb[0].mxu0 %v377
        %v2304 = vpop.f32.mrb[0].mxu0
        %v2305 = vadd.f32 %v1486, %v2304
        %v2306 = vpop.f32.mrb[0].mxu0
        %v2307 = vadd.f32 %v1488, %v2306
        %v2308 = vpop.f32.mrb[0].mxu0
        %v2309 = vadd.f32 %v1490, %v2308
        %v2310 = vpop.f32.mrb[0].mxu0
        %v2311 = vadd.f32 %v1492, %v2310
        %2312 = vmatprep.mubr.bf16.mxu0 %v495
        %2313 = vmatmul.mubr.bf16.gmra.mrb[0].mxu0 %v378
        %v2314 = vpop.f32.mrb[0].mxu0
        %v2315 = vadd.f32 %v1496, %v2314
        %v2316 = vpop.f32.mrb[0].mxu0
        %v2317 = vadd.f32 %v1498, %v2316
        %v2318 = vpop.f32.mrb[0].mxu0
        %v2319 = vadd.f32 %v1500, %v2318
        %v2320 = vpop.f32.mrb[0].mxu0
        %v2321 = vadd.f32 %v1502, %v2320
        %2322 = vmatprep.mubr.bf16.mxu0 %v507
        %2323 = vmatmul.mubr.bf16.gmra.mrb[0].mxu0 %v379
        %v2324 = vpop.f32.mrb[0].mxu0
        %v2325 = vadd.f32 %v1506, %v2324
        %v2326 = vpop.f32.mrb[0].mxu0
        %v2327 = vadd.f32 %v1508, %v2326
        %v2328 = vpop.f32.mrb[0].mxu0
        %v2329 = vadd.f32 %v1510, %v2328
        %v2330 = vpop.f32.mrb[0].mxu0
        %v2331 = vadd.f32 %v1512, %v2330
        %2332 = vmatprep.mubr.bf16.mxu0 %v519
        %2333 = vmatmul.mubr.bf16.gmra.mrb[0].mxu0 %v380
        %v2334 = vpop.f32.mrb[0].mxu0
        %v2335 = vadd.f32 %v1516, %v2334
        %v2336 = vpop.f32.mrb[0].mxu0
        %v2337 = vadd.f32 %v1518, %v2336
        %v2338 = vpop.f32.mrb[0].mxu0
        %v2339 = vadd.f32 %v1520, %v2338
        %v2340 = vpop.f32.mrb[0].mxu0
        %v2341 = vadd.f32 %v1522, %v2340
        %2342 = vdwg.mxu0
        %2343 = vmatprep.subr.bf16.mxu0 %v2103
        %2344 = vmatpush1.bf16.msra.mxu0 %v2102
        %2345 = vmatprep.subr.bf16.mxu0 %v2107
        %2346 = vmatpush1.bf16.msra.mxu0 %v2106
        %2347 = vmatprep.subr.bf16.mxu0 %v2111
        %2348 = vmatpush1.bf16.msra.mxu0 %v2110
        %2349 = vmatprep.subr.bf16.mxu0 %v2115
        %2350 = vmatpush1.bf16.msra.mxu0 %v2114
        %2351 = vmatprep.subr.bf16.mxu0 %v2119
        %2352 = vmatpush1.bf16.msra.mxu0 %v2118
        %2353 = vmatprep.subr.bf16.mxu0 %v2123
        %2354 = vmatpush1.bf16.msra.mxu0 %v2122
        %2355 = vmatprep.subr.bf16.mxu0 %v2127
        %2356 = vmatpush1.bf16.msra.mxu0 %v2126
        %2357 = vmatprep.subr.bf16.mxu0 %v2131
        %2358 = vmatpush1.bf16.msra.mxu0 %v2130
        %2359 = vmatprep.subr.bf16.mxu0 0
        %2360 = vmatpush1.bf16.msra.mxu0 0
        %2361 = vmatprep.subr.bf16.mxu0 0
        %2362 = vmatpush1.bf16.msra.mxu0 0
        %2363 = vmatprep.subr.bf16.mxu0 0
        %2364 = vmatpush1.bf16.msra.mxu0 0
        %2365 = vmatprep.subr.bf16.mxu0 0
        %2366 = vmatpush1.bf16.msra.mxu0 0
        %2367 = vmatprep.subr.bf16.mxu0 0
        %2368 = vmatpush1.bf16.msra.mxu0 0
        %2369 = vmatprep.subr.bf16.mxu0 0
        %2370 = vmatpush1.bf16.msra.mxu0 0
        %2371 = vmatprep.subr.bf16.mxu0 0
        %2372 = vmatpush1.bf16.msra.mxu0 0
        %2373 = vmatprep.subr.bf16.mxu0 0
        %2374 = vmatpush1.bf16.msra.mxu0 0
        %2375 = vmatprep.mubr.bf16.mxu0 0
        %2376 = vmatmul.mubr.bf16.gmra.mrb[0].mxu0 %v587
        %v2377 = vpop.f32.mrb[0].mxu0
        %v2378 = vadd.f32 %v2265, %v2377
        %v2379 = vpop.f32.mrb[0].mxu0
        %v2380 = vadd.f32 %v2267, %v2379
        %v2381 = vpop.f32.mrb[0].mxu0
        %v2382 = vadd.f32 %v2269, %v2381
        %v2383 = vpop.f32.mrb[0].mxu0
        %v2384 = vadd.f32 %v2271, %v2383
        %2385 = vmatprep.mubr.bf16.mxu0 0
        %2386 = vmatmul.mubr.bf16.gmra.mrb[0].mxu0 %v590
        %v2387 = vpop.f32.mrb[0].mxu0
        %v2388 = vadd.f32 %v2275, %v2387
        %v2389 = vpop.f32.mrb[0].mxu0
        %v2390 = vadd.f32 %v2277, %v2389
        %v2391 = vpop.f32.mrb[0].mxu0
        %v2392 = vadd.f32 %v2279, %v2391
        %v2393 = vpop.f32.mrb[0].mxu0
        %v2394 = vadd.f32 %v2281, %v2393
        %2395 = vmatprep.mubr.bf16.mxu0 0
        %2396 = vmatmul.mubr.bf16.gmra.mrb[0].mxu0 %v593
        %v2397 = vpop.f32.mrb[0].mxu0
        %v2398 = vadd.f32 %v2285, %v2397
        %v2399 = vpop.f32.mrb[0].mxu0
        %v2400 = vadd.f32 %v2287, %v2399
        %v2401 = vpop.f32.mrb[0].mxu0
        %v2402 = vadd.f32 %v2289, %v2401
        %v2403 = vpop.f32.mrb[0].mxu0
        %v2404 = vadd.f32 %v2291, %v2403
        %2405 = vmatprep.mubr.bf16.mxu0 0
        %2406 = vmatmul.mubr.bf16.gmra.mrb[0].mxu0 %v596
        %v2407 = vpop.f32.mrb[0].mxu0
        %v2408 = vadd.f32 %v2295, %v2407
        %v2409 = vpop.f32.mrb[0].mxu0
        %v2410 = vadd.f32 %v2297, %v2409
        %v2411 = vpop.f32.mrb[0].mxu0
        %v2412 = vadd.f32 %v2299, %v2411
        %v2413 = vpop.f32.mrb[0].mxu0
        %v2414 = vadd.f32 %v2301, %v2413
        %2415 = vmatprep.mubr.bf16.mxu0 0
        %2416 = vmatmul.mubr.bf16.gmra.mrb[0].mxu0 %v599
        %v2417 = vpop.f32.mrb[0].mxu0
        %v2418 = vadd.f32 %v2305, %v2417
        %v2419 = vpop.f32.mrb[0].mxu0
        %v2420 = vadd.f32 %v2307, %v2419
        %v2421 = vpop.f32.mrb[0].mxu0
        %v2422 = vadd.f32 %v2309, %v2421
        %v2423 = vpop.f32.mrb[0].mxu0
        %v2424 = vadd.f32 %v2311, %v2423
        %2425 = vmatprep.mubr.bf16.mxu0 0
        %2426 = vmatmul.mubr.bf16.gmra.mrb[0].mxu0 %v602
        %v2427 = vpop.f32.mrb[0].mxu0
        %v2428 = vadd.f32 %v2315, %v2427
        %v2429 = vpop.f32.mrb[0].mxu0
        %v2430 = vadd.f32 %v2317, %v2429
        %v2431 = vpop.f32.mrb[0].mxu0
        %v2432 = vadd.f32 %v2319, %v2431
        %v2433 = vpop.f32.mrb[0].mxu0
        %v2434 = vadd.f32 %v2321, %v2433
        %2435 = vmatprep.mubr.bf16.mxu0 0
        %2436 = vmatmul.mubr.bf16.gmra.mrb[0].mxu0 %v605
        %v2437 = vpop.f32.mrb[0].mxu0
        %v2438 = vadd.f32 %v2325, %v2437
        %v2439 = vpop.f32.mrb[0].mxu0
        %v2440 = vadd.f32 %v2327, %v2439
        %v2441 = vpop.f32.mrb[0].mxu0
        %v2442 = vadd.f32 %v2329, %v2441
        %v2443 = vpop.f32.mrb[0].mxu0
        %v2444 = vadd.f32 %v2331, %v2443
        %2445 = vmatprep.mubr.bf16.mxu0 0
        %2446 = vmatmul.mubr.bf16.gmra.mrb[0].mxu0 %v608
        %v2447 = vpop.f32.mrb[0].mxu0
        %v2448 = vadd.f32 %v2335, %v2447
        %v2449 = vpop.f32.mrb[0].mxu0
        %v2450 = vadd.f32 %v2337, %v2449
        %v2451 = vpop.f32.mrb[0].mxu0
        %v2452 = vadd.f32 %v2339, %v2451
        %v2453 = vpop.f32.mrb[0].mxu0
        %v2454 = vadd.f32 %v2341, %v2453
        %2455 = vdwg.mxu0
        %2456 = vmatprep.subr.bf16.mxu0 %v2041
        %2457 = vmatpush1.bf16.msra.mxu0 %v2040
        %2458 = vmatprep.subr.bf16.mxu0 %v2045
        %2459 = vmatpush1.bf16.msra.mxu0 %v2044
        %2460 = vmatprep.subr.bf16.mxu0 %v2049
        %2461 = vmatpush1.bf16.msra.mxu0 %v2048
        %2462 = vmatprep.subr.bf16.mxu0 %v2053
        %2463 = vmatpush1.bf16.msra.mxu0 %v2052
        %2464 = vmatprep.subr.bf16.mxu0 %v2057
        %2465 = vmatpush1.bf16.msra.mxu0 %v2056
        %2466 = vmatprep.subr.bf16.mxu0 %v2061
        %2467 = vmatpush1.bf16.msra.mxu0 %v2060
        %2468 = vmatprep.subr.bf16.mxu0 %v2065
        %2469 = vmatpush1.bf16.msra.mxu0 %v2064
        %2470 = vmatprep.subr.bf16.mxu0 %v2069
        %2471 = vmatpush1.bf16.msra.mxu0 %v2068
        %2472 = vmatprep.subr.bf16.mxu0 %v2073
        %2473 = vmatpush1.bf16.msra.mxu0 %v2072
        %2474 = vmatprep.subr.bf16.mxu0 %v2077
        %2475 = vmatpush1.bf16.msra.mxu0 %v2076
        %2476 = vmatprep.subr.bf16.mxu0 %v2081
        %2477 = vmatpush1.bf16.msra.mxu0 %v2080
        %2478 = vmatprep.subr.bf16.mxu0 %v2085
        %2479 = vmatpush1.bf16.msra.mxu0 %v2084
        %2480 = vmatprep.subr.bf16.mxu0 %v2089
        %2481 = vmatpush1.bf16.msra.mxu0 %v2088
        %2482 = vmatprep.subr.bf16.mxu0 %v2093
        %2483 = vmatpush1.bf16.msra.mxu0 %v2092
        %2484 = vmatprep.subr.bf16.mxu0 %v2097
        %2485 = vmatpush1.bf16.msra.mxu0 %v2096
        %2486 = vmatprep.subr.bf16.mxu0 %v2101
        %2487 = vmatpush1.bf16.msra.mxu0 %v2100
        %2488 = vmatprep.mubr.bf16.mxu0 %v435
        %2489 = vmatmul.mubr.bf16.gmra.mrb[0].mxu0 %v373
        %v2490 = vpop.f32.mrb[0].mxu0
        %v2491 = vadd.f32 %v1672, %v2490
        %v2492 = vpop.f32.mrb[0].mxu0
        %v2493 = vadd.f32 %v1674, %v2492
        %v2494 = vpop.f32.mrb[0].mxu0
        %v2495 = vadd.f32 %v1676, %v2494
        %v2496 = vpop.f32.mrb[0].mxu0
        %v2497 = vadd.f32 %v1678, %v2496
        %2498 = vmatprep.mubr.bf16.mxu0 %v447
        %2499 = vmatmul.mubr.bf16.gmra.mrb[0].mxu0 %v374
        %v2500 = vpop.f32.mrb[0].mxu0
        %v2501 = vadd.f32 %v1682, %v2500
        %v2502 = vpop.f32.mrb[0].mxu0
        %v2503 = vadd.f32 %v1684, %v2502
        %v2504 = vpop.f32.mrb[0].mxu0
        %v2505 = vadd.f32 %v1686, %v2504
        %v2506 = vpop.f32.mrb[0].mxu0
        %v2507 = vadd.f32 %v1688, %v2506
        %2508 = vmatprep.mubr.bf16.mxu0 %v459
        %2509 = vmatmul.mubr.bf16.gmra.mrb[0].mxu0 %v375
        %v2510 = vpop.f32.mrb[0].mxu0
        %v2511 = vadd.f32 %v1692, %v2510
        %v2512 = vpop.f32.mrb[0].mxu0
        %v2513 = vadd.f32 %v1694, %v2512
        %v2514 = vpop.f32.mrb[0].mxu0
        %v2515 = vadd.f32 %v1696, %v2514
        %v2516 = vpop.f32.mrb[0].mxu0
        %v2517 = vadd.f32 %v1698, %v2516
        %2518 = vmatprep.mubr.bf16.mxu0 %v471
        %2519 = vmatmul.mubr.bf16.gmra.mrb[0].mxu0 %v376
        %v2520 = vpop.f32.mrb[0].mxu0
        %v2521 = vadd.f32 %v1702, %v2520
        %v2522 = vpop.f32.mrb[0].mxu0
        %v2523 = vadd.f32 %v1704, %v2522
        %v2524 = vpop.f32.mrb[0].mxu0
        %v2525 = vadd.f32 %v1706, %v2524
        %v2526 = vpop.f32.mrb[0].mxu0
        %v2527 = vadd.f32 %v1708, %v2526
        %2528 = vmatprep.mubr.bf16.mxu0 %v483
        %2529 = vmatmul.mubr.bf16.gmra.mrb[0].mxu0 %v377
        %v2530 = vpop.f32.mrb[0].mxu0
        %v2531 = vadd.f32 %v1712, %v2530
        %v2532 = vpop.f32.mrb[0].mxu0
        %v2533 = vadd.f32 %v1714, %v2532
        %v2534 = vpop.f32.mrb[0].mxu0
        %v2535 = vadd.f32 %v1716, %v2534
        %v2536 = vpop.f32.mrb[0].mxu0
        %v2537 = vadd.f32 %v1718, %v2536
        %2538 = vmatprep.mubr.bf16.mxu0 %v495
        %2539 = vmatmul.mubr.bf16.gmra.mrb[0].mxu0 %v378
        %v2540 = vpop.f32.mrb[0].mxu0
        %v2541 = vadd.f32 %v1722, %v2540
        %v2542 = vpop.f32.mrb[0].mxu0
        %v2543 = vadd.f32 %v1724, %v2542
        %v2544 = vpop.f32.mrb[0].mxu0
        %v2545 = vadd.f32 %v1726, %v2544
        %v2546 = vpop.f32.mrb[0].mxu0
        %v2547 = vadd.f32 %v1728, %v2546
        %2548 = vmatprep.mubr.bf16.mxu0 %v507
        %2549 = vmatmul.mubr.bf16.gmra.mrb[0].mxu0 %v379
        %v2550 = vpop.f32.mrb[0].mxu0
        %v2551 = vadd.f32 %v1732, %v2550
        %v2552 = vpop.f32.mrb[0].mxu0
        %v2553 = vadd.f32 %v1734, %v2552
        %v2554 = vpop.f32.mrb[0].mxu0
        %v2555 = vadd.f32 %v1736, %v2554
        %v2556 = vpop.f32.mrb[0].mxu0
        %v2557 = vadd.f32 %v1738, %v2556
        %2558 = vmatprep.mubr.bf16.mxu0 %v519
        %2559 = vmatmul.mubr.bf16.gmra.mrb[0].mxu0 %v380
        %v2560 = vpop.f32.mrb[0].mxu0
        %v2561 = vadd.f32 %v1742, %v2560
        %v2562 = vpop.f32.mrb[0].mxu0
        %v2563 = vadd.f32 %v1744, %v2562
        %v2564 = vpop.f32.mrb[0].mxu0
        %v2565 = vadd.f32 %v1746, %v2564
        %v2566 = vpop.f32.mrb[0].mxu0
        %v2567 = vadd.f32 %v1748, %v2566
        %2568 = vdwg.mxu0
        %2569 = vmatprep.subr.bf16.mxu0 %v2105
        %2570 = vmatpush1.bf16.msra.mxu0 %v2104
        %2571 = vmatprep.subr.bf16.mxu0 %v2109
        %2572 = vmatpush1.bf16.msra.mxu0 %v2108
        %2573 = vmatprep.subr.bf16.mxu0 %v2113
        %2574 = vmatpush1.bf16.msra.mxu0 %v2112
        %2575 = vmatprep.subr.bf16.mxu0 %v2117
        %2576 = vmatpush1.bf16.msra.mxu0 %v2116
        %2577 = vmatprep.subr.bf16.mxu0 %v2121
        %2578 = vmatpush1.bf16.msra.mxu0 %v2120
        %2579 = vmatprep.subr.bf16.mxu0 %v2125
        %2580 = vmatpush1.bf16.msra.mxu0 %v2124
        %2581 = vmatprep.subr.bf16.mxu0 %v2129
        %2582 = vmatpush1.bf16.msra.mxu0 %v2128
        %2583 = vmatprep.subr.bf16.mxu0 %v2133
        %2584 = vmatpush1.bf16.msra.mxu0 %v2132
        %2585 = vmatprep.subr.bf16.mxu0 0
        %2586 = vmatpush1.bf16.msra.mxu0 0
        %2587 = vmatprep.subr.bf16.mxu0 0
        %2588 = vmatpush1.bf16.msra.mxu0 0
        %2589 = vmatprep.subr.bf16.mxu0 0
        %2590 = vmatpush1.bf16.msra.mxu0 0
        %2591 = vmatprep.subr.bf16.mxu0 0
        %2592 = vmatpush1.bf16.msra.mxu0 0
        %2593 = vmatprep.subr.bf16.mxu0 0
        %2594 = vmatpush1.bf16.msra.mxu0 0
        %2595 = vmatprep.subr.bf16.mxu0 0
        %2596 = vmatpush1.bf16.msra.mxu0 0
        %2597 = vmatprep.subr.bf16.mxu0 0
        %2598 = vmatpush1.bf16.msra.mxu0 0
        %2599 = vmatprep.subr.bf16.mxu0 0
        %2600 = vmatpush1.bf16.msra.mxu0 0
        %2601 = vmatprep.mubr.bf16.mxu0 0
        %2602 = vmatmul.mubr.bf16.gmra.mrb[0].mxu0 %v587
        %v2603 = vpop.f32.mrb[0].mxu0
        %v2604 = vadd.f32 %v2491, %v2603
        %v2605 = vpop.f32.mrb[0].mxu0
        %v2606 = vadd.f32 %v2493, %v2605
        %v2607 = vpop.f32.mrb[0].mxu0
        %v2608 = vadd.f32 %v2495, %v2607
        %v2609 = vpop.f32.mrb[0].mxu0
        %v2610 = vadd.f32 %v2497, %v2609
        %2611 = vmatprep.mubr.bf16.mxu0 0
        %2612 = vmatmul.mubr.bf16.gmra.mrb[0].mxu0 %v590
        %v2613 = vpop.f32.mrb[0].mxu0
        %v2614 = vadd.f32 %v2501, %v2613
        %v2615 = vpop.f32.mrb[0].mxu0
        %v2616 = vadd.f32 %v2503, %v2615
        %v2617 = vpop.f32.mrb[0].mxu0
        %v2618 = vadd.f32 %v2505, %v2617
        %v2619 = vpop.f32.mrb[0].mxu0
        %v2620 = vadd.f32 %v2507, %v2619
        %2621 = vmatprep.mubr.bf16.mxu0 0
        %2622 = vmatmul.mubr.bf16.gmra.mrb[0].mxu0 %v593
        %v2623 = vpop.f32.mrb[0].mxu0
        %v2624 = vadd.f32 %v2511, %v2623
        %v2625 = vpop.f32.mrb[0].mxu0
        %v2626 = vadd.f32 %v2513, %v2625
        %v2627 = vpop.f32.mrb[0].mxu0
        %v2628 = vadd.f32 %v2515, %v2627
        %v2629 = vpop.f32.mrb[0].mxu0
        %v2630 = vadd.f32 %v2517, %v2629
        %2631 = vmatprep.mubr.bf16.mxu0 0
        %2632 = vmatmul.mubr.bf16.gmra.mrb[0].mxu0 %v596
        %v2633 = vpop.f32.mrb[0].mxu0
        %v2634 = vadd.f32 %v2521, %v2633
        %v2635 = vpop.f32.mrb[0].mxu0
        %v2636 = vadd.f32 %v2523, %v2635
        %v2637 = vpop.f32.mrb[0].mxu0
        %v2638 = vadd.f32 %v2525, %v2637
        %v2639 = vpop.f32.mrb[0].mxu0
        %v2640 = vadd.f32 %v2527, %v2639
        %2641 = vmatprep.mubr.bf16.mxu0 0
        %2642 = vmatmul.mubr.bf16.gmra.mrb[0].mxu0 %v599
        %v2643 = vpop.f32.mrb[0].mxu0
        %v2644 = vadd.f32 %v2531, %v2643
        %v2645 = vpop.f32.mrb[0].mxu0
        %v2646 = vadd.f32 %v2533, %v2645
        %v2647 = vpop.f32.mrb[0].mxu0
        %v2648 = vadd.f32 %v2535, %v2647
        %v2649 = vpop.f32.mrb[0].mxu0
        %v2650 = vadd.f32 %v2537, %v2649
        %2651 = vmatprep.mubr.bf16.mxu0 0
        %2652 = vmatmul.mubr.bf16.gmra.mrb[0].mxu0 %v602
        %v2653 = vpop.f32.mrb[0].mxu0
        %v2654 = vadd.f32 %v2541, %v2653
        %v2655 = vpop.f32.mrb[0].mxu0
        %v2656 = vadd.f32 %v2543, %v2655
        %v2657 = vpop.f32.mrb[0].mxu0
        %v2658 = vadd.f32 %v2545, %v2657
        %v2659 = vpop.f32.mrb[0].mxu0
        %v2660 = vadd.f32 %v2547, %v2659
        %2661 = vmatprep.mubr.bf16.mxu0 0
        %2662 = vmatmul.mubr.bf16.gmra.mrb[0].mxu0 %v605
        %v2663 = vpop.f32.mrb[0].mxu0
        %v2664 = vadd.f32 %v2551, %v2663
        %v2665 = vpop.f32.mrb[0].mxu0
        %v2666 = vadd.f32 %v2553, %v2665
        %v2667 = vpop.f32.mrb[0].mxu0
        %v2668 = vadd.f32 %v2555, %v2667
        %v2669 = vpop.f32.mrb[0].mxu0
        %v2670 = vadd.f32 %v2557, %v2669
        %2671 = vmatprep.mubr.bf16.mxu0 0
        %2672 = vmatmul.mubr.bf16.gmra.mrb[0].mxu0 %v608
        %v2673 = vpop.f32.mrb[0].mxu0
        %v2674 = vadd.f32 %v2561, %v2673
        %v2675 = vpop.f32.mrb[0].mxu0
        %v2676 = vadd.f32 %v2563, %v2675
        %v2677 = vpop.f32.mrb[0].mxu0
        %v2678 = vadd.f32 %v2565, %v2677
        %v2679 = vpop.f32.mrb[0].mxu0
        %v2680 = vadd.f32 %v2567, %v2679
        %2681 = vdwg.mxu0
        %s2682 = scalar_lea.vmem [#allocation2], 1536
        %v2683 = vld [vmem:[%s2682] sm:$0xff]
        %v2684 = vld [vmem:[%s2682 + $0x8] sm:$0xff]
        %v2685 = vld [vmem:[%s2682 + $0x10] sm:$0xff]
        %v2686 = vld [vmem:[%s2682 + $0x18] sm:$0xff]
        %v2687 = vld [vmem:[%s2682 + $0x20] sm:$0xff]
        %v2688 = vld [vmem:[%s2682 + $0x28] sm:$0xff]
        %v2689 = vld [vmem:[%s2682 + $0x30] sm:$0xff]
        %v2690 = vld [vmem:[%s2682 + $0x38] sm:$0xff]
        %v2691 = vld [vmem:[%s2682 + $0x40] sm:$0xff]
        %v2692 = vld [vmem:[%s2682 + $0x48] sm:$0xff]
        %v2693 = vld [vmem:[%s2682 + $0x50] sm:$0xff]
        %v2694 = vld [vmem:[%s2682 + $0x58] sm:$0xff]
        %v2695 = vld [vmem:[%s2682 + $0x60] sm:$0xff]
        %v2696 = vld [vmem:[%s2682 + $0x68] sm:$0xff]
        %v2697 = vld [vmem:[%s2682 + $0x70] sm:$0xff]
        %v2698 = vld [vmem:[%s2682 + $0x78] sm:$0xff]
        %v2699 = vld [vmem:[%s2682 + $0x80] sm:$0xff]
        %v2700 = vld [vmem:[%s2682 + $0x88] sm:$0xff]
        %v2701 = vld [vmem:[%s2682 + $0x90] sm:$0xff]
        %v2702 = vld [vmem:[%s2682 + $0x98] sm:$0xff]
        %v2703 = vld [vmem:[%s2682 + $0xa0] sm:$0xff]
        %v2704 = vld [vmem:[%s2682 + $0xa8] sm:$0xff]
        %v2705 = vld [vmem:[%s2682 + $0xb0] sm:$0xff]
        %v2706 = vld [vmem:[%s2682 + $0xb8] sm:$0xff]
        %v2707 = vld [vmem:[%s2682 + $0xc0] sm:$0xff]
        %v2708 = vld [vmem:[%s2682 + $0xc8] sm:$0xff]
        %v2709 = vld [vmem:[%s2682 + $0xd0] sm:$0xff]
        %v2710 = vld [vmem:[%s2682 + $0xd8] sm:$0xff]
        %v2711 = vld [vmem:[%s2682 + $0xe0] sm:$0xff]
        %v2712 = vld [vmem:[%s2682 + $0xe8] sm:$0xff]
        %v2713 = vld [vmem:[%s2682 + $0xf0] sm:$0xff]
        %v2714 = vld [vmem:[%s2682 + $0xf8] sm:$0xff]
        %v2715 = vld [vmem:[%s2682 + $0x100] sm:$0xff]
        %v2716 = vld [vmem:[%s2682 + $0x108] sm:$0xff]
        %v2717 = vld [vmem:[%s2682 + $0x110] sm:$0xff]
        %v2718 = vld [vmem:[%s2682 + $0x118] sm:$0xff]
        %v2719 = vld [vmem:[%s2682 + $0x120] sm:$0xff]
        %v2720 = vld [vmem:[%s2682 + $0x128] sm:$0xff]
        %v2721 = vld [vmem:[%s2682 + $0x130] sm:$0xff]
        %v2722 = vld [vmem:[%s2682 + $0x138] sm:$0xff]
        %v2723 = vld [vmem:[%s2682 + $0x140] sm:$0xff]
        %v2724 = vld [vmem:[%s2682 + $0x148] sm:$0xff]
        %v2725 = vld [vmem:[%s2682 + $0x150] sm:$0xff]
        %v2726 = vld [vmem:[%s2682 + $0x158] sm:$0xff]
        %v2727 = vld [vmem:[%s2682 + $0x160] sm:$0xff]
        %v2728 = vld [vmem:[%s2682 + $0x168] sm:$0xff]
        %v2729 = vld [vmem:[%s2682 + $0x170] sm:$0xff]
        %v2730 = vld [vmem:[%s2682 + $0x178] sm:$0xff]
        %v2731 = vld [vmem:[%s2682 + $0x180] sm:$0xff]
        %v2732 = vld [vmem:[%s2682 + $0x188] sm:$0xff]
        %v2733 = vld [vmem:[%s2682 + $0x190] sm:$0xff]
        %v2734 = vld [vmem:[%s2682 + $0x198] sm:$0xff]
        %v2735 = vld [vmem:[%s2682 + $0x1a0] sm:$0xff]
        %v2736 = vld [vmem:[%s2682 + $0x1a8] sm:$0xff]
        %v2737 = vld [vmem:[%s2682 + $0x1b0] sm:$0xff]
        %v2738 = vld [vmem:[%s2682 + $0x1b8] sm:$0xff]
        %v2739 = vld [vmem:[%s2682 + $0x1c0] sm:$0xff]
        %v2740 = vld [vmem:[%s2682 + $0x1c8] sm:$0xff]
        %v2741 = vld [vmem:[%s2682 + $0x1d0] sm:$0xff]
        %v2742 = vld [vmem:[%s2682 + $0x1d8] sm:$0xff]
        %v2743 = vld [vmem:[%s2682 + $0x1e0] sm:$0xff]
        %v2744 = vld [vmem:[%s2682 + $0x1e8] sm:$0xff]
        %v2745 = vld [vmem:[%s2682 + $0x1f0] sm:$0xff]
        %v2746 = vld [vmem:[%s2682 + $0x1f8] sm:$0xff]
        %v2747 = vld [vmem:[%s2682 + $0x200] sm:$0xff]
        %v2748 = vld [vmem:[%s2682 + $0x208] sm:$0xff]
        %v2749 = vld [vmem:[%s2682 + $0x210] sm:$0xff]
        %v2750 = vld [vmem:[%s2682 + $0x218] sm:$0xff]
        %v2751 = vld [vmem:[%s2682 + $0x220] sm:$0xff]
        %v2752 = vld [vmem:[%s2682 + $0x228] sm:$0xff]
        %v2753 = vld [vmem:[%s2682 + $0x230] sm:$0xff]
        %v2754 = vld [vmem:[%s2682 + $0x238] sm:$0xff]
        %v2755 = vld [vmem:[%s2682 + $0x240] sm:$0xff]
        %v2756 = vld [vmem:[%s2682 + $0x248] sm:$0xff]
        %v2757 = vld [vmem:[%s2682 + $0x250] sm:$0xff]
        %v2758 = vld [vmem:[%s2682 + $0x258] sm:$0xff]
        %v2759 = vld [vmem:[%s2682 + $0x260] sm:$0xff]
        %v2760 = vld [vmem:[%s2682 + $0x268] sm:$0xff]
        %v2761 = vld [vmem:[%s2682 + $0x270] sm:$0xff]
        %v2762 = vld [vmem:[%s2682 + $0x278] sm:$0xff]
        %v2763 = vld [vmem:[%s2682 + $0x280] sm:$0xff]
        %v2764 = vld [vmem:[%s2682 + $0x288] sm:$0xff]
        %v2765 = vld [vmem:[%s2682 + $0x290] sm:$0xff]
        %v2766 = vld [vmem:[%s2682 + $0x298] sm:$0xff]
        %v2767 = vld [vmem:[%s2682 + $0x2a0] sm:$0xff]
        %v2768 = vld [vmem:[%s2682 + $0x2a8] sm:$0xff]
        %v2769 = vld [vmem:[%s2682 + $0x2b0] sm:$0xff]
        %v2770 = vld [vmem:[%s2682 + $0x2b8] sm:$0xff]
        %v2771 = vld [vmem:[%s2682 + $0x2c0] sm:$0xff]
        %v2772 = vld [vmem:[%s2682 + $0x2c8] sm:$0xff]
        %v2773 = vld [vmem:[%s2682 + $0x2d0] sm:$0xff]
        %v2774 = vld [vmem:[%s2682 + $0x2d8] sm:$0xff]
        %v2775 = vld [vmem:[%s2682 + $0x2e0] sm:$0xff]
        %v2776 = vld [vmem:[%s2682 + $0x2e8] sm:$0xff]
        %v2777 = vld [vmem:[%s2682 + $0x2f0] sm:$0xff]
        %v2778 = vld [vmem:[%s2682 + $0x2f8] sm:$0xff]
        %v2875 = vunpack.c.l.b16 %v2683
        %v2876 = vunpack.c.h.b16 %v2683
        %v2877 = vunpack.c.l.b16 %v2684
        %v2878 = vunpack.c.h.b16 %v2684
        %v2879 = vunpack.c.l.b16 %v2685
        %v2880 = vunpack.c.h.b16 %v2685
        %v2881 = vunpack.c.l.b16 %v2686
        %v2882 = vunpack.c.h.b16 %v2686
        %v2883 = vunpack.c.l.b16 %v2687
        %v2884 = vunpack.c.h.b16 %v2687
        %v2885 = vunpack.c.l.b16 %v2688
        %v2886 = vunpack.c.h.b16 %v2688
        %v2887 = vunpack.c.l.b16 %v2689
        %v2888 = vunpack.c.h.b16 %v2689
        %v2889 = vunpack.c.l.b16 %v2690
        %v2890 = vunpack.c.h.b16 %v2690
        %v2891 = vunpack.c.l.b16 %v2691
        %v2892 = vunpack.c.h.b16 %v2691
        %v2893 = vunpack.c.l.b16 %v2692
        %v2894 = vunpack.c.h.b16 %v2692
        %v2895 = vunpack.c.l.b16 %v2693
        %v2896 = vunpack.c.h.b16 %v2693
        %v2897 = vunpack.c.l.b16 %v2694
        %v2898 = vunpack.c.h.b16 %v2694
        %v2899 = vunpack.c.l.b16 %v2695
        %v2900 = vunpack.c.h.b16 %v2695
        %v2901 = vunpack.c.l.b16 %v2696
        %v2902 = vunpack.c.h.b16 %v2696
        %v2903 = vunpack.c.l.b16 %v2697
        %v2904 = vunpack.c.h.b16 %v2697
        %v2905 = vunpack.c.l.b16 %v2698
        %v2906 = vunpack.c.h.b16 %v2698
        %v2907 = vunpack.c.l.b16 %v2699
        %v2908 = vunpack.c.h.b16 %v2699
        %v2909 = vunpack.c.l.b16 %v2700
        %v2910 = vunpack.c.h.b16 %v2700
        %v2911 = vunpack.c.l.b16 %v2701
        %v2912 = vunpack.c.h.b16 %v2701
        %v2913 = vunpack.c.l.b16 %v2702
        %v2914 = vunpack.c.h.b16 %v2702
        %v2915 = vunpack.c.l.b16 %v2703
        %v2916 = vunpack.c.h.b16 %v2703
        %v2917 = vunpack.c.l.b16 %v2704
        %v2918 = vunpack.c.h.b16 %v2704
        %v2919 = vunpack.c.l.b16 %v2705
        %v2920 = vunpack.c.h.b16 %v2705
        %v2921 = vunpack.c.l.b16 %v2706
        %v2922 = vunpack.c.h.b16 %v2706
        %v2923 = vunpack.c.l.b16 %v2707
        %v2924 = vunpack.c.h.b16 %v2707
        %v2925 = vunpack.c.l.b16 %v2708
        %v2926 = vunpack.c.h.b16 %v2708
        %v2927 = vunpack.c.l.b16 %v2709
        %v2928 = vunpack.c.h.b16 %v2709
        %v2929 = vunpack.c.l.b16 %v2710
        %v2930 = vunpack.c.h.b16 %v2710
        %v2931 = vunpack.c.l.b16 %v2711
        %v2932 = vunpack.c.h.b16 %v2711
        %v2933 = vunpack.c.l.b16 %v2712
        %v2934 = vunpack.c.h.b16 %v2712
        %v2935 = vunpack.c.l.b16 %v2713
        %v2936 = vunpack.c.h.b16 %v2713
        %v2937 = vunpack.c.l.b16 %v2714
        %v2938 = vunpack.c.h.b16 %v2714
        %v2939 = vunpack.c.l.b16 %v2715
        %v2940 = vunpack.c.h.b16 %v2715
        %v2941 = vunpack.c.l.b16 %v2716
        %v2942 = vunpack.c.h.b16 %v2716
        %v2943 = vunpack.c.l.b16 %v2717
        %v2944 = vunpack.c.h.b16 %v2717
        %v2945 = vunpack.c.l.b16 %v2718
        %v2946 = vunpack.c.h.b16 %v2718
        %v2947 = vunpack.c.l.b16 %v2719
        %v2948 = vunpack.c.h.b16 %v2719
        %v2949 = vunpack.c.l.b16 %v2720
        %v2950 = vunpack.c.h.b16 %v2720
        %v2951 = vunpack.c.l.b16 %v2721
        %v2952 = vunpack.c.h.b16 %v2721
        %v2953 = vunpack.c.l.b16 %v2722
        %v2954 = vunpack.c.h.b16 %v2722
        %v2955 = vunpack.c.l.b16 %v2723
        %v2956 = vunpack.c.h.b16 %v2723
        %v2957 = vunpack.c.l.b16 %v2724
        %v2958 = vunpack.c.h.b16 %v2724
        %v2959 = vunpack.c.l.b16 %v2725
        %v2960 = vunpack.c.h.b16 %v2725
        %v2961 = vunpack.c.l.b16 %v2726
        %v2962 = vunpack.c.h.b16 %v2726
        %v2963 = vunpack.c.l.b16 %v2727
        %v2964 = vunpack.c.h.b16 %v2727
        %v2965 = vunpack.c.l.b16 %v2728
        %v2966 = vunpack.c.h.b16 %v2728
        %v2967 = vunpack.c.l.b16 %v2729
        %v2968 = vunpack.c.h.b16 %v2729
        %v2969 = vunpack.c.l.b16 %v2730
        %v2970 = vunpack.c.h.b16 %v2730
        %v2971 = vunpack.c.l.b16 %v2731
        %v2972 = vunpack.c.h.b16 %v2731
        %v2973 = vunpack.c.l.b16 %v2732
        %v2974 = vunpack.c.h.b16 %v2732
        %v2975 = vunpack.c.l.b16 %v2733
        %v2976 = vunpack.c.h.b16 %v2733
        %v2977 = vunpack.c.l.b16 %v2734
        %v2978 = vunpack.c.h.b16 %v2734
        %v2979 = vunpack.c.l.b16 %v2735
        %v2980 = vunpack.c.h.b16 %v2735
        %v2981 = vunpack.c.l.b16 %v2736
        %v2982 = vunpack.c.h.b16 %v2736
        %v2983 = vunpack.c.l.b16 %v2737
        %v2984 = vunpack.c.h.b16 %v2737
        %v2985 = vunpack.c.l.b16 %v2738
        %v2986 = vunpack.c.h.b16 %v2738
        %v2987 = vunpack.c.l.b16 %v2739
        %v2988 = vunpack.c.h.b16 %v2739
        %v2989 = vunpack.c.l.b16 %v2740
        %v2990 = vunpack.c.h.b16 %v2740
        %v2991 = vunpack.c.l.b16 %v2741
        %v2992 = vunpack.c.h.b16 %v2741
        %v2993 = vunpack.c.l.b16 %v2742
        %v2994 = vunpack.c.h.b16 %v2742
        %v2995 = vunpack.c.l.b16 %v2743
        %v2996 = vunpack.c.h.b16 %v2743
        %v2997 = vunpack.c.l.b16 %v2744
        %v2998 = vunpack.c.h.b16 %v2744
        %v2999 = vunpack.c.l.b16 %v2745
        %v3000 = vunpack.c.h.b16 %v2745
        %v3001 = vunpack.c.l.b16 %v2746
        %v3002 = vunpack.c.h.b16 %v2746
        %v3003 = vunpack.c.l.b16 %v2747
        %v3004 = vunpack.c.h.b16 %v2747
        %v3005 = vunpack.c.l.b16 %v2748
        %v3006 = vunpack.c.h.b16 %v2748
        %v3007 = vunpack.c.l.b16 %v2749
        %v3008 = vunpack.c.h.b16 %v2749
        %v3009 = vunpack.c.l.b16 %v2750
        %v3010 = vunpack.c.h.b16 %v2750
        %v3011 = vunpack.c.l.b16 %v2751
        %v3012 = vunpack.c.h.b16 %v2751
        %v3013 = vunpack.c.l.b16 %v2752
        %v3014 = vunpack.c.h.b16 %v2752
        %v3015 = vunpack.c.l.b16 %v2753
        %v3016 = vunpack.c.h.b16 %v2753
        %v3017 = vunpack.c.l.b16 %v2754
        %v3018 = vunpack.c.h.b16 %v2754
        %v3019 = vunpack.c.l.b16 %v2755
        %v3020 = vunpack.c.h.b16 %v2755
        %v3021 = vunpack.c.l.b16 %v2756
        %v3022 = vunpack.c.h.b16 %v2756
        %v3023 = vunpack.c.l.b16 %v2757
        %v3024 = vunpack.c.h.b16 %v2757
        %v3025 = vunpack.c.l.b16 %v2758
        %v3026 = vunpack.c.h.b16 %v2758
        %v3027 = vunpack.c.l.b16 %v2759
        %v3028 = vunpack.c.h.b16 %v2759
        %v3029 = vunpack.c.l.b16 %v2760
        %v3030 = vunpack.c.h.b16 %v2760
        %v3031 = vunpack.c.l.b16 %v2761
        %v3032 = vunpack.c.h.b16 %v2761
        %v3033 = vunpack.c.l.b16 %v2762
        %v3034 = vunpack.c.h.b16 %v2762
        %v3035 = vunpack.c.l.b16 %v2763
        %v3036 = vunpack.c.h.b16 %v2763
        %v3037 = vunpack.c.l.b16 %v2764
        %v3038 = vunpack.c.h.b16 %v2764
        %v3039 = vunpack.c.l.b16 %v2765
        %v3040 = vunpack.c.h.b16 %v2765
        %v3041 = vunpack.c.l.b16 %v2766
        %v3042 = vunpack.c.h.b16 %v2766
        %v3043 = vunpack.c.l.b16 %v2767
        %v3044 = vunpack.c.h.b16 %v2767
        %v3045 = vunpack.c.l.b16 %v2768
        %v3046 = vunpack.c.h.b16 %v2768
        %v3047 = vunpack.c.l.b16 %v2769
        %v3048 = vunpack.c.h.b16 %v2769
        %v3049 = vunpack.c.l.b16 %v2770
        %v3050 = vunpack.c.h.b16 %v2770
        %v3051 = vunpack.c.l.b16 %v2771
        %v3052 = vunpack.c.h.b16 %v2771
        %v3053 = vunpack.c.l.b16 %v2772
        %v3054 = vunpack.c.h.b16 %v2772
        %v3055 = vunpack.c.l.b16 %v2773
        %v3056 = vunpack.c.h.b16 %v2773
        %v3057 = vunpack.c.l.b16 %v2774
        %v3058 = vunpack.c.h.b16 %v2774
        %v3059 = vunpack.c.l.b16 %v2775
        %v3060 = vunpack.c.h.b16 %v2775
        %v3061 = vunpack.c.l.b16 %v2776
        %v3062 = vunpack.c.h.b16 %v2776
        %v3063 = vunpack.c.l.b16 %v2777
        %v3064 = vunpack.c.h.b16 %v2777
        %v3065 = vunpack.c.l.b16 %v2778
        %v3066 = vunpack.c.h.b16 %v2778
        %v3067 = vpack.c.b16 %v2879, %v2875
        %v3068 = vpack.c.b16 %v2880, %v2876
        %v3069 = vpack.c.b16 %v2881, %v2877
        %v3070 = vpack.c.b16 %v2882, %v2878
        %v3071 = vpack.c.b16 %v2887, %v2883
        %v3072 = vpack.c.b16 %v2888, %v2884
        %v3073 = vpack.c.b16 %v2889, %v2885
        %v3074 = vpack.c.b16 %v2890, %v2886
        %v3075 = vpack.c.b16 %v2895, %v2891
        %v3076 = vpack.c.b16 %v2896, %v2892
        %v3077 = vpack.c.b16 %v2897, %v2893
        %v3078 = vpack.c.b16 %v2898, %v2894
        %v3079 = vpack.c.b16 %v2903, %v2899
        %v3080 = vpack.c.b16 %v2904, %v2900
        %v3081 = vpack.c.b16 %v2905, %v2901
        %v3082 = vpack.c.b16 %v2906, %v2902
        %v3083 = vpack.c.b16 %v2911, %v2907
        %v3084 = vpack.c.b16 %v2912, %v2908
        %v3085 = vpack.c.b16 %v2913, %v2909
        %v3086 = vpack.c.b16 %v2914, %v2910
        %v3087 = vpack.c.b16 %v2919, %v2915
        %v3088 = vpack.c.b16 %v2920, %v2916
        %v3089 = vpack.c.b16 %v2921, %v2917
        %v3090 = vpack.c.b16 %v2922, %v2918
        %v3091 = vpack.c.b16 %v2927, %v2923
        %v3092 = vpack.c.b16 %v2928, %v2924
        %v3093 = vpack.c.b16 %v2929, %v2925
        %v3094 = vpack.c.b16 %v2930, %v2926
        %v3095 = vpack.c.b16 %v2935, %v2931
        %v3096 = vpack.c.b16 %v2936, %v2932
        %v3097 = vpack.c.b16 %v2937, %v2933
        %v3098 = vpack.c.b16 %v2938, %v2934
        %v3099 = vpack.c.b16 %v2943, %v2939
        %v3100 = vpack.c.b16 %v2944, %v2940
        %v3101 = vpack.c.b16 %v2945, %v2941
        %v3102 = vpack.c.b16 %v2946, %v2942
        %v3103 = vpack.c.b16 %v2951, %v2947
        %v3104 = vpack.c.b16 %v2952, %v2948
        %v3105 = vpack.c.b16 %v2953, %v2949
        %v3106 = vpack.c.b16 %v2954, %v2950
        %v3107 = vpack.c.b16 %v2959, %v2955
        %v3108 = vpack.c.b16 %v2960, %v2956
        %v3109 = vpack.c.b16 %v2961, %v2957
        %v3110 = vpack.c.b16 %v2962, %v2958
        %v3111 = vpack.c.b16 %v2967, %v2963
        %v3112 = vpack.c.b16 %v2968, %v2964
        %v3113 = vpack.c.b16 %v2969, %v2965
        %v3114 = vpack.c.b16 %v2970, %v2966
        %v3115 = vpack.c.b16 %v2975, %v2971
        %v3116 = vpack.c.b16 %v2976, %v2972
        %v3117 = vpack.c.b16 %v2977, %v2973
        %v3118 = vpack.c.b16 %v2978, %v2974
        %v3119 = vpack.c.b16 %v2983, %v2979
        %v3120 = vpack.c.b16 %v2984, %v2980
        %v3121 = vpack.c.b16 %v2985, %v2981
        %v3122 = vpack.c.b16 %v2986, %v2982
        %v3123 = vpack.c.b16 %v2991, %v2987
        %v3124 = vpack.c.b16 %v2992, %v2988
        %v3125 = vpack.c.b16 %v2993, %v2989
        %v3126 = vpack.c.b16 %v2994, %v2990
        %v3127 = vpack.c.b16 %v2999, %v2995
        %v3128 = vpack.c.b16 %v3000, %v2996
        %v3129 = vpack.c.b16 %v3001, %v2997
        %v3130 = vpack.c.b16 %v3002, %v2998
        %v3131 = vpack.c.b16 %v3007, %v3003
        %v3132 = vpack.c.b16 %v3008, %v3004
        %v3133 = vpack.c.b16 %v3009, %v3005
        %v3134 = vpack.c.b16 %v3010, %v3006
        %v3135 = vpack.c.b16 %v3015, %v3011
        %v3136 = vpack.c.b16 %v3016, %v3012
        %v3137 = vpack.c.b16 %v3017, %v3013
        %v3138 = vpack.c.b16 %v3018, %v3014
        %v3139 = vpack.c.b16 %v3023, %v3019
        %v3140 = vpack.c.b16 %v3024, %v3020
        %v3141 = vpack.c.b16 %v3025, %v3021
        %v3142 = vpack.c.b16 %v3026, %v3022
        %v3143 = vpack.c.b16 %v3031, %v3027
        %v3144 = vpack.c.b16 %v3032, %v3028
        %v3145 = vpack.c.b16 %v3033, %v3029
        %v3146 = vpack.c.b16 %v3034, %v3030
        %v3147 = vpack.c.b16 %v3039, %v3035
        %v3148 = vpack.c.b16 %v3040, %v3036
        %v3149 = vpack.c.b16 %v3041, %v3037
        %v3150 = vpack.c.b16 %v3042, %v3038
        %v3151 = vpack.c.b16 %v3047, %v3043
        %v3152 = vpack.c.b16 %v3048, %v3044
        %v3153 = vpack.c.b16 %v3049, %v3045
        %v3154 = vpack.c.b16 %v3050, %v3046
        %v3155 = vpack.c.b16 %v3055, %v3051
        %v3156 = vpack.c.b16 %v3056, %v3052
        %v3157 = vpack.c.b16 %v3057, %v3053
        %v3158 = vpack.c.b16 %v3058, %v3054
        %v3159 = vpack.c.b16 %v3063, %v3059
        %v3160 = vpack.c.b16 %v3064, %v3060
        %v3161 = vpack.c.b16 %v3065, %v3061
        %v3162 = vpack.c.b16 %v3066, %v3062
        %3259 = vmatprep.subr.bf16.mxu0 %v3068
        %3260 = vmatpush1.bf16.msra.mxu0 %v3067
        %3261 = vmatprep.subr.bf16.mxu0 %v3072
        %3262 = vmatpush1.bf16.msra.mxu0 %v3071
        %3263 = vmatprep.subr.bf16.mxu0 %v3076
        %3264 = vmatpush1.bf16.msra.mxu0 %v3075
        %3265 = vmatprep.subr.bf16.mxu0 %v3080
        %3266 = vmatpush1.bf16.msra.mxu0 %v3079
        %3267 = vmatprep.subr.bf16.mxu0 %v3084
        %3268 = vmatpush1.bf16.msra.mxu0 %v3083
        %3269 = vmatprep.subr.bf16.mxu0 %v3088
        %3270 = vmatpush1.bf16.msra.mxu0 %v3087
        %3271 = vmatprep.subr.bf16.mxu0 %v3092
        %3272 = vmatpush1.bf16.msra.mxu0 %v3091
        %3273 = vmatprep.subr.bf16.mxu0 %v3096
        %3274 = vmatpush1.bf16.msra.mxu0 %v3095
        %3275 = vmatprep.subr.bf16.mxu0 %v3100
        %3276 = vmatpush1.bf16.msra.mxu0 %v3099
        %3277 = vmatprep.subr.bf16.mxu0 %v3104
        %3278 = vmatpush1.bf16.msra.mxu0 %v3103
        %3279 = vmatprep.subr.bf16.mxu0 %v3108
        %3280 = vmatpush1.bf16.msra.mxu0 %v3107
        %3281 = vmatprep.subr.bf16.mxu0 %v3112
        %3282 = vmatpush1.bf16.msra.mxu0 %v3111
        %3283 = vmatprep.subr.bf16.mxu0 %v3116
        %3284 = vmatpush1.bf16.msra.mxu0 %v3115
        %3285 = vmatprep.subr.bf16.mxu0 %v3120
        %3286 = vmatpush1.bf16.msra.mxu0 %v3119
        %3287 = vmatprep.subr.bf16.mxu0 %v3124
        %3288 = vmatpush1.bf16.msra.mxu0 %v3123
        %3289 = vmatprep.subr.bf16.mxu0 %v3128
        %3290 = vmatpush1.bf16.msra.mxu0 %v3127
        %3291 = vmatprep.mubr.bf16.mxu0 %v459
        %3292 = vmatmul.mubr.bf16.gmra.mrb[0].mxu0 %v375
        %v3293 = vpop.f32.mrb[0].mxu0
        %v3294 = vadd.f32 0.0, %v3293
        %v3295 = vpop.f32.mrb[0].mxu0
        %v3296 = vadd.f32 0.0, %v3295
        %v3297 = vpop.f32.mrb[0].mxu0
        %v3298 = vadd.f32 0.0, %v3297
        %v3299 = vpop.f32.mrb[0].mxu0
        %v3300 = vadd.f32 0.0, %v3299
        %3301 = vmatprep.mubr.bf16.mxu0 %v471
        %3302 = vmatmul.mubr.bf16.gmra.mrb[0].mxu0 %v376
        %v3303 = vpop.f32.mrb[0].mxu0
        %v3304 = vadd.f32 0.0, %v3303
        %v3305 = vpop.f32.mrb[0].mxu0
        %v3306 = vadd.f32 0.0, %v3305
        %v3307 = vpop.f32.mrb[0].mxu0
        %v3308 = vadd.f32 0.0, %v3307
        %v3309 = vpop.f32.mrb[0].mxu0
        %v3310 = vadd.f32 0.0, %v3309
        %3311 = vmatprep.mubr.bf16.mxu0 %v483
        %3312 = vmatmul.mubr.bf16.gmra.mrb[0].mxu0 %v377
        %v3313 = vpop.f32.mrb[0].mxu0
        %v3314 = vadd.f32 0.0, %v3313
        %v3315 = vpop.f32.mrb[0].mxu0
        %v3316 = vadd.f32 0.0, %v3315
        %v3317 = vpop.f32.mrb[0].mxu0
        %v3318 = vadd.f32 0.0, %v3317
        %v3319 = vpop.f32.mrb[0].mxu0
        %v3320 = vadd.f32 0.0, %v3319
        %3321 = vmatprep.mubr.bf16.mxu0 %v495
        %3322 = vmatmul.mubr.bf16.gmra.mrb[0].mxu0 %v378
        %v3323 = vpop.f32.mrb[0].mxu0
        %v3324 = vadd.f32 0.0, %v3323
        %v3325 = vpop.f32.mrb[0].mxu0
        %v3326 = vadd.f32 0.0, %v3325
        %v3327 = vpop.f32.mrb[0].mxu0
        %v3328 = vadd.f32 0.0, %v3327
        %v3329 = vpop.f32.mrb[0].mxu0
        %v3330 = vadd.f32 0.0, %v3329
        %3331 = vmatprep.mubr.bf16.mxu0 %v507
        %3332 = vmatmul.mubr.bf16.gmra.mrb[0].mxu0 %v379
        %v3333 = vpop.f32.mrb[0].mxu0
        %v3334 = vadd.f32 0.0, %v3333
        %v3335 = vpop.f32.mrb[0].mxu0
        %v3336 = vadd.f32 0.0, %v3335
        %v3337 = vpop.f32.mrb[0].mxu0
        %v3338 = vadd.f32 0.0, %v3337
        %v3339 = vpop.f32.mrb[0].mxu0
        %v3340 = vadd.f32 0.0, %v3339
        %3341 = vmatprep.mubr.bf16.mxu0 %v519
        %3342 = vmatmul.mubr.bf16.gmra.mrb[0].mxu0 %v380
        %v3343 = vpop.f32.mrb[0].mxu0
        %v3344 = vadd.f32 0.0, %v3343
        %v3345 = vpop.f32.mrb[0].mxu0
        %v3346 = vadd.f32 0.0, %v3345
        %v3347 = vpop.f32.mrb[0].mxu0
        %v3348 = vadd.f32 0.0, %v3347
        %v3349 = vpop.f32.mrb[0].mxu0
        %v3350 = vadd.f32 0.0, %v3349
        %3351 = vmatprep.mubr.bf16.mxu0 %v531
        %3352 = vmatmul.mubr.bf16.gmra.mrb[0].mxu0 %v381
        %v3353 = vpop.f32.mrb[0].mxu0
        %v3354 = vadd.f32 0.0, %v3353
        %v3355 = vpop.f32.mrb[0].mxu0
        %v3356 = vadd.f32 0.0, %v3355
        %v3357 = vpop.f32.mrb[0].mxu0
        %v3358 = vadd.f32 0.0, %v3357
        %v3359 = vpop.f32.mrb[0].mxu0
        %v3360 = vadd.f32 0.0, %v3359
        %3361 = vmatprep.mubr.bf16.mxu0 %v543
        %3362 = vmatmul.mubr.bf16.gmra.mrb[0].mxu0 %v382
        %v3363 = vpop.f32.mrb[0].mxu0
        %v3364 = vadd.f32 0.0, %v3363
        %v3365 = vpop.f32.mrb[0].mxu0
        %v3366 = vadd.f32 0.0, %v3365
        %v3367 = vpop.f32.mrb[0].mxu0
        %v3368 = vadd.f32 0.0, %v3367
        %v3369 = vpop.f32.mrb[0].mxu0
        %v3370 = vadd.f32 0.0, %v3369
        %3371 = vdwg.mxu0
        %3372 = vmatprep.subr.bf16.mxu0 %v3132
        %3373 = vmatpush1.bf16.msra.mxu0 %v3131
        %3374 = vmatprep.subr.bf16.mxu0 %v3136
        %3375 = vmatpush1.bf16.msra.mxu0 %v3135
        %3376 = vmatprep.subr.bf16.mxu0 %v3140
        %3377 = vmatpush1.bf16.msra.mxu0 %v3139
        %3378 = vmatprep.subr.bf16.mxu0 %v3144
        %3379 = vmatpush1.bf16.msra.mxu0 %v3143
        %3380 = vmatprep.subr.bf16.mxu0 %v3148
        %3381 = vmatpush1.bf16.msra.mxu0 %v3147
        %3382 = vmatprep.subr.bf16.mxu0 %v3152
        %3383 = vmatpush1.bf16.msra.mxu0 %v3151
        %3384 = vmatprep.subr.bf16.mxu0 %v3156
        %3385 = vmatpush1.bf16.msra.mxu0 %v3155
        %3386 = vmatprep.subr.bf16.mxu0 %v3160
        %3387 = vmatpush1.bf16.msra.mxu0 %v3159
        %3388 = vmatprep.subr.bf16.mxu0 0
        %3389 = vmatpush1.bf16.msra.mxu0 0
        %3390 = vmatprep.subr.bf16.mxu0 0
        %3391 = vmatpush1.bf16.msra.mxu0 0
        %3392 = vmatprep.subr.bf16.mxu0 0
        %3393 = vmatpush1.bf16.msra.mxu0 0
        %3394 = vmatprep.subr.bf16.mxu0 0
        %3395 = vmatpush1.bf16.msra.mxu0 0
        %3396 = vmatprep.subr.bf16.mxu0 0
        %3397 = vmatpush1.bf16.msra.mxu0 0
        %3398 = vmatprep.subr.bf16.mxu0 0
        %3399 = vmatpush1.bf16.msra.mxu0 0
        %3400 = vmatprep.subr.bf16.mxu0 0
        %3401 = vmatpush1.bf16.msra.mxu0 0
        %3402 = vmatprep.subr.bf16.mxu0 0
        %3403 = vmatpush1.bf16.msra.mxu0 0
        %3404 = vmatprep.mubr.bf16.mxu0 0
        %3405 = vmatmul.mubr.bf16.gmra.mrb[0].mxu0 %v593
        %v3406 = vpop.f32.mrb[0].mxu0
        %v3407 = vadd.f32 %v3294, %v3406
        %v3408 = vpop.f32.mrb[0].mxu0
        %v3409 = vadd.f32 %v3296, %v3408
        %v3410 = vpop.f32.mrb[0].mxu0
        %v3411 = vadd.f32 %v3298, %v3410
        %v3412 = vpop.f32.mrb[0].mxu0
        %v3413 = vadd.f32 %v3300, %v3412
        %3414 = vmatprep.mubr.bf16.mxu0 0
        %3415 = vmatmul.mubr.bf16.gmra.mrb[0].mxu0 %v596
        %v3416 = vpop.f32.mrb[0].mxu0
        %v3417 = vadd.f32 %v3304, %v3416
        %v3418 = vpop.f32.mrb[0].mxu0
        %v3419 = vadd.f32 %v3306, %v3418
        %v3420 = vpop.f32.mrb[0].mxu0
        %v3421 = vadd.f32 %v3308, %v3420
        %v3422 = vpop.f32.mrb[0].mxu0
        %v3423 = vadd.f32 %v3310, %v3422
        %3424 = vmatprep.mubr.bf16.mxu0 0
        %3425 = vmatmul.mubr.bf16.gmra.mrb[0].mxu0 %v599
        %v3426 = vpop.f32.mrb[0].mxu0
        %v3427 = vadd.f32 %v3314, %v3426
        %v3428 = vpop.f32.mrb[0].mxu0
        %v3429 = vadd.f32 %v3316, %v3428
        %v3430 = vpop.f32.mrb[0].mxu0
        %v3431 = vadd.f32 %v3318, %v3430
        %v3432 = vpop.f32.mrb[0].mxu0
        %v3433 = vadd.f32 %v3320, %v3432
        %3434 = vmatprep.mubr.bf16.mxu0 0
        %3435 = vmatmul.mubr.bf16.gmra.mrb[0].mxu0 %v602
        %v3436 = vpop.f32.mrb[0].mxu0
        %v3437 = vadd.f32 %v3324, %v3436
        %v3438 = vpop.f32.mrb[0].mxu0
        %v3439 = vadd.f32 %v3326, %v3438
        %v3440 = vpop.f32.mrb[0].mxu0
        %v3441 = vadd.f32 %v3328, %v3440
        %v3442 = vpop.f32.mrb[0].mxu0
        %v3443 = vadd.f32 %v3330, %v3442
        %3444 = vmatprep.mubr.bf16.mxu0 0
        %3445 = vmatmul.mubr.bf16.gmra.mrb[0].mxu0 %v605
        %v3446 = vpop.f32.mrb[0].mxu0
        %v3447 = vadd.f32 %v3334, %v3446
        %v3448 = vpop.f32.mrb[0].mxu0
        %v3449 = vadd.f32 %v3336, %v3448
        %v3450 = vpop.f32.mrb[0].mxu0
        %v3451 = vadd.f32 %v3338, %v3450
        %v3452 = vpop.f32.mrb[0].mxu0
        %v3453 = vadd.f32 %v3340, %v3452
        %3454 = vmatprep.mubr.bf16.mxu0 0
        %3455 = vmatmul.mubr.bf16.gmra.mrb[0].mxu0 %v608
        %v3456 = vpop.f32.mrb[0].mxu0
        %v3457 = vadd.f32 %v3344, %v3456
        %v3458 = vpop.f32.mrb[0].mxu0
        %v3459 = vadd.f32 %v3346, %v3458
        %v3460 = vpop.f32.mrb[0].mxu0
        %v3461 = vadd.f32 %v3348, %v3460
        %v3462 = vpop.f32.mrb[0].mxu0
        %v3463 = vadd.f32 %v3350, %v3462
        %3464 = vmatprep.mubr.bf16.mxu0 0
        %3465 = vmatmul.mubr.bf16.gmra.mrb[0].mxu0 %v611
        %v3466 = vpop.f32.mrb[0].mxu0
        %v3467 = vadd.f32 %v3354, %v3466
        %v3468 = vpop.f32.mrb[0].mxu0
        %v3469 = vadd.f32 %v3356, %v3468
        %v3470 = vpop.f32.mrb[0].mxu0
        %v3471 = vadd.f32 %v3358, %v3470
        %v3472 = vpop.f32.mrb[0].mxu0
        %v3473 = vadd.f32 %v3360, %v3472
        %3474 = vmatprep.mubr.bf16.mxu0 0
        %3475 = vmatmul.mubr.bf16.gmra.mrb[0].mxu0 %v614
        %v3476 = vpop.f32.mrb[0].mxu0
        %v3477 = vadd.f32 %v3364, %v3476
        %v3478 = vpop.f32.mrb[0].mxu0
        %v3479 = vadd.f32 %v3366, %v3478
        %v3480 = vpop.f32.mrb[0].mxu0
        %v3481 = vadd.f32 %v3368, %v3480
        %v3482 = vpop.f32.mrb[0].mxu0
        %v3483 = vadd.f32 %v3370, %v3482
        %3484 = vdwg.mxu0
        %3485 = vmatprep.subr.bf16.mxu0 %v3070
        %3486 = vmatpush1.bf16.msra.mxu0 %v3069
        %3487 = vmatprep.subr.bf16.mxu0 %v3074
        %3488 = vmatpush1.bf16.msra.mxu0 %v3073
        %3489 = vmatprep.subr.bf16.mxu0 %v3078
        %3490 = vmatpush1.bf16.msra.mxu0 %v3077
        %3491 = vmatprep.subr.bf16.mxu0 %v3082
        %3492 = vmatpush1.bf16.msra.mxu0 %v3081
        %3493 = vmatprep.subr.bf16.mxu0 %v3086
        %3494 = vmatpush1.bf16.msra.mxu0 %v3085
        %3495 = vmatprep.subr.bf16.mxu0 %v3090
        %3496 = vmatpush1.bf16.msra.mxu0 %v3089
        %3497 = vmatprep.subr.bf16.mxu0 %v3094
        %3498 = vmatpush1.bf16.msra.mxu0 %v3093
        %3499 = vmatprep.subr.bf16.mxu0 %v3098
        %3500 = vmatpush1.bf16.msra.mxu0 %v3097
        %3501 = vmatprep.subr.bf16.mxu0 %v3102
        %3502 = vmatpush1.bf16.msra.mxu0 %v3101
        %3503 = vmatprep.subr.bf16.mxu0 %v3106
        %3504 = vmatpush1.bf16.msra.mxu0 %v3105
        %3505 = vmatprep.subr.bf16.mxu0 %v3110
        %3506 = vmatpush1.bf16.msra.mxu0 %v3109
        %3507 = vmatprep.subr.bf16.mxu0 %v3114
        %3508 = vmatpush1.bf16.msra.mxu0 %v3113
        %3509 = vmatprep.subr.bf16.mxu0 %v3118
        %3510 = vmatpush1.bf16.msra.mxu0 %v3117
        %3511 = vmatprep.subr.bf16.mxu0 %v3122
        %3512 = vmatpush1.bf16.msra.mxu0 %v3121
        %3513 = vmatprep.subr.bf16.mxu0 %v3126
        %3514 = vmatpush1.bf16.msra.mxu0 %v3125
        %3515 = vmatprep.subr.bf16.mxu0 %v3130
        %3516 = vmatpush1.bf16.msra.mxu0 %v3129
        %3517 = vmatprep.mubr.bf16.mxu0 %v459
        %3518 = vmatmul.mubr.bf16.gmra.mrb[0].mxu0 %v375
        %v3519 = vpop.f32.mrb[0].mxu0
        %v3520 = vadd.f32 0.0, %v3519
        %v3521 = vpop.f32.mrb[0].mxu0
        %v3522 = vadd.f32 0.0, %v3521
        %v3523 = vpop.f32.mrb[0].mxu0
        %v3524 = vadd.f32 0.0, %v3523
        %v3525 = vpop.f32.mrb[0].mxu0
        %v3526 = vadd.f32 0.0, %v3525
        %3527 = vmatprep.mubr.bf16.mxu0 %v471
        %3528 = vmatmul.mubr.bf16.gmra.mrb[0].mxu0 %v376
        %v3529 = vpop.f32.mrb[0].mxu0
        %v3530 = vadd.f32 0.0, %v3529
        %v3531 = vpop.f32.mrb[0].mxu0
        %v3532 = vadd.f32 0.0, %v3531
        %v3533 = vpop.f32.mrb[0].mxu0
        %v3534 = vadd.f32 0.0, %v3533
        %v3535 = vpop.f32.mrb[0].mxu0
        %v3536 = vadd.f32 0.0, %v3535
        %3537 = vmatprep.mubr.bf16.mxu0 %v483
        %3538 = vmatmul.mubr.bf16.gmra.mrb[0].mxu0 %v377
        %v3539 = vpop.f32.mrb[0].mxu0
        %v3540 = vadd.f32 0.0, %v3539
        %v3541 = vpop.f32.mrb[0].mxu0
        %v3542 = vadd.f32 0.0, %v3541
        %v3543 = vpop.f32.mrb[0].mxu0
        %v3544 = vadd.f32 0.0, %v3543
        %v3545 = vpop.f32.mrb[0].mxu0
        %v3546 = vadd.f32 0.0, %v3545
        %3547 = vmatprep.mubr.bf16.mxu0 %v495
        %3548 = vmatmul.mubr.bf16.gmra.mrb[0].mxu0 %v378
        %v3549 = vpop.f32.mrb[0].mxu0
        %v3550 = vadd.f32 0.0, %v3549
        %v3551 = vpop.f32.mrb[0].mxu0
        %v3552 = vadd.f32 0.0, %v3551
        %v3553 = vpop.f32.mrb[0].mxu0
        %v3554 = vadd.f32 0.0, %v3553
        %v3555 = vpop.f32.mrb[0].mxu0
        %v3556 = vadd.f32 0.0, %v3555
        %3557 = vmatprep.mubr.bf16.mxu0 %v507
        %3558 = vmatmul.mubr.bf16.gmra.mrb[0].mxu0 %v379
        %v3559 = vpop.f32.mrb[0].mxu0
        %v3560 = vadd.f32 0.0, %v3559
        %v3561 = vpop.f32.mrb[0].mxu0
        %v3562 = vadd.f32 0.0, %v3561
        %v3563 = vpop.f32.mrb[0].mxu0
        %v3564 = vadd.f32 0.0, %v3563
        %v3565 = vpop.f32.mrb[0].mxu0
        %v3566 = vadd.f32 0.0, %v3565
        %3567 = vmatprep.mubr.bf16.mxu0 %v519
        %3568 = vmatmul.mubr.bf16.gmra.mrb[0].mxu0 %v380
        %v3569 = vpop.f32.mrb[0].mxu0
        %v3570 = vadd.f32 0.0, %v3569
        %v3571 = vpop.f32.mrb[0].mxu0
        %v3572 = vadd.f32 0.0, %v3571
        %v3573 = vpop.f32.mrb[0].mxu0
        %v3574 = vadd.f32 0.0, %v3573
        %v3575 = vpop.f32.mrb[0].mxu0
        %v3576 = vadd.f32 0.0, %v3575
        %3577 = vmatprep.mubr.bf16.mxu0 %v531
        %3578 = vmatmul.mubr.bf16.gmra.mrb[0].mxu0 %v381
        %v3579 = vpop.f32.mrb[0].mxu0
        %v3580 = vadd.f32 0.0, %v3579
        %v3581 = vpop.f32.mrb[0].mxu0
        %v3582 = vadd.f32 0.0, %v3581
        %v3583 = vpop.f32.mrb[0].mxu0
        %v3584 = vadd.f32 0.0, %v3583
        %v3585 = vpop.f32.mrb[0].mxu0
        %v3586 = vadd.f32 0.0, %v3585
        %3587 = vmatprep.mubr.bf16.mxu0 %v543
        %3588 = vmatmul.mubr.bf16.gmra.mrb[0].mxu0 %v382
        %v3589 = vpop.f32.mrb[0].mxu0
        %v3590 = vadd.f32 0.0, %v3589
        %v3591 = vpop.f32.mrb[0].mxu0
        %v3592 = vadd.f32 0.0, %v3591
        %v3593 = vpop.f32.mrb[0].mxu0
        %v3594 = vadd.f32 0.0, %v3593
        %v3595 = vpop.f32.mrb[0].mxu0
        %v3596 = vadd.f32 0.0, %v3595
        %3597 = vdwg.mxu0
        %3598 = vmatprep.subr.bf16.mxu0 %v3134
        %3599 = vmatpush1.bf16.msra.mxu0 %v3133
        %3600 = vmatprep.subr.bf16.mxu0 %v3138
        %3601 = vmatpush1.bf16.msra.mxu0 %v3137
        %3602 = vmatprep.subr.bf16.mxu0 %v3142
        %3603 = vmatpush1.bf16.msra.mxu0 %v3141
        %3604 = vmatprep.subr.bf16.mxu0 %v3146
        %3605 = vmatpush1.bf16.msra.mxu0 %v3145
        %3606 = vmatprep.subr.bf16.mxu0 %v3150
        %3607 = vmatpush1.bf16.msra.mxu0 %v3149
        %3608 = vmatprep.subr.bf16.mxu0 %v3154
        %3609 = vmatpush1.bf16.msra.mxu0 %v3153
        %3610 = vmatprep.subr.bf16.mxu0 %v3158
        %3611 = vmatpush1.bf16.msra.mxu0 %v3157
        %3612 = vmatprep.subr.bf16.mxu0 %v3162
        %3613 = vmatpush1.bf16.msra.mxu0 %v3161
        %3614 = vmatprep.subr.bf16.mxu0 0
        %3615 = vmatpush1.bf16.msra.mxu0 0
        %3616 = vmatprep.subr.bf16.mxu0 0
        %3617 = vmatpush1.bf16.msra.mxu0 0
        %3618 = vmatprep.subr.bf16.mxu0 0
        %3619 = vmatpush1.bf16.msra.mxu0 0
        %3620 = vmatprep.subr.bf16.mxu0 0
        %3621 = vmatpush1.bf16.msra.mxu0 0
        %3622 = vmatprep.subr.bf16.mxu0 0
        %3623 = vmatpush1.bf16.msra.mxu0 0
        %3624 = vmatprep.subr.bf16.mxu0 0
        %3625 = vmatpush1.bf16.msra.mxu0 0
        %3626 = vmatprep.subr.bf16.mxu0 0
        %3627 = vmatpush1.bf16.msra.mxu0 0
        %3628 = vmatprep.subr.bf16.mxu0 0
        %3629 = vmatpush1.bf16.msra.mxu0 0
        %3630 = vmatprep.mubr.bf16.mxu0 0
        %3631 = vmatmul.mubr.bf16.gmra.mrb[0].mxu0 %v593
        %v3632 = vpop.f32.mrb[0].mxu0
        %v3633 = vadd.f32 %v3520, %v3632
        %v3634 = vpop.f32.mrb[0].mxu0
        %v3635 = vadd.f32 %v3522, %v3634
        %v3636 = vpop.f32.mrb[0].mxu0
        %v3637 = vadd.f32 %v3524, %v3636
        %v3638 = vpop.f32.mrb[0].mxu0
        %v3639 = vadd.f32 %v3526, %v3638
        %3640 = vmatprep.mubr.bf16.mxu0 0
        %3641 = vmatmul.mubr.bf16.gmra.mrb[0].mxu0 %v596
        %v3642 = vpop.f32.mrb[0].mxu0
        %v3643 = vadd.f32 %v3530, %v3642
        %v3644 = vpop.f32.mrb[0].mxu0
        %v3645 = vadd.f32 %v3532, %v3644
        %v3646 = vpop.f32.mrb[0].mxu0
        %v3647 = vadd.f32 %v3534, %v3646
        %v3648 = vpop.f32.mrb[0].mxu0
        %v3649 = vadd.f32 %v3536, %v3648
        %3650 = vmatprep.mubr.bf16.mxu0 0
        %3651 = vmatmul.mubr.bf16.gmra.mrb[0].mxu0 %v599
        %v3652 = vpop.f32.mrb[0].mxu0
        %v3653 = vadd.f32 %v3540, %v3652
        %v3654 = vpop.f32.mrb[0].mxu0
        %v3655 = vadd.f32 %v3542, %v3654
        %v3656 = vpop.f32.mrb[0].mxu0
        %v3657 = vadd.f32 %v3544, %v3656
        %v3658 = vpop.f32.mrb[0].mxu0
        %v3659 = vadd.f32 %v3546, %v3658
        %3660 = vmatprep.mubr.bf16.mxu0 0
        %3661 = vmatmul.mubr.bf16.gmra.mrb[0].mxu0 %v602
        %v3662 = vpop.f32.mrb[0].mxu0
        %v3663 = vadd.f32 %v3550, %v3662
        %v3664 = vpop.f32.mrb[0].mxu0
        %v3665 = vadd.f32 %v3552, %v3664
        %v3666 = vpop.f32.mrb[0].mxu0
        %v3667 = vadd.f32 %v3554, %v3666
        %v3668 = vpop.f32.mrb[0].mxu0
        %v3669 = vadd.f32 %v3556, %v3668
        %3670 = vmatprep.mubr.bf16.mxu0 0
        %3671 = vmatmul.mubr.bf16.gmra.mrb[0].mxu0 %v605
        %v3672 = vpop.f32.mrb[0].mxu0
        %v3673 = vadd.f32 %v3560, %v3672
        %v3674 = vpop.f32.mrb[0].mxu0
        %v3675 = vadd.f32 %v3562, %v3674
        %v3676 = vpop.f32.mrb[0].mxu0
        %v3677 = vadd.f32 %v3564, %v3676
        %v3678 = vpop.f32.mrb[0].mxu0
        %v3679 = vadd.f32 %v3566, %v3678
        %3680 = vmatprep.mubr.bf16.mxu0 0
        %3681 = vmatmul.mubr.bf16.gmra.mrb[0].mxu0 %v608
        %v3682 = vpop.f32.mrb[0].mxu0
        %v3683 = vadd.f32 %v3570, %v3682
        %v3684 = vpop.f32.mrb[0].mxu0
        %v3685 = vadd.f32 %v3572, %v3684
        %v3686 = vpop.f32.mrb[0].mxu0
        %v3687 = vadd.f32 %v3574, %v3686
        %v3688 = vpop.f32.mrb[0].mxu0
        %v3689 = vadd.f32 %v3576, %v3688
        %3690 = vmatprep.mubr.bf16.mxu0 0
        %3691 = vmatmul.mubr.bf16.gmra.mrb[0].mxu0 %v611
        %v3692 = vpop.f32.mrb[0].mxu0
        %v3693 = vadd.f32 %v3580, %v3692
        %v3694 = vpop.f32.mrb[0].mxu0
        %v3695 = vadd.f32 %v3582, %v3694
        %v3696 = vpop.f32.mrb[0].mxu0
        %v3697 = vadd.f32 %v3584, %v3696
        %v3698 = vpop.f32.mrb[0].mxu0
        %v3699 = vadd.f32 %v3586, %v3698
        %3700 = vmatprep.mubr.bf16.mxu0 0
        %3701 = vmatmul.mubr.bf16.gmra.mrb[0].mxu0 %v614
        %v3702 = vpop.f32.mrb[0].mxu0
        %v3703 = vadd.f32 %v3590, %v3702
        %v3704 = vpop.f32.mrb[0].mxu0
        %v3705 = vadd.f32 %v3592, %v3704
        %v3706 = vpop.f32.mrb[0].mxu0
        %v3707 = vadd.f32 %v3594, %v3706
        %v3708 = vpop.f32.mrb[0].mxu0
        %v3709 = vadd.f32 %v3596, %v3708
        %3710 = vdwg.mxu0
        %v3711 = vadd.f32 %v2378, %v3407
        %v3712 = vadd.f32 %v2380, %v3409
        %v3713 = vadd.f32 %v2604, %v3633
        %v3714 = vadd.f32 %v2606, %v3635
        %v3715 = vadd.f32 %v2382, %v3411
        %v3716 = vadd.f32 %v2384, %v3413
        %v3717 = vadd.f32 %v2608, %v3637
        %v3718 = vadd.f32 %v2610, %v3639
        %v3719 = vadd.f32 %v2388, %v3417
        %v3720 = vadd.f32 %v2390, %v3419
        %v3721 = vadd.f32 %v2614, %v3643
        %v3722 = vadd.f32 %v2616, %v3645
        %v3723 = vadd.f32 %v2392, %v3421
        %v3724 = vadd.f32 %v2394, %v3423
        %v3725 = vadd.f32 %v2618, %v3647
        %v3726 = vadd.f32 %v2620, %v3649
        %v3727 = vadd.f32 %v2398, %v3427
        %v3728 = vadd.f32 %v2400, %v3429
        %v3729 = vadd.f32 %v2624, %v3653
        %v3730 = vadd.f32 %v2626, %v3655
        %v3731 = vadd.f32 %v2402, %v3431
        %v3732 = vadd.f32 %v2404, %v3433
        %v3733 = vadd.f32 %v2628, %v3657
        %v3734 = vadd.f32 %v2630, %v3659
        %v3735 = vadd.f32 %v2408, %v3437
        %v3736 = vadd.f32 %v2410, %v3439
        %v3737 = vadd.f32 %v2634, %v3663
        %v3738 = vadd.f32 %v2636, %v3665
        %v3739 = vadd.f32 %v2412, %v3441
        %v3740 = vadd.f32 %v2414, %v3443
        %v3741 = vadd.f32 %v2638, %v3667
        %v3742 = vadd.f32 %v2640, %v3669
        %v3743 = vadd.f32 %v2418, %v3447
        %v3744 = vadd.f32 %v2420, %v3449
        %v3745 = vadd.f32 %v2644, %v3673
        %v3746 = vadd.f32 %v2646, %v3675
        %v3747 = vadd.f32 %v2422, %v3451
        %v3748 = vadd.f32 %v2424, %v3453
        %v3749 = vadd.f32 %v2648, %v3677
        %v3750 = vadd.f32 %v2650, %v3679
        %v3751 = vadd.f32 %v2428, %v3457
        %v3752 = vadd.f32 %v2430, %v3459
        %v3753 = vadd.f32 %v2654, %v3683
        %v3754 = vadd.f32 %v2656, %v3685
        %v3755 = vadd.f32 %v2432, %v3461
        %v3756 = vadd.f32 %v2434, %v3463
        %v3757 = vadd.f32 %v2658, %v3687
        %v3758 = vadd.f32 %v2660, %v3689
        %v3759 = vadd.f32 %v2438, %v3467
        %v3760 = vadd.f32 %v2440, %v3469
        %v3761 = vadd.f32 %v2664, %v3693
        %v3762 = vadd.f32 %v2666, %v3695
        %v3763 = vadd.f32 %v2442, %v3471
        %v3764 = vadd.f32 %v2444, %v3473
        %v3765 = vadd.f32 %v2668, %v3697
        %v3766 = vadd.f32 %v2670, %v3699
        %v3767 = vadd.f32 %v2448, %v3477
        %v3768 = vadd.f32 %v2450, %v3479
        %v3769 = vadd.f32 %v2674, %v3703
        %v3770 = vadd.f32 %v2676, %v3705
        %v3771 = vadd.f32 %v2452, %v3481
        %v3772 = vadd.f32 %v2454, %v3483
        %v3773 = vadd.f32 %v2678, %v3707
        %v3774 = vadd.f32 %v2680, %v3709
        %v3775 = vld [vmem:[#allocation4] sm:$0xf]
        %v3777 = vlaneseq
        %v3778 = vshrl.u32 %v3777, 7
        %v3779 = vsub.s32 0, %v3778
        %v3780 = vrot.slane %v3775, %v3779
        %v3781 = vlaneseq
        %v3782 = vshrl.u32 %v3781, 7
        %v3783 = vsub.s32 1, %v3782
        %v3784 = vrot.slane %v3775, %v3783
        %v3785 = vlaneseq
        %v3786 = vshrl.u32 %v3785, 7
        %v3787 = vsub.s32 2, %v3786
        %v3788 = vrot.slane %v3775, %v3787
        %v3789 = vlaneseq
        %v3790 = vshrl.u32 %v3789, 7
        %v3791 = vsub.s32 3, %v3790
        %v3792 = vrot.slane %v3775, %v3791
        %v3797 = vadd.f32 %v3711, %v3780
        %v3798 = vadd.f32 %v3712, %v3784
        %v3799 = vadd.f32 %v3713, %v3788
        %v3800 = vadd.f32 %v3714, %v3792
        %v3801 = vadd.f32 %v3715, %v3780
        %v3802 = vadd.f32 %v3716, %v3784
        %v3803 = vadd.f32 %v3717, %v3788
        %v3804 = vadd.f32 %v3718, %v3792
        %v3805 = vadd.f32 %v3719, %v3780
        %v3806 = vadd.f32 %v3720, %v3784
        %v3807 = vadd.f32 %v3721, %v3788
        %v3808 = vadd.f32 %v3722, %v3792
        %v3809 = vadd.f32 %v3723, %v3780
        %v3810 = vadd.f32 %v3724, %v3784
        %v3811 = vadd.f32 %v3725, %v3788
        %v3812 = vadd.f32 %v3726, %v3792
        %v3813 = vadd.f32 %v3727, %v3780
        %v3814 = vadd.f32 %v3728, %v3784
        %v3815 = vadd.f32 %v3729, %v3788
        %v3816 = vadd.f32 %v3730, %v3792
        %v3817 = vadd.f32 %v3731, %v3780
        %v3818 = vadd.f32 %v3732, %v3784
        %v3819 = vadd.f32 %v3733, %v3788
        %v3820 = vadd.f32 %v3734, %v3792
        %v3821 = vadd.f32 %v3735, %v3780
        %v3822 = vadd.f32 %v3736, %v3784
        %v3823 = vadd.f32 %v3737, %v3788
        %v3824 = vadd.f32 %v3738, %v3792
        %v3825 = vadd.f32 %v3739, %v3780
        %v3826 = vadd.f32 %v3740, %v3784
        %v3827 = vadd.f32 %v3741, %v3788
        %v3828 = vadd.f32 %v3742, %v3792
        %v3829 = vadd.f32 %v3743, %v3780
        %v3830 = vadd.f32 %v3744, %v3784
        %v3831 = vadd.f32 %v3745, %v3788
        %v3832 = vadd.f32 %v3746, %v3792
        %v3833 = vadd.f32 %v3747, %v3780
        %v3834 = vadd.f32 %v3748, %v3784
        %v3835 = vadd.f32 %v3749, %v3788
        %v3836 = vadd.f32 %v3750, %v3792
        %v3837 = vadd.f32 %v3751, %v3780
        %v3838 = vadd.f32 %v3752, %v3784
        %v3839 = vadd.f32 %v3753, %v3788
        %v3840 = vadd.f32 %v3754, %v3792
        %v3841 = vadd.f32 %v3755, %v3780
        %v3842 = vadd.f32 %v3756, %v3784
        %v3843 = vadd.f32 %v3757, %v3788
        %v3844 = vadd.f32 %v3758, %v3792
        %v3845 = vadd.f32 %v3759, %v3780
        %v3846 = vadd.f32 %v3760, %v3784
        %v3847 = vadd.f32 %v3761, %v3788
        %v3848 = vadd.f32 %v3762, %v3792
        %v3849 = vadd.f32 %v3763, %v3780
        %v3850 = vadd.f32 %v3764, %v3784
        %v3851 = vadd.f32 %v3765, %v3788
        %v3852 = vadd.f32 %v3766, %v3792
        %v3853 = vadd.f32 %v3767, %v3780
        %v3854 = vadd.f32 %v3768, %v3784
        %v3855 = vadd.f32 %v3769, %v3788
        %v3856 = vadd.f32 %v3770, %v3792
        %v3857 = vadd.f32 %v3771, %v3780
        %v3858 = vadd.f32 %v3772, %v3784
        %v3859 = vadd.f32 %v3773, %v3788
        %v3860 = vadd.f32 %v3774, %v3792
        %v3861 = vmax.f32 %v3797, 0.0
        %v3862 = vmax.f32 %v3798, 0.0
        %v3863 = vmax.f32 %v3799, 0.0
        %v3864 = vmax.f32 %v3800, 0.0
        %v3865 = vmax.f32 %v3801, 0.0
        %v3866 = vmax.f32 %v3802, 0.0
        %v3867 = vmax.f32 %v3803, 0.0
        %v3868 = vmax.f32 %v3804, 0.0
        %v3869 = vmax.f32 %v3805, 0.0
        %v3870 = vmax.f32 %v3806, 0.0
        %v3871 = vmax.f32 %v3807, 0.0
        %v3872 = vmax.f32 %v3808, 0.0
        %v3873 = vmax.f32 %v3809, 0.0
        %v3874 = vmax.f32 %v3810, 0.0
        %v3875 = vmax.f32 %v3811, 0.0
        %v3876 = vmax.f32 %v3812, 0.0
        %v3877 = vmax.f32 %v3813, 0.0
        %v3878 = vmax.f32 %v3814, 0.0
        %v3879 = vmax.f32 %v3815, 0.0
        %v3880 = vmax.f32 %v3816, 0.0
        %v3881 = vmax.f32 %v3817, 0.0
        %v3882 = vmax.f32 %v3818, 0.0
        %v3883 = vmax.f32 %v3819, 0.0
        %v3884 = vmax.f32 %v3820, 0.0
        %v3885 = vmax.f32 %v3821, 0.0
        %v3886 = vmax.f32 %v3822, 0.0
        %v3887 = vmax.f32 %v3823, 0.0
        %v3888 = vmax.f32 %v3824, 0.0
        %v3889 = vmax.f32 %v3825, 0.0
        %v3890 = vmax.f32 %v3826, 0.0
        %v3891 = vmax.f32 %v3827, 0.0
        %v3892 = vmax.f32 %v3828, 0.0
        %v3893 = vmax.f32 %v3829, 0.0
        %v3894 = vmax.f32 %v3830, 0.0
        %v3895 = vmax.f32 %v3831, 0.0
        %v3896 = vmax.f32 %v3832, 0.0
        %v3897 = vmax.f32 %v3833, 0.0
        %v3898 = vmax.f32 %v3834, 0.0
        %v3899 = vmax.f32 %v3835, 0.0
        %v3900 = vmax.f32 %v3836, 0.0
        %v3901 = vmax.f32 %v3837, 0.0
        %v3902 = vmax.f32 %v3838, 0.0
        %v3903 = vmax.f32 %v3839, 0.0
        %v3904 = vmax.f32 %v3840, 0.0
        %v3905 = vmax.f32 %v3841, 0.0
        %v3906 = vmax.f32 %v3842, 0.0
        %v3907 = vmax.f32 %v3843, 0.0
        %v3908 = vmax.f32 %v3844, 0.0
        %v3909 = vmax.f32 %v3845, 0.0
        %v3910 = vmax.f32 %v3846, 0.0
        %v3911 = vmax.f32 %v3847, 0.0
        %v3912 = vmax.f32 %v3848, 0.0
        %v3913 = vmax.f32 %v3849, 0.0
        %v3914 = vmax.f32 %v3850, 0.0
        %v3915 = vmax.f32 %v3851, 0.0
        %v3916 = vmax.f32 %v3852, 0.0
        %v3917 = vmax.f32 %v3853, 0.0
        %v3918 = vmax.f32 %v3854, 0.0
        %v3919 = vmax.f32 %v3855, 0.0
        %v3920 = vmax.f32 %v3856, 0.0
        %v3921 = vmax.f32 %v3857, 0.0
        %v3922 = vmax.f32 %v3858, 0.0
        %v3923 = vmax.f32 %v3859, 0.0
        %v3924 = vmax.f32 %v3860, 0.0
        %v3925 = vpack.c.bf16 %v3865, %v3861
        %v3926 = vpack.c.bf16 %v3866, %v3862
        %v3927 = vpack.c.bf16 %v3867, %v3863
        %v3928 = vpack.c.bf16 %v3868, %v3864
        %v3929 = vpack.c.bf16 %v3873, %v3869
        %v3930 = vpack.c.bf16 %v3874, %v3870
        %v3931 = vpack.c.bf16 %v3875, %v3871
        %v3932 = vpack.c.bf16 %v3876, %v3872
        %v3933 = vpack.c.bf16 %v3881, %v3877
        %v3934 = vpack.c.bf16 %v3882, %v3878
        %v3935 = vpack.c.bf16 %v3883, %v3879
        %v3936 = vpack.c.bf16 %v3884, %v3880
        %v3937 = vpack.c.bf16 %v3889, %v3885
        %v3938 = vpack.c.bf16 %v3890, %v3886
        %v3939 = vpack.c.bf16 %v3891, %v3887
        %v3940 = vpack.c.bf16 %v3892, %v3888
        %v3941 = vpack.c.bf16 %v3897, %v3893
        %v3942 = vpack.c.bf16 %v3898, %v3894
        %v3943 = vpack.c.bf16 %v3899, %v3895
        %v3944 = vpack.c.bf16 %v3900, %v3896
        %v3945 = vpack.c.bf16 %v3905, %v3901
        %v3946 = vpack.c.bf16 %v3906, %v3902
        %v3947 = vpack.c.bf16 %v3907, %v3903
        %v3948 = vpack.c.bf16 %v3908, %v3904
        %v3949 = vpack.c.bf16 %v3913, %v3909
        %v3950 = vpack.c.bf16 %v3914, %v3910
        %v3951 = vpack.c.bf16 %v3915, %v3911
        %v3952 = vpack.c.bf16 %v3916, %v3912
        %v3953 = vpack.c.bf16 %v3921, %v3917
        %v3954 = vpack.c.bf16 %v3922, %v3918
        %v3955 = vpack.c.bf16 %v3923, %v3919
        %v3956 = vpack.c.bf16 %v3924, %v3920
        %v3957 = vld [vmem:[%s3] sm:$0xf]
        %v3958 = vld [vmem:[%s3 + $0x4] sm:$0xf]
        %v3959 = vld [vmem:[%s3 + $0x8] sm:$0xf]
        %v3960 = vld [vmem:[%s3 + $0xc] sm:$0xf]
        %v3961 = vld [vmem:[%s3 + $0x10] sm:$0xf]
        %v3962 = vld [vmem:[%s3 + $0x14] sm:$0xf]
        %v3963 = vld [vmem:[%s3 + $0x18] sm:$0xf]
        %v3964 = vld [vmem:[%s3 + $0x1c] sm:$0xf]
        %v3965 = vld [vmem:[%s3 + $0x20] sm:$0xf]
        %v3966 = vld [vmem:[%s3 + $0x24] sm:$0xf]
        %v3967 = vld [vmem:[%s3 + $0x28] sm:$0xf]
        %v3968 = vld [vmem:[%s3 + $0x2c] sm:$0xf]
        %v3969 = vld [vmem:[%s3 + $0x30] sm:$0xf]
        %v3970 = vld [vmem:[%s3 + $0x34] sm:$0xf]
        %v3971 = vld [vmem:[%s3 + $0x38] sm:$0xf]
        %v3972 = vld [vmem:[%s3 + $0x3c] sm:$0xf]
        %v3973 = vld [vmem:[%s3 + $0x40] sm:$0xf]
        %v3974 = vld [vmem:[%s3 + $0x44] sm:$0xf]
        %v3975 = vld [vmem:[%s3 + $0x48] sm:$0xf]
        %v3976 = vld [vmem:[%s3 + $0x4c] sm:$0xf]
        %v3977 = vld [vmem:[%s3 + $0x50] sm:$0xf]
        %v3978 = vld [vmem:[%s3 + $0x54] sm:$0xf]
        %v3979 = vld [vmem:[%s3 + $0x58] sm:$0xf]
        %v3980 = vld [vmem:[%s3 + $0x5c] sm:$0xf]
        %v3981 = vld [vmem:[%s3 + $0x60] sm:$0xf]
        %v3982 = vld [vmem:[%s3 + $0x64] sm:$0xf]
        %v3983 = vld [vmem:[%s3 + $0x68] sm:$0xf]
        %v3984 = vld [vmem:[%s3 + $0x6c] sm:$0xf]
        %v3985 = vld [vmem:[%s3 + $0x70] sm:$0xf]
        %v3986 = vld [vmem:[%s3 + $0x74] sm:$0xf]
        %v3987 = vld [vmem:[%s3 + $0x78] sm:$0xf]
        %v3988 = vld [vmem:[%s3 + $0x7c] sm:$0xf]
        %v3989 = vld [vmem:[%s3 + $0x80] sm:$0xf]
        %v3990 = vld [vmem:[%s3 + $0x84] sm:$0xf]
        %v3991 = vld [vmem:[%s3 + $0x88] sm:$0xf]
        %v3992 = vld [vmem:[%s3 + $0x8c] sm:$0xf]
        %v3993 = vld [vmem:[%s3 + $0x90] sm:$0xf]
        %v3994 = vld [vmem:[%s3 + $0x94] sm:$0xf]
        %v3995 = vld [vmem:[%s3 + $0x98] sm:$0xf]
        %v3996 = vld [vmem:[%s3 + $0x9c] sm:$0xf]
        %v3997 = vld [vmem:[%s3 + $0xa0] sm:$0xf]
        %v3998 = vld [vmem:[%s3 + $0xa4] sm:$0xf]
        %v3999 = vld [vmem:[%s3 + $0xa8] sm:$0xf]
        %v4000 = vld [vmem:[%s3 + $0xac] sm:$0xf]
        %v4001 = vld [vmem:[%s3 + $0xb0] sm:$0xf]
        %v4002 = vld [vmem:[%s3 + $0xb4] sm:$0xf]
        %v4003 = vld [vmem:[%s3 + $0xb8] sm:$0xf]
        %v4004 = vld [vmem:[%s3 + $0xbc] sm:$0xf]
        %v4005 = vld [vmem:[%s3 + $0xc0] sm:$0xf]
        %v4006 = vld [vmem:[%s3 + $0xc4] sm:$0xf]
        %v4007 = vld [vmem:[%s3 + $0xc8] sm:$0xf]
        %v4008 = vld [vmem:[%s3 + $0xcc] sm:$0xf]
        %v4009 = vld [vmem:[%s3 + $0xd0] sm:$0xf]
        %v4010 = vld [vmem:[%s3 + $0xd4] sm:$0xf]
        %v4011 = vld [vmem:[%s3 + $0xd8] sm:$0xf]
        %v4012 = vld [vmem:[%s3 + $0xdc] sm:$0xf]
        %v4013 = vld [vmem:[%s3 + $0xe0] sm:$0xf]
        %v4014 = vld [vmem:[%s3 + $0xe4] sm:$0xf]
        %v4015 = vld [vmem:[%s3 + $0xe8] sm:$0xf]
        %v4016 = vld [vmem:[%s3 + $0xec] sm:$0xf]
        %v4017 = vld [vmem:[%s3 + $0xf0] sm:$0xf]
        %v4018 = vld [vmem:[%s3 + $0xf4] sm:$0xf]
        %v4019 = vld [vmem:[%s3 + $0xf8] sm:$0xf]
        %v4020 = vld [vmem:[%s3 + $0xfc] sm:$0xf]
        %v4021 = vld [vmem:[#allocation6] sm:$0x1]
        %v4023 = vlaneseq
        %v4024 = vshrl.u32 %v4023, 7
        %v4025 = vsub.s32 0, %v4024
        %v4026 = vrot.slane %v4021, %v4025
        %v4092 = vunpack.c.l.b16 %v3957
        %v4093 = vunpack.c.l.b16 %v3958
        %v4094 = vunpack.c.l.b16 %v3959
        %v4095 = vunpack.c.l.b16 %v3960
        %v4096 = vunpack.c.l.b16 %v3961
        %v4097 = vunpack.c.l.b16 %v3962
        %v4098 = vunpack.c.l.b16 %v3963
        %v4099 = vunpack.c.l.b16 %v3964
        %v4100 = vunpack.c.l.b16 %v3965
        %v4101 = vunpack.c.l.b16 %v3966
        %v4102 = vunpack.c.l.b16 %v3967
        %v4103 = vunpack.c.l.b16 %v3968
        %v4104 = vunpack.c.l.b16 %v3969
        %v4105 = vunpack.c.l.b16 %v3970
        %v4106 = vunpack.c.l.b16 %v3971
        %v4107 = vunpack.c.l.b16 %v3972
        %v4108 = vunpack.c.l.b16 %v3973
        %v4109 = vunpack.c.l.b16 %v3974
        %v4110 = vunpack.c.l.b16 %v3975
        %v4111 = vunpack.c.l.b16 %v3976
        %v4112 = vunpack.c.l.b16 %v3977
        %v4113 = vunpack.c.l.b16 %v3978
        %v4114 = vunpack.c.l.b16 %v3979
        %v4115 = vunpack.c.l.b16 %v3980
        %v4116 = vunpack.c.l.b16 %v3981
        %v4117 = vunpack.c.l.b16 %v3982
        %v4118 = vunpack.c.l.b16 %v3983
        %v4119 = vunpack.c.l.b16 %v3984
        %v4120 = vunpack.c.l.b16 %v3985
        %v4121 = vunpack.c.l.b16 %v3986
        %v4122 = vunpack.c.l.b16 %v3987
        %v4123 = vunpack.c.l.b16 %v3988
        %v4124 = vunpack.c.l.b16 %v3989
        %v4125 = vunpack.c.l.b16 %v3990
        %v4126 = vunpack.c.l.b16 %v3991
        %v4127 = vunpack.c.l.b16 %v3992
        %v4128 = vunpack.c.l.b16 %v3993
        %v4129 = vunpack.c.l.b16 %v3994
        %v4130 = vunpack.c.l.b16 %v3995
        %v4131 = vunpack.c.l.b16 %v3996
        %v4132 = vunpack.c.l.b16 %v3997
        %v4133 = vunpack.c.l.b16 %v3998
        %v4134 = vunpack.c.l.b16 %v3999
        %v4135 = vunpack.c.l.b16 %v4000
        %v4136 = vunpack.c.l.b16 %v4001
        %v4137 = vunpack.c.l.b16 %v4002
        %v4138 = vunpack.c.l.b16 %v4003
        %v4139 = vunpack.c.l.b16 %v4004
        %v4140 = vunpack.c.l.b16 %v4005
        %v4141 = vunpack.c.l.b16 %v4006
        %v4142 = vunpack.c.l.b16 %v4007
        %v4143 = vunpack.c.l.b16 %v4008
        %v4144 = vunpack.c.l.b16 %v4009
        %v4145 = vunpack.c.l.b16 %v4010
        %v4146 = vunpack.c.l.b16 %v4011
        %v4147 = vunpack.c.l.b16 %v4012
        %v4148 = vunpack.c.l.b16 %v4013
        %v4149 = vunpack.c.l.b16 %v4014
        %v4150 = vunpack.c.l.b16 %v4015
        %v4151 = vunpack.c.l.b16 %v4016
        %v4152 = vunpack.c.l.b16 %v4017
        %v4153 = vunpack.c.l.b16 %v4018
        %v4154 = vunpack.c.l.b16 %v4019
        %v4155 = vunpack.c.l.b16 %v4020
        %v4156 = vpack.c.b16 %v4093, %v4092
        %v4157 = vpack.c.b16 %v4095, %v4094
        %v4158 = vpack.c.b16 %v4097, %v4096
        %v4159 = vpack.c.b16 %v4099, %v4098
        %v4160 = vpack.c.b16 %v4101, %v4100
        %v4161 = vpack.c.b16 %v4103, %v4102
        %v4162 = vpack.c.b16 %v4105, %v4104
        %v4163 = vpack.c.b16 %v4107, %v4106
        %v4164 = vpack.c.b16 %v4109, %v4108
        %v4165 = vpack.c.b16 %v4111, %v4110
        %v4166 = vpack.c.b16 %v4113, %v4112
        %v4167 = vpack.c.b16 %v4115, %v4114
        %v4168 = vpack.c.b16 %v4117, %v4116
        %v4169 = vpack.c.b16 %v4119, %v4118
        %v4170 = vpack.c.b16 %v4121, %v4120
        %v4171 = vpack.c.b16 %v4123, %v4122
        %v4172 = vpack.c.b16 %v4125, %v4124
        %v4173 = vpack.c.b16 %v4127, %v4126
        %v4174 = vpack.c.b16 %v4129, %v4128
        %v4175 = vpack.c.b16 %v4131, %v4130
        %v4176 = vpack.c.b16 %v4133, %v4132
        %v4177 = vpack.c.b16 %v4135, %v4134
        %v4178 = vpack.c.b16 %v4137, %v4136
        %v4179 = vpack.c.b16 %v4139, %v4138
        %v4180 = vpack.c.b16 %v4141, %v4140
        %v4181 = vpack.c.b16 %v4143, %v4142
        %v4182 = vpack.c.b16 %v4145, %v4144
        %v4183 = vpack.c.b16 %v4147, %v4146
        %v4184 = vpack.c.b16 %v4149, %v4148
        %v4185 = vpack.c.b16 %v4151, %v4150
        %v4186 = vpack.c.b16 %v4153, %v4152
        %v4187 = vpack.c.b16 %v4155, %v4154
        %4220 = vmatprep.subr.bf16.mxu0 0
        %4221 = vmatpush1.bf16.msra.mxu0 %v4156
        %4222 = vmatprep.subr.bf16.mxu0 0
        %4223 = vmatpush1.bf16.msra.mxu0 %v4157
        %4224 = vmatprep.subr.bf16.mxu0 0
        %4225 = vmatpush1.bf16.msra.mxu0 %v4158
        %4226 = vmatprep.subr.bf16.mxu0 0
        %4227 = vmatpush1.bf16.msra.mxu0 %v4159
        %4228 = vmatprep.subr.bf16.mxu0 0
        %4229 = vmatpush1.bf16.msra.mxu0 %v4160
        %4230 = vmatprep.subr.bf16.mxu0 0
        %4231 = vmatpush1.bf16.msra.mxu0 %v4161
        %4232 = vmatprep.subr.bf16.mxu0 0
        %4233 = vmatpush1.bf16.msra.mxu0 %v4162
        %4234 = vmatprep.subr.bf16.mxu0 0
        %4235 = vmatpush1.bf16.msra.mxu0 %v4163
        %4236 = vmatprep.subr.bf16.mxu0 0
        %4237 = vmatpush1.bf16.msra.mxu0 %v4164
        %4238 = vmatprep.subr.bf16.mxu0 0
        %4239 = vmatpush1.bf16.msra.mxu0 %v4165
        %4240 = vmatprep.subr.bf16.mxu0 0
        %4241 = vmatpush1.bf16.msra.mxu0 %v4166
        %4242 = vmatprep.subr.bf16.mxu0 0
        %4243 = vmatpush1.bf16.msra.mxu0 %v4167
        %4244 = vmatprep.subr.bf16.mxu0 0
        %4245 = vmatpush1.bf16.msra.mxu0 %v4168
        %4246 = vmatprep.subr.bf16.mxu0 0
        %4247 = vmatpush1.bf16.msra.mxu0 %v4169
        %4248 = vmatprep.subr.bf16.mxu0 0
        %4249 = vmatpush1.bf16.msra.mxu0 %v4170
        %4250 = vmatprep.subr.bf16.mxu0 0
        %4251 = vmatpush1.bf16.msra.mxu0 %v4171
        %4252 = vmatprep.mubr.bf16.mxu0 %v3926
        %4253 = vmatmul.mubr.bf16.gmra.mrb[0].mxu0 %v3925
        %v4254 = vpop.f32.mrb[0].mxu0
        %v4255 = vadd.f32 %v4026, %v4254
        %v4256 = vpop.f32.mrb[0].mxu0
        %v4257 = vpop.f32.mrb[0].mxu0
        %v4258 = vadd.f32 %v4026, %v4257
        %v4259 = vpop.f32.mrb[0].mxu0
        %4260 = vmatprep.mubr.bf16.mxu0 %v3930
        %4261 = vmatmul.mubr.bf16.gmra.mrb[0].mxu0 %v3929
        %v4262 = vpop.f32.mrb[0].mxu0
        %v4263 = vadd.f32 %v4026, %v4262
        %v4264 = vpop.f32.mrb[0].mxu0
        %v4265 = vpop.f32.mrb[0].mxu0
        %v4266 = vadd.f32 %v4026, %v4265
        %v4267 = vpop.f32.mrb[0].mxu0
        %4268 = vmatprep.mubr.bf16.mxu0 %v3934
        %4269 = vmatmul.mubr.bf16.gmra.mrb[0].mxu0 %v3933
        %v4270 = vpop.f32.mrb[0].mxu0
        %v4271 = vadd.f32 %v4026, %v4270
        %v4272 = vpop.f32.mrb[0].mxu0
        %v4273 = vpop.f32.mrb[0].mxu0
        %v4274 = vadd.f32 %v4026, %v4273
        %v4275 = vpop.f32.mrb[0].mxu0
        %4276 = vmatprep.mubr.bf16.mxu0 %v3938
        %4277 = vmatmul.mubr.bf16.gmra.mrb[0].mxu0 %v3937
        %v4278 = vpop.f32.mrb[0].mxu0
        %v4279 = vadd.f32 %v4026, %v4278
        %v4280 = vpop.f32.mrb[0].mxu0
        %v4281 = vpop.f32.mrb[0].mxu0
        %v4282 = vadd.f32 %v4026, %v4281
        %v4283 = vpop.f32.mrb[0].mxu0
        %4284 = vmatprep.mubr.bf16.mxu0 %v3942
        %4285 = vmatmul.mubr.bf16.gmra.mrb[0].mxu0 %v3941
        %v4286 = vpop.f32.mrb[0].mxu0
        %v4287 = vadd.f32 %v4026, %v4286
        %v4288 = vpop.f32.mrb[0].mxu0
        %v4289 = vpop.f32.mrb[0].mxu0
        %v4290 = vadd.f32 %v4026, %v4289
        %v4291 = vpop.f32.mrb[0].mxu0
        %4292 = vmatprep.mubr.bf16.mxu0 %v3946
        %4293 = vmatmul.mubr.bf16.gmra.mrb[0].mxu0 %v3945
        %v4294 = vpop.f32.mrb[0].mxu0
        %v4295 = vadd.f32 %v4026, %v4294
        %v4296 = vpop.f32.mrb[0].mxu0
        %v4297 = vpop.f32.mrb[0].mxu0
        %v4298 = vadd.f32 %v4026, %v4297
        %v4299 = vpop.f32.mrb[0].mxu0
        %4300 = vmatprep.mubr.bf16.mxu0 %v3950
        %4301 = vmatmul.mubr.bf16.gmra.mrb[0].mxu0 %v3949
        %v4302 = vpop.f32.mrb[0].mxu0
        %v4303 = vadd.f32 %v4026, %v4302
        %v4304 = vpop.f32.mrb[0].mxu0
        %v4305 = vpop.f32.mrb[0].mxu0
        %v4306 = vadd.f32 %v4026, %v4305
        %v4307 = vpop.f32.mrb[0].mxu0
        %4308 = vmatprep.mubr.bf16.mxu0 %v3954
        %4309 = vmatmul.mubr.bf16.gmra.mrb[0].mxu0 %v3953
        %v4310 = vpop.f32.mrb[0].mxu0
        %v4311 = vadd.f32 %v4026, %v4310
        %v4312 = vpop.f32.mrb[0].mxu0
        %v4313 = vpop.f32.mrb[0].mxu0
        %v4314 = vadd.f32 %v4026, %v4313
        %v4315 = vpop.f32.mrb[0].mxu0
        %4316 = vdwg.mxu0
        %4317 = vmatprep.subr.bf16.mxu0 0
        %4318 = vmatpush1.bf16.msra.mxu0 %v4172
        %4319 = vmatprep.subr.bf16.mxu0 0
        %4320 = vmatpush1.bf16.msra.mxu0 %v4173
        %4321 = vmatprep.subr.bf16.mxu0 0
        %4322 = vmatpush1.bf16.msra.mxu0 %v4174
        %4323 = vmatprep.subr.bf16.mxu0 0
        %4324 = vmatpush1.bf16.msra.mxu0 %v4175
        %4325 = vmatprep.subr.bf16.mxu0 0
        %4326 = vmatpush1.bf16.msra.mxu0 %v4176
        %4327 = vmatprep.subr.bf16.mxu0 0
        %4328 = vmatpush1.bf16.msra.mxu0 %v4177
        %4329 = vmatprep.subr.bf16.mxu0 0
        %4330 = vmatpush1.bf16.msra.mxu0 %v4178
        %4331 = vmatprep.subr.bf16.mxu0 0
        %4332 = vmatpush1.bf16.msra.mxu0 %v4179
        %4333 = vmatprep.subr.bf16.mxu0 0
        %4334 = vmatpush1.bf16.msra.mxu0 %v4180
        %4335 = vmatprep.subr.bf16.mxu0 0
        %4336 = vmatpush1.bf16.msra.mxu0 %v4181
        %4337 = vmatprep.subr.bf16.mxu0 0
        %4338 = vmatpush1.bf16.msra.mxu0 %v4182
        %4339 = vmatprep.subr.bf16.mxu0 0
        %4340 = vmatpush1.bf16.msra.mxu0 %v4183
        %4341 = vmatprep.subr.bf16.mxu0 0
        %4342 = vmatpush1.bf16.msra.mxu0 %v4184
        %4343 = vmatprep.subr.bf16.mxu0 0
        %4344 = vmatpush1.bf16.msra.mxu0 %v4185
        %4345 = vmatprep.subr.bf16.mxu0 0
        %4346 = vmatpush1.bf16.msra.mxu0 %v4186
        %4347 = vmatprep.subr.bf16.mxu0 0
        %4348 = vmatpush1.bf16.msra.mxu0 %v4187
        %4349 = vmatprep.mubr.bf16.mxu0 %v3928
        %4350 = vmatmul.mubr.bf16.gmra.mrb[0].mxu0 %v3927
        %v4351 = vpop.f32.mrb[0].mxu0
        %v4352 = vadd.f32 %v4255, %v4351
        %v4353 = vpop.f32.mrb[0].mxu0
        %v4354 = vpop.f32.mrb[0].mxu0
        %v4355 = vadd.f32 %v4258, %v4354
        %v4356 = vpop.f32.mrb[0].mxu0
        %4357 = vmatprep.mubr.bf16.mxu0 %v3932
        %4358 = vmatmul.mubr.bf16.gmra.mrb[0].mxu0 %v3931
        %v4359 = vpop.f32.mrb[0].mxu0
        %v4360 = vadd.f32 %v4263, %v4359
        %v4361 = vpop.f32.mrb[0].mxu0
        %v4362 = vpop.f32.mrb[0].mxu0
        %v4363 = vadd.f32 %v4266, %v4362
        %v4364 = vpop.f32.mrb[0].mxu0
        %4365 = vmatprep.mubr.bf16.mxu0 %v3936
        %4366 = vmatmul.mubr.bf16.gmra.mrb[0].mxu0 %v3935
        %v4367 = vpop.f32.mrb[0].mxu0
        %v4368 = vadd.f32 %v4271, %v4367
        %v4369 = vpop.f32.mrb[0].mxu0
        %v4370 = vpop.f32.mrb[0].mxu0
        %v4371 = vadd.f32 %v4274, %v4370
        %v4372 = vpop.f32.mrb[0].mxu0
        %4373 = vmatprep.mubr.bf16.mxu0 %v3940
        %4374 = vmatmul.mubr.bf16.gmra.mrb[0].mxu0 %v3939
        %v4375 = vpop.f32.mrb[0].mxu0
        %v4376 = vadd.f32 %v4279, %v4375
        %v4377 = vpop.f32.mrb[0].mxu0
        %v4378 = vpop.f32.mrb[0].mxu0
        %v4379 = vadd.f32 %v4282, %v4378
        %v4380 = vpop.f32.mrb[0].mxu0
        %4381 = vmatprep.mubr.bf16.mxu0 %v3944
        %4382 = vmatmul.mubr.bf16.gmra.mrb[0].mxu0 %v3943
        %v4383 = vpop.f32.mrb[0].mxu0
        %v4384 = vadd.f32 %v4287, %v4383
        %v4385 = vpop.f32.mrb[0].mxu0
        %v4386 = vpop.f32.mrb[0].mxu0
        %v4387 = vadd.f32 %v4290, %v4386
        %v4388 = vpop.f32.mrb[0].mxu0
        %4389 = vmatprep.mubr.bf16.mxu0 %v3948
        %4390 = vmatmul.mubr.bf16.gmra.mrb[0].mxu0 %v3947
        %v4391 = vpop.f32.mrb[0].mxu0
        %v4392 = vadd.f32 %v4295, %v4391
        %v4393 = vpop.f32.mrb[0].mxu0
        %v4394 = vpop.f32.mrb[0].mxu0
        %v4395 = vadd.f32 %v4298, %v4394
        %v4396 = vpop.f32.mrb[0].mxu0
        %4397 = vmatprep.mubr.bf16.mxu0 %v3952
        %4398 = vmatmul.mubr.bf16.gmra.mrb[0].mxu0 %v3951
        %v4399 = vpop.f32.mrb[0].mxu0
        %v4400 = vadd.f32 %v4303, %v4399
        %v4401 = vpop.f32.mrb[0].mxu0
        %v4402 = vpop.f32.mrb[0].mxu0
        %v4403 = vadd.f32 %v4306, %v4402
        %v4404 = vpop.f32.mrb[0].mxu0
        %4405 = vmatprep.mubr.bf16.mxu0 %v3956
        %4406 = vmatmul.mubr.bf16.gmra.mrb[0].mxu0 %v3955
        %v4407 = vpop.f32.mrb[0].mxu0
        %v4408 = vadd.f32 %v4311, %v4407
        %v4409 = vpop.f32.mrb[0].mxu0
        %v4410 = vpop.f32.mrb[0].mxu0
        %v4411 = vadd.f32 %v4314, %v4410
        %v4412 = vpop.f32.mrb[0].mxu0
        %4413 = vdwg.mxu0
        %4430 = vrot.lane.b32.xlu0 %v4352, 119
        %v4431 = vpop.permute.xlu0 %4430
        %4432 = vrot.lane.b32.xlu0 %v4355, 119
        %v4433 = vpop.permute.xlu0 %4432
        %4434 = vrot.lane.b32.xlu0 %v4360, 119
        %v4435 = vpop.permute.xlu0 %4434
        %4436 = vrot.lane.b32.xlu0 %v4363, 119
        %v4437 = vpop.permute.xlu0 %4436
        %4438 = vrot.lane.b32.xlu0 %v4368, 119
        %v4439 = vpop.permute.xlu0 %4438
        %4440 = vrot.lane.b32.xlu0 %v4371, 119
        %v4441 = vpop.permute.xlu0 %4440
        %4442 = vrot.lane.b32.xlu0 %v4376, 119
        %v4443 = vpop.permute.xlu0 %4442
        %4444 = vrot.lane.b32.xlu0 %v4379, 119
        %v4445 = vpop.permute.xlu0 %4444
        %4446 = vrot.lane.b32.xlu0 %v4384, 119
        %v4447 = vpop.permute.xlu0 %4446
        %4448 = vrot.lane.b32.xlu0 %v4387, 119
        %v4449 = vpop.permute.xlu0 %4448
        %4450 = vrot.lane.b32.xlu0 %v4392, 119
        %v4451 = vpop.permute.xlu0 %4450
        %4452 = vrot.lane.b32.xlu0 %v4395, 119
        %v4453 = vpop.permute.xlu0 %4452
        %4454 = vrot.lane.b32.xlu0 %v4400, 119
        %v4455 = vpop.permute.xlu0 %4454
        %4456 = vrot.lane.b32.xlu0 %v4403, 119
        %v4457 = vpop.permute.xlu0 %4456
        %4458 = vrot.lane.b32.xlu0 %v4408, 119
        %v4459 = vpop.permute.xlu0 %4458
        %4460 = vrot.lane.b32.xlu0 %v4411, 119
        %v4461 = vpop.permute.xlu0 %4460
        %v4478 = vmax.f32 %v4352, %v4431
        %v4479 = vmax.f32 %v4355, %v4433
        %v4480 = vmax.f32 %v4360, %v4435
        %v4481 = vmax.f32 %v4363, %v4437
        %v4482 = vmax.f32 %v4368, %v4439
        %v4483 = vmax.f32 %v4371, %v4441
        %v4484 = vmax.f32 %v4376, %v4443
        %v4485 = vmax.f32 %v4379, %v4445
        %v4486 = vmax.f32 %v4384, %v4447
        %v4487 = vmax.f32 %v4387, %v4449
        %v4488 = vmax.f32 %v4392, %v4451
        %v4489 = vmax.f32 %v4395, %v4453
        %v4490 = vmax.f32 %v4400, %v4455
        %v4491 = vmax.f32 %v4403, %v4457
        %v4492 = vmax.f32 %v4408, %v4459
        %v4493 = vmax.f32 %v4411, %v4461
        %v4494 = vsub.f32 %v4352, %v4478
        %v4495 = vsub.f32 %v4355, %v4479
        %v4496 = vsub.f32 %v4360, %v4480
        %v4497 = vsub.f32 %v4363, %v4481
        %v4498 = vsub.f32 %v4368, %v4482
        %v4499 = vsub.f32 %v4371, %v4483
        %v4500 = vsub.f32 %v4376, %v4484
        %v4501 = vsub.f32 %v4379, %v4485
        %v4502 = vsub.f32 %v4384, %v4486
        %v4503 = vsub.f32 %v4387, %v4487
        %v4504 = vsub.f32 %v4392, %v4488
        %v4505 = vsub.f32 %v4395, %v4489
        %v4506 = vsub.f32 %v4400, %v4490
        %v4507 = vsub.f32 %v4403, %v4491
        %v4508 = vsub.f32 %v4408, %v4492
        %v4509 = vsub.f32 %v4411, %v4493
        %v4510 = vmul.f32 %v4494, 1.442695
        %v4511 = vpow.pop %v4510
        %v4512 = vmul.f32 %v4495, 1.442695
        %v4513 = vpow.pop %v4512
        %v4514 = vmul.f32 %v4496, 1.442695
        %v4515 = vpow.pop %v4514
        %v4516 = vmul.f32 %v4497, 1.442695
        %v4517 = vpow.pop %v4516
        %v4518 = vmul.f32 %v4498, 1.442695
        %v4519 = vpow.pop %v4518
        %v4520 = vmul.f32 %v4499, 1.442695
        %v4521 = vpow.pop %v4520
        %v4522 = vmul.f32 %v4500, 1.442695
        %v4523 = vpow.pop %v4522
        %v4524 = vmul.f32 %v4501, 1.442695
        %v4525 = vpow.pop %v4524
        %v4526 = vmul.f32 %v4502, 1.442695
        %v4527 = vpow.pop %v4526
        %v4528 = vmul.f32 %v4503, 1.442695
        %v4529 = vpow.pop %v4528
        %v4530 = vmul.f32 %v4504, 1.442695
        %v4531 = vpow.pop %v4530
        %v4532 = vmul.f32 %v4505, 1.442695
        %v4533 = vpow.pop %v4532
        %v4534 = vmul.f32 %v4506, 1.442695
        %v4535 = vpow.pop %v4534
        %v4536 = vmul.f32 %v4507, 1.442695
        %v4537 = vpow.pop %v4536
        %v4538 = vmul.f32 %v4508, 1.442695
        %v4539 = vpow.pop %v4538
        %v4540 = vmul.f32 %v4509, 1.442695
        %v4541 = vpow.pop %v4540
        %4558 = vrot.lane.b32.xlu0 %v4478, 9
        %v4559 = vpop.permute.xlu0 %4558
        %4560 = vrot.lane.b32.xlu0 %v4479, 9
        %v4561 = vpop.permute.xlu0 %4560
        %4562 = vrot.lane.b32.xlu0 %v4480, 9
        %v4563 = vpop.permute.xlu0 %4562
        %4564 = vrot.lane.b32.xlu0 %v4481, 9
        %v4565 = vpop.permute.xlu0 %4564
        %4566 = vrot.lane.b32.xlu0 %v4482, 9
        %v4567 = vpop.permute.xlu0 %4566
        %4568 = vrot.lane.b32.xlu0 %v4483, 9
        %v4569 = vpop.permute.xlu0 %4568
        %4570 = vrot.lane.b32.xlu0 %v4484, 9
        %v4571 = vpop.permute.xlu0 %4570
        %4572 = vrot.lane.b32.xlu0 %v4485, 9
        %v4573 = vpop.permute.xlu0 %4572
        %4574 = vrot.lane.b32.xlu0 %v4486, 9
        %v4575 = vpop.permute.xlu0 %4574
        %4576 = vrot.lane.b32.xlu0 %v4487, 9
        %v4577 = vpop.permute.xlu0 %4576
        %4578 = vrot.lane.b32.xlu0 %v4488, 9
        %v4579 = vpop.permute.xlu0 %4578
        %4580 = vrot.lane.b32.xlu0 %v4489, 9
        %v4581 = vpop.permute.xlu0 %4580
        %4582 = vrot.lane.b32.xlu0 %v4490, 9
        %v4583 = vpop.permute.xlu0 %4582
        %4584 = vrot.lane.b32.xlu0 %v4491, 9
        %v4585 = vpop.permute.xlu0 %4584
        %4586 = vrot.lane.b32.xlu0 %v4492, 9
        %v4587 = vpop.permute.xlu0 %4586
        %4588 = vrot.lane.b32.xlu0 %v4493, 9
        %v4589 = vpop.permute.xlu0 %4588
        %v4606 = vsub.f32 %v4352, %v4559
        %v4607 = vsub.f32 %v4355, %v4561
        %v4608 = vsub.f32 %v4360, %v4563
        %v4609 = vsub.f32 %v4363, %v4565
        %v4610 = vsub.f32 %v4368, %v4567
        %v4611 = vsub.f32 %v4371, %v4569
        %v4612 = vsub.f32 %v4376, %v4571
        %v4613 = vsub.f32 %v4379, %v4573
        %v4614 = vsub.f32 %v4384, %v4575
        %v4615 = vsub.f32 %v4387, %v4577
        %v4616 = vsub.f32 %v4392, %v4579
        %v4617 = vsub.f32 %v4395, %v4581
        %v4618 = vsub.f32 %v4400, %v4583
        %v4619 = vsub.f32 %v4403, %v4585
        %v4620 = vsub.f32 %v4408, %v4587
        %v4621 = vsub.f32 %v4411, %v4589
        %v4622 = vmul.f32 %v4606, 1.442695
        %v4623 = vpow.pop %v4622
        %v4624 = vmul.f32 %v4607, 1.442695
        %v4625 = vpow.pop %v4624
        %v4626 = vmul.f32 %v4608, 1.442695
        %v4627 = vpow.pop %v4626
        %v4628 = vmul.f32 %v4609, 1.442695
        %v4629 = vpow.pop %v4628
        %v4630 = vmul.f32 %v4610, 1.442695
        %v4631 = vpow.pop %v4630
        %v4632 = vmul.f32 %v4611, 1.442695
        %v4633 = vpow.pop %v4632
        %v4634 = vmul.f32 %v4612, 1.442695
        %v4635 = vpow.pop %v4634
        %v4636 = vmul.f32 %v4613, 1.442695
        %v4637 = vpow.pop %v4636
        %v4638 = vmul.f32 %v4614, 1.442695
        %v4639 = vpow.pop %v4638
        %v4640 = vmul.f32 %v4615, 1.442695
        %v4641 = vpow.pop %v4640
        %v4642 = vmul.f32 %v4616, 1.442695
        %v4643 = vpow.pop %v4642
        %v4644 = vmul.f32 %v4617, 1.442695
        %v4645 = vpow.pop %v4644
        %v4646 = vmul.f32 %v4618, 1.442695
        %v4647 = vpow.pop %v4646
        %v4648 = vmul.f32 %v4619, 1.442695
        %v4649 = vpow.pop %v4648
        %v4650 = vmul.f32 %v4620, 1.442695
        %v4651 = vpow.pop %v4650
        %v4652 = vmul.f32 %v4621, 1.442695
        %v4653 = vpow.pop %v4652
        %4670 = vrot.lane.b32.xlu0 %v4623, 119
        %v4671 = vpop.permute.xlu0 %4670
        %4672 = vrot.lane.b32.xlu0 %v4625, 119
        %v4673 = vpop.permute.xlu0 %4672
        %4674 = vrot.lane.b32.xlu0 %v4627, 119
        %v4675 = vpop.permute.xlu0 %4674
        %4676 = vrot.lane.b32.xlu0 %v4629, 119
        %v4677 = vpop.permute.xlu0 %4676
        %4678 = vrot.lane.b32.xlu0 %v4631, 119
        %v4679 = vpop.permute.xlu0 %4678
        %4680 = vrot.lane.b32.xlu0 %v4633, 119
        %v4681 = vpop.permute.xlu0 %4680
        %4682 = vrot.lane.b32.xlu0 %v4635, 119
        %v4683 = vpop.permute.xlu0 %4682
        %4684 = vrot.lane.b32.xlu0 %v4637, 119
        %v4685 = vpop.permute.xlu0 %4684
        %4686 = vrot.lane.b32.xlu0 %v4639, 119
        %v4687 = vpop.permute.xlu0 %4686
        %4688 = vrot.lane.b32.xlu0 %v4641, 119
        %v4689 = vpop.permute.xlu0 %4688
        %4690 = vrot.lane.b32.xlu0 %v4643, 119
        %v4691 = vpop.permute.xlu0 %4690
        %4692 = vrot.lane.b32.xlu0 %v4645, 119
        %v4693 = vpop.permute.xlu0 %4692
        %4694 = vrot.lane.b32.xlu0 %v4647, 119
        %v4695 = vpop.permute.xlu0 %4694
        %4696 = vrot.lane.b32.xlu0 %v4649, 119
        %v4697 = vpop.permute.xlu0 %4696
        %4698 = vrot.lane.b32.xlu0 %v4651, 119
        %v4699 = vpop.permute.xlu0 %4698
        %4700 = vrot.lane.b32.xlu0 %v4653, 119
        %v4701 = vpop.permute.xlu0 %4700
        %v4718 = vadd.f32 %v4511, %v4671
        %v4719 = vadd.f32 %v4513, %v4673
        %v4720 = vadd.f32 %v4515, %v4675
        %v4721 = vadd.f32 %v4517, %v4677
        %v4722 = vadd.f32 %v4519, %v4679
        %v4723 = vadd.f32 %v4521, %v4681
        %v4724 = vadd.f32 %v4523, %v4683
        %v4725 = vadd.f32 %v4525, %v4685
        %v4726 = vadd.f32 %v4527, %v4687
        %v4727 = vadd.f32 %v4529, %v4689
        %v4728 = vadd.f32 %v4531, %v4691
        %v4729 = vadd.f32 %v4533, %v4693
        %v4730 = vadd.f32 %v4535, %v4695
        %v4731 = vadd.f32 %v4537, %v4697
        %v4732 = vadd.f32 %v4539, %v4699
        %v4733 = vadd.f32 %v4541, %v4701
        %v4734 = vrcp.pop %v4718
        %v4735 = vrcp.pop %v4719
        %v4736 = vrcp.pop %v4720
        %v4737 = vrcp.pop %v4721
        %v4738 = vrcp.pop %v4722
        %v4739 = vrcp.pop %v4723
        %v4740 = vrcp.pop %v4724
        %v4741 = vrcp.pop %v4725
        %v4742 = vrcp.pop %v4726
        %v4743 = vrcp.pop %v4727
        %v4744 = vrcp.pop %v4728
        %v4745 = vrcp.pop %v4729
        %v4746 = vrcp.pop %v4730
        %v4747 = vrcp.pop %v4731
        %v4748 = vrcp.pop %v4732
        %v4749 = vrcp.pop %v4733
        %v4750 = vmul.f32 %v4511, %v4734
        %v4751 = vmul.f32 %v4513, %v4735
        %v4752 = vmul.f32 %v4515, %v4736
        %v4753 = vmul.f32 %v4517, %v4737
        %v4754 = vmul.f32 %v4519, %v4738
        %v4755 = vmul.f32 %v4521, %v4739
        %v4756 = vmul.f32 %v4523, %v4740
        %v4757 = vmul.f32 %v4525, %v4741
        %v4758 = vmul.f32 %v4527, %v4742
        %v4759 = vmul.f32 %v4529, %v4743
        %v4760 = vmul.f32 %v4531, %v4744
        %v4761 = vmul.f32 %v4533, %v4745
        %v4762 = vmul.f32 %v4535, %v4746
        %v4763 = vmul.f32 %v4537, %v4747
        %v4764 = vmul.f32 %v4539, %v4748
        %v4765 = vmul.f32 %v4541, %v4749
        %4782 = vrot.lane.b32.xlu0 %v4734, 9
        %v4783 = vpop.permute.xlu0 %4782
        %4784 = vrot.lane.b32.xlu0 %v4735, 9
        %v4785 = vpop.permute.xlu0 %4784
        %4786 = vrot.lane.b32.xlu0 %v4736, 9
        %v4787 = vpop.permute.xlu0 %4786
        %4788 = vrot.lane.b32.xlu0 %v4737, 9
        %v4789 = vpop.permute.xlu0 %4788
        %4790 = vrot.lane.b32.xlu0 %v4738, 9
        %v4791 = vpop.permute.xlu0 %4790
        %4792 = vrot.lane.b32.xlu0 %v4739, 9
        %v4793 = vpop.permute.xlu0 %4792
        %4794 = vrot.lane.b32.xlu0 %v4740, 9
        %v4795 = vpop.permute.xlu0 %4794
        %4796 = vrot.lane.b32.xlu0 %v4741, 9
        %v4797 = vpop.permute.xlu0 %4796
        %4798 = vrot.lane.b32.xlu0 %v4742, 9
        %v4799 = vpop.permute.xlu0 %4798
        %4800 = vrot.lane.b32.xlu0 %v4743, 9
        %v4801 = vpop.permute.xlu0 %4800
        %4802 = vrot.lane.b32.xlu0 %v4744, 9
        %v4803 = vpop.permute.xlu0 %4802
        %4804 = vrot.lane.b32.xlu0 %v4745, 9
        %v4805 = vpop.permute.xlu0 %4804
        %4806 = vrot.lane.b32.xlu0 %v4746, 9
        %v4807 = vpop.permute.xlu0 %4806
        %4808 = vrot.lane.b32.xlu0 %v4747, 9
        %v4809 = vpop.permute.xlu0 %4808
        %4810 = vrot.lane.b32.xlu0 %v4748, 9
        %v4811 = vpop.permute.xlu0 %4810
        %4812 = vrot.lane.b32.xlu0 %v4749, 9
        %v4813 = vpop.permute.xlu0 %4812
        %v4830 = vmul.f32 %v4623, %v4783
        %v4831 = vmul.f32 %v4625, %v4785
        %v4832 = vmul.f32 %v4627, %v4787
        %v4833 = vmul.f32 %v4629, %v4789
        %v4834 = vmul.f32 %v4631, %v4791
        %v4835 = vmul.f32 %v4633, %v4793
        %v4836 = vmul.f32 %v4635, %v4795
        %v4837 = vmul.f32 %v4637, %v4797
        %v4838 = vmul.f32 %v4639, %v4799
        %v4839 = vmul.f32 %v4641, %v4801
        %v4840 = vmul.f32 %v4643, %v4803
        %v4841 = vmul.f32 %v4645, %v4805
        %v4842 = vmul.f32 %v4647, %v4807
        %v4843 = vmul.f32 %v4649, %v4809
        %v4844 = vmul.f32 %v4651, %v4811
        %v4845 = vmul.f32 %v4653, %v4813
        %vm4846 = vcmask 72704
        %v4847 = vsel %vm4846, %v4750, %v4830
        %v4848 = vsel %vm4846, %v4751, %v4831
        %v4849 = vsel %vm4846, %v4752, %v4832
        %v4850 = vsel %vm4846, %v4753, %v4833
        %v4851 = vsel %vm4846, %v4754, %v4834
        %v4852 = vsel %vm4846, %v4755, %v4835
        %v4853 = vsel %vm4846, %v4756, %v4836
        %v4854 = vsel %vm4846, %v4757, %v4837
        %v4855 = vsel %vm4846, %v4758, %v4838
        %v4856 = vsel %vm4846, %v4759, %v4839
        %v4857 = vsel %vm4846, %v4760, %v4840
        %v4858 = vsel %vm4846, %v4761, %v4841
        %v4859 = vsel %vm4846, %v4762, %v4842
        %v4860 = vsel %vm4846, %v4763, %v4843
        %v4861 = vsel %vm4846, %v4764, %v4844
        %v4862 = vsel %vm4846, %v4765, %v4845
        %vm4863 = vcmask 146432
        %v4864 = vsel %vm4863, %v4847, %v4352
        %v4865 = vsel %vm4863, %v4848, %v4355
        %v4866 = vsel %vm4863, %v4849, %v4360
        %v4867 = vsel %vm4863, %v4850, %v4363
        %v4868 = vsel %vm4863, %v4851, %v4368
        %v4869 = vsel %vm4863, %v4852, %v4371
        %v4870 = vsel %vm4863, %v4853, %v4376
        %v4871 = vsel %vm4863, %v4854, %v4379
        %v4872 = vsel %vm4863, %v4855, %v4384
        %v4873 = vsel %vm4863, %v4856, %v4387
        %v4874 = vsel %vm4863, %v4857, %v4392
        %v4875 = vsel %vm4863, %v4858, %v4395
        %v4876 = vsel %vm4863, %v4859, %v4400
        %v4877 = vsel %vm4863, %v4860, %v4403
        %v4878 = vsel %vm4863, %v4861, %v4408
        %v4879 = vsel %vm4863, %v4862, %v4411
        %v4880 = vpack.c.bf16 %v4865, %v4864
        %v4881 = vpack.c.bf16 %v4867, %v4866
        %v4882 = vpack.c.bf16 %v4869, %v4868
        %v4883 = vpack.c.bf16 %v4871, %v4870
        %v4884 = vpack.c.bf16 %v4873, %v4872
        %v4885 = vpack.c.bf16 %v4875, %v4874
        %v4886 = vpack.c.bf16 %v4877, %v4876
        %v4887 = vpack.c.bf16 %v4879, %v4878
        %v4896 = vunpack.c.l.b16 %v4880
        %v4897 = vunpack.c.h.b16 %v4880
        %v4898 = vunpack.c.l.b16 %v4881
        %v4899 = vunpack.c.h.b16 %v4881
        %v4900 = vunpack.c.l.b16 %v4882
        %v4901 = vunpack.c.h.b16 %v4882
        %v4902 = vunpack.c.l.b16 %v4883
        %v4903 = vunpack.c.h.b16 %v4883
        %v4904 = vunpack.c.l.b16 %v4884
        %v4905 = vunpack.c.h.b16 %v4884
        %v4906 = vunpack.c.l.b16 %v4885
        %v4907 = vunpack.c.h.b16 %v4885
        %v4908 = vunpack.c.l.b16 %v4886
        %v4909 = vunpack.c.h.b16 %v4886
        %v4910 = vunpack.c.l.b16 %v4887
        %v4911 = vunpack.c.h.b16 %v4887
        %v4912 = vpack.c.b16 %v4896, %v4896
        %v4913 = vpack.c.b16 %v4897, %v4897
        %v4914 = vpack.c.b16 %v4898, %v4898
        %v4915 = vpack.c.b16 %v4899, %v4899
        %v4916 = vpack.c.b16 %v4900, %v4900
        %v4917 = vpack.c.b16 %v4901, %v4901
        %v4918 = vpack.c.b16 %v4902, %v4902
        %v4919 = vpack.c.b16 %v4903, %v4903
        %v4920 = vpack.c.b16 %v4904, %v4904
        %v4921 = vpack.c.b16 %v4905, %v4905
        %v4922 = vpack.c.b16 %v4906, %v4906
        %v4923 = vpack.c.b16 %v4907, %v4907
        %v4924 = vpack.c.b16 %v4908, %v4908
        %v4925 = vpack.c.b16 %v4909, %v4909
        %v4926 = vpack.c.b16 %v4910, %v4910
        %v4927 = vpack.c.b16 %v4911, %v4911
        %vm4944 = vcmask 519168
        %4945 = vst.msk [vmem:[%s286] sm:$0xf] %vm4944, %v4912
        %4946 = vst.msk [vmem:[%s286 + $0x4] sm:$0xf] %vm4944, %v4913
        %4947 = vst.msk [vmem:[%s286 + $0x8] sm:$0xf] %vm4944, %v4914
        %4948 = vst.msk [vmem:[%s286 + $0xc] sm:$0xf] %vm4944, %v4915
        %4949 = vst.msk [vmem:[%s286 + $0x10] sm:$0xf] %vm4944, %v4916
        %4950 = vst.msk [vmem:[%s286 + $0x14] sm:$0xf] %vm4944, %v4917
        %4951 = vst.msk [vmem:[%s286 + $0x18] sm:$0xf] %vm4944, %v4918
        %4952 = vst.msk [vmem:[%s286 + $0x1c] sm:$0xf] %vm4944, %v4919
        %4953 = vst.msk [vmem:[%s286 + $0x20] sm:$0xf] %vm4944, %v4920
        %4954 = vst.msk [vmem:[%s286 + $0x24] sm:$0xf] %vm4944, %v4921
        %4955 = vst.msk [vmem:[%s286 + $0x28] sm:$0xf] %vm4944, %v4922
        %4956 = vst.msk [vmem:[%s286 + $0x2c] sm:$0xf] %vm4944, %v4923
        %4957 = vst.msk [vmem:[%s286 + $0x30] sm:$0xf] %vm4944, %v4924
        %4958 = vst.msk [vmem:[%s286 + $0x34] sm:$0xf] %vm4944, %v4925
        %4959 = vst.msk [vmem:[%s286 + $0x38] sm:$0xf] %vm4944, %v4926
        %4960 = vst.msk [vmem:[%s286 + $0x3c] sm:$0xf] %vm4944, %v4927
        %s4961 = smul.u32 16, %s23
        %p4962 = scmp.lt.s32.totalorder %s22, 1
        %s4963 = scalar_select %p4962, %s22, 1
        %p4964 = scmp.lt.s32.totalorder %s4961, 31
        %s4965 = scalar_select %p4964, %s4961, 31
        %s4966 = smul.addr %s4963, 32
        %s4967 = sadd.s32 %s4965, %s4966
        %s4968 = smul.addr %s4967, 4
        %s4969 = scalar_lea.vmem %s5, %s4968
        // Predicated region
        $region53: #{tpu_custom_call.1} parent=39 // pred_check
          %p4970 = pneg %p160
        $region54: #{tpu_custom_call.1} parent=39 // pred_check_branch
          %4972 = sbr.rel (%p4970) target = $region56
        $region55: #{tpu_custom_call.1} parent=39 // pred_region
          %s4973 = smul.u32 16, %s23
        $region56: #{tpu_custom_call.1} parent=39 // pred_fallthru
          _
      $region40: #{tpu_custom_call.1} parent=5 // pred_fallthru
        _
      %p4974 = scmp.le.s32.totalorder 2, %s13
      // Predicated region
      $region57: #{tpu_custom_call.1} parent=5 // pred_check
        %p4975 = pneg %p4974
      $region58: #{tpu_custom_call.1} parent=5 // pred_check_branch
        %4977 = sbr.rel (%p4975) target = $region60
      $region59: #{tpu_custom_call.1} parent=5 // pred_region
        %s4978 = ssub.s32 %s13, 2
        // Predicated region
        $region61: #{tpu_custom_call.1} parent=59 // pred_check
          %p4979 = pneg %p166
        $region62: #{tpu_custom_call.1} parent=59 // pred_check_branch
          %4981 = sbr.rel (%p4979) target = $region64
        $region63: #{tpu_custom_call.1} parent=59 // pred_region
          %s4982 = smul.u32 16, %s25
          %p4983 = scmp.lt.s32.totalorder %s24, 1
          %s4984 = scalar_select %p4983, %s24, 1
          %p4985 = scmp.lt.s32.totalorder %s4982, 31
          %s4986 = scalar_select %p4985, %s4982, 31
          %s4987 = smul.addr %s4984, 32
          %s4988 = sadd.s32 %s4986, %s4987
          %s4989 = smul.addr %s4988, 4
          %s4990 = scalar_lea.vmem %s5, %s4989
        $region64: #{tpu_custom_call.1} parent=59 // pred_fallthru
          _
      $region60: #{tpu_custom_call.1} parent=5 // pred_fallthru
        _
    $region6: #{tpu_custom_call.1} parent=1 // loop_footer
      %s17 = sadd.s32 1, %s13
    $region7: #{tpu_custom_call.1} parent=1 // loop_footer_branch
      %12 = sbr.rel target = $region3
    $region8: #{tpu_custom_call.1} parent=1 // loop_exit
      _
    %4991 = vsyncpa [#allocation3], 1
    %s4992 = scalar_lea.sflag [#allocation3], 1
    %4993 = vsyncpa %s4992, 1
    %4994 = vsyncpa [#allocation5], 1

</llo_original>
